<compile_context>
chip_gen: v7x
topology: tpu7x:2x2x1
jax: 0.10.0
libtpu: 0.0.40
codegen_flags: <defaults>
</compile_context>

<pallas_src>
import functools

import jax
import jax.numpy as jnp
from jax.experimental import pallas as pl
from jax.experimental.pallas import tpu as pltpu


# ----------------------------------------------------------------------------
# Fused kernel helpers (run inside the Pallas kernel on VMEM-resident values)
# ----------------------------------------------------------------------------
def _conv3x3_bn_relu(x_bhwc, w_flat, shift):
    """3x3 valid conv (BN scale folded into w_flat, bf16 MXU) + shift + ReLU.

    x_bhwc: (B, H, W, Cin) f32 input feature map (value, VMEM resident)
    w_flat: (9*Cin, Cout) bf16 weights, rows ordered ((dy*3 + dx)*Cin + ci)
    shift:  (Cout,) f32 folded BN shift
    returns (B, H-2, W-2, Cout) f32
    """
    B, H, W, Cin = x_bhwc.shape
    Cout = w_flat.shape[-1]
    Ho, Wo = H - 2, W - 2
    xb = x_bhwc.astype(jnp.bfloat16)          # bf16 operand: half lane footprint
    # im2col: only 3 sublane (width) slices; the 9 row slices are free
    # outer-dim slices; batch folds into M -> one K = 9*Cin MXU matmul.
    x_dx = [xb[:, :, dx:dx + Wo, :] for dx in range(3)]
    cols = [x_dx[dx][:, dy:dy + Ho] for dy in range(3) for dx in range(3)]
    patches = jnp.concatenate(cols, axis=-1).reshape(B * Ho * Wo, 9 * Cin)
    y = jnp.dot(patches, w_flat, preferred_element_type=jnp.float32) + shift
    return jnp.maximum(y, 0.0).reshape(B, Ho, Wo, Cout)


def _fused_rpn_kernel(z_ref, x_ref, wz_ref, shz_ref, wx_ref, shx_ref,
                      w1_ref, sh1_ref, w2_ref, b2_ref, out_ref,
                      k_scr, s_scr, acc_scr):
    # Per grid step (B = batch tile):
    #   z_ref:(B,Hz,Wz,Cin)  x_ref:(B,Hx,Wx,Cin)
    #   wz/wx:(9*Cin,C2) bf16    shz/shx/sh1:(1,C2) f32
    #   w1:(C2,C2) bf16   w2:(C2,Cp) bf16   b2:(1,Cp) f32
    #   out_ref:(B,Fh*Fw,Cp) f32         (C2 = 2*hidden, Cp = padded 2A+4A)
    B, Fh, Fw, C2 = acc_scr.shape
    Hk, Wk = k_scr.shape[1], k_scr.shape[2]
    Cp = out_ref.shape[-1]

    # Both branches (cls & loc) are stacked on the channel axis, so template
    # and search features are read and convolved exactly once.  Conv outputs
    # go to VMEM scratch so the xcorr can load per-tap slices (bounded vreg
    # live ranges instead of holding all of s/k live across 36 unrolled taps).
    k_scr[...] = _conv3x3_bn_relu(z_ref[...], wz_ref[...], shz_ref[0])
    s_scr[...] = _conv3x3_bn_relu(x_ref[...], wx_ref[...], shx_ref[0])

    # Depthwise cross-correlation (valid), f32 on the VPU (no bf16 VALU on
    # v5e).  The accumulator stays in vregs per batch element; every tap's
    # search slice is a fresh VMEM load (static offsets -> cheap shifted vld).
    for b in range(B):
        acc = jnp.zeros((Fh, Fw, C2), jnp.float32)
        for u in range(Hk):
            for v in range(Wk):
                acc = acc + s_scr[b, u:u + Fh, v:v + Fw, :] * k_scr[b, u, v, :]
        acc_scr[b] = acc

    # Head: 1x1 conv (+folded BN, ReLU) then 1x1 conv (+bias) as channel
    # matmuls over all B*Fh*Fw pixels; both branches via block weights; the
    # combined [cls|loc] output is zero-padded to Cp lanes and stored as one
    # lane-aligned block (split + transpose are done in the wrapper).
    f = acc_scr[...].astype(jnp.bfloat16).reshape(B * Fh * Fw, C2)
    h = jnp.dot(f, w1_ref[...], preferred_element_type=jnp.float32) + sh1_ref[0]
    h = jnp.maximum(h, 0.0).astype(jnp.bfloat16)
    o = jnp.dot(h, w2_ref[...], preferred_element_type=jnp.float32) + b2_ref[0]
    out_ref[...] = o.reshape(B, Fh * Fw, Cp)


# ----------------------------------------------------------------------------
# Wrapper: one fused pallas_call for the whole DepthwiseRPN forward
# ----------------------------------------------------------------------------
def depthwise_rpn_forward(packed, z_f_nchw, x_f_nchw):
    # NCHW -> NHWC at the boundary (channels onto the lane axis).
    # TODO(synk): if the backbone emits NHWC these boundary transposes vanish.
    z = jnp.transpose(z_f_nchw, (0, 2, 3, 1))
    x = jnp.transpose(x_f_nchw, (0, 2, 3, 1))
    N, Hz, Wz, Cin = z.shape
    _, Hx, Wx, _ = x.shape
    Hk, Wk = Hz - 2, Wz - 2
    Hs, Ws = Hx - 2, Wx - 2
    Fh, Fw = Hs - Hk + 1, Ws - Wk + 1

    n_cls, n_loc = packed["n_cls"], packed["n_loc"]
    K9, C2 = packed["wz"].shape
    Cp = packed["w2"].shape[-1]          # padded [cls|loc] channel count (32)

    # Batch tile: amortize per-grid-step overhead and grow matmul M, but keep
    # the parallel grid axis length >= 2 whenever N >= 2 so both v7x
    # TensorCores are used (grid is a serial loop on v5e/v6e anyway).
    b_tile = N // 2 if (N >= 2 and N % 2 == 0) else 1
    grid = (N // b_tile,)

    def rep(shape):
        return pl.BlockSpec(shape, lambda g, _n=len(shape): (0,) * _n)

    out = pl.pallas_call(
        _fused_rpn_kernel,
        out_shape=jax.ShapeDtypeStruct((N, Fh * Fw, Cp), jnp.float32),
        grid=grid,
        in_specs=[
            pl.BlockSpec((b_tile, Hz, Wz, Cin), lambda g: (g, 0, 0, 0)),
            pl.BlockSpec((b_tile, Hx, Wx, Cin), lambda g: (g, 0, 0, 0)),
            rep((K9, C2)), rep((1, C2)),
            rep((K9, C2)), rep((1, C2)),
            rep((C2, C2)), rep((1, C2)),
            rep((C2, Cp)), rep((1, Cp)),
        ],
        out_specs=pl.BlockSpec((b_tile, Fh * Fw, Cp), lambda g: (g, 0, 0)),
        scratch_shapes=[
            pltpu.VMEM((b_tile, Hk, Wk, C2), jnp.float32),   # template feat k
            pltpu.VMEM((b_tile, Hs, Ws, C2), jnp.float32),   # search feat   s
            pltpu.VMEM((b_tile, Fh, Fw, C2), jnp.float32),   # xcorr output
        ],
        compiler_params=pltpu.CompilerParams(
            dimension_semantics=("parallel",)),
    )(z, x, packed["wz"], packed["shz"], packed["wx"], packed["shx"],
      packed["w1"], packed["sh1"], packed["w2"], packed["b2"])

    # Single fused split + NHWC->NCHW of the combined, channel-padded output.
    out = out.reshape(N, Fh, Fw, Cp)
    out_nchw = jnp.transpose(out, (0, 3, 1, 2))
    cls = out_nchw[:, :n_cls]
    loc = out_nchw[:, n_cls:n_cls + n_loc]
    return cls, loc


# ----------------------------------------------------------------------------
# Parameter construction (deterministic, synthetic) + branch packing
# ----------------------------------------------------------------------------
def _fold_bn(key, c, eps=1e-5):
    k1, k2, k3, k4 = jax.random.split(key, 4)
    gamma = 1.0 + 0.1 * jax.random.normal(k1, (c,), jnp.float32)
    beta = 0.1 * jax.random.normal(k2, (c,), jnp.float32)
    mean = 0.1 * jax.random.normal(k3, (c,), jnp.float32)
    var = 1.0 + jnp.abs(jax.random.normal(k4, (c,), jnp.float32))
    scale = gamma / jnp.sqrt(var + eps)
    shift = beta - mean * scale
    return scale, shift


def init_depthwise_xcorr_params(key, in_channels, hidden, out_channels):
    keys = jax.random.split(key, 8)
    wk = 0.05 * jax.random.normal(keys[0], (3, 3, in_channels, hidden), jnp.float32)
    sck, shk = _fold_bn(keys[1], hidden)
    ws = 0.05 * jax.random.normal(keys[2], (3, 3, in_channels, hidden), jnp.float32)
    scs, shs = _fold_bn(keys[3], hidden)
    w1 = 0.05 * jax.random.normal(keys[4], (hidden, hidden), jnp.float32)
    sc1, sh1 = _fold_bn(keys[5], hidden)
    w2 = 0.05 * jax.random.normal(keys[6], (hidden, out_channels), jnp.float32)
    b2 = 0.1 * jax.random.normal(keys[7], (out_channels,), jnp.float32)
    return {"conv_kernel": (wk, sck, shk),
            "conv_search": (ws, scs, shs),
            "head": (w1, sc1, sh1, w2, b2)}


def pack_rpn_params(cls_p, loc_p):
    """Stack the two DepthwiseXCorr branches on the channel axis, fold the
    inference-mode BatchNorm scales into the conv weights, cast MXU weights to
    bf16 and zero-pad the head output channels to a lane-aligned width."""
    def conv_fold(pc, plc):
        (wc, scc, shc), (wl, scl, shl) = pc, plc
        w = jnp.concatenate([wc * scc.reshape(1, 1, 1, -1),
                             wl * scl.reshape(1, 1, 1, -1)], axis=-1)
        w = w.reshape(-1, w.shape[-1]).astype(jnp.bfloat16)   # (9*Cin, 2H)
        sh = jnp.concatenate([shc, shl]).reshape(1, -1)       # (1, 2H) f32
        return w, sh

    wz, shz = conv_fold(cls_p["conv_kernel"], loc_p["conv_kernel"])
    wx, shx = conv_fold(cls_p["conv_search"], loc_p["conv_search"])

    w1c, sc1c, sh1c, w2c, b2c = cls_p["head"]
    w1l, sc1l, sh1l, w2l, b2l = loc_p["head"]
    H = w1c.shape[0]
    n_cls, n_loc = w2c.shape[1], w2l.shape[1]
    n_tot = n_cls + n_loc
    cp = ((n_tot + 7) // 8) * 8          # pad head output 30 -> 32 lanes

    # block-diagonal 1x1 head conv (hidden->hidden), BN scale folded in
    w1 = jnp.zeros((2 * H, 2 * H), jnp.float32)
    w1 = w1.at[:H, :H].set(w1c * sc1c.reshape(1, -1))
    w1 = w1.at[H:, H:].set(w1l * sc1l.reshape(1, -1))
    sh1 = jnp.concatenate([sh1c, sh1l]).reshape(1, -1)

    # block 1x1 head conv (hidden->out); outputs [cls | loc | zero pad]
    w2 = jnp.zeros((2 * H, cp), jnp.float32)
    w2 = w2.at[:H, :n_cls].set(w2c)
    w2 = w2.at[H:, n_cls:n_tot].set(w2l)
    b2 = jnp.zeros((1, cp), jnp.float32)
    b2 = b2.at[0, :n_tot].set(jnp.concatenate([b2c, b2l]))

    return dict(wz=wz, shz=shz, wx=wx, shx=shx,
                w1=w1.astype(jnp.bfloat16), sh1=sh1,
                w2=w2.astype(jnp.bfloat16), b2=b2,
                n_cls=n_cls, n_loc=n_loc)


# ----------------------------------------------------------------------------
# Pure-JAX reference (unfused, per-branch, f32 HIGHEST) for a numerical check
# ----------------------------------------------------------------------------
def _ref_depthwise_xcorr(params, z, x):
    hp = jax.lax.Precision.HIGHEST

    def conv_bn_relu(inp, w, scale, shift):
        N, H, W, Cin = inp.shape
        Ho, Wo = H - 2, W - 2
        out = jnp.zeros((N, Ho, Wo, w.shape[-1]), jnp.float32)
        for dy in range(3):
            for dx in range(3):
                out = out + jnp.einsum("nhwc,cd->nhwd",
                                       inp[:, dy:dy + Ho, dx:dx + Wo, :],
                                       w[dy, dx], precision=hp)
        return jnp.maximum(out * scale + shift, 0.0)

    k = conv_bn_relu(z, *params["conv_kernel"])
    s = conv_bn_relu(x, *params["conv_search"])
    N, Hk, Wk, C = k.shape
    _, Hs, Ws, _ = s.shape
    Fh, Fw = Hs - Hk + 1, Ws - Wk + 1
    f = jnp.zeros((N, Fh, Fw, C), jnp.float32)
    for u in range(Hk):
        for v in range(Wk):
            f = f + s[:, u:u + Fh, v:v + Fw, :] * k[:, u:u + 1, v:v + 1, :]
    w1, sc1, sh1, w2, b2 = params["head"]
    h = jnp.maximum(jnp.einsum("nhwc,cd->nhwd", f, w1, precision=hp) * sc1 + sh1, 0.0)
    return jnp.einsum("nhwc,cd->nhwd", h, w2, precision=hp) + b2


if __name__ == "__main__":
    # Small shapes consistent with the module (in_channels=hidden, anchor_num=5)
    batch = 2
    in_channels = 32
    hidden = 32          # DepthwiseRPN out_channels (= XCorr hidden)
    anchor_num = 5
    z_hw, x_hw = 8, 16   # template / search spatial sizes

    key = jax.random.PRNGKey(0)
    k_cls, k_loc, k_z, k_x = jax.random.split(key, 4)

    cls_params = init_depthwise_xcorr_params(k_cls, in_channels, hidden, 2 * anchor_num)
    loc_params = init_depthwise_xcorr_params(k_loc, in_channels, hidden, 4 * anchor_num)
    packed = pack_rpn_params(cls_params, loc_params)

    z_f = jax.random.normal(k_z, (batch, in_channels, z_hw, z_hw), jnp.float32)
    x_f = jax.random.normal(k_x, (batch, in_channels, x_hw, x_hw), jnp.float32)

    fwd = jax.jit(functools.partial(depthwise_rpn_forward, packed))
    cls_out, loc_out = fwd(z_f, x_f)
    jax.block_until_ready((cls_out, loc_out))

    # Expected: conv3x3 shrinks 8->6 and 16->14; xcorr: 14-6+1=9
    assert cls_out.shape == (batch, 2 * anchor_num, 9, 9), cls_out.shape
    assert loc_out.shape == (batch, 4 * anchor_num, 9, 9), loc_out.shape
    assert jnp.all(jnp.isfinite(cls_out)) and jnp.all(jnp.isfinite(loc_out))

    # Numerical check against the unfused pure-JAX reference of the module.
    # bf16 MXU operands (f32 accumulation) => loose tolerance vs HIGHEST ref.
    z_nhwc = jnp.transpose(z_f, (0, 2, 3, 1))
    x_nhwc = jnp.transpose(x_f, (0, 2, 3, 1))
    cls_ref = jnp.transpose(_ref_depthwise_xcorr(cls_params, z_nhwc, x_nhwc), (0, 3, 1, 2))
    loc_ref = jnp.transpose(_ref_depthwise_xcorr(loc_params, z_nhwc, x_nhwc), (0, 3, 1, 2))

    def rel_err(a, b):
        return float(jnp.max(jnp.abs(a - b)) / (jnp.max(jnp.abs(b)) + 1e-6))

    assert rel_err(cls_out, cls_ref) < 2e-2, rel_err(cls_out, cls_ref)
    assert rel_err(loc_out, loc_ref) < 2e-2, rel_err(loc_out, loc_ref)

    print("KERNEL_OK")
</pallas_src>

<mosaic_0001>
module attributes {stable_mosaic.version = 11 : i64} {
  func.func @_fused_rpn_kernel(%arg0: i32, %arg1: memref<1x8x8x32xf32, #tpu.memory_space<vmem>>, %arg2: memref<1x16x16x32xf32, #tpu.memory_space<vmem>>, %arg3: memref<288x64xbf16, #tpu.memory_space<vmem>>, %arg4: memref<1x64xf32, #tpu.memory_space<vmem>>, %arg5: memref<288x64xbf16, #tpu.memory_space<vmem>>, %arg6: memref<1x64xf32, #tpu.memory_space<vmem>>, %arg7: memref<64x64xbf16, #tpu.memory_space<vmem>>, %arg8: memref<1x64xf32, #tpu.memory_space<vmem>>, %arg9: memref<64x32xbf16, #tpu.memory_space<vmem>>, %arg10: memref<1x32xf32, #tpu.memory_space<vmem>>, %arg11: memref<1x81x32xf32, #tpu.memory_space<vmem>>, %arg12: memref<1x6x6x64xf32, #tpu.memory_space<vmem>>, %arg13: memref<1x14x14x64xf32, #tpu.memory_space<vmem>>, %arg14: memref<1x9x9x64xf32, #tpu.memory_space<vmem>>) attributes {dimension_semantics = [#tpu.dimension_semantics<parallel>], iteration_bounds = array<i64: 2>, scalar_prefetch = 0 : i64, scratch_operands = 3 : i64, tpu.core_type = #tpu.core_type<tc>, window_params = [{transform_indices = @transform_0, window_bounds = array<i64: 1, 8, 8, 32>}, {transform_indices = @transform_1, window_bounds = array<i64: 1, 16, 16, 32>}, {pipeline_mode = #tpu.pipeline_mode<synchronous>, transform_indices = @transform_2, window_bounds = array<i64: 288, 64>}, {pipeline_mode = #tpu.pipeline_mode<synchronous>, transform_indices = @transform_3, window_bounds = array<i64: 1, 64>}, {pipeline_mode = #tpu.pipeline_mode<synchronous>, transform_indices = @transform_4, window_bounds = array<i64: 288, 64>}, {pipeline_mode = #tpu.pipeline_mode<synchronous>, transform_indices = @transform_5, window_bounds = array<i64: 1, 64>}, {pipeline_mode = #tpu.pipeline_mode<synchronous>, transform_indices = @transform_6, window_bounds = array<i64: 64, 64>}, {pipeline_mode = #tpu.pipeline_mode<synchronous>, transform_indices = @transform_7, window_bounds = array<i64: 1, 64>}, {pipeline_mode = #tpu.pipeline_mode<synchronous>, transform_indices = @transform_8, window_bounds = array<i64: 64, 32>}, {pipeline_mode = #tpu.pipeline_mode<synchronous>, transform_indices = @transform_9, window_bounds = array<i64: 1, 32>}, {transform_indices = @transform_10, window_bounds = array<i64: 1, 81, 32>}]} {
    %c0 = arith.constant 0 : index
    %c0_0 = arith.constant 0 : index
    %c0_1 = arith.constant 0 : index
    %c0_2 = arith.constant 0 : index
    %0 = vector.load %arg1[%c0, %c0_0, %c0_1, %c0_2] : memref<1x8x8x32xf32, #tpu.memory_space<vmem>>, vector<1x8x8x32xf32>
    %c0_3 = arith.constant 0 : index
    %c0_4 = arith.constant 0 : index
    %1 = vector.load %arg3[%c0_3, %c0_4] : memref<288x64xbf16, #tpu.memory_space<vmem>>, vector<288x64xbf16>
    %c0_5 = arith.constant 0 : index
    %c0_6 = arith.constant 0 : index
    %2 = vector.load %arg4[%c0_5, %c0_6] : memref<1x64xf32, #tpu.memory_space<vmem>>, vector<1x64xf32>
    %3 = vector.shape_cast %2 : vector<1x64xf32> to vector<64xf32>
    %4 = arith.truncf %0 : vector<1x8x8x32xf32> to vector<1x8x8x32xbf16>
    %5 = vector.extract_strided_slice %4 {offsets = [0, 0, 0, 0], sizes = [1, 8, 6, 32], strides = [1, 1, 1, 1]} : vector<1x8x8x32xbf16> to vector<1x8x6x32xbf16>
    %6 = vector.extract_strided_slice %4 {offsets = [0, 0, 1, 0], sizes = [1, 8, 6, 32], strides = [1, 1, 1, 1]} : vector<1x8x8x32xbf16> to vector<1x8x6x32xbf16>
    %7 = vector.extract_strided_slice %4 {offsets = [0, 0, 2, 0], sizes = [1, 8, 6, 32], strides = [1, 1, 1, 1]} : vector<1x8x8x32xbf16> to vector<1x8x6x32xbf16>
    %8 = vector.extract_strided_slice %5 {offsets = [0, 0, 0, 0], sizes = [1, 6, 6, 32], strides = [1, 1, 1, 1]} : vector<1x8x6x32xbf16> to vector<1x6x6x32xbf16>
    %9 = vector.extract_strided_slice %6 {offsets = [0, 0, 0, 0], sizes = [1, 6, 6, 32], strides = [1, 1, 1, 1]} : vector<1x8x6x32xbf16> to vector<1x6x6x32xbf16>
    %10 = vector.extract_strided_slice %7 {offsets = [0, 0, 0, 0], sizes = [1, 6, 6, 32], strides = [1, 1, 1, 1]} : vector<1x8x6x32xbf16> to vector<1x6x6x32xbf16>
    %11 = vector.extract_strided_slice %5 {offsets = [0, 1, 0, 0], sizes = [1, 6, 6, 32], strides = [1, 1, 1, 1]} : vector<1x8x6x32xbf16> to vector<1x6x6x32xbf16>
    %12 = vector.extract_strided_slice %6 {offsets = [0, 1, 0, 0], sizes = [1, 6, 6, 32], strides = [1, 1, 1, 1]} : vector<1x8x6x32xbf16> to vector<1x6x6x32xbf16>
    %13 = vector.extract_strided_slice %7 {offsets = [0, 1, 0, 0], sizes = [1, 6, 6, 32], strides = [1, 1, 1, 1]} : vector<1x8x6x32xbf16> to vector<1x6x6x32xbf16>
    %14 = vector.extract_strided_slice %5 {offsets = [0, 2, 0, 0], sizes = [1, 6, 6, 32], strides = [1, 1, 1, 1]} : vector<1x8x6x32xbf16> to vector<1x6x6x32xbf16>
    %15 = vector.extract_strided_slice %6 {offsets = [0, 2, 0, 0], sizes = [1, 6, 6, 32], strides = [1, 1, 1, 1]} : vector<1x8x6x32xbf16> to vector<1x6x6x32xbf16>
    %16 = vector.extract_strided_slice %7 {offsets = [0, 2, 0, 0], sizes = [1, 6, 6, 32], strides = [1, 1, 1, 1]} : vector<1x8x6x32xbf16> to vector<1x6x6x32xbf16>
    %17 = tpu.concatenate %8, %9, %10, %11, %12, %13, %14, %15, %16 in 3 : vector<1x6x6x32xbf16>, vector<1x6x6x32xbf16>, vector<1x6x6x32xbf16>, vector<1x6x6x32xbf16>, vector<1x6x6x32xbf16>, vector<1x6x6x32xbf16>, vector<1x6x6x32xbf16>, vector<1x6x6x32xbf16>, vector<1x6x6x32xbf16> -> vector<1x6x6x288xbf16>
    %18 = vector.shape_cast %17 : vector<1x6x6x288xbf16> to vector<36x288xbf16>
    %cst = arith.constant dense<0.000000e+00> : vector<36x64xf32>
    %19 = tpu.matmul %18, %1, %cst {dimension_numbers = #tpu.dot_dimension_numbers<[1], [0], [0], [1], [0, 0, 1, 1], [], []>} : vector<36x288xbf16>, vector<288x64xbf16>, vector<36x64xf32> -> vector<36x64xf32>
    %20 = vector.shape_cast %3 : vector<64xf32> to vector<1x64xf32>
    %21 = vector.broadcast %20 : vector<1x64xf32> to vector<36x64xf32>
    %22 = arith.addf %19, %21 : vector<36x64xf32>
    %cst_7 = arith.constant 0.000000e+00 : f32
    %23 = vector.broadcast %cst_7 : f32 to vector<36x64xf32>
    %24 = arith.maximumf %22, %23 : vector<36x64xf32>
    %25 = vector.shape_cast %24 : vector<36x64xf32> to vector<1x6x6x64xf32>
    %c0_8 = arith.constant 0 : index
    %c0_9 = arith.constant 0 : index
    %c0_10 = arith.constant 0 : index
    %c0_11 = arith.constant 0 : index
    %26 = vector.load %arg12[%c0_8, %c0_9, %c0_10, %c0_11] : memref<1x6x6x64xf32, #tpu.memory_space<vmem>>, vector<1x6x6x64xf32>
    tpu.vector_store %arg12[%c0_8, %c0_9, %c0_10, %c0_11], %25 {strides = array<i32>} : memref<1x6x6x64xf32, #tpu.memory_space<vmem>>, vector<1x6x6x64xf32>,
    %c0_12 = arith.constant 0 : index
    %c0_13 = arith.constant 0 : index
    %c0_14 = arith.constant 0 : index
    %c0_15 = arith.constant 0 : index
    %27 = vector.load %arg2[%c0_12, %c0_13, %c0_14, %c0_15] : memref<1x16x16x32xf32, #tpu.memory_space<vmem>>, vector<1x16x16x32xf32>
    %c0_16 = arith.constant 0 : index
    %c0_17 = arith.constant 0 : index
    %28 = vector.load %arg5[%c0_16, %c0_17] : memref<288x64xbf16, #tpu.memory_space<vmem>>, vector<288x64xbf16>
    %c0_18 = arith.constant 0 : index
    %c0_19 = arith.constant 0 : index
    %29 = vector.load %arg6[%c0_18, %c0_19] : memref<1x64xf32, #tpu.memory_space<vmem>>, vector<1x64xf32>
    %30 = vector.shape_cast %29 : vector<1x64xf32> to vector<64xf32>
    %31 = arith.truncf %27 : vector<1x16x16x32xf32> to vector<1x16x16x32xbf16>
    %32 = vector.extract_strided_slice %31 {offsets = [0, 0, 0, 0], sizes = [1, 16, 14, 32], strides = [1, 1, 1, 1]} : vector<1x16x16x32xbf16> to vector<1x16x14x32xbf16>
    %33 = vector.extract_strided_slice %31 {offsets = [0, 0, 1, 0], sizes = [1, 16, 14, 32], strides = [1, 1, 1, 1]} : vector<1x16x16x32xbf16> to vector<1x16x14x32xbf16>
    %34 = vector.extract_strided_slice %31 {offsets = [0, 0, 2, 0], sizes = [1, 16, 14, 32], strides = [1, 1, 1, 1]} : vector<1x16x16x32xbf16> to vector<1x16x14x32xbf16>
    %35 = vector.extract_strided_slice %32 {offsets = [0, 0, 0, 0], sizes = [1, 14, 14, 32], strides = [1, 1, 1, 1]} : vector<1x16x14x32xbf16> to vector<1x14x14x32xbf16>
    %36 = vector.extract_strided_slice %33 {offsets = [0, 0, 0, 0], sizes = [1, 14, 14, 32], strides = [1, 1, 1, 1]} : vector<1x16x14x32xbf16> to vector<1x14x14x32xbf16>
    %37 = vector.extract_strided_slice %34 {offsets = [0, 0, 0, 0], sizes = [1, 14, 14, 32], strides = [1, 1, 1, 1]} : vector<1x16x14x32xbf16> to vector<1x14x14x32xbf16>
    %38 = vector.extract_strided_slice %32 {offsets = [0, 1, 0, 0], sizes = [1, 14, 14, 32], strides = [1, 1, 1, 1]} : vector<1x16x14x32xbf16> to vector<1x14x14x32xbf16>
    %39 = vector.extract_strided_slice %33 {offsets = [0, 1, 0, 0], sizes = [1, 14, 14, 32], strides = [1, 1, 1, 1]} : vector<1x16x14x32xbf16> to vector<1x14x14x32xbf16>
    %40 = vector.extract_strided_slice %34 {offsets = [0, 1, 0, 0], sizes = [1, 14, 14, 32], strides = [1, 1, 1, 1]} : vector<1x16x14x32xbf16> to vector<1x14x14x32xbf16>
    %41 = vector.extract_strided_slice %32 {offsets = [0, 2, 0, 0], sizes = [1, 14, 14, 32], strides = [1, 1, 1, 1]} : vector<1x16x14x32xbf16> to vector<1x14x14x32xbf16>
    %42 = vector.extract_strided_slice %33 {offsets = [0, 2, 0, 0], sizes = [1, 14, 14, 32], strides = [1, 1, 1, 1]} : vector<1x16x14x32xbf16> to vector<1x14x14x32xbf16>
    %43 = vector.extract_strided_slice %34 {offsets = [0, 2, 0, 0], sizes = [1, 14, 14, 32], strides = [1, 1, 1, 1]} : vector<1x16x14x32xbf16> to vector<1x14x14x32xbf16>
    %44 = tpu.concatenate %35, %36, %37, %38, %39, %40, %41, %42, %43 in 3 : vector<1x14x14x32xbf16>, vector<1x14x14x32xbf16>, vector<1x14x14x32xbf16>, vector<1x14x14x32xbf16>, vector<1x14x14x32xbf16>, vector<1x14x14x32xbf16>, vector<1x14x14x32xbf16>, vector<1x14x14x32xbf16>, vector<1x14x14x32xbf16> -> vector<1x14x14x288xbf16>
    %45 = vector.shape_cast %44 : vector<1x14x14x288xbf16> to vector<196x288xbf16>
    %cst_20 = arith.constant dense<0.000000e+00> : vector<196x64xf32>
    %46 = tpu.matmul %45, %28, %cst_20 {dimension_numbers = #tpu.dot_dimension_numbers<[1], [0], [0], [1], [0, 0, 1, 1], [], []>} : vector<196x288xbf16>, vector<288x64xbf16>, vector<196x64xf32> -> vector<196x64xf32>
    %47 = vector.shape_cast %30 : vector<64xf32> to vector<1x64xf32>
    %48 = vector.broadcast %47 : vector<1x64xf32> to vector<196x64xf32>
    %49 = arith.addf %46, %48 : vector<196x64xf32>
    %cst_21 = arith.constant 0.000000e+00 : f32
    %50 = vector.broadcast %cst_21 : f32 to vector<196x64xf32>
    %51 = arith.maximumf %49, %50 : vector<196x64xf32>
    %52 = vector.shape_cast %51 : vector<196x64xf32> to vector<1x14x14x64xf32>
    %c0_22 = arith.constant 0 : index
    %c0_23 = arith.constant 0 : index
    %c0_24 = arith.constant 0 : index
    %c0_25 = arith.constant 0 : index
    %53 = vector.load %arg13[%c0_22, %c0_23, %c0_24, %c0_25] : memref<1x14x14x64xf32, #tpu.memory_space<vmem>>, vector<1x14x14x64xf32>
    tpu.vector_store %arg13[%c0_22, %c0_23, %c0_24, %c0_25], %52 {strides = array<i32>} : memref<1x14x14x64xf32, #tpu.memory_space<vmem>>, vector<1x14x14x64xf32>,
    %cst_26 = arith.constant 0.000000e+00 : f32
    %54 = vector.broadcast %cst_26 : f32 to vector<9x9x64xf32>
    %c0_27 = arith.constant 0 : index
    %c0_28 = arith.constant 0 : index
    %c0_29 = arith.constant 0 : index
    %c0_30 = arith.constant 0 : index
    %55 = vector.load %arg13[%c0_27, %c0_28, %c0_29, %c0_30] : memref<1x14x14x64xf32, #tpu.memory_space<vmem>>, vector<1x9x9x64xf32>
    %56 = vector.shape_cast %55 : vector<1x9x9x64xf32> to vector<9x9x64xf32>
    %c0_31 = arith.constant 0 : index
    %c0_32 = arith.constant 0 : index
    %c0_33 = arith.constant 0 : index
    %c0_34 = arith.constant 0 : index
    %57 = vector.load %arg12[%c0_31, %c0_32, %c0_33, %c0_34] : memref<1x6x6x64xf32, #tpu.memory_space<vmem>>, vector<1x1x1x64xf32>
    %58 = vector.shape_cast %57 : vector<1x1x1x64xf32> to vector<64xf32>
    %59 = vector.shape_cast %58 : vector<64xf32> to vector<1x1x64xf32>
    %60 = vector.broadcast %59 : vector<1x1x64xf32> to vector<9x9x64xf32>
    %61 = arith.mulf %56, %60 : vector<9x9x64xf32>
    %62 = arith.addf %54, %61 : vector<9x9x64xf32>
    %c0_35 = arith.constant 0 : index
    %c0_36 = arith.constant 0 : index
    %c1 = arith.constant 1 : index
    %c0_37 = arith.constant 0 : index
    %63 = vector.load %arg13[%c0_35, %c0_36, %c1, %c0_37] : memref<1x14x14x64xf32, #tpu.memory_space<vmem>>, vector<1x9x9x64xf32>
    %64 = vector.shape_cast %63 : vector<1x9x9x64xf32> to vector<9x9x64xf32>
    %c0_38 = arith.constant 0 : index
    %c0_39 = arith.constant 0 : index
    %c1_40 = arith.constant 1 : index
    %c0_41 = arith.constant 0 : index
    %65 = vector.load %arg12[%c0_38, %c0_39, %c1_40, %c0_41] : memref<1x6x6x64xf32, #tpu.memory_space<vmem>>, vector<1x1x1x64xf32>
    %66 = vector.shape_cast %65 : vector<1x1x1x64xf32> to vector<64xf32>
    %67 = vector.shape_cast %66 : vector<64xf32> to vector<1x1x64xf32>
    %68 = vector.broadcast %67 : vector<1x1x64xf32> to vector<9x9x64xf32>
    %69 = arith.mulf %64, %68 : vector<9x9x64xf32>
    %70 = arith.addf %62, %69 : vector<9x9x64xf32>
    %c0_42 = arith.constant 0 : index
    %c0_43 = arith.constant 0 : index
    %c2 = arith.constant 2 : index
    %c0_44 = arith.constant 0 : index
    %71 = vector.load %arg13[%c0_42, %c0_43, %c2, %c0_44] : memref<1x14x14x64xf32, #tpu.memory_space<vmem>>, vector<1x9x9x64xf32>
    %72 = vector.shape_cast %71 : vector<1x9x9x64xf32> to vector<9x9x64xf32>
    %c0_45 = arith.constant 0 : index
    %c0_46 = arith.constant 0 : index
    %c2_47 = arith.constant 2 : index
    %c0_48 = arith.constant 0 : index
    %73 = vector.load %arg12[%c0_45, %c0_46, %c2_47, %c0_48] : memref<1x6x6x64xf32, #tpu.memory_space<vmem>>, vector<1x1x1x64xf32>
    %74 = vector.shape_cast %73 : vector<1x1x1x64xf32> to vector<64xf32>
    %75 = vector.shape_cast %74 : vector<64xf32> to vector<1x1x64xf32>
    %76 = vector.broadcast %75 : vector<1x1x64xf32> to vector<9x9x64xf32>
    %77 = arith.mulf %72, %76 : vector<9x9x64xf32>
    %78 = arith.addf %70, %77 : vector<9x9x64xf32>
    %c0_49 = arith.constant 0 : index
    %c0_50 = arith.constant 0 : index
    %c3 = arith.constant 3 : index
    %c0_51 = arith.constant 0 : index
    %79 = vector.load %arg13[%c0_49, %c0_50, %c3, %c0_51] : memref<1x14x14x64xf32, #tpu.memory_space<vmem>>, vector<1x9x9x64xf32>
    %80 = vector.shape_cast %79 : vector<1x9x9x64xf32> to vector<9x9x64xf32>
    %c0_52 = arith.constant 0 : index
    %c0_53 = arith.constant 0 : index
    %c3_54 = arith.constant 3 : index
    %c0_55 = arith.constant 0 : index
    %81 = vector.load %arg12[%c0_52, %c0_53, %c3_54, %c0_55] : memref<1x6x6x64xf32, #tpu.memory_space<vmem>>, vector<1x1x1x64xf32>
    %82 = vector.shape_cast %81 : vector<1x1x1x64xf32> to vector<64xf32>
    %83 = vector.shape_cast %82 : vector<64xf32> to vector<1x1x64xf32>
    %84 = vector.broadcast %83 : vector<1x1x64xf32> to vector<9x9x64xf32>
    %85 = arith.mulf %80, %84 : vector<9x9x64xf32>
    %86 = arith.addf %78, %85 : vector<9x9x64xf32>
    %c0_56 = arith.constant 0 : index
    %c0_57 = arith.constant 0 : index
    %c4 = arith.constant 4 : index
    %c0_58 = arith.constant 0 : index
    %87 = vector.load %arg13[%c0_56, %c0_57, %c4, %c0_58] : memref<1x14x14x64xf32, #tpu.memory_space<vmem>>, vector<1x9x9x64xf32>
    %88 = vector.shape_cast %87 : vector<1x9x9x64xf32> to vector<9x9x64xf32>
    %c0_59 = arith.constant 0 : index
    %c0_60 = arith.constant 0 : index
    %c4_61 = arith.constant 4 : index
    %c0_62 = arith.constant 0 : index
    %89 = vector.load %arg12[%c0_59, %c0_60, %c4_61, %c0_62] : memref<1x6x6x64xf32, #tpu.memory_space<vmem>>, vector<1x1x1x64xf32>
    %90 = vector.shape_cast %89 : vector<1x1x1x64xf32> to vector<64xf32>
    %91 = vector.shape_cast %90 : vector<64xf32> to vector<1x1x64xf32>
    %92 = vector.broadcast %91 : vector<1x1x64xf32> to vector<9x9x64xf32>
    %93 = arith.mulf %88, %92 : vector<9x9x64xf32>
    %94 = arith.addf %86, %93 : vector<9x9x64xf32>
    %c0_63 = arith.constant 0 : index
    %c0_64 = arith.constant 0 : index
    %c5 = arith.constant 5 : index
    %c0_65 = arith.constant 0 : index
    %95 = vector.load %arg13[%c0_63, %c0_64, %c5, %c0_65] : memref<1x14x14x64xf32, #tpu.memory_space<vmem>>, vector<1x9x9x64xf32>
    %96 = vector.shape_cast %95 : vector<1x9x9x64xf32> to vector<9x9x64xf32>
    %c0_66 = arith.constant 0 : index
    %c0_67 = arith.constant 0 : index
    %c5_68 = arith.constant 5 : index
    %c0_69 = arith.constant 0 : index
    %97 = vector.load %arg12[%c0_66, %c0_67, %c5_68, %c0_69] : memref<1x6x6x64xf32, #tpu.memory_space<vmem>>, vector<1x1x1x64xf32>
    %98 = vector.shape_cast %97 : vector<1x1x1x64xf32> to vector<64xf32>
    %99 = vector.shape_cast %98 : vector<64xf32> to vector<1x1x64xf32>
    %100 = vector.broadcast %99 : vector<1x1x64xf32> to vector<9x9x64xf32>
    %101 = arith.mulf %96, %100 : vector<9x9x64xf32>
    %102 = arith.addf %94, %101 : vector<9x9x64xf32>
    %c0_70 = arith.constant 0 : index
    %c1_71 = arith.constant 1 : index
    %c0_72 = arith.constant 0 : index
    %c0_73 = arith.constant 0 : index
    %103 = vector.load %arg13[%c0_70, %c1_71, %c0_72, %c0_73] : memref<1x14x14x64xf32, #tpu.memory_space<vmem>>, vector<1x9x9x64xf32>
    %104 = vector.shape_cast %103 : vector<1x9x9x64xf32> to vector<9x9x64xf32>
    %c0_74 = arith.constant 0 : index
    %c1_75 = arith.constant 1 : index
    %c0_76 = arith.constant 0 : index
    %c0_77 = arith.constant 0 : index
    %105 = vector.load %arg12[%c0_74, %c1_75, %c0_76, %c0_77] : memref<1x6x6x64xf32, #tpu.memory_space<vmem>>, vector<1x1x1x64xf32>
    %106 = vector.shape_cast %105 : vector<1x1x1x64xf32> to vector<64xf32>
    %107 = vector.shape_cast %106 : vector<64xf32> to vector<1x1x64xf32>
    %108 = vector.broadcast %107 : vector<1x1x64xf32> to vector<9x9x64xf32>
    %109 = arith.mulf %104, %108 : vector<9x9x64xf32>
    %110 = arith.addf %102, %109 : vector<9x9x64xf32>
    %c0_78 = arith.constant 0 : index
    %c1_79 = arith.constant 1 : index
    %c1_80 = arith.constant 1 : index
    %c0_81 = arith.constant 0 : index
    %111 = vector.load %arg13[%c0_78, %c1_79, %c1_80, %c0_81] : memref<1x14x14x64xf32, #tpu.memory_space<vmem>>, vector<1x9x9x64xf32>
    %112 = vector.shape_cast %111 : vector<1x9x9x64xf32> to vector<9x9x64xf32>
    %c0_82 = arith.constant 0 : index
    %c1_83 = arith.constant 1 : index
    %c1_84 = arith.constant 1 : index
    %c0_85 = arith.constant 0 : index
    %113 = vector.load %arg12[%c0_82, %c1_83, %c1_84, %c0_85] : memref<1x6x6x64xf32, #tpu.memory_space<vmem>>, vector<1x1x1x64xf32>
    %114 = vector.shape_cast %113 : vector<1x1x1x64xf32> to vector<64xf32>
    %115 = vector.shape_cast %114 : vector<64xf32> to vector<1x1x64xf32>
    %116 = vector.broadcast %115 : vector<1x1x64xf32> to vector<9x9x64xf32>
    %117 = arith.mulf %112, %116 : vector<9x9x64xf32>
    %118 = arith.addf %110, %117 : vector<9x9x64xf32>
    %c0_86 = arith.constant 0 : index
    %c1_87 = arith.constant 1 : index
    %c2_88 = arith.constant 2 : index
    %c0_89 = arith.constant 0 : index
    %119 = vector.load %arg13[%c0_86, %c1_87, %c2_88, %c0_89] : memref<1x14x14x64xf32, #tpu.memory_space<vmem>>, vector<1x9x9x64xf32>
    %120 = vector.shape_cast %119 : vector<1x9x9x64xf32> to vector<9x9x64xf32>
    %c0_90 = arith.constant 0 : index
    %c1_91 = arith.constant 1 : index
    %c2_92 = arith.constant 2 : index
    %c0_93 = arith.constant 0 : index
    %121 = vector.load %arg12[%c0_90, %c1_91, %c2_92, %c0_93] : memref<1x6x6x64xf32, #tpu.memory_space<vmem>>, vector<1x1x1x64xf32>
    %122 = vector.shape_cast %121 : vector<1x1x1x64xf32> to vector<64xf32>
    %123 = vector.shape_cast %122 : vector<64xf32> to vector<1x1x64xf32>
    %124 = vector.broadcast %123 : vector<1x1x64xf32> to vector<9x9x64xf32>
    %125 = arith.mulf %120, %124 : vector<9x9x64xf32>
    %126 = arith.addf %118, %125 : vector<9x9x64xf32>
    %c0_94 = arith.constant 0 : index
    %c1_95 = arith.constant 1 : index
    %c3_96 = arith.constant 3 : index
    %c0_97 = arith.constant 0 : index
    %127 = vector.load %arg13[%c0_94, %c1_95, %c3_96, %c0_97] : memref<1x14x14x64xf32, #tpu.memory_space<vmem>>, vector<1x9x9x64xf32>
    %128 = vector.shape_cast %127 : vector<1x9x9x64xf32> to vector<9x9x64xf32>
    %c0_98 = arith.constant 0 : index
    %c1_99 = arith.constant 1 : index
    %c3_100 = arith.constant 3 : index
    %c0_101 = arith.constant 0 : index
    %129 = vector.load %arg12[%c0_98, %c1_99, %c3_100, %c0_101] : memref<1x6x6x64xf32, #tpu.memory_space<vmem>>, vector<1x1x1x64xf32>
    %130 = vector.shape_cast %129 : vector<1x1x1x64xf32> to vector<64xf32>
    %131 = vector.shape_cast %130 : vector<64xf32> to vector<1x1x64xf32>
    %132 = vector.broadcast %131 : vector<1x1x64xf32> to vector<9x9x64xf32>
    %133 = arith.mulf %128, %132 : vector<9x9x64xf32>
    %134 = arith.addf %126, %133 : vector<9x9x64xf32>
    %c0_102 = arith.constant 0 : index
    %c1_103 = arith.constant 1 : index
    %c4_104 = arith.constant 4 : index
    %c0_105 = arith.constant 0 : index
    %135 = vector.load %arg13[%c0_102, %c1_103, %c4_104, %c0_105] : memref<1x14x14x64xf32, #tpu.memory_space<vmem>>, vector<1x9x9x64xf32>
    %136 = vector.shape_cast %135 : vector<1x9x9x64xf32> to vector<9x9x64xf32>
    %c0_106 = arith.constant 0 : index
    %c1_107 = arith.constant 1 : index
    %c4_108 = arith.constant 4 : index
    %c0_109 = arith.constant 0 : index
    %137 = vector.load %arg12[%c0_106, %c1_107, %c4_108, %c0_109] : memref<1x6x6x64xf32, #tpu.memory_space<vmem>>, vector<1x1x1x64xf32>
    %138 = vector.shape_cast %137 : vector<1x1x1x64xf32> to vector<64xf32>
    %139 = vector.shape_cast %138 : vector<64xf32> to vector<1x1x64xf32>
    %140 = vector.broadcast %139 : vector<1x1x64xf32> to vector<9x9x64xf32>
    %141 = arith.mulf %136, %140 : vector<9x9x64xf32>
    %142 = arith.addf %134, %141 : vector<9x9x64xf32>
    %c0_110 = arith.constant 0 : index
    %c1_111 = arith.constant 1 : index
    %c5_112 = arith.constant 5 : index
    %c0_113 = arith.constant 0 : index
    %143 = vector.load %arg13[%c0_110, %c1_111, %c5_112, %c0_113] : memref<1x14x14x64xf32, #tpu.memory_space<vmem>>, vector<1x9x9x64xf32>
    %144 = vector.shape_cast %143 : vector<1x9x9x64xf32> to vector<9x9x64xf32>
    %c0_114 = arith.constant 0 : index
    %c1_115 = arith.constant 1 : index
    %c5_116 = arith.constant 5 : index
    %c0_117 = arith.constant 0 : index
    %145 = vector.load %arg12[%c0_114, %c1_115, %c5_116, %c0_117] : memref<1x6x6x64xf32, #tpu.memory_space<vmem>>, vector<1x1x1x64xf32>
    %146 = vector.shape_cast %145 : vector<1x1x1x64xf32> to vector<64xf32>
    %147 = vector.shape_cast %146 : vector<64xf32> to vector<1x1x64xf32>
    %148 = vector.broadcast %147 : vector<1x1x64xf32> to vector<9x9x64xf32>
    %149 = arith.mulf %144, %148 : vector<9x9x64xf32>
    %150 = arith.addf %142, %149 : vector<9x9x64xf32>
    %c0_118 = arith.constant 0 : index
    %c2_119 = arith.constant 2 : index
    %c0_120 = arith.constant 0 : index
    %c0_121 = arith.constant 0 : index
    %151 = vector.load %arg13[%c0_118, %c2_119, %c0_120, %c0_121] : memref<1x14x14x64xf32, #tpu.memory_space<vmem>>, vector<1x9x9x64xf32>
    %152 = vector.shape_cast %151 : vector<1x9x9x64xf32> to vector<9x9x64xf32>
    %c0_122 = arith.constant 0 : index
    %c2_123 = arith.constant 2 : index
    %c0_124 = arith.constant 0 : index
    %c0_125 = arith.constant 0 : index
    %153 = vector.load %arg12[%c0_122, %c2_123, %c0_124, %c0_125] : memref<1x6x6x64xf32, #tpu.memory_space<vmem>>, vector<1x1x1x64xf32>
    %154 = vector.shape_cast %153 : vector<1x1x1x64xf32> to vector<64xf32>
    %155 = vector.shape_cast %154 : vector<64xf32> to vector<1x1x64xf32>
    %156 = vector.broadcast %155 : vector<1x1x64xf32> to vector<9x9x64xf32>
    %157 = arith.mulf %152, %156 : vector<9x9x64xf32>
    %158 = arith.addf %150, %157 : vector<9x9x64xf32>
    %c0_126 = arith.constant 0 : index
    %c2_127 = arith.constant 2 : index
    %c1_128 = arith.constant 1 : index
    %c0_129 = arith.constant 0 : index
    %159 = vector.load %arg13[%c0_126, %c2_127, %c1_128, %c0_129] : memref<1x14x14x64xf32, #tpu.memory_space<vmem>>, vector<1x9x9x64xf32>
    %160 = vector.shape_cast %159 : vector<1x9x9x64xf32> to vector<9x9x64xf32>
    %c0_130 = arith.constant 0 : index
    %c2_131 = arith.constant 2 : index
    %c1_132 = arith.constant 1 : index
    %c0_133 = arith.constant 0 : index
    %161 = vector.load %arg12[%c0_130, %c2_131, %c1_132, %c0_133] : memref<1x6x6x64xf32, #tpu.memory_space<vmem>>, vector<1x1x1x64xf32>
    %162 = vector.shape_cast %161 : vector<1x1x1x64xf32> to vector<64xf32>
    %163 = vector.shape_cast %162 : vector<64xf32> to vector<1x1x64xf32>
    %164 = vector.broadcast %163 : vector<1x1x64xf32> to vector<9x9x64xf32>
    %165 = arith.mulf %160, %164 : vector<9x9x64xf32>
    %166 = arith.addf %158, %165 : vector<9x9x64xf32>
    %c0_134 = arith.constant 0 : index
    %c2_135 = arith.constant 2 : index
    %c2_136 = arith.constant 2 : index
    %c0_137 = arith.constant 0 : index
    %167 = vector.load %arg13[%c0_134, %c2_135, %c2_136, %c0_137] : memref<1x14x14x64xf32, #tpu.memory_space<vmem>>, vector<1x9x9x64xf32>
    %168 = vector.shape_cast %167 : vector<1x9x9x64xf32> to vector<9x9x64xf32>
    %c0_138 = arith.constant 0 : index
    %c2_139 = arith.constant 2 : index
    %c2_140 = arith.constant 2 : index
    %c0_141 = arith.constant 0 : index
    %169 = vector.load %arg12[%c0_138, %c2_139, %c2_140, %c0_141] : memref<1x6x6x64xf32, #tpu.memory_space<vmem>>, vector<1x1x1x64xf32>
    %170 = vector.shape_cast %169 : vector<1x1x1x64xf32> to vector<64xf32>
    %171 = vector.shape_cast %170 : vector<64xf32> to vector<1x1x64xf32>
    %172 = vector.broadcast %171 : vector<1x1x64xf32> to vector<9x9x64xf32>
    %173 = arith.mulf %168, %172 : vector<9x9x64xf32>
    %174 = arith.addf %166, %173 : vector<9x9x64xf32>
    %c0_142 = arith.constant 0 : index
    %c2_143 = arith.constant 2 : index
    %c3_144 = arith.constant 3 : index
    %c0_145 = arith.constant 0 : index
    %175 = vector.load %arg13[%c0_142, %c2_143, %c3_144, %c0_145] : memref<1x14x14x64xf32, #tpu.memory_space<vmem>>, vector<1x9x9x64xf32>
    %176 = vector.shape_cast %175 : vector<1x9x9x64xf32> to vector<9x9x64xf32>
    %c0_146 = arith.constant 0 : index
    %c2_147 = arith.constant 2 : index
    %c3_148 = arith.constant 3 : index
    %c0_149 = arith.constant 0 : index
    %177 = vector.load %arg12[%c0_146, %c2_147, %c3_148, %c0_149] : memref<1x6x6x64xf32, #tpu.memory_space<vmem>>, vector<1x1x1x64xf32>
    %178 = vector.shape_cast %177 : vector<1x1x1x64xf32> to vector<64xf32>
    %179 = vector.shape_cast %178 : vector<64xf32> to vector<1x1x64xf32>
    %180 = vector.broadcast %179 : vector<1x1x64xf32> to vector<9x9x64xf32>
    %181 = arith.mulf %176, %180 : vector<9x9x64xf32>
    %182 = arith.addf %174, %181 : vector<9x9x64xf32>
    %c0_150 = arith.constant 0 : index
    %c2_151 = arith.constant 2 : index
    %c4_152 = arith.constant 4 : index
    %c0_153 = arith.constant 0 : index
    %183 = vector.load %arg13[%c0_150, %c2_151, %c4_152, %c0_153] : memref<1x14x14x64xf32, #tpu.memory_space<vmem>>, vector<1x9x9x64xf32>
    %184 = vector.shape_cast %183 : vector<1x9x9x64xf32> to vector<9x9x64xf32>
    %c0_154 = arith.constant 0 : index
    %c2_155 = arith.constant 2 : index
    %c4_156 = arith.constant 4 : index
    %c0_157 = arith.constant 0 : index
    %185 = vector.load %arg12[%c0_154, %c2_155, %c4_156, %c0_157] : memref<1x6x6x64xf32, #tpu.memory_space<vmem>>, vector<1x1x1x64xf32>
    %186 = vector.shape_cast %185 : vector<1x1x1x64xf32> to vector<64xf32>
    %187 = vector.shape_cast %186 : vector<64xf32> to vector<1x1x64xf32>
    %188 = vector.broadcast %187 : vector<1x1x64xf32> to vector<9x9x64xf32>
    %189 = arith.mulf %184, %188 : vector<9x9x64xf32>
    %190 = arith.addf %182, %189 : vector<9x9x64xf32>
    %c0_158 = arith.constant 0 : index
    %c2_159 = arith.constant 2 : index
    %c5_160 = arith.constant 5 : index
    %c0_161 = arith.constant 0 : index
    %191 = vector.load %arg13[%c0_158, %c2_159, %c5_160, %c0_161] : memref<1x14x14x64xf32, #tpu.memory_space<vmem>>, vector<1x9x9x64xf32>
    %192 = vector.shape_cast %191 : vector<1x9x9x64xf32> to vector<9x9x64xf32>
    %c0_162 = arith.constant 0 : index
    %c2_163 = arith.constant 2 : index
    %c5_164 = arith.constant 5 : index
    %c0_165 = arith.constant 0 : index
    %193 = vector.load %arg12[%c0_162, %c2_163, %c5_164, %c0_165] : memref<1x6x6x64xf32, #tpu.memory_space<vmem>>, vector<1x1x1x64xf32>
    %194 = vector.shape_cast %193 : vector<1x1x1x64xf32> to vector<64xf32>
    %195 = vector.shape_cast %194 : vector<64xf32> to vector<1x1x64xf32>
    %196 = vector.broadcast %195 : vector<1x1x64xf32> to vector<9x9x64xf32>
    %197 = arith.mulf %192, %196 : vector<9x9x64xf32>
    %198 = arith.addf %190, %197 : vector<9x9x64xf32>
    %c0_166 = arith.constant 0 : index
    %c3_167 = arith.constant 3 : index
    %c0_168 = arith.constant 0 : index
    %c0_169 = arith.constant 0 : index
    %199 = vector.load %arg13[%c0_166, %c3_167, %c0_168, %c0_169] : memref<1x14x14x64xf32, #tpu.memory_space<vmem>>, vector<1x9x9x64xf32>
    %200 = vector.shape_cast %199 : vector<1x9x9x64xf32> to vector<9x9x64xf32>
    %c0_170 = arith.constant 0 : index
    %c3_171 = arith.constant 3 : index
    %c0_172 = arith.constant 0 : index
    %c0_173 = arith.constant 0 : index
    %201 = vector.load %arg12[%c0_170, %c3_171, %c0_172, %c0_173] : memref<1x6x6x64xf32, #tpu.memory_space<vmem>>, vector<1x1x1x64xf32>
    %202 = vector.shape_cast %201 : vector<1x1x1x64xf32> to vector<64xf32>
    %203 = vector.shape_cast %202 : vector<64xf32> to vector<1x1x64xf32>
    %204 = vector.broadcast %203 : vector<1x1x64xf32> to vector<9x9x64xf32>
    %205 = arith.mulf %200, %204 : vector<9x9x64xf32>
    %206 = arith.addf %198, %205 : vector<9x9x64xf32>
    %c0_174 = arith.constant 0 : index
    %c3_175 = arith.constant 3 : index
    %c1_176 = arith.constant 1 : index
    %c0_177 = arith.constant 0 : index
    %207 = vector.load %arg13[%c0_174, %c3_175, %c1_176, %c0_177] : memref<1x14x14x64xf32, #tpu.memory_space<vmem>>, vector<1x9x9x64xf32>
    %208 = vector.shape_cast %207 : vector<1x9x9x64xf32> to vector<9x9x64xf32>
    %c0_178 = arith.constant 0 : index
    %c3_179 = arith.constant 3 : index
    %c1_180 = arith.constant 1 : index
    %c0_181 = arith.constant 0 : index
    %209 = vector.load %arg12[%c0_178, %c3_179, %c1_180, %c0_181] : memref<1x6x6x64xf32, #tpu.memory_space<vmem>>, vector<1x1x1x64xf32>
    %210 = vector.shape_cast %209 : vector<1x1x1x64xf32> to vector<64xf32>
    %211 = vector.shape_cast %210 : vector<64xf32> to vector<1x1x64xf32>
    %212 = vector.broadcast %211 : vector<1x1x64xf32> to vector<9x9x64xf32>
    %213 = arith.mulf %208, %212 : vector<9x9x64xf32>
    %214 = arith.addf %206, %213 : vector<9x9x64xf32>
    %c0_182 = arith.constant 0 : index
    %c3_183 = arith.constant 3 : index
    %c2_184 = arith.constant 2 : index
    %c0_185 = arith.constant 0 : index
    %215 = vector.load %arg13[%c0_182, %c3_183, %c2_184, %c0_185] : memref<1x14x14x64xf32, #tpu.memory_space<vmem>>, vector<1x9x9x64xf32>
    %216 = vector.shape_cast %215 : vector<1x9x9x64xf32> to vector<9x9x64xf32>
    %c0_186 = arith.constant 0 : index
    %c3_187 = arith.constant 3 : index
    %c2_188 = arith.constant 2 : index
    %c0_189 = arith.constant 0 : index
    %217 = vector.load %arg12[%c0_186, %c3_187, %c2_188, %c0_189] : memref<1x6x6x64xf32, #tpu.memory_space<vmem>>, vector<1x1x1x64xf32>
    %218 = vector.shape_cast %217 : vector<1x1x1x64xf32> to vector<64xf32>
    %219 = vector.shape_cast %218 : vector<64xf32> to vector<1x1x64xf32>
    %220 = vector.broadcast %219 : vector<1x1x64xf32> to vector<9x9x64xf32>
    %221 = arith.mulf %216, %220 : vector<9x9x64xf32>
    %222 = arith.addf %214, %221 : vector<9x9x64xf32>
    %c0_190 = arith.constant 0 : index
    %c3_191 = arith.constant 3 : index
    %c3_192 = arith.constant 3 : index
    %c0_193 = arith.constant 0 : index
    %223 = vector.load %arg13[%c0_190, %c3_191, %c3_192, %c0_193] : memref<1x14x14x64xf32, #tpu.memory_space<vmem>>, vector<1x9x9x64xf32>
    %224 = vector.shape_cast %223 : vector<1x9x9x64xf32> to vector<9x9x64xf32>
    %c0_194 = arith.constant 0 : index
    %c3_195 = arith.constant 3 : index
    %c3_196 = arith.constant 3 : index
    %c0_197 = arith.constant 0 : index
    %225 = vector.load %arg12[%c0_194, %c3_195, %c3_196, %c0_197] : memref<1x6x6x64xf32, #tpu.memory_space<vmem>>, vector<1x1x1x64xf32>
    %226 = vector.shape_cast %225 : vector<1x1x1x64xf32> to vector<64xf32>
    %227 = vector.shape_cast %226 : vector<64xf32> to vector<1x1x64xf32>
    %228 = vector.broadcast %227 : vector<1x1x64xf32> to vector<9x9x64xf32>
    %229 = arith.mulf %224, %228 : vector<9x9x64xf32>
    %230 = arith.addf %222, %229 : vector<9x9x64xf32>
    %c0_198 = arith.constant 0 : index
    %c3_199 = arith.constant 3 : index
    %c4_200 = arith.constant 4 : index
    %c0_201 = arith.constant 0 : index
    %231 = vector.load %arg13[%c0_198, %c3_199, %c4_200, %c0_201] : memref<1x14x14x64xf32, #tpu.memory_space<vmem>>, vector<1x9x9x64xf32>
    %232 = vector.shape_cast %231 : vector<1x9x9x64xf32> to vector<9x9x64xf32>
    %c0_202 = arith.constant 0 : index
    %c3_203 = arith.constant 3 : index
    %c4_204 = arith.constant 4 : index
    %c0_205 = arith.constant 0 : index
    %233 = vector.load %arg12[%c0_202, %c3_203, %c4_204, %c0_205] : memref<1x6x6x64xf32, #tpu.memory_space<vmem>>, vector<1x1x1x64xf32>
    %234 = vector.shape_cast %233 : vector<1x1x1x64xf32> to vector<64xf32>
    %235 = vector.shape_cast %234 : vector<64xf32> to vector<1x1x64xf32>
    %236 = vector.broadcast %235 : vector<1x1x64xf32> to vector<9x9x64xf32>
    %237 = arith.mulf %232, %236 : vector<9x9x64xf32>
    %238 = arith.addf %230, %237 : vector<9x9x64xf32>
    %c0_206 = arith.constant 0 : index
    %c3_207 = arith.constant 3 : index
    %c5_208 = arith.constant 5 : index
    %c0_209 = arith.constant 0 : index
    %239 = vector.load %arg13[%c0_206, %c3_207, %c5_208, %c0_209] : memref<1x14x14x64xf32, #tpu.memory_space<vmem>>, vector<1x9x9x64xf32>
    %240 = vector.shape_cast %239 : vector<1x9x9x64xf32> to vector<9x9x64xf32>
    %c0_210 = arith.constant 0 : index
    %c3_211 = arith.constant 3 : index
    %c5_212 = arith.constant 5 : index
    %c0_213 = arith.constant 0 : index
    %241 = vector.load %arg12[%c0_210, %c3_211, %c5_212, %c0_213] : memref<1x6x6x64xf32, #tpu.memory_space<vmem>>, vector<1x1x1x64xf32>
    %242 = vector.shape_cast %241 : vector<1x1x1x64xf32> to vector<64xf32>
    %243 = vector.shape_cast %242 : vector<64xf32> to vector<1x1x64xf32>
    %244 = vector.broadcast %243 : vector<1x1x64xf32> to vector<9x9x64xf32>
    %245 = arith.mulf %240, %244 : vector<9x9x64xf32>
    %246 = arith.addf %238, %245 : vector<9x9x64xf32>
    %c0_214 = arith.constant 0 : index
    %c4_215 = arith.constant 4 : index
    %c0_216 = arith.constant 0 : index
    %c0_217 = arith.constant 0 : index
    %247 = vector.load %arg13[%c0_214, %c4_215, %c0_216, %c0_217] : memref<1x14x14x64xf32, #tpu.memory_space<vmem>>, vector<1x9x9x64xf32>
    %248 = vector.shape_cast %247 : vector<1x9x9x64xf32> to vector<9x9x64xf32>
    %c0_218 = arith.constant 0 : index
    %c4_219 = arith.constant 4 : index
    %c0_220 = arith.constant 0 : index
    %c0_221 = arith.constant 0 : index
    %249 = vector.load %arg12[%c0_218, %c4_219, %c0_220, %c0_221] : memref<1x6x6x64xf32, #tpu.memory_space<vmem>>, vector<1x1x1x64xf32>
    %250 = vector.shape_cast %249 : vector<1x1x1x64xf32> to vector<64xf32>
    %251 = vector.shape_cast %250 : vector<64xf32> to vector<1x1x64xf32>
    %252 = vector.broadcast %251 : vector<1x1x64xf32> to vector<9x9x64xf32>
    %253 = arith.mulf %248, %252 : vector<9x9x64xf32>
    %254 = arith.addf %246, %253 : vector<9x9x64xf32>
    %c0_222 = arith.constant 0 : index
    %c4_223 = arith.constant 4 : index
    %c1_224 = arith.constant 1 : index
    %c0_225 = arith.constant 0 : index
    %255 = vector.load %arg13[%c0_222, %c4_223, %c1_224, %c0_225] : memref<1x14x14x64xf32, #tpu.memory_space<vmem>>, vector<1x9x9x64xf32>
    %256 = vector.shape_cast %255 : vector<1x9x9x64xf32> to vector<9x9x64xf32>
    %c0_226 = arith.constant 0 : index
    %c4_227 = arith.constant 4 : index
    %c1_228 = arith.constant 1 : index
    %c0_229 = arith.constant 0 : index
    %257 = vector.load %arg12[%c0_226, %c4_227, %c1_228, %c0_229] : memref<1x6x6x64xf32, #tpu.memory_space<vmem>>, vector<1x1x1x64xf32>
    %258 = vector.shape_cast %257 : vector<1x1x1x64xf32> to vector<64xf32>
    %259 = vector.shape_cast %258 : vector<64xf32> to vector<1x1x64xf32>
    %260 = vector.broadcast %259 : vector<1x1x64xf32> to vector<9x9x64xf32>
    %261 = arith.mulf %256, %260 : vector<9x9x64xf32>
    %262 = arith.addf %254, %261 : vector<9x9x64xf32>
    %c0_230 = arith.constant 0 : index
    %c4_231 = arith.constant 4 : index
    %c2_232 = arith.constant 2 : index
    %c0_233 = arith.constant 0 : index
    %263 = vector.load %arg13[%c0_230, %c4_231, %c2_232, %c0_233] : memref<1x14x14x64xf32, #tpu.memory_space<vmem>>, vector<1x9x9x64xf32>
    %264 = vector.shape_cast %263 : vector<1x9x9x64xf32> to vector<9x9x64xf32>
    %c0_234 = arith.constant 0 : index
    %c4_235 = arith.constant 4 : index
    %c2_236 = arith.constant 2 : index
    %c0_237 = arith.constant 0 : index
    %265 = vector.load %arg12[%c0_234, %c4_235, %c2_236, %c0_237] : memref<1x6x6x64xf32, #tpu.memory_space<vmem>>, vector<1x1x1x64xf32>
    %266 = vector.shape_cast %265 : vector<1x1x1x64xf32> to vector<64xf32>
    %267 = vector.shape_cast %266 : vector<64xf32> to vector<1x1x64xf32>
    %268 = vector.broadcast %267 : vector<1x1x64xf32> to vector<9x9x64xf32>
    %269 = arith.mulf %264, %268 : vector<9x9x64xf32>
    %270 = arith.addf %262, %269 : vector<9x9x64xf32>
    %c0_238 = arith.constant 0 : index
    %c4_239 = arith.constant 4 : index
    %c3_240 = arith.constant 3 : index
    %c0_241 = arith.constant 0 : index
    %271 = vector.load %arg13[%c0_238, %c4_239, %c3_240, %c0_241] : memref<1x14x14x64xf32, #tpu.memory_space<vmem>>, vector<1x9x9x64xf32>
    %272 = vector.shape_cast %271 : vector<1x9x9x64xf32> to vector<9x9x64xf32>
    %c0_242 = arith.constant 0 : index
    %c4_243 = arith.constant 4 : index
    %c3_244 = arith.constant 3 : index
    %c0_245 = arith.constant 0 : index
    %273 = vector.load %arg12[%c0_242, %c4_243, %c3_244, %c0_245] : memref<1x6x6x64xf32, #tpu.memory_space<vmem>>, vector<1x1x1x64xf32>
    %274 = vector.shape_cast %273 : vector<1x1x1x64xf32> to vector<64xf32>
    %275 = vector.shape_cast %274 : vector<64xf32> to vector<1x1x64xf32>
    %276 = vector.broadcast %275 : vector<1x1x64xf32> to vector<9x9x64xf32>
    %277 = arith.mulf %272, %276 : vector<9x9x64xf32>
    %278 = arith.addf %270, %277 : vector<9x9x64xf32>
    %c0_246 = arith.constant 0 : index
    %c4_247 = arith.constant 4 : index
    %c4_248 = arith.constant 4 : index
    %c0_249 = arith.constant 0 : index
    %279 = vector.load %arg13[%c0_246, %c4_247, %c4_248, %c0_249] : memref<1x14x14x64xf32, #tpu.memory_space<vmem>>, vector<1x9x9x64xf32>
    %280 = vector.shape_cast %279 : vector<1x9x9x64xf32> to vector<9x9x64xf32>
    %c0_250 = arith.constant 0 : index
    %c4_251 = arith.constant 4 : index
    %c4_252 = arith.constant 4 : index
    %c0_253 = arith.constant 0 : index
    %281 = vector.load %arg12[%c0_250, %c4_251, %c4_252, %c0_253] : memref<1x6x6x64xf32, #tpu.memory_space<vmem>>, vector<1x1x1x64xf32>
    %282 = vector.shape_cast %281 : vector<1x1x1x64xf32> to vector<64xf32>
    %283 = vector.shape_cast %282 : vector<64xf32> to vector<1x1x64xf32>
    %284 = vector.broadcast %283 : vector<1x1x64xf32> to vector<9x9x64xf32>
    %285 = arith.mulf %280, %284 : vector<9x9x64xf32>
    %286 = arith.addf %278, %285 : vector<9x9x64xf32>
    %c0_254 = arith.constant 0 : index
    %c4_255 = arith.constant 4 : index
    %c5_256 = arith.constant 5 : index
    %c0_257 = arith.constant 0 : index
    %287 = vector.load %arg13[%c0_254, %c4_255, %c5_256, %c0_257] : memref<1x14x14x64xf32, #tpu.memory_space<vmem>>, vector<1x9x9x64xf32>
    %288 = vector.shape_cast %287 : vector<1x9x9x64xf32> to vector<9x9x64xf32>
    %c0_258 = arith.constant 0 : index
    %c4_259 = arith.constant 4 : index
    %c5_260 = arith.constant 5 : index
    %c0_261 = arith.constant 0 : index
    %289 = vector.load %arg12[%c0_258, %c4_259, %c5_260, %c0_261] : memref<1x6x6x64xf32, #tpu.memory_space<vmem>>, vector<1x1x1x64xf32>
    %290 = vector.shape_cast %289 : vector<1x1x1x64xf32> to vector<64xf32>
    %291 = vector.shape_cast %290 : vector<64xf32> to vector<1x1x64xf32>
    %292 = vector.broadcast %291 : vector<1x1x64xf32> to vector<9x9x64xf32>
    %293 = arith.mulf %288, %292 : vector<9x9x64xf32>
    %294 = arith.addf %286, %293 : vector<9x9x64xf32>
    %c0_262 = arith.constant 0 : index
    %c5_263 = arith.constant 5 : index
    %c0_264 = arith.constant 0 : index
    %c0_265 = arith.constant 0 : index
    %295 = vector.load %arg13[%c0_262, %c5_263, %c0_264, %c0_265] : memref<1x14x14x64xf32, #tpu.memory_space<vmem>>, vector<1x9x9x64xf32>
    %296 = vector.shape_cast %295 : vector<1x9x9x64xf32> to vector<9x9x64xf32>
    %c0_266 = arith.constant 0 : index
    %c5_267 = arith.constant 5 : index
    %c0_268 = arith.constant 0 : index
    %c0_269 = arith.constant 0 : index
    %297 = vector.load %arg12[%c0_266, %c5_267, %c0_268, %c0_269] : memref<1x6x6x64xf32, #tpu.memory_space<vmem>>, vector<1x1x1x64xf32>
    %298 = vector.shape_cast %297 : vector<1x1x1x64xf32> to vector<64xf32>
    %299 = vector.shape_cast %298 : vector<64xf32> to vector<1x1x64xf32>
    %300 = vector.broadcast %299 : vector<1x1x64xf32> to vector<9x9x64xf32>
    %301 = arith.mulf %296, %300 : vector<9x9x64xf32>
    %302 = arith.addf %294, %301 : vector<9x9x64xf32>
    %c0_270 = arith.constant 0 : index
    %c5_271 = arith.constant 5 : index
    %c1_272 = arith.constant 1 : index
    %c0_273 = arith.constant 0 : index
    %303 = vector.load %arg13[%c0_270, %c5_271, %c1_272, %c0_273] : memref<1x14x14x64xf32, #tpu.memory_space<vmem>>, vector<1x9x9x64xf32>
    %304 = vector.shape_cast %303 : vector<1x9x9x64xf32> to vector<9x9x64xf32>
    %c0_274 = arith.constant 0 : index
    %c5_275 = arith.constant 5 : index
    %c1_276 = arith.constant 1 : index
    %c0_277 = arith.constant 0 : index
    %305 = vector.load %arg12[%c0_274, %c5_275, %c1_276, %c0_277] : memref<1x6x6x64xf32, #tpu.memory_space<vmem>>, vector<1x1x1x64xf32>
    %306 = vector.shape_cast %305 : vector<1x1x1x64xf32> to vector<64xf32>
    %307 = vector.shape_cast %306 : vector<64xf32> to vector<1x1x64xf32>
    %308 = vector.broadcast %307 : vector<1x1x64xf32> to vector<9x9x64xf32>
    %309 = arith.mulf %304, %308 : vector<9x9x64xf32>
    %310 = arith.addf %302, %309 : vector<9x9x64xf32>
    %c0_278 = arith.constant 0 : index
    %c5_279 = arith.constant 5 : index
    %c2_280 = arith.constant 2 : index
    %c0_281 = arith.constant 0 : index
    %311 = vector.load %arg13[%c0_278, %c5_279, %c2_280, %c0_281] : memref<1x14x14x64xf32, #tpu.memory_space<vmem>>, vector<1x9x9x64xf32>
    %312 = vector.shape_cast %311 : vector<1x9x9x64xf32> to vector<9x9x64xf32>
    %c0_282 = arith.constant 0 : index
    %c5_283 = arith.constant 5 : index
    %c2_284 = arith.constant 2 : index
    %c0_285 = arith.constant 0 : index
    %313 = vector.load %arg12[%c0_282, %c5_283, %c2_284, %c0_285] : memref<1x6x6x64xf32, #tpu.memory_space<vmem>>, vector<1x1x1x64xf32>
    %314 = vector.shape_cast %313 : vector<1x1x1x64xf32> to vector<64xf32>
    %315 = vector.shape_cast %314 : vector<64xf32> to vector<1x1x64xf32>
    %316 = vector.broadcast %315 : vector<1x1x64xf32> to vector<9x9x64xf32>
    %317 = arith.mulf %312, %316 : vector<9x9x64xf32>
    %318 = arith.addf %310, %317 : vector<9x9x64xf32>
    %c0_286 = arith.constant 0 : index
    %c5_287 = arith.constant 5 : index
    %c3_288 = arith.constant 3 : index
    %c0_289 = arith.constant 0 : index
    %319 = vector.load %arg13[%c0_286, %c5_287, %c3_288, %c0_289] : memref<1x14x14x64xf32, #tpu.memory_space<vmem>>, vector<1x9x9x64xf32>
    %320 = vector.shape_cast %319 : vector<1x9x9x64xf32> to vector<9x9x64xf32>
    %c0_290 = arith.constant 0 : index
    %c5_291 = arith.constant 5 : index
    %c3_292 = arith.constant 3 : index
    %c0_293 = arith.constant 0 : index
    %321 = vector.load %arg12[%c0_290, %c5_291, %c3_292, %c0_293] : memref<1x6x6x64xf32, #tpu.memory_space<vmem>>, vector<1x1x1x64xf32>
    %322 = vector.shape_cast %321 : vector<1x1x1x64xf32> to vector<64xf32>
    %323 = vector.shape_cast %322 : vector<64xf32> to vector<1x1x64xf32>
    %324 = vector.broadcast %323 : vector<1x1x64xf32> to vector<9x9x64xf32>
    %325 = arith.mulf %320, %324 : vector<9x9x64xf32>
    %326 = arith.addf %318, %325 : vector<9x9x64xf32>
    %c0_294 = arith.constant 0 : index
    %c5_295 = arith.constant 5 : index
    %c4_296 = arith.constant 4 : index
    %c0_297 = arith.constant 0 : index
    %327 = vector.load %arg13[%c0_294, %c5_295, %c4_296, %c0_297] : memref<1x14x14x64xf32, #tpu.memory_space<vmem>>, vector<1x9x9x64xf32>
    %328 = vector.shape_cast %327 : vector<1x9x9x64xf32> to vector<9x9x64xf32>
    %c0_298 = arith.constant 0 : index
    %c5_299 = arith.constant 5 : index
    %c4_300 = arith.constant 4 : index
    %c0_301 = arith.constant 0 : index
    %329 = vector.load %arg12[%c0_298, %c5_299, %c4_300, %c0_301] : memref<1x6x6x64xf32, #tpu.memory_space<vmem>>, vector<1x1x1x64xf32>
    %330 = vector.shape_cast %329 : vector<1x1x1x64xf32> to vector<64xf32>
    %331 = vector.shape_cast %330 : vector<64xf32> to vector<1x1x64xf32>
    %332 = vector.broadcast %331 : vector<1x1x64xf32> to vector<9x9x64xf32>
    %333 = arith.mulf %328, %332 : vector<9x9x64xf32>
    %334 = arith.addf %326, %333 : vector<9x9x64xf32>
    %c0_302 = arith.constant 0 : index
    %c5_303 = arith.constant 5 : index
    %c5_304 = arith.constant 5 : index
    %c0_305 = arith.constant 0 : index
    %335 = vector.load %arg13[%c0_302, %c5_303, %c5_304, %c0_305] : memref<1x14x14x64xf32, #tpu.memory_space<vmem>>, vector<1x9x9x64xf32>
    %336 = vector.shape_cast %335 : vector<1x9x9x64xf32> to vector<9x9x64xf32>
    %c0_306 = arith.constant 0 : index
    %c5_307 = arith.constant 5 : index
    %c5_308 = arith.constant 5 : index
    %c0_309 = arith.constant 0 : index
    %337 = vector.load %arg12[%c0_306, %c5_307, %c5_308, %c0_309] : memref<1x6x6x64xf32, #tpu.memory_space<vmem>>, vector<1x1x1x64xf32>
    %338 = vector.shape_cast %337 : vector<1x1x1x64xf32> to vector<64xf32>
    %339 = vector.shape_cast %338 : vector<64xf32> to vector<1x1x64xf32>
    %340 = vector.broadcast %339 : vector<1x1x64xf32> to vector<9x9x64xf32>
    %341 = arith.mulf %336, %340 : vector<9x9x64xf32>
    %342 = arith.addf %334, %341 : vector<9x9x64xf32>
    %c0_310 = arith.constant 0 : index
    %c0_311 = arith.constant 0 : index
    %c0_312 = arith.constant 0 : index
    %c0_313 = arith.constant 0 : index
    %343 = vector.load %arg14[%c0_310, %c0_311, %c0_312, %c0_313] : memref<1x9x9x64xf32, #tpu.memory_space<vmem>>, vector<1x9x9x64xf32>
    %344 = vector.shape_cast %343 : vector<1x9x9x64xf32> to vector<9x9x64xf32>
    %345 = vector.shape_cast %342 : vector<9x9x64xf32> to vector<1x9x9x64xf32>
    tpu.vector_store %arg14[%c0_310, %c0_311, %c0_312, %c0_313], %345 {strides = array<i32>} : memref<1x9x9x64xf32, #tpu.memory_space<vmem>>, vector<1x9x9x64xf32>,
    %c0_314 = arith.constant 0 : index
    %c0_315 = arith.constant 0 : index
    %c0_316 = arith.constant 0 : index
    %c0_317 = arith.constant 0 : index
    %346 = vector.load %arg14[%c0_314, %c0_315, %c0_316, %c0_317] : memref<1x9x9x64xf32, #tpu.memory_space<vmem>>, vector<1x9x9x64xf32>
    %347 = arith.truncf %346 : vector<1x9x9x64xf32> to vector<1x9x9x64xbf16>
    %348 = vector.shape_cast %347 : vector<1x9x9x64xbf16> to vector<81x64xbf16>
    %c0_318 = arith.constant 0 : index
    %c0_319 = arith.constant 0 : index
    %349 = vector.load %arg7[%c0_318, %c0_319] : memref<64x64xbf16, #tpu.memory_space<vmem>>, vector<64x64xbf16>
    %cst_320 = arith.constant dense<0.000000e+00> : vector<81x64xf32>
    %350 = tpu.matmul %348, %349, %cst_320 {dimension_numbers = #tpu.dot_dimension_numbers<[1], [0], [0], [1], [0, 0, 1, 1], [], []>} : vector<81x64xbf16>, vector<64x64xbf16>, vector<81x64xf32> -> vector<81x64xf32>
    %c0_321 = arith.constant 0 : index
    %c0_322 = arith.constant 0 : index
    %351 = vector.load %arg8[%c0_321, %c0_322] : memref<1x64xf32, #tpu.memory_space<vmem>>, vector<1x64xf32>
    %352 = vector.shape_cast %351 : vector<1x64xf32> to vector<64xf32>
    %353 = vector.shape_cast %352 : vector<64xf32> to vector<1x64xf32>
    %354 = vector.broadcast %353 : vector<1x64xf32> to vector<81x64xf32>
    %355 = arith.addf %350, %354 : vector<81x64xf32>
    %cst_323 = arith.constant 0.000000e+00 : f32
    %356 = vector.broadcast %cst_323 : f32 to vector<81x64xf32>
    %357 = arith.maximumf %355, %356 : vector<81x64xf32>
    %358 = arith.truncf %357 : vector<81x64xf32> to vector<81x64xbf16>
    %c0_324 = arith.constant 0 : index
    %c0_325 = arith.constant 0 : index
    %359 = vector.load %arg9[%c0_324, %c0_325] : memref<64x32xbf16, #tpu.memory_space<vmem>>, vector<64x32xbf16>
    %cst_326 = arith.constant dense<0.000000e+00> : vector<81x32xf32>
    %360 = tpu.matmul %358, %359, %cst_326 {dimension_numbers = #tpu.dot_dimension_numbers<[1], [0], [0], [1], [0, 0, 1, 1], [], []>} : vector<81x64xbf16>, vector<64x32xbf16>, vector<81x32xf32> -> vector<81x32xf32>
    %c0_327 = arith.constant 0 : index
    %c0_328 = arith.constant 0 : index
    %361 = vector.load %arg10[%c0_327, %c0_328] : memref<1x32xf32, #tpu.memory_space<vmem>>, vector<1x32xf32>
    %362 = vector.shape_cast %361 : vector<1x32xf32> to vector<32xf32>
    %363 = vector.shape_cast %362 : vector<32xf32> to vector<1x32xf32>
    %364 = vector.broadcast %363 : vector<1x32xf32> to vector<81x32xf32>
    %365 = arith.addf %360, %364 : vector<81x32xf32>
    %366 = vector.shape_cast %365 : vector<81x32xf32> to vector<1x81x32xf32>
    %c0_329 = arith.constant 0 : index
    %c0_330 = arith.constant 0 : index
    %c0_331 = arith.constant 0 : index
    %367 = vector.load %arg11[%c0_329, %c0_330, %c0_331] : memref<1x81x32xf32, #tpu.memory_space<vmem>>, vector<1x81x32xf32>
    tpu.vector_store %arg11[%c0_329, %c0_330, %c0_331], %366 {strides = array<i32>} : memref<1x81x32xf32, #tpu.memory_space<vmem>>, vector<1x81x32xf32>,
    return
  }
  func.func @transform_0(%arg0: i32) -> (i32, i32, i32, i32) {
    %c0_i32 = arith.constant 0 : i32
    %c0_i32_0 = arith.constant 0 : i32
    %c0_i32_1 = arith.constant 0 : i32
    %c0_i32_2 = arith.constant 0 : i32
    return %arg0, %c0_i32, %c0_i32_0, %c0_i32_1 : i32, i32, i32, i32
  }
  func.func @transform_1(%arg0: i32) -> (i32, i32, i32, i32) {
    %c0_i32 = arith.constant 0 : i32
    %c0_i32_0 = arith.constant 0 : i32
    %c0_i32_1 = arith.constant 0 : i32
    %c0_i32_2 = arith.constant 0 : i32
    return %arg0, %c0_i32, %c0_i32_0, %c0_i32_1 : i32, i32, i32, i32
  }
  func.func @transform_2(%arg0: i32) -> (i32, i32) {
    %c0_i32 = arith.constant 0 : i32
    %c0_i32_0 = arith.constant 0 : i32
    %c0_i32_1 = arith.constant 0 : i32
    return %c0_i32, %c0_i32_0 : i32, i32
  }
  func.func @transform_3(%arg0: i32) -> (i32, i32) {
    %c0_i32 = arith.constant 0 : i32
    %c0_i32_0 = arith.constant 0 : i32
    %c0_i32_1 = arith.constant 0 : i32
    return %c0_i32, %c0_i32_0 : i32, i32
  }
  func.func @transform_4(%arg0: i32) -> (i32, i32) {
    %c0_i32 = arith.constant 0 : i32
    %c0_i32_0 = arith.constant 0 : i32
    %c0_i32_1 = arith.constant 0 : i32
    return %c0_i32, %c0_i32_0 : i32, i32
  }
  func.func @transform_5(%arg0: i32) -> (i32, i32) {
    %c0_i32 = arith.constant 0 : i32
    %c0_i32_0 = arith.constant 0 : i32
    %c0_i32_1 = arith.constant 0 : i32
    return %c0_i32, %c0_i32_0 : i32, i32
  }
  func.func @transform_6(%arg0: i32) -> (i32, i32) {
    %c0_i32 = arith.constant 0 : i32
    %c0_i32_0 = arith.constant 0 : i32
    %c0_i32_1 = arith.constant 0 : i32
    return %c0_i32, %c0_i32_0 : i32, i32
  }
  func.func @transform_7(%arg0: i32) -> (i32, i32) {
    %c0_i32 = arith.constant 0 : i32
    %c0_i32_0 = arith.constant 0 : i32
    %c0_i32_1 = arith.constant 0 : i32
    return %c0_i32, %c0_i32_0 : i32, i32
  }
  func.func @transform_8(%arg0: i32) -> (i32, i32) {
    %c0_i32 = arith.constant 0 : i32
    %c0_i32_0 = arith.constant 0 : i32
    %c0_i32_1 = arith.constant 0 : i32
    return %c0_i32, %c0_i32_0 : i32, i32
  }
  func.func @transform_9(%arg0: i32) -> (i32, i32) {
    %c0_i32 = arith.constant 0 : i32
    %c0_i32_0 = arith.constant 0 : i32
    %c0_i32_1 = arith.constant 0 : i32
    return %c0_i32, %c0_i32_0 : i32, i32
  }
  func.func @transform_10(%arg0: i32) -> (i32, i32, i32) {
    %c0_i32 = arith.constant 0 : i32
    %c0_i32_0 = arith.constant 0 : i32
    %c0_i32_1 = arith.constant 0 : i32
    return %arg0, %c0_i32, %c0_i32_0 : i32, i32, i32
  }
}

</mosaic_0001>

<llo_original>
// kernel: depthwise_rpn_forward.1
$region0: #{depthwise_rpn_forward.1}
  #allocation0 [shape = 'u32[]', space=smem, size = 0x4, offset = 0x4, fixed_abs, tag = 'smem constant byte address 0x4 - core index']
  #allocation1 [shape = 'u32[144,128]{1,0:T(1,128)}', space=vmem, size = 0x12000, scoped, tag = 'internal scratch']
  #allocation2 [shape = 'f32[1,6,6,64]{3,2,1,0:T(8,128)}', space=vmem, size = 0x6000, scoped, tag = 'scratch operand']
  #allocation3 [shape = 'f32[1,14,14,64]{3,2,1,0:T(8,128)}', space=vmem, size = 0x1c000, scoped, tag = 'scratch operand']
  #allocation4 [shape = 'f32[1,9,9,64]{3,2,1,0:T(8,128)}', space=vmem, size = 0x12000, scoped, tag = 'scratch operand']
  %s0 = inlined_call_operand.hbm [shape: f32[2,8,8,32], index: 0, kind: input, shape index: {}]
  %s1 = inlined_call_operand.hbm [shape: f32[2,16,16,32], index: 1, kind: input, shape index: {}]
  %s2 = inlined_call_operand.hbm [shape: bf16[288,64], index: 2, kind: input, shape index: {}]
  %s3 = inlined_call_operand.vmem [shape: f32[1,64], index: 3, kind: input, shape index: {}]
  %s4 = inlined_call_operand.hbm [shape: bf16[288,64], index: 4, kind: input, shape index: {}]
  %s5 = inlined_call_operand.vmem [shape: f32[1,64], index: 5, kind: input, shape index: {}]
  %s6 = inlined_call_operand.hbm [shape: bf16[64,64], index: 6, kind: input, shape index: {}]
  %s7 = inlined_call_operand.vmem [shape: f32[1,64], index: 7, kind: input, shape index: {}]
  %s8 = inlined_call_operand.vmem [shape: bf16[64,32], index: 8, kind: input, shape index: {}]
  %s9 = inlined_call_operand.vmem [shape: f32[1,32], index: 9, kind: input, shape index: {}]
  %s10 = inlined_call_operand.vmem [shape: f32[2,81,32], index: 10, kind: output, shape index: {}]
  %s11 = sld [smem:[#allocation0]]
  $region93: #{depthwise_rpn_forward.1} parent=0
    _
  %s13 = ssub.s32 1, %s11
  %s14 = scalar_select 0, %s13, %s11
  $region1: #{depthwise_rpn_forward.1} parent=0
    #allocation5 [shape = 'u8[65536]{0}', space=vmem, size = 0x10000, scoped, tag = 'input window, operand 0']
    #allocation6 [shape = 's32[2]{0}', space=sflag, size = 0x8, scoped, tag = 'scoped memory for depthwise_rpn_forward.1']
    #allocation7 [shape = 'u8[262144]{0}', space=vmem, size = 0x40000, scoped, tag = 'input window, operand 1']
    #allocation8 [shape = 's32[2]{0}', space=sflag, size = 0x8, scoped, tag = 'scoped memory for depthwise_rpn_forward.1']
    #allocation9 [shape = 'u8[73728]{0}', space=vmem, size = 0x12000, scoped, tag = 'input window, operand 2, single buffered']
    #allocation10 [shape = 'u8[73728]{0}', space=vmem, size = 0x12000, scoped, tag = 'input window, operand 4, single buffered']
    #allocation11 [shape = 's32[1]{0}', space=sflag, size = 0x4, scoped, tag = 'scoped memory for depthwise_rpn_forward.1']
    #allocation12 [shape = 'u8[16384]{0}', space=vmem, size = 0x4000, scoped, tag = 'input window, operand 6, single buffered']
    %15 = vsyncpa [#allocation6], 0
    %s16 = scalar_lea.sflag [#allocation6], 1
    %17 = vsyncpa %s16, 0
    %18 = vsyncpa [#allocation8], 0
    %s19 = scalar_lea.sflag [#allocation8], 1
    %20 = vsyncpa %s19, 0
    %21 = vsyncpa [#allocation11], 0
    loop: start=0, step=1, limit=4
    $region2: #{depthwise_rpn_forward.1} parent=1 // loop_pre_header
      _
    $region3: #{depthwise_rpn_forward.1} parent=1 // loop_header
      %s23 = sphi 0, %s27
      %p24 = scmp.ge.s32.totalorder %s23, 4
      %s33 = sphi 0, %s35
      %s36 = sphi 0, %s33
      %s37 = sphi 0, %s36
      %s53 = sphi 0, %s37
      %s59 = sphi 0, %s61
      %s62 = sphi 0, %s59
      %s63 = sphi 0, %s62
      %s79 = sphi 0, %s63
      %s83 = sphi 0, %s83
      %s85 = sphi 0, %s83
      %s86 = sphi 0, %s85
      %s100 = sphi 0, %s86
      %s104 = sphi 0, %s104
      %s106 = sphi 0, %s104
      %s107 = sphi 0, %s106
      %s121 = sphi 0, %s107
      %s125 = sphi 0, %s125
      %s127 = sphi 0, %s125
      %s128 = sphi 0, %s127
      %s142 = sphi 0, %s128
      %s146 = sphi 0, %s146
      %s148 = sphi 0, %s146
      %s149 = sphi 0, %s148
      %s163 = sphi 0, %s149
      %s167 = sphi 0, %s167
      %s169 = sphi 0, %s167
      %s170 = sphi 0, %s169
      %s184 = sphi 0, %s170
      %s188 = sphi 0, %s188
      %s190 = sphi 0, %s188
      %s191 = sphi 0, %s190
      %s205 = sphi 0, %s191
      %s209 = sphi 0, %s209
      %s211 = sphi 0, %s209
      %s212 = sphi 0, %s211
      %s226 = sphi 0, %s212
      %s230 = sphi 0, %s230
      %s232 = sphi 0, %s230
      %s233 = sphi 0, %s232
      %s247 = sphi 0, %s233
      %s253 = sphi 0, %s255
      %s256 = sphi 0, %s253
      %s257 = sphi 0, %s256
      %s273 = sphi 0, %s257
    $region4: #{depthwise_rpn_forward.1} parent=1 // loop_header_branch
      %26 = sbr.rel (%p24) target = $region8
    $region5: #{depthwise_rpn_forward.1} parent=1 // loop_body
      %s28 = ssub.s32 %s23, 1
      %s29 = ssub.s32 %s23, 2
      %s30 = sadd.s32 %s23, 1
      %s31 = ssub.s32 %s23, %s30
      %p32 = scmp.eq.s32.totalorder %s31, 0
      %s34 = sadd.s32 %s33, 1
      %s35 = scalar_select %p32, %s33, %s34
      %p38 = pneg %p32
      %p39 = scmp.eq.s32.totalorder %s23, 1
      %p40 = por %p38, %p39
      %p41 = scmp.ne.s32.totalorder %s33, %s36
      %p42 = scmp.eq.s32.totalorder %s23, 0
      %p43 = por %p41, %p42
      %p44 = scmp.ne.s32.totalorder %s33, %s36
      %p45 = scmp.eq.s32.totalorder %s28, 1
      %p46 = por %p44, %p45
      %p47 = scmp.ne.s32.totalorder %s36, %s37
      %p48 = scmp.eq.s32.totalorder %s28, 0
      %p49 = por %p47, %p48
      %p50 = scmp.ne.s32.totalorder %s36, %s37
      %p51 = scmp.eq.s32.totalorder %s29, 1
      %p52 = por %p50, %p51
      %p54 = scmp.ne.s32.totalorder %s37, %s53
      %p55 = scmp.eq.s32.totalorder %s29, 0
      %p56 = por %p54, %p55
      %s57 = ssub.s32 %s23, %s30
      %p58 = scmp.eq.s32.totalorder %s57, 0
      %s60 = sadd.s32 %s59, 1
      %s61 = scalar_select %p58, %s59, %s60
      %p64 = pneg %p58
      %p65 = scmp.eq.s32.totalorder %s23, 1
      %p66 = por %p64, %p65
      %p67 = scmp.ne.s32.totalorder %s59, %s62
      %p68 = scmp.eq.s32.totalorder %s23, 0
      %p69 = por %p67, %p68
      %p70 = scmp.ne.s32.totalorder %s59, %s62
      %p71 = scmp.eq.s32.totalorder %s28, 1
      %p72 = por %p70, %p71
      %p73 = scmp.ne.s32.totalorder %s62, %s63
      %p74 = scmp.eq.s32.totalorder %s28, 0
      %p75 = por %p73, %p74
      %p76 = scmp.ne.s32.totalorder %s62, %s63
      %p77 = scmp.eq.s32.totalorder %s29, 1
      %p78 = por %p76, %p77
      %p80 = scmp.ne.s32.totalorder %s63, %s79
      %p81 = scmp.eq.s32.totalorder %s29, 0
      %p82 = por %p80, %p81
      %s84 = sadd.s32 %s83, 1
      %p87 = scmp.eq.s32.totalorder %s23, 1
      %p88 = scmp.ne.s32.totalorder %s83, %s85
      %p89 = scmp.eq.s32.totalorder %s23, 0
      %p90 = por %p88, %p89
      %p91 = scmp.ne.s32.totalorder %s83, %s85
      %p92 = scmp.eq.s32.totalorder %s28, 1
      %p93 = por %p91, %p92
      %p94 = scmp.ne.s32.totalorder %s85, %s86
      %p95 = scmp.eq.s32.totalorder %s28, 0
      %p96 = por %p94, %p95
      %p97 = scmp.ne.s32.totalorder %s85, %s86
      %p98 = scmp.eq.s32.totalorder %s29, 1
      %p99 = por %p97, %p98
      %p101 = scmp.ne.s32.totalorder %s86, %s100
      %p102 = scmp.eq.s32.totalorder %s29, 0
      %p103 = por %p101, %p102
      %s105 = sadd.s32 %s104, 1
      %p108 = scmp.eq.s32.totalorder %s23, 1
      %p109 = scmp.ne.s32.totalorder %s104, %s106
      %p110 = scmp.eq.s32.totalorder %s23, 0
      %p111 = por %p109, %p110
      %p112 = scmp.ne.s32.totalorder %s104, %s106
      %p113 = scmp.eq.s32.totalorder %s28, 1
      %p114 = por %p112, %p113
      %p115 = scmp.ne.s32.totalorder %s106, %s107
      %p116 = scmp.eq.s32.totalorder %s28, 0
      %p117 = por %p115, %p116
      %p118 = scmp.ne.s32.totalorder %s106, %s107
      %p119 = scmp.eq.s32.totalorder %s29, 1
      %p120 = por %p118, %p119
      %p122 = scmp.ne.s32.totalorder %s107, %s121
      %p123 = scmp.eq.s32.totalorder %s29, 0
      %p124 = por %p122, %p123
      %s126 = sadd.s32 %s125, 1
      %p129 = scmp.eq.s32.totalorder %s23, 1
      %p130 = scmp.ne.s32.totalorder %s125, %s127
      %p131 = scmp.eq.s32.totalorder %s23, 0
      %p132 = por %p130, %p131
      %p133 = scmp.ne.s32.totalorder %s125, %s127
      %p134 = scmp.eq.s32.totalorder %s28, 1
      %p135 = por %p133, %p134
      %p136 = scmp.ne.s32.totalorder %s127, %s128
      %p137 = scmp.eq.s32.totalorder %s28, 0
      %p138 = por %p136, %p137
      %p139 = scmp.ne.s32.totalorder %s127, %s128
      %p140 = scmp.eq.s32.totalorder %s29, 1
      %p141 = por %p139, %p140
      %p143 = scmp.ne.s32.totalorder %s128, %s142
      %p144 = scmp.eq.s32.totalorder %s29, 0
      %p145 = por %p143, %p144
      %s147 = sadd.s32 %s146, 1
      %p150 = scmp.eq.s32.totalorder %s23, 1
      %p151 = scmp.ne.s32.totalorder %s146, %s148
      %p152 = scmp.eq.s32.totalorder %s23, 0
      %p153 = por %p151, %p152
      %p154 = scmp.ne.s32.totalorder %s146, %s148
      %p155 = scmp.eq.s32.totalorder %s28, 1
      %p156 = por %p154, %p155
      %p157 = scmp.ne.s32.totalorder %s148, %s149
      %p158 = scmp.eq.s32.totalorder %s28, 0
      %p159 = por %p157, %p158
      %p160 = scmp.ne.s32.totalorder %s148, %s149
      %p161 = scmp.eq.s32.totalorder %s29, 1
      %p162 = por %p160, %p161
      %p164 = scmp.ne.s32.totalorder %s149, %s163
      %p165 = scmp.eq.s32.totalorder %s29, 0
      %p166 = por %p164, %p165
      %s168 = sadd.s32 %s167, 1
      %p171 = scmp.eq.s32.totalorder %s23, 1
      %p172 = scmp.ne.s32.totalorder %s167, %s169
      %p173 = scmp.eq.s32.totalorder %s23, 0
      %p174 = por %p172, %p173
      %p175 = scmp.ne.s32.totalorder %s167, %s169
      %p176 = scmp.eq.s32.totalorder %s28, 1
      %p177 = por %p175, %p176
      %p178 = scmp.ne.s32.totalorder %s169, %s170
      %p179 = scmp.eq.s32.totalorder %s28, 0
      %p180 = por %p178, %p179
      %p181 = scmp.ne.s32.totalorder %s169, %s170
      %p182 = scmp.eq.s32.totalorder %s29, 1
      %p183 = por %p181, %p182
      %p185 = scmp.ne.s32.totalorder %s170, %s184
      %p186 = scmp.eq.s32.totalorder %s29, 0
      %p187 = por %p185, %p186
      %s189 = sadd.s32 %s188, 1
      %p192 = scmp.eq.s32.totalorder %s23, 1
      %p193 = scmp.ne.s32.totalorder %s188, %s190
      %p194 = scmp.eq.s32.totalorder %s23, 0
      %p195 = por %p193, %p194
      %p196 = scmp.ne.s32.totalorder %s188, %s190
      %p197 = scmp.eq.s32.totalorder %s28, 1
      %p198 = por %p196, %p197
      %p199 = scmp.ne.s32.totalorder %s190, %s191
      %p200 = scmp.eq.s32.totalorder %s28, 0
      %p201 = por %p199, %p200
      %p202 = scmp.ne.s32.totalorder %s190, %s191
      %p203 = scmp.eq.s32.totalorder %s29, 1
      %p204 = por %p202, %p203
      %p206 = scmp.ne.s32.totalorder %s191, %s205
      %p207 = scmp.eq.s32.totalorder %s29, 0
      %p208 = por %p206, %p207
      %s210 = sadd.s32 %s209, 1
      %p213 = scmp.eq.s32.totalorder %s23, 1
      %p214 = scmp.ne.s32.totalorder %s209, %s211
      %p215 = scmp.eq.s32.totalorder %s23, 0
      %p216 = por %p214, %p215
      %p217 = scmp.ne.s32.totalorder %s209, %s211
      %p218 = scmp.eq.s32.totalorder %s28, 1
      %p219 = por %p217, %p218
      %p220 = scmp.ne.s32.totalorder %s211, %s212
      %p221 = scmp.eq.s32.totalorder %s28, 0
      %p222 = por %p220, %p221
      %p223 = scmp.ne.s32.totalorder %s211, %s212
      %p224 = scmp.eq.s32.totalorder %s29, 1
      %p225 = por %p223, %p224
      %p227 = scmp.ne.s32.totalorder %s212, %s226
      %p228 = scmp.eq.s32.totalorder %s29, 0
      %p229 = por %p227, %p228
      %s231 = sadd.s32 %s230, 1
      %p234 = scmp.eq.s32.totalorder %s23, 1
      %p235 = scmp.ne.s32.totalorder %s230, %s232
      %p236 = scmp.eq.s32.totalorder %s23, 0
      %p237 = por %p235, %p236
      %p238 = scmp.ne.s32.totalorder %s230, %s232
      %p239 = scmp.eq.s32.totalorder %s28, 1
      %p240 = por %p238, %p239
      %p241 = scmp.ne.s32.totalorder %s232, %s233
      %p242 = scmp.eq.s32.totalorder %s28, 0
      %p243 = por %p241, %p242
      %p244 = scmp.ne.s32.totalorder %s232, %s233
      %p245 = scmp.eq.s32.totalorder %s29, 1
      %p246 = por %p244, %p245
      %p248 = scmp.ne.s32.totalorder %s233, %s247
      %p249 = scmp.eq.s32.totalorder %s29, 0
      %p250 = por %p248, %p249
      %s251 = ssub.s32 %s23, %s30
      %p252 = scmp.eq.s32.totalorder %s251, 0
      %s254 = sadd.s32 %s253, 1
      %s255 = scalar_select %p252, %s253, %s254
      %p258 = pneg %p252
      %p259 = scmp.eq.s32.totalorder %s23, 1
      %p260 = por %p258, %p259
      %p261 = scmp.ne.s32.totalorder %s253, %s256
      %p262 = scmp.eq.s32.totalorder %s23, 0
      %p263 = por %p261, %p262
      %p264 = scmp.ne.s32.totalorder %s253, %s256
      %p265 = scmp.eq.s32.totalorder %s28, 1
      %p266 = por %p264, %p265
      %p267 = scmp.ne.s32.totalorder %s256, %s257
      %p268 = scmp.eq.s32.totalorder %s28, 0
      %p269 = por %p267, %p268
      %p270 = scmp.ne.s32.totalorder %s256, %s257
      %p271 = scmp.eq.s32.totalorder %s29, 1
      %p272 = por %p270, %p271
      %p274 = scmp.ne.s32.totalorder %s257, %s273
      %p275 = scmp.eq.s32.totalorder %s29, 0
      %p276 = por %p274, %p275
      %p277 = scmp.le.s32.totalorder 1, %s23
      %p278 = scmp.lt.s32.totalorder %s23, 3
      %p279 = pnand %p277, %p278
      %p280 = pneg %p279
      // Predicated region
      $region9: #{depthwise_rpn_forward.1} parent=5 // pred_check
        _
      $region10: #{depthwise_rpn_forward.1} parent=5 // pred_check_branch
        %282 = sbr.rel (%p279) target = $region12
      $region11: #{depthwise_rpn_forward.1} parent=5 // pred_region
        %s283 = ssub.s32 %s23, 1
        // Predicated region
        $region13: #{depthwise_rpn_forward.1} parent=11 // pred_check
          %p284 = pneg %p96
        $region14: #{depthwise_rpn_forward.1} parent=11 // pred_check_branch
          %286 = sbr.rel (%p284) target = $region16
        $region15: #{depthwise_rpn_forward.1} parent=11 // pred_region
          %s288 = ssub.s32 2304, 2304
          %289 = vsyncadd [#allocation8], %s288
          %s290 = sshll.u32 [#allocation9], 4
          %s291 = int_to_ptr.vmem [resolvable:$true] %s290
          %296 = dma.hbm_to_vmem [thread:$0]  %s2, 2304, %s291, [#allocation8], 64, 64, 4
        $region16: #{depthwise_rpn_forward.1} parent=11 // pred_fallthru
          _
        // Predicated region
        $region17: #{depthwise_rpn_forward.1} parent=11 // pred_check
          %p297 = pneg %p117
        $region18: #{depthwise_rpn_forward.1} parent=11 // pred_check_branch
          %299 = sbr.rel (%p297) target = $region20
        $region19: #{depthwise_rpn_forward.1} parent=11 // pred_region
          _
        $region20: #{depthwise_rpn_forward.1} parent=11 // pred_fallthru
          _
        // Predicated region
        $region21: #{depthwise_rpn_forward.1} parent=11 // pred_check
          %p300 = pneg %p138
        $region22: #{depthwise_rpn_forward.1} parent=11 // pred_check_branch
          %302 = sbr.rel (%p300) target = $region24
        $region23: #{depthwise_rpn_forward.1} parent=11 // pred_region
          %s304 = ssub.s32 2304, 2304
          %305 = vsyncadd [#allocation11], %s304
          %s306 = sshll.u32 [#allocation10], 4
          %s307 = int_to_ptr.vmem [resolvable:$true] %s306
          %312 = dma.hbm_to_vmem [thread:$0]  %s4, 2304, %s307, [#allocation11], 64, 64, 4
        $region24: #{depthwise_rpn_forward.1} parent=11 // pred_fallthru
          _
        // Predicated region
        $region25: #{depthwise_rpn_forward.1} parent=11 // pred_check
          %p313 = pneg %p159
        $region26: #{depthwise_rpn_forward.1} parent=11 // pred_check_branch
          %315 = sbr.rel (%p313) target = $region28
        $region27: #{depthwise_rpn_forward.1} parent=11 // pred_region
          _
        $region28: #{depthwise_rpn_forward.1} parent=11 // pred_fallthru
          _
        // Predicated region
        $region29: #{depthwise_rpn_forward.1} parent=11 // pred_check
          %p316 = pneg %p180
        $region30: #{depthwise_rpn_forward.1} parent=11 // pred_check_branch
          %318 = sbr.rel (%p316) target = $region32
        $region31: #{depthwise_rpn_forward.1} parent=11 // pred_region
          %s320 = ssub.s32 512, 512
          %321 = vsyncadd [#allocation11], %s320
          %s322 = sshll.u32 [#allocation12], 4
          %s323 = int_to_ptr.vmem [resolvable:$true] %s322
          %328 = dma.hbm_to_vmem [thread:$0]  %s6, 512, %s323, [#allocation11], 64, 64, 4
        $region32: #{depthwise_rpn_forward.1} parent=11 // pred_fallthru
          _
        // Predicated region
        $region33: #{depthwise_rpn_forward.1} parent=11 // pred_check
          %p329 = pneg %p201
        $region34: #{depthwise_rpn_forward.1} parent=11 // pred_check_branch
          %331 = sbr.rel (%p329) target = $region36
        $region35: #{depthwise_rpn_forward.1} parent=11 // pred_region
          _
        $region36: #{depthwise_rpn_forward.1} parent=11 // pred_fallthru
          _
        // Predicated region
        $region37: #{depthwise_rpn_forward.1} parent=11 // pred_check
          %p332 = pneg %p222
        $region38: #{depthwise_rpn_forward.1} parent=11 // pred_check_branch
          %334 = sbr.rel (%p332) target = $region40
        $region39: #{depthwise_rpn_forward.1} parent=11 // pred_region
          _
        $region40: #{depthwise_rpn_forward.1} parent=11 // pred_fallthru
          _
        // Predicated region
        $region41: #{depthwise_rpn_forward.1} parent=11 // pred_check
          %p335 = pneg %p243
        $region42: #{depthwise_rpn_forward.1} parent=11 // pred_check_branch
          %337 = sbr.rel (%p335) target = $region44
        $region43: #{depthwise_rpn_forward.1} parent=11 // pred_region
          _
        $region44: #{depthwise_rpn_forward.1} parent=11 // pred_fallthru
          _
      $region12: #{depthwise_rpn_forward.1} parent=5 // pred_fallthru
        _
      %p338 = scmp.lt.s32.totalorder %s23, 2
      // Predicated region
      $region45: #{depthwise_rpn_forward.1} parent=5 // pred_check
        %p339 = pneg %p338
      $region46: #{depthwise_rpn_forward.1} parent=5 // pred_check_branch
        %341 = sbr.rel (%p339) target = $region48
      $region47: #{depthwise_rpn_forward.1} parent=5 // pred_region
        // Predicated region
        $region49: #{depthwise_rpn_forward.1} parent=47 // pred_check
          %p342 = pneg %p43
        $region50: #{depthwise_rpn_forward.1} parent=47 // pred_check_branch
          %344 = sbr.rel (%p342) target = $region52
        $region51: #{depthwise_rpn_forward.1} parent=47 // pred_region
          %s345 = sand.u32 %s33, 1
          %s346 = scalar_lea.sflag [#allocation6], %s345
          %s347 = sand.u32 %s33, 1
          %s348 = smul.addr %s347, 64
          %s349 = scalar_lea.vmem [#allocation5], %s348
          %s351 = ssub.s32 1024, 1024
          %352 = vsyncadd %s346, %s351
          %s353 = smul.addr %s23, 8
          %s354 = smul.addr %s353, 128
          %s355 = scalar_lea.hbm %s0, %s354
          %s356 = sshll.u32 %s349, 4
          %s357 = int_to_ptr.vmem [resolvable:$true] %s356
          %362 = dma.hbm_to_vmem [thread:$0]  %s355, 1024, %s357, %s346, 128, 128, 8
        $region52: #{depthwise_rpn_forward.1} parent=47 // pred_fallthru
          _
        // Predicated region
        $region53: #{depthwise_rpn_forward.1} parent=47 // pred_check
          %p363 = pneg %p69
        $region54: #{depthwise_rpn_forward.1} parent=47 // pred_check_branch
          %365 = sbr.rel (%p363) target = $region56
        $region55: #{depthwise_rpn_forward.1} parent=47 // pred_region
          %s366 = sand.u32 %s23, 1
          %s367 = scalar_lea.sflag [#allocation8], %s366
          %s368 = sand.u32 %s59, 1
          %s369 = smul.addr %s368, 256
          %s370 = scalar_lea.vmem [#allocation7], %s369
          %s372 = ssub.s32 4096, 4096
          %373 = vsyncadd %s367, %s372
          %s374 = smul.addr %s23, 32
          %s375 = smul.addr %s374, 128
          %s376 = scalar_lea.hbm %s1, %s375
          %s377 = sshll.u32 %s370, 4
          %s378 = int_to_ptr.vmem [resolvable:$true] %s377
          %383 = dma.hbm_to_vmem [thread:$0]  %s376, 4096, %s378, %s367, 128, 128, 8
        $region56: #{depthwise_rpn_forward.1} parent=47 // pred_fallthru
          _
      $region48: #{depthwise_rpn_forward.1} parent=5 // pred_fallthru
        _
      %p384 = scmp.le.s32.totalorder 1, %s23
      %p385 = scmp.lt.s32.totalorder %s23, 3
      %p386 = pnand %p384, %p385
      %p387 = pneg %p386
      // Predicated region
      $region57: #{depthwise_rpn_forward.1} parent=5 // pred_check
        _
      $region58: #{depthwise_rpn_forward.1} parent=5 // pred_check_branch
        %389 = sbr.rel (%p386) target = $region60
      $region59: #{depthwise_rpn_forward.1} parent=5 // pred_region
        %s390 = ssub.s32 %s23, 1
        %s391 = sand.u32 %s36, 1
        %s392 = scalar_lea.sflag [#allocation6], %s391
        %s393 = sand.u32 %s36, 1
        %s394 = smul.addr %s393, 64
        %s395 = scalar_lea.vmem [#allocation5], %s394
        // Predicated region
        $region61: #{depthwise_rpn_forward.1} parent=59 // pred_check
          %p396 = pneg %p49
        $region62: #{depthwise_rpn_forward.1} parent=59 // pred_check_branch
          %398 = sbr.rel (%p396) target = $region64
        $region63: #{depthwise_rpn_forward.1} parent=59 // pred_region
          %399 = dma.done %s392, 1024
        $region64: #{depthwise_rpn_forward.1} parent=59 // pred_fallthru
          _
        %s400 = sand.u32 %s28, 1
        %s401 = scalar_lea.sflag [#allocation8], %s400
        %s402 = sand.u32 %s62, 1
        %s403 = smul.addr %s402, 256
        %s404 = scalar_lea.vmem [#allocation7], %s403
        // Predicated region
        $region65: #{depthwise_rpn_forward.1} parent=59 // pred_check
          %p405 = pneg %p75
        $region66: #{depthwise_rpn_forward.1} parent=59 // pred_check_branch
          %407 = sbr.rel (%p405) target = $region68
        $region67: #{depthwise_rpn_forward.1} parent=59 // pred_region
          %408 = dma.done %s401, 4096
        $region68: #{depthwise_rpn_forward.1} parent=59 // pred_fallthru
          _
        // Predicated region
        $region69: #{depthwise_rpn_forward.1} parent=59 // pred_check
          %p409 = pneg %p96
        $region70: #{depthwise_rpn_forward.1} parent=59 // pred_check_branch
          %411 = sbr.rel (%p409) target = $region72
        $region71: #{depthwise_rpn_forward.1} parent=59 // pred_region
          %412 = dma.done [#allocation8], 2304
        $region72: #{depthwise_rpn_forward.1} parent=59 // pred_fallthru
          _
        // Predicated region
        $region73: #{depthwise_rpn_forward.1} parent=59 // pred_check
          %p413 = pneg %p138
        $region74: #{depthwise_rpn_forward.1} parent=59 // pred_check_branch
          %415 = sbr.rel (%p413) target = $region76
        $region75: #{depthwise_rpn_forward.1} parent=59 // pred_region
          %416 = dma.done [#allocation11], 2304
        $region76: #{depthwise_rpn_forward.1} parent=59 // pred_fallthru
          _
        // Predicated region
        $region77: #{depthwise_rpn_forward.1} parent=59 // pred_check
          %p417 = pneg %p180
        $region78: #{depthwise_rpn_forward.1} parent=59 // pred_check_branch
          %419 = sbr.rel (%p417) target = $region80
        $region79: #{depthwise_rpn_forward.1} parent=59 // pred_region
          %420 = dma.done [#allocation11], 512
        $region80: #{depthwise_rpn_forward.1} parent=59 // pred_fallthru
          _
        %s421 = sand.u32 %s36, 1
        %s422 = scalar_lea.sflag [#allocation6], %s421
        %s423 = sand.u32 %s36, 1
        %s424 = smul.addr %s423, 64
        %s425 = scalar_lea.vmem [#allocation5], %s424
        %p426 = pneg %p49
        %p427 = pneg %p46
        %s428 = sand.u32 %s28, 1
        %s429 = scalar_lea.sflag [#allocation8], %s428
        %s430 = sand.u32 %s62, 1
        %s431 = smul.addr %s430, 256
        %s432 = scalar_lea.vmem [#allocation7], %s431
        %p433 = pneg %p75
        %p434 = pneg %p72
        %p435 = pneg %p96
        %p436 = pneg %p93
        %p437 = pneg %p117
        %p438 = pneg %p114
        %p439 = pneg %p138
        %p440 = pneg %p135
        %p441 = pneg %p159
        %p442 = pneg %p156
        %p443 = pneg %p180
        %p444 = pneg %p177
        %p445 = pneg %p201
        %p446 = pneg %p198
        %p447 = pneg %p222
        %p448 = pneg %p219
        %p449 = pneg %p243
        %p450 = pneg %p240
        %p451 = pneg %p269
        %p452 = pneg %p266
        %p453 = scmp.lt.s32.totalorder %s28, 1
        %s454 = scalar_select %p453, %s28, 1
        %s455 = smul.addr %s454, 11
        %s456 = smul.addr %s455, 8
        %s457 = scalar_lea.vmem %s10, %s456
        %p458 = scmp.lt.s32.totalorder %s28, 1
        %s459 = scalar_select %p458, %s28, 1
        %s460 = smul.addr %s459, 11
        %s461 = smul.addr %s460, 8
        %s462 = scalar_lea.vmem %s10, %s461
        %v464 = vld [vmem:[%s395] sm:$0xff]
        %v465 = vld [vmem:[%s395 + $0x8] sm:$0xff]
        %v466 = vld [vmem:[%s395 + $0x10] sm:$0xff]
        %v467 = vld [vmem:[%s395 + $0x18] sm:$0xff]
        %v468 = vld [vmem:[%s395 + $0x20] sm:$0xff]
        %v469 = vld [vmem:[%s395 + $0x28] sm:$0xff]
        %v470 = vld [vmem:[%s395 + $0x30] sm:$0xff]
        %v471 = vld [vmem:[%s395 + $0x38] sm:$0xff]
        %v472 = vld [vmem:[#allocation9] sm:$0xf]
        %v473 = vld [vmem:[#allocation9 + $0x4] sm:$0xf]
        %v474 = vld [vmem:[#allocation9 + $0x8] sm:$0xf]
        %v475 = vld [vmem:[#allocation9 + $0xc] sm:$0xf]
        %v476 = vld [vmem:[#allocation9 + $0x10] sm:$0xf]
        %v477 = vld [vmem:[#allocation9 + $0x14] sm:$0xf]
        %v478 = vld [vmem:[#allocation9 + $0x18] sm:$0xf]
        %v479 = vld [vmem:[#allocation9 + $0x1c] sm:$0xf]
        %v480 = vld [vmem:[#allocation9 + $0x20] sm:$0xf]
        %v481 = vld [vmem:[#allocation9 + $0x24] sm:$0xf]
        %v482 = vld [vmem:[#allocation9 + $0x28] sm:$0xf]
        %v483 = vld [vmem:[#allocation9 + $0x2c] sm:$0xf]
        %v484 = vld [vmem:[#allocation9 + $0x30] sm:$0xf]
        %v485 = vld [vmem:[#allocation9 + $0x34] sm:$0xf]
        %v486 = vld [vmem:[#allocation9 + $0x38] sm:$0xf]
        %v487 = vld [vmem:[#allocation9 + $0x3c] sm:$0xf]
        %v488 = vld [vmem:[#allocation9 + $0x40] sm:$0xf]
        %v489 = vld [vmem:[#allocation9 + $0x44] sm:$0xf]
        %v490 = vld [vmem:[#allocation9 + $0x48] sm:$0xf]
        %v491 = vld [vmem:[#allocation9 + $0x4c] sm:$0xf]
        %v492 = vld [vmem:[#allocation9 + $0x50] sm:$0xf]
        %v493 = vld [vmem:[#allocation9 + $0x54] sm:$0xf]
        %v494 = vld [vmem:[#allocation9 + $0x58] sm:$0xf]
        %v495 = vld [vmem:[#allocation9 + $0x5c] sm:$0xf]
        %v496 = vld [vmem:[#allocation9 + $0x60] sm:$0xf]
        %v497 = vld [vmem:[#allocation9 + $0x64] sm:$0xf]
        %v498 = vld [vmem:[#allocation9 + $0x68] sm:$0xf]
        %v499 = vld [vmem:[#allocation9 + $0x6c] sm:$0xf]
        %v500 = vld [vmem:[#allocation9 + $0x70] sm:$0xf]
        %v501 = vld [vmem:[#allocation9 + $0x74] sm:$0xf]
        %v502 = vld [vmem:[#allocation9 + $0x78] sm:$0xf]
        %v503 = vld [vmem:[#allocation9 + $0x7c] sm:$0xf]
        %v504 = vld [vmem:[#allocation9 + $0x80] sm:$0xf]
        %v505 = vld [vmem:[#allocation9 + $0x84] sm:$0xf]
        %v506 = vld [vmem:[#allocation9 + $0x88] sm:$0xf]
        %v507 = vld [vmem:[#allocation9 + $0x8c] sm:$0xf]
        %v508 = vld [vmem:[%s3] sm:$0x1]
        %v509 = vpack.c.bf16 %v464, %v464
        %v510 = vpack.c.bf16 %v465, %v465
        %v511 = vpack.c.bf16 %v466, %v466
        %v512 = vpack.c.bf16 %v467, %v467
        %v513 = vpack.c.bf16 %v468, %v468
        %v514 = vpack.c.bf16 %v469, %v469
        %v515 = vpack.c.bf16 %v470, %v470
        %v516 = vpack.c.bf16 %v471, %v471
        %v518 = vshrl.u32 %v509, 16
        %v520 = vshll.u32 %v509, 16
        %v522 = vrot.slane %v520, 1
        %v523 = vor.u32 %v518, %v522
        %v525 = vshrl.u32 %v510, 16
        %v527 = vshll.u32 %v510, 16
        %v529 = vrot.slane %v527, 1
        %v530 = vor.u32 %v525, %v529
        %v532 = vshrl.u32 %v511, 16
        %v534 = vshll.u32 %v511, 16
        %v536 = vrot.slane %v534, 1
        %v537 = vor.u32 %v532, %v536
        %v539 = vshrl.u32 %v512, 16
        %v541 = vshll.u32 %v512, 16
        %v543 = vrot.slane %v541, 1
        %v544 = vor.u32 %v539, %v543
        %v546 = vshrl.u32 %v513, 16
        %v548 = vshll.u32 %v513, 16
        %v550 = vrot.slane %v548, 1
        %v551 = vor.u32 %v546, %v550
        %v553 = vshrl.u32 %v514, 16
        %v555 = vshll.u32 %v514, 16
        %v557 = vrot.slane %v555, 1
        %v558 = vor.u32 %v553, %v557
        %559 = vrot.lane.b32.xlu0 %v523, 32
        %v560 = vpop.permute.xlu0 %559
        %561 = vrot.lane.b32.xlu0 %v530, 32
        %v562 = vpop.permute.xlu0 %561
        %563 = vrot.lane.b32.xlu0 %v537, 32
        %v564 = vpop.permute.xlu0 %563
        %565 = vrot.lane.b32.xlu0 %v544, 32
        %v566 = vpop.permute.xlu0 %565
        %567 = vrot.lane.b32.xlu0 %v551, 32
        %v568 = vpop.permute.xlu0 %567
        %569 = vrot.lane.b32.xlu0 %v558, 32
        %v570 = vpop.permute.xlu0 %569
        %v577 = vrot.slane %v509, 1
        %v578 = vrot.slane %v510, 1
        %v579 = vrot.slane %v511, 1
        %v580 = vrot.slane %v512, 1
        %v581 = vrot.slane %v513, 1
        %v582 = vrot.slane %v514, 1
        %583 = vrot.lane.b32.xlu0 %v577, 64
        %v584 = vpop.permute.xlu0 %583
        %585 = vrot.lane.b32.xlu0 %v578, 64
        %v586 = vpop.permute.xlu0 %585
        %587 = vrot.lane.b32.xlu0 %v579, 64
        %v588 = vpop.permute.xlu0 %587
        %589 = vrot.lane.b32.xlu0 %v580, 64
        %v590 = vpop.permute.xlu0 %589
        %591 = vrot.lane.b32.xlu0 %v581, 64
        %v592 = vpop.permute.xlu0 %591
        %593 = vrot.lane.b32.xlu0 %v582, 64
        %v594 = vpop.permute.xlu0 %593
        %596 = vrot.lane.b32.xlu0 %v510, 96
        %v597 = vpop.permute.xlu0 %596
        %598 = vrot.lane.b32.xlu0 %v511, 96
        %v599 = vpop.permute.xlu0 %598
        %600 = vrot.lane.b32.xlu0 %v512, 96
        %v601 = vpop.permute.xlu0 %600
        %602 = vrot.lane.b32.xlu0 %v513, 96
        %v603 = vpop.permute.xlu0 %602
        %604 = vrot.lane.b32.xlu0 %v514, 96
        %v605 = vpop.permute.xlu0 %604
        %606 = vrot.lane.b32.xlu0 %v515, 96
        %v607 = vpop.permute.xlu0 %606
        %v609 = vshrl.u32 %v515, 16
        %v611 = vshll.u32 %v515, 16
        %v613 = vrot.slane %v611, 1
        %v614 = vor.u32 %v609, %v613
        %v615 = vrot.slane %v515, 1
        %616 = vrot.lane.b32.xlu0 %v578, 32
        %v617 = vpop.permute.xlu0 %616
        %618 = vrot.lane.b32.xlu0 %v579, 32
        %v619 = vpop.permute.xlu0 %618
        %620 = vrot.lane.b32.xlu0 %v580, 32
        %v621 = vpop.permute.xlu0 %620
        %622 = vrot.lane.b32.xlu0 %v581, 32
        %v623 = vpop.permute.xlu0 %622
        %624 = vrot.lane.b32.xlu0 %v582, 32
        %v625 = vpop.permute.xlu0 %624
        %626 = vrot.lane.b32.xlu0 %v615, 32
        %v627 = vpop.permute.xlu0 %626
        %629 = vrot.lane.b32.xlu0 %v511, 64
        %v630 = vpop.permute.xlu0 %629
        %631 = vrot.lane.b32.xlu0 %v512, 64
        %v632 = vpop.permute.xlu0 %631
        %633 = vrot.lane.b32.xlu0 %v513, 64
        %v634 = vpop.permute.xlu0 %633
        %635 = vrot.lane.b32.xlu0 %v514, 64
        %v636 = vpop.permute.xlu0 %635
        %637 = vrot.lane.b32.xlu0 %v515, 64
        %v638 = vpop.permute.xlu0 %637
        %639 = vrot.lane.b32.xlu0 %v516, 64
        %v640 = vpop.permute.xlu0 %639
        %v642 = vshrl.u32 %v516, 16
        %v644 = vshll.u32 %v516, 16
        %v646 = vrot.slane %v644, 1
        %v647 = vor.u32 %v642, %v646
        %648 = vrot.lane.b32.xlu0 %v537, 96
        %v649 = vpop.permute.xlu0 %648
        %650 = vrot.lane.b32.xlu0 %v544, 96
        %v651 = vpop.permute.xlu0 %650
        %652 = vrot.lane.b32.xlu0 %v551, 96
        %v653 = vpop.permute.xlu0 %652
        %654 = vrot.lane.b32.xlu0 %v558, 96
        %v655 = vpop.permute.xlu0 %654
        %656 = vrot.lane.b32.xlu0 %v614, 96
        %v657 = vpop.permute.xlu0 %656
        %658 = vrot.lane.b32.xlu0 %v647, 96
        %v659 = vpop.permute.xlu0 %658
        %v660 = vrot.slane %v516, 1
        %vm661 = vcmask 261120
        %v663 = vsel %vm661, %v509, %v560
        %v665 = vsel %vm661, %v510, %v562
        %v667 = vsel %vm661, %v511, %v564
        %v669 = vsel %vm661, %v512, %v566
        %v671 = vsel %vm661, %v513, %v568
        %v673 = vsel %vm661, %v514, %v570
        %vm674 = vcmask 523264
        %v676 = vsel %vm674, %v663, %v584
        %v678 = vsel %vm674, %v665, %v586
        %v680 = vsel %vm674, %v667, %v588
        %v682 = vsel %vm674, %v669, %v590
        %v684 = vsel %vm674, %v671, %v592
        %v686 = vsel %vm674, %v673, %v594
        %vm687 = vcmask 785408
        %v689 = vsel %vm687, %v676, %v597
        %v691 = vsel %vm687, %v678, %v599
        %v693 = vsel %vm687, %v680, %v601
        %v695 = vsel %vm687, %v682, %v603
        %v697 = vsel %vm687, %v684, %v605
        %v699 = vsel %vm687, %v686, %v607
        %v702 = vsel %vm661, %v530, %v617
        %v705 = vsel %vm661, %v537, %v619
        %v708 = vsel %vm661, %v544, %v621
        %v711 = vsel %vm661, %v551, %v623
        %v714 = vsel %vm661, %v558, %v625
        %v717 = vsel %vm661, %v614, %v627
        %v719 = vsel %vm674, %v702, %v630
        %v721 = vsel %vm674, %v705, %v632
        %v723 = vsel %vm674, %v708, %v634
        %v725 = vsel %vm674, %v711, %v636
        %v727 = vsel %vm674, %v714, %v638
        %v729 = vsel %vm674, %v717, %v640
        %v731 = vsel %vm687, %v719, %v649
        %v733 = vsel %vm687, %v721, %v651
        %v735 = vsel %vm687, %v723, %v653
        %v737 = vsel %vm687, %v725, %v655
        %v739 = vsel %vm687, %v727, %v657
        %v741 = vsel %vm687, %v729, %v659
        %v754 = vcombine.low %v689, %v731
        %v756 = vunpack.c.l.s4 1966171168
        %v757 = vunpack.c.0.s8 %v756
        %v758 = vlaneseq
        %v759 = vshrl.u32 %v758, 7
        %v760 = vsub.s32 %v757, %v759
        %v761 = vrot.slane %v754, %v760
        %v763 = vunpack.c.l.s4 1966171168
        %v764 = vunpack.c.0.s8 %v763
        %v765 = vlaneseq
        %v766 = vshrl.u32 %v765, 7
        %v767 = vsub.s32 %v764, %v766
        %v768 = vrot.slane %v579, %v767
        %v769 = vcombine.low %v761, %v768
        %v770 = vcombine.high %v761, %v768
        %v772 = vunpack.c.l.s4 1966171168
        %v773 = vunpack.c.0.s8 %v772
        %v774 = vlaneseq
        %v775 = vshrl.u32 %v774, 7
        %v776 = vsub.s32 %v773, %v775
        %v777 = vrot.slane %v769, %v776
        %v779 = vunpack.c.l.s4 1966171168
        %v780 = vunpack.c.0.s8 %v779
        %v781 = vlaneseq
        %v782 = vshrl.u32 %v781, 7
        %v783 = vsub.s32 %v780, %v782
        %v784 = vrot.slane %v770, %v783
        %v785 = vcombine.high %v777, %v777
        %v786 = vcombine.low %v691, %v733
        %v788 = vunpack.c.l.s4 1966171168
        %v789 = vunpack.c.0.s8 %v788
        %v790 = vlaneseq
        %v791 = vshrl.u32 %v790, 7
        %v792 = vsub.s32 %v789, %v791
        %v793 = vrot.slane %v786, %v792
        %v795 = vunpack.c.l.s4 1966171168
        %v796 = vunpack.c.0.s8 %v795
        %v797 = vlaneseq
        %v798 = vshrl.u32 %v797, 7
        %v799 = vsub.s32 %v796, %v798
        %v800 = vrot.slane %v580, %v799
        %v801 = vcombine.low %v793, %v800
        %v802 = vcombine.high %v793, %v800
        %v804 = vunpack.c.l.s4 1966171168
        %v805 = vunpack.c.0.s8 %v804
        %v806 = vlaneseq
        %v807 = vshrl.u32 %v806, 7
        %v808 = vsub.s32 %v805, %v807
        %v809 = vrot.slane %v801, %v808
        %v811 = vunpack.c.l.s4 1966171168
        %v812 = vunpack.c.0.s8 %v811
        %v813 = vlaneseq
        %v814 = vshrl.u32 %v813, 7
        %v815 = vsub.s32 %v812, %v814
        %v816 = vrot.slane %v802, %v815
        %v817 = vcombine.high %v809, %v809
        %v818 = vcombine.low %v693, %v735
        %v820 = vunpack.c.l.s4 1966171168
        %v821 = vunpack.c.0.s8 %v820
        %v822 = vlaneseq
        %v823 = vshrl.u32 %v822, 7
        %v824 = vsub.s32 %v821, %v823
        %v825 = vrot.slane %v818, %v824
        %v827 = vunpack.c.l.s4 1966171168
        %v828 = vunpack.c.0.s8 %v827
        %v829 = vlaneseq
        %v830 = vshrl.u32 %v829, 7
        %v831 = vsub.s32 %v828, %v830
        %v832 = vrot.slane %v581, %v831
        %v833 = vcombine.low %v825, %v832
        %v834 = vcombine.high %v825, %v832
        %v836 = vunpack.c.l.s4 1966171168
        %v837 = vunpack.c.0.s8 %v836
        %v838 = vlaneseq
        %v839 = vshrl.u32 %v838, 7
        %v840 = vsub.s32 %v837, %v839
        %v841 = vrot.slane %v833, %v840
        %v843 = vunpack.c.l.s4 1966171168
        %v844 = vunpack.c.0.s8 %v843
        %v845 = vlaneseq
        %v846 = vshrl.u32 %v845, 7
        %v847 = vsub.s32 %v844, %v846
        %v848 = vrot.slane %v834, %v847
        %v849 = vcombine.high %v841, %v841
        %v850 = vcombine.low %v695, %v737
        %v852 = vunpack.c.l.s4 1966171168
        %v853 = vunpack.c.0.s8 %v852
        %v854 = vlaneseq
        %v855 = vshrl.u32 %v854, 7
        %v856 = vsub.s32 %v853, %v855
        %v857 = vrot.slane %v850, %v856
        %v859 = vunpack.c.l.s4 1966171168
        %v860 = vunpack.c.0.s8 %v859
        %v861 = vlaneseq
        %v862 = vshrl.u32 %v861, 7
        %v863 = vsub.s32 %v860, %v862
        %v864 = vrot.slane %v582, %v863
        %v865 = vcombine.low %v857, %v864
        %v866 = vcombine.high %v857, %v864
        %v868 = vunpack.c.l.s4 1966171168
        %v869 = vunpack.c.0.s8 %v868
        %v870 = vlaneseq
        %v871 = vshrl.u32 %v870, 7
        %v872 = vsub.s32 %v869, %v871
        %v873 = vrot.slane %v865, %v872
        %v875 = vunpack.c.l.s4 1966171168
        %v876 = vunpack.c.0.s8 %v875
        %v877 = vlaneseq
        %v878 = vshrl.u32 %v877, 7
        %v879 = vsub.s32 %v876, %v878
        %v880 = vrot.slane %v866, %v879
        %v881 = vcombine.high %v873, %v873
        %v882 = vcombine.low %v697, %v739
        %v884 = vunpack.c.l.s4 1966171168
        %v885 = vunpack.c.0.s8 %v884
        %v886 = vlaneseq
        %v887 = vshrl.u32 %v886, 7
        %v888 = vsub.s32 %v885, %v887
        %v889 = vrot.slane %v882, %v888
        %v891 = vunpack.c.l.s4 1966171168
        %v892 = vunpack.c.0.s8 %v891
        %v893 = vlaneseq
        %v894 = vshrl.u32 %v893, 7
        %v895 = vsub.s32 %v892, %v894
        %v896 = vrot.slane %v615, %v895
        %v897 = vcombine.low %v889, %v896
        %v898 = vcombine.high %v889, %v896
        %v900 = vunpack.c.l.s4 1966171168
        %v901 = vunpack.c.0.s8 %v900
        %v902 = vlaneseq
        %v903 = vshrl.u32 %v902, 7
        %v904 = vsub.s32 %v901, %v903
        %v905 = vrot.slane %v897, %v904
        %v907 = vunpack.c.l.s4 1966171168
        %v908 = vunpack.c.0.s8 %v907
        %v909 = vlaneseq
        %v910 = vshrl.u32 %v909, 7
        %v911 = vsub.s32 %v908, %v910
        %v912 = vrot.slane %v898, %v911
        %v913 = vcombine.high %v905, %v905
        %v914 = vcombine.low %v699, %v741
        %v916 = vunpack.c.l.s4 1966171168
        %v917 = vunpack.c.0.s8 %v916
        %v918 = vlaneseq
        %v919 = vshrl.u32 %v918, 7
        %v920 = vsub.s32 %v917, %v919
        %v921 = vrot.slane %v914, %v920
        %v923 = vunpack.c.l.s4 1966171168
        %v924 = vunpack.c.0.s8 %v923
        %v925 = vlaneseq
        %v926 = vshrl.u32 %v925, 7
        %v927 = vsub.s32 %v924, %v926
        %v928 = vrot.slane %v660, %v927
        %v929 = vcombine.low %v921, %v928
        %v930 = vcombine.high %v921, %v928
        %v932 = vunpack.c.l.s4 1966171168
        %v933 = vunpack.c.0.s8 %v932
        %v934 = vlaneseq
        %v935 = vshrl.u32 %v934, 7
        %v936 = vsub.s32 %v933, %v935
        %v937 = vrot.slane %v929, %v936
        %v939 = vunpack.c.l.s4 1966171168
        %v940 = vunpack.c.0.s8 %v939
        %v941 = vlaneseq
        %v942 = vshrl.u32 %v941, 7
        %v943 = vsub.s32 %v940, %v942
        %v944 = vrot.slane %v930, %v943
        %v945 = vcombine.high %v937, %v937
        %v947 = vlaneseq
        %v948 = vshrl.u32 %v947, 7
        %v949 = vsub.s32 0, %v948
        %v950 = vrot.slane %v508, %v949
        %v952 = vcombine.low %v777, %v784
        %v953 = vcombine.low %v785, %v809
        %v954 = vcombine.low %v816, %v817
        %v955 = vcombine.low %v841, %v848
        %v957 = vunpack.c.l.s4 1966171168
        %v958 = vunpack.c.0.s8 %v957
        %v959 = vlaneseq
        %v960 = vshrl.u32 %v959, 7
        %v961 = vsub.s32 %v958, %v960
        %v962 = vrot.slane %v952, %v961
        %v964 = vunpack.c.l.s4 1966171168
        %v965 = vunpack.c.0.s8 %v964
        %v966 = vlaneseq
        %v967 = vshrl.u32 %v966, 7
        %v968 = vsub.s32 %v965, %v967
        %v969 = vrot.slane %v953, %v968
        %v971 = vunpack.c.l.s4 1966171168
        %v972 = vunpack.c.0.s8 %v971
        %v973 = vlaneseq
        %v974 = vshrl.u32 %v973, 7
        %v975 = vsub.s32 %v972, %v974
        %v976 = vrot.slane %v954, %v975
        %v978 = vunpack.c.l.s4 1966171168
        %v979 = vunpack.c.0.s8 %v978
        %v980 = vlaneseq
        %v981 = vshrl.u32 %v980, 7
        %v982 = vsub.s32 %v979, %v981
        %v983 = vrot.slane %v955, %v982
        %v984 = vcombine.low %v962, %v969
        %v985 = vcombine.high %v962, %v969
        %v986 = vcombine.low %v976, %v983
        %v987 = vcombine.high %v976, %v983
        %v989 = vunpack.c.l.s4 1966171168
        %v990 = vunpack.c.0.s8 %v989
        %v991 = vlaneseq
        %v992 = vshrl.u32 %v991, 7
        %v993 = vsub.s32 %v990, %v992
        %v994 = vrot.slane %v984, %v993
        %v996 = vunpack.c.l.s4 1966171168
        %v997 = vunpack.c.0.s8 %v996
        %v998 = vlaneseq
        %v999 = vshrl.u32 %v998, 7
        %v1000 = vsub.s32 %v997, %v999
        %v1001 = vrot.slane %v985, %v1000
        %v1003 = vunpack.c.l.s4 1966171168
        %v1004 = vunpack.c.0.s8 %v1003
        %v1005 = vlaneseq
        %v1006 = vshrl.u32 %v1005, 7
        %v1007 = vsub.s32 %v1004, %v1006
        %v1008 = vrot.slane %v986, %v1007
        %v1010 = vunpack.c.l.s4 1966171168
        %v1011 = vunpack.c.0.s8 %v1010
        %v1012 = vlaneseq
        %v1013 = vshrl.u32 %v1012, 7
        %v1014 = vsub.s32 %v1011, %v1013
        %v1015 = vrot.slane %v987, %v1014
        %v1016 = vcombine.low %v994, %v1008
        %v1017 = vcombine.high %v994, %v1008
        %v1018 = vcombine.low %v1001, %v1015
        %v1019 = vcombine.low %v849, %v873
        %v1020 = vcombine.low %v880, %v881
        %v1021 = vcombine.low %v905, %v912
        %v1022 = vcombine.low %v913, %v937
        %v1024 = vunpack.c.l.s4 1966171168
        %v1025 = vunpack.c.0.s8 %v1024
        %v1026 = vlaneseq
        %v1027 = vshrl.u32 %v1026, 7
        %v1028 = vsub.s32 %v1025, %v1027
        %v1029 = vrot.slane %v1019, %v1028
        %v1031 = vunpack.c.l.s4 1966171168
        %v1032 = vunpack.c.0.s8 %v1031
        %v1033 = vlaneseq
        %v1034 = vshrl.u32 %v1033, 7
        %v1035 = vsub.s32 %v1032, %v1034
        %v1036 = vrot.slane %v1020, %v1035
        %v1038 = vunpack.c.l.s4 1966171168
        %v1039 = vunpack.c.0.s8 %v1038
        %v1040 = vlaneseq
        %v1041 = vshrl.u32 %v1040, 7
        %v1042 = vsub.s32 %v1039, %v1041
        %v1043 = vrot.slane %v1021, %v1042
        %v1045 = vunpack.c.l.s4 1966171168
        %v1046 = vunpack.c.0.s8 %v1045
        %v1047 = vlaneseq
        %v1048 = vshrl.u32 %v1047, 7
        %v1049 = vsub.s32 %v1046, %v1048
        %v1050 = vrot.slane %v1022, %v1049
        %v1051 = vcombine.low %v1029, %v1036
        %v1052 = vcombine.high %v1029, %v1036
        %v1053 = vcombine.low %v1043, %v1050
        %v1054 = vcombine.high %v1043, %v1050
        %v1056 = vunpack.c.l.s4 1966171168
        %v1057 = vunpack.c.0.s8 %v1056
        %v1058 = vlaneseq
        %v1059 = vshrl.u32 %v1058, 7
        %v1060 = vsub.s32 %v1057, %v1059
        %v1061 = vrot.slane %v1051, %v1060
        %v1063 = vunpack.c.l.s4 1966171168
        %v1064 = vunpack.c.0.s8 %v1063
        %v1065 = vlaneseq
        %v1066 = vshrl.u32 %v1065, 7
        %v1067 = vsub.s32 %v1064, %v1066
        %v1068 = vrot.slane %v1052, %v1067
        %v1070 = vunpack.c.l.s4 1966171168
        %v1071 = vunpack.c.0.s8 %v1070
        %v1072 = vlaneseq
        %v1073 = vshrl.u32 %v1072, 7
        %v1074 = vsub.s32 %v1071, %v1073
        %v1075 = vrot.slane %v1053, %v1074
        %v1077 = vunpack.c.l.s4 1966171168
        %v1078 = vunpack.c.0.s8 %v1077
        %v1079 = vlaneseq
        %v1080 = vshrl.u32 %v1079, 7
        %v1081 = vsub.s32 %v1078, %v1080
        %v1082 = vrot.slane %v1054, %v1081
        %v1083 = vcombine.low %v1061, %v1075
        %v1084 = vcombine.high %v1061, %v1075
        %v1085 = vcombine.low %v1068, %v1082
        %v1086 = vcombine.low %v944, %v945
        %v1088 = vunpack.c.l.s4 1966171168
        %v1089 = vunpack.c.0.s8 %v1088
        %v1090 = vlaneseq
        %v1091 = vshrl.u32 %v1090, 7
        %v1092 = vsub.s32 %v1089, %v1091
        %v1093 = vrot.slane %v1086, %v1092
        %v1094 = vcombine.high %v1093, %v1093
        %v1096 = vunpack.c.l.s4 1966171168
        %v1097 = vunpack.c.0.s8 %v1096
        %v1098 = vlaneseq
        %v1099 = vshrl.u32 %v1098, 7
        %v1100 = vsub.s32 %v1097, %v1099
        %v1101 = vrot.slane %v1093, %v1100
        %v1103 = vunpack.c.l.s4 1966171168
        %v1104 = vunpack.c.0.s8 %v1103
        %v1105 = vlaneseq
        %v1106 = vshrl.u32 %v1105, 7
        %v1107 = vsub.s32 %v1104, %v1106
        %v1108 = vrot.slane %v1094, %v1107
        %v1109 = vcombine.high %v1101, %v1101
        %v1152 = vunpack.c.l.b16 %v472
        %v1153 = vunpack.c.l.b16 %v473
        %v1154 = vunpack.c.l.b16 %v474
        %v1155 = vunpack.c.l.b16 %v475
        %v1156 = vunpack.c.l.b16 %v476
        %v1157 = vunpack.c.l.b16 %v477
        %v1158 = vunpack.c.l.b16 %v478
        %v1159 = vunpack.c.l.b16 %v479
        %v1160 = vunpack.c.l.b16 %v480
        %v1161 = vunpack.c.l.b16 %v481
        %v1162 = vunpack.c.l.b16 %v482
        %v1163 = vunpack.c.l.b16 %v483
        %v1164 = vunpack.c.l.b16 %v484
        %v1165 = vunpack.c.l.b16 %v485
        %v1166 = vunpack.c.l.b16 %v486
        %v1167 = vunpack.c.l.b16 %v487
        %v1168 = vunpack.c.l.b16 %v488
        %v1169 = vunpack.c.l.b16 %v489
        %v1170 = vunpack.c.l.b16 %v490
        %v1171 = vunpack.c.l.b16 %v491
        %v1172 = vunpack.c.l.b16 %v492
        %v1173 = vunpack.c.l.b16 %v493
        %v1174 = vunpack.c.l.b16 %v494
        %v1175 = vunpack.c.l.b16 %v495
        %v1176 = vunpack.c.l.b16 %v496
        %v1177 = vunpack.c.l.b16 %v497
        %v1178 = vunpack.c.l.b16 %v498
        %v1179 = vunpack.c.l.b16 %v499
        %v1180 = vunpack.c.l.b16 %v500
        %v1181 = vunpack.c.l.b16 %v501
        %v1182 = vunpack.c.l.b16 %v502
        %v1183 = vunpack.c.l.b16 %v503
        %v1184 = vunpack.c.l.b16 %v504
        %v1185 = vunpack.c.l.b16 %v505
        %v1186 = vunpack.c.l.b16 %v506
        %v1187 = vunpack.c.l.b16 %v507
        %v1188 = vpack.c.b16 %v1153, %v1152
        %v1189 = vpack.c.b16 %v1155, %v1154
        %v1190 = vpack.c.b16 %v1157, %v1156
        %v1191 = vpack.c.b16 %v1159, %v1158
        %v1192 = vpack.c.b16 %v1161, %v1160
        %v1193 = vpack.c.b16 %v1163, %v1162
        %v1194 = vpack.c.b16 %v1165, %v1164
        %v1195 = vpack.c.b16 %v1167, %v1166
        %v1196 = vpack.c.b16 %v1169, %v1168
        %v1197 = vpack.c.b16 %v1171, %v1170
        %v1198 = vpack.c.b16 %v1173, %v1172
        %v1199 = vpack.c.b16 %v1175, %v1174
        %v1200 = vpack.c.b16 %v1177, %v1176
        %v1201 = vpack.c.b16 %v1179, %v1178
        %v1202 = vpack.c.b16 %v1181, %v1180
        %v1203 = vpack.c.b16 %v1183, %v1182
        %v1204 = vpack.c.b16 %v1185, %v1184
        %v1205 = vpack.c.b16 %v1187, %v1186
        %v1225 = vsel %vm661, %v1017, 0
        %v1228 = vsel %vm661, %v1084, 0
        %v1231 = vsel %vm661, %v1109, 0
        %1233 = vmatprep.subr.bf16.mxu0 0
        %1234 = vmatpush1.bf16.msra.mxu0 %v1188
        %1235 = vmatprep.subr.bf16.mxu0 0
        %1236 = vmatpush1.bf16.msra.mxu0 %v1189
        %1237 = vmatprep.subr.bf16.mxu0 0
        %1238 = vmatpush1.bf16.msra.mxu0 %v1190
        %1239 = vmatprep.subr.bf16.mxu0 0
        %1240 = vmatpush1.bf16.msra.mxu0 %v1191
        %1241 = vmatprep.subr.bf16.mxu0 0
        %1242 = vmatpush1.bf16.msra.mxu0 %v1192
        %1243 = vmatprep.subr.bf16.mxu0 0
        %1244 = vmatpush1.bf16.msra.mxu0 %v1193
        %1245 = vmatprep.subr.bf16.mxu0 0
        %1246 = vmatpush1.bf16.msra.mxu0 %v1194
        %1247 = vmatprep.subr.bf16.mxu0 0
        %1248 = vmatpush1.bf16.msra.mxu0 %v1195
        %1249 = vmatprep.subr.bf16.mxu0 0
        %1250 = vmatpush1.bf16.msra.mxu0 %v1196
        %1251 = vmatprep.subr.bf16.mxu0 0
        %1252 = vmatpush1.bf16.msra.mxu0 %v1197
        %1253 = vmatprep.subr.bf16.mxu0 0
        %1254 = vmatpush1.bf16.msra.mxu0 %v1198
        %1255 = vmatprep.subr.bf16.mxu0 0
        %1256 = vmatpush1.bf16.msra.mxu0 %v1199
        %1257 = vmatprep.subr.bf16.mxu0 0
        %1258 = vmatpush1.bf16.msra.mxu0 %v1200
        %1259 = vmatprep.subr.bf16.mxu0 0
        %1260 = vmatpush1.bf16.msra.mxu0 %v1201
        %1261 = vmatprep.subr.bf16.mxu0 0
        %1262 = vmatpush1.bf16.msra.mxu0 %v1202
        %1263 = vmatprep.subr.bf16.mxu0 0
        %1264 = vmatpush1.bf16.msra.mxu0 %v1203
        %1265 = vmatprep.mubr.bf16.mxu0 %v1018
        %1266 = vmatmul.mubr.bf16.gmra.mrb[0].mxu0 %v1016
        %v1267 = vpop.f32.mrb[0].mxu0
        %v1268 = vadd.f32 %v950, %v1267
        %v1269 = vpop.f32.mrb[0].mxu0
        %v1270 = vpop.f32.mrb[0].mxu0
        %v1271 = vadd.f32 %v950, %v1270
        %v1272 = vpop.f32.mrb[0].mxu0
        %1273 = vmatprep.mubr.bf16.mxu0 %v1085
        %1274 = vmatmul.mubr.bf16.gmra.mrb[0].mxu0 %v1083
        %v1275 = vpop.f32.mrb[0].mxu0
        %v1276 = vadd.f32 %v950, %v1275
        %v1277 = vpop.f32.mrb[0].mxu0
        %v1278 = vpop.f32.mrb[0].mxu0
        %v1279 = vadd.f32 %v950, %v1278
        %v1280 = vpop.f32.mrb[0].mxu0
        %1281 = vmatprep.mubr.bf16.mxu0 %v1108
        %1282 = vmatmul.mubr.bf16.gmra.mrb[0].mxu0 %v1101
        %v1283 = vpop.f32.mrb[0].mxu0
        %v1284 = vadd.f32 %v950, %v1283
        %v1285 = vpop.f32.mrb[0].mxu0
        %v1286 = vpop.f32.mrb[0].mxu0
        %v1287 = vpop.f32.mrb[0].mxu0
        %1288 = vdwg.mxu0
        %1289 = vmatprep.subr.bf16.mxu0 0
        %1290 = vmatpush1.bf16.msra.mxu0 %v1204
        %1291 = vmatprep.subr.bf16.mxu0 0
        %1292 = vmatpush1.bf16.msra.mxu0 %v1205
        %1293 = vmatprep.subr.bf16.mxu0 0
        %1294 = vmatpush1.bf16.msra.mxu0 0
        %1295 = vmatprep.subr.bf16.mxu0 0
        %1296 = vmatpush1.bf16.msra.mxu0 0
        %1297 = vmatprep.subr.bf16.mxu0 0
        %1298 = vmatpush1.bf16.msra.mxu0 0
        %1299 = vmatprep.subr.bf16.mxu0 0
        %1300 = vmatpush1.bf16.msra.mxu0 0
        %1301 = vmatprep.subr.bf16.mxu0 0
        %1302 = vmatpush1.bf16.msra.mxu0 0
        %1303 = vmatprep.subr.bf16.mxu0 0
        %1304 = vmatpush1.bf16.msra.mxu0 0
        %1305 = vmatprep.subr.bf16.mxu0 0
        %1306 = vmatpush1.bf16.msra.mxu0 0
        %1307 = vmatprep.subr.bf16.mxu0 0
        %1308 = vmatpush1.bf16.msra.mxu0 0
        %1309 = vmatprep.subr.bf16.mxu0 0
        %1310 = vmatpush1.bf16.msra.mxu0 0
        %1311 = vmatprep.subr.bf16.mxu0 0
        %1312 = vmatpush1.bf16.msra.mxu0 0
        %1313 = vmatprep.subr.bf16.mxu0 0
        %1314 = vmatpush1.bf16.msra.mxu0 0
        %1315 = vmatprep.subr.bf16.mxu0 0
        %1316 = vmatpush1.bf16.msra.mxu0 0
        %1317 = vmatprep.subr.bf16.mxu0 0
        %1318 = vmatpush1.bf16.msra.mxu0 0
        %1319 = vmatprep.subr.bf16.mxu0 0
        %1320 = vmatpush1.bf16.msra.mxu0 0
        %1321 = vmatprep.mubr.bf16.mxu0 0
        %1322 = vmatmul.mubr.bf16.gmra.mrb[0].mxu0 %v1225
        %v1323 = vpop.f32.mrb[0].mxu0
        %v1324 = vadd.f32 %v1268, %v1323
        %v1325 = vpop.f32.mrb[0].mxu0
        %v1326 = vpop.f32.mrb[0].mxu0
        %v1327 = vadd.f32 %v1271, %v1326
        %v1328 = vpop.f32.mrb[0].mxu0
        %1329 = vmatprep.mubr.bf16.mxu0 0
        %1330 = vmatmul.mubr.bf16.gmra.mrb[0].mxu0 %v1228
        %v1331 = vpop.f32.mrb[0].mxu0
        %v1332 = vadd.f32 %v1276, %v1331
        %v1333 = vpop.f32.mrb[0].mxu0
        %v1334 = vpop.f32.mrb[0].mxu0
        %v1335 = vadd.f32 %v1279, %v1334
        %v1336 = vpop.f32.mrb[0].mxu0
        %1337 = vmatprep.mubr.bf16.mxu0 0
        %1338 = vmatmul.mubr.bf16.gmra.mrb[0].mxu0 %v1231
        %v1339 = vpop.f32.mrb[0].mxu0
        %v1340 = vadd.f32 %v1284, %v1339
        %v1341 = vpop.f32.mrb[0].mxu0
        %v1342 = vpop.f32.mrb[0].mxu0
        %v1343 = vpop.f32.mrb[0].mxu0
        %1344 = vdwg.mxu0
        %v1345 = vmax.f32 %v1324, 0.0
        %v1346 = vmax.f32 %v1327, 0.0
        %v1347 = vmax.f32 %v1332, 0.0
        %v1348 = vmax.f32 %v1335, 0.0
        %v1349 = vmax.f32 %v1340, 0.0
        %v1355 = vcombine.high %v1345, %v1345
        %v1357 = vunpack.c.l.s4 1983009808
        %v1358 = vunpack.c.0.s8 %v1357
        %v1359 = vlaneseq
        %v1360 = vshrl.u32 %v1359, 7
        %v1361 = vsub.s32 %v1358, %v1360
        %v1362 = vrot.slane %v1345, %v1361
        %v1364 = vunpack.c.l.s4 1983009808
        %v1365 = vunpack.c.0.s8 %v1364
        %v1366 = vlaneseq
        %v1367 = vshrl.u32 %v1366, 7
        %v1368 = vsub.s32 %v1365, %v1367
        %v1369 = vrot.slane %v1355, %v1368
        %v1370 = vcombine.high %v1362, %v1362
        %v1371 = vcombine.high %v1369, %v1369
        %v1372 = vcombine.high %v1346, %v1346
        %v1374 = vunpack.c.l.s4 1983009808
        %v1375 = vunpack.c.0.s8 %v1374
        %v1376 = vlaneseq
        %v1377 = vshrl.u32 %v1376, 7
        %v1378 = vsub.s32 %v1375, %v1377
        %v1379 = vrot.slane %v1346, %v1378
        %v1381 = vunpack.c.l.s4 1983009808
        %v1382 = vunpack.c.0.s8 %v1381
        %v1383 = vlaneseq
        %v1384 = vshrl.u32 %v1383, 7
        %v1385 = vsub.s32 %v1382, %v1384
        %v1386 = vrot.slane %v1372, %v1385
        %v1387 = vcombine.high %v1379, %v1379
        %v1388 = vcombine.high %v1386, %v1386
        %v1389 = vcombine.high %v1347, %v1347
        %v1391 = vunpack.c.l.s4 1983009808
        %v1392 = vunpack.c.0.s8 %v1391
        %v1393 = vlaneseq
        %v1394 = vshrl.u32 %v1393, 7
        %v1395 = vsub.s32 %v1392, %v1394
        %v1396 = vrot.slane %v1347, %v1395
        %v1398 = vunpack.c.l.s4 1983009808
        %v1399 = vunpack.c.0.s8 %v1398
        %v1400 = vlaneseq
        %v1401 = vshrl.u32 %v1400, 7
        %v1402 = vsub.s32 %v1399, %v1401
        %v1403 = vrot.slane %v1389, %v1402
        %v1404 = vcombine.high %v1396, %v1396
        %v1405 = vcombine.high %v1403, %v1403
        %v1406 = vcombine.high %v1348, %v1348
        %v1408 = vunpack.c.l.s4 1983009808
        %v1409 = vunpack.c.0.s8 %v1408
        %v1410 = vlaneseq
        %v1411 = vshrl.u32 %v1410, 7
        %v1412 = vsub.s32 %v1409, %v1411
        %v1413 = vrot.slane %v1348, %v1412
        %v1415 = vunpack.c.l.s4 1983009808
        %v1416 = vunpack.c.0.s8 %v1415
        %v1417 = vlaneseq
        %v1418 = vshrl.u32 %v1417, 7
        %v1419 = vsub.s32 %v1416, %v1418
        %v1420 = vrot.slane %v1406, %v1419
        %v1421 = vcombine.high %v1413, %v1413
        %v1422 = vcombine.high %v1420, %v1420
        %v1424 = vunpack.c.l.s4 1983009808
        %v1425 = vunpack.c.0.s8 %v1424
        %v1426 = vlaneseq
        %v1427 = vshrl.u32 %v1426, 7
        %v1428 = vsub.s32 %v1425, %v1427
        %v1429 = vrot.slane %v1349, %v1428
        %v1430 = vcombine.high %v1429, %v1429
        %v1431 = vcombine.low %v1362, %v1370
        %v1433 = vunpack.c.l.s4 1983009808
        %v1434 = vunpack.c.0.s8 %v1433
        %v1435 = vlaneseq
        %v1436 = vshrl.u32 %v1435, 7
        %v1437 = vsub.s32 %v1434, %v1436
        %v1438 = vrot.slane %v1431, %v1437
        %v1440 = vunpack.c.l.s4 1983009808
        %v1441 = vunpack.c.0.s8 %v1440
        %v1442 = vlaneseq
        %v1443 = vshrl.u32 %v1442, 7
        %v1444 = vsub.s32 %v1441, %v1443
        %v1445 = vrot.slane %v1369, %v1444
        %v1446 = vcombine.low %v1438, %v1445
        %v1447 = vcombine.low %v1371, %v1379
        %v1449 = vunpack.c.l.s4 1983009808
        %v1450 = vunpack.c.0.s8 %v1449
        %v1451 = vlaneseq
        %v1452 = vshrl.u32 %v1451, 7
        %v1453 = vsub.s32 %v1450, %v1452
        %v1454 = vrot.slane %v1447, %v1453
        %v1456 = vunpack.c.l.s4 1983009808
        %v1457 = vunpack.c.0.s8 %v1456
        %v1458 = vlaneseq
        %v1459 = vshrl.u32 %v1458, 7
        %v1460 = vsub.s32 %v1457, %v1459
        %v1461 = vrot.slane %v1387, %v1460
        %v1462 = vcombine.low %v1454, %v1461
        %v1463 = vcombine.low %v1386, %v1388
        %v1465 = vunpack.c.l.s4 1983009808
        %v1466 = vunpack.c.0.s8 %v1465
        %v1467 = vlaneseq
        %v1468 = vshrl.u32 %v1467, 7
        %v1469 = vsub.s32 %v1466, %v1468
        %v1470 = vrot.slane %v1463, %v1469
        %v1472 = vunpack.c.l.s4 1983009808
        %v1473 = vunpack.c.0.s8 %v1472
        %v1474 = vlaneseq
        %v1475 = vshrl.u32 %v1474, 7
        %v1476 = vsub.s32 %v1473, %v1475
        %v1477 = vrot.slane %v1396, %v1476
        %v1478 = vcombine.low %v1470, %v1477
        %v1479 = vcombine.low %v1404, %v1403
        %v1481 = vunpack.c.l.s4 1983009808
        %v1482 = vunpack.c.0.s8 %v1481
        %v1483 = vlaneseq
        %v1484 = vshrl.u32 %v1483, 7
        %v1485 = vsub.s32 %v1482, %v1484
        %v1486 = vrot.slane %v1479, %v1485
        %v1488 = vunpack.c.l.s4 1983009808
        %v1489 = vunpack.c.0.s8 %v1488
        %v1490 = vlaneseq
        %v1491 = vshrl.u32 %v1490, 7
        %v1492 = vsub.s32 %v1489, %v1491
        %v1493 = vrot.slane %v1405, %v1492
        %v1494 = vcombine.low %v1486, %v1493
        %v1495 = vcombine.low %v1413, %v1421
        %v1497 = vunpack.c.l.s4 1983009808
        %v1498 = vunpack.c.0.s8 %v1497
        %v1499 = vlaneseq
        %v1500 = vshrl.u32 %v1499, 7
        %v1501 = vsub.s32 %v1498, %v1500
        %v1502 = vrot.slane %v1495, %v1501
        %v1504 = vunpack.c.l.s4 1983009808
        %v1505 = vunpack.c.0.s8 %v1504
        %v1506 = vlaneseq
        %v1507 = vshrl.u32 %v1506, 7
        %v1508 = vsub.s32 %v1505, %v1507
        %v1509 = vrot.slane %v1420, %v1508
        %v1510 = vcombine.low %v1502, %v1509
        %v1511 = vcombine.low %v1422, %v1429
        %v1513 = vunpack.c.l.s4 1983009808
        %v1514 = vunpack.c.0.s8 %v1513
        %v1515 = vlaneseq
        %v1516 = vshrl.u32 %v1515, 7
        %v1517 = vsub.s32 %v1514, %v1516
        %v1518 = vrot.slane %v1511, %v1517
        %v1520 = vunpack.c.l.s4 1983009808
        %v1521 = vunpack.c.0.s8 %v1520
        %v1522 = vlaneseq
        %v1523 = vshrl.u32 %v1522, 7
        %v1524 = vsub.s32 %v1521, %v1523
        %v1525 = vrot.slane %v1430, %v1524
        %v1526 = vcombine.low %v1518, %v1525
        %vm1533 = vcmask 521216
        %1534 = vst.msk [vmem:[#allocation2] sm:$0x3f] %vm1533, %v1446
        %1535 = vst.msk [vmem:[#allocation2 + $0x8] sm:$0x3f] %vm1533, %v1462
        %1536 = vst.msk [vmem:[#allocation2 + $0x10] sm:$0x3f] %vm1533, %v1478
        %1537 = vst.msk [vmem:[#allocation2 + $0x18] sm:$0x3f] %vm1533, %v1494
        %1538 = vst.msk [vmem:[#allocation2 + $0x20] sm:$0x3f] %vm1533, %v1510
        %1539 = vst.msk [vmem:[#allocation2 + $0x28] sm:$0x3f] %vm1533, %v1526
        %v1540 = vld [vmem:[%s404] sm:$0xff]
        %v1541 = vld [vmem:[%s404 + $0x8] sm:$0xff]
        %v1542 = vld [vmem:[%s404 + $0x10] sm:$0xff]
        %v1543 = vld [vmem:[%s404 + $0x18] sm:$0xff]
        %v1544 = vld [vmem:[%s404 + $0x20] sm:$0xff]
        %v1545 = vld [vmem:[%s404 + $0x28] sm:$0xff]
        %v1546 = vld [vmem:[%s404 + $0x30] sm:$0xff]
        %v1547 = vld [vmem:[%s404 + $0x38] sm:$0xff]
        %v1548 = vld [vmem:[%s404 + $0x40] sm:$0xff]
        %v1549 = vld [vmem:[%s404 + $0x48] sm:$0xff]
        %v1550 = vld [vmem:[%s404 + $0x50] sm:$0xff]
        %v1551 = vld [vmem:[%s404 + $0x58] sm:$0xff]
        %v1552 = vld [vmem:[%s404 + $0x60] sm:$0xff]
        %v1553 = vld [vmem:[%s404 + $0x68] sm:$0xff]
        %v1554 = vld [vmem:[%s404 + $0x70] sm:$0xff]
        %v1555 = vld [vmem:[%s404 + $0x78] sm:$0xff]
        %v1556 = vld [vmem:[%s404 + $0x80] sm:$0xff]
        %v1557 = vld [vmem:[%s404 + $0x88] sm:$0xff]
        %v1558 = vld [vmem:[%s404 + $0x90] sm:$0xff]
        %v1559 = vld [vmem:[%s404 + $0x98] sm:$0xff]
        %v1560 = vld [vmem:[%s404 + $0xa0] sm:$0xff]
        %v1561 = vld [vmem:[%s404 + $0xa8] sm:$0xff]
        %v1562 = vld [vmem:[%s404 + $0xb0] sm:$0xff]
        %v1563 = vld [vmem:[%s404 + $0xb8] sm:$0xff]
        %v1564 = vld [vmem:[%s404 + $0xc0] sm:$0xff]
        %v1565 = vld [vmem:[%s404 + $0xc8] sm:$0xff]
        %v1566 = vld [vmem:[%s404 + $0xd0] sm:$0xff]
        %v1567 = vld [vmem:[%s404 + $0xd8] sm:$0xff]
        %v1568 = vld [vmem:[%s404 + $0xe0] sm:$0xff]
        %v1569 = vld [vmem:[%s404 + $0xe8] sm:$0xff]
        %v1570 = vld [vmem:[%s404 + $0xf0] sm:$0xff]
        %v1571 = vld [vmem:[%s404 + $0xf8] sm:$0xff]
        %v1572 = vld [vmem:[#allocation10] sm:$0xf]
        %v1573 = vld [vmem:[#allocation10 + $0x4] sm:$0xf]
        %v1574 = vld [vmem:[#allocation10 + $0x8] sm:$0xf]
        %v1575 = vld [vmem:[#allocation10 + $0xc] sm:$0xf]
        %v1576 = vld [vmem:[#allocation10 + $0x10] sm:$0xf]
        %v1577 = vld [vmem:[#allocation10 + $0x14] sm:$0xf]
        %v1578 = vld [vmem:[#allocation10 + $0x18] sm:$0xf]
        %v1579 = vld [vmem:[#allocation10 + $0x1c] sm:$0xf]
        %v1580 = vld [vmem:[#allocation10 + $0x20] sm:$0xf]
        %v1581 = vld [vmem:[#allocation10 + $0x24] sm:$0xf]
        %v1582 = vld [vmem:[#allocation10 + $0x28] sm:$0xf]
        %v1583 = vld [vmem:[#allocation10 + $0x2c] sm:$0xf]
        %v1584 = vld [vmem:[#allocation10 + $0x30] sm:$0xf]
        %v1585 = vld [vmem:[#allocation10 + $0x34] sm:$0xf]
        %v1586 = vld [vmem:[#allocation10 + $0x38] sm:$0xf]
        %v1587 = vld [vmem:[#allocation10 + $0x3c] sm:$0xf]
        %v1588 = vld [vmem:[#allocation10 + $0x40] sm:$0xf]
        %v1589 = vld [vmem:[#allocation10 + $0x44] sm:$0xf]
        %v1590 = vld [vmem:[#allocation10 + $0x48] sm:$0xf]
        %v1591 = vld [vmem:[#allocation10 + $0x4c] sm:$0xf]
        %v1592 = vld [vmem:[#allocation10 + $0x50] sm:$0xf]
        %v1593 = vld [vmem:[#allocation10 + $0x54] sm:$0xf]
        %v1594 = vld [vmem:[#allocation10 + $0x58] sm:$0xf]
        %v1595 = vld [vmem:[#allocation10 + $0x5c] sm:$0xf]
        %v1596 = vld [vmem:[#allocation10 + $0x60] sm:$0xf]
        %v1597 = vld [vmem:[#allocation10 + $0x64] sm:$0xf]
        %v1598 = vld [vmem:[#allocation10 + $0x68] sm:$0xf]
        %v1599 = vld [vmem:[#allocation10 + $0x6c] sm:$0xf]
        %v1600 = vld [vmem:[#allocation10 + $0x70] sm:$0xf]
        %v1601 = vld [vmem:[#allocation10 + $0x74] sm:$0xf]
        %v1602 = vld [vmem:[#allocation10 + $0x78] sm:$0xf]
        %v1603 = vld [vmem:[#allocation10 + $0x7c] sm:$0xf]
        %v1604 = vld [vmem:[#allocation10 + $0x80] sm:$0xf]
        %v1605 = vld [vmem:[#allocation10 + $0x84] sm:$0xf]
        %v1606 = vld [vmem:[#allocation10 + $0x88] sm:$0xf]
        %v1607 = vld [vmem:[#allocation10 + $0x8c] sm:$0xf]
        %v1608 = vld [vmem:[%s5] sm:$0x1]
        %v1609 = vpack.c.bf16 %v1541, %v1540
        %v1610 = vpack.c.bf16 %v1543, %v1542
        %v1611 = vpack.c.bf16 %v1545, %v1544
        %v1612 = vpack.c.bf16 %v1547, %v1546
        %v1613 = vpack.c.bf16 %v1549, %v1548
        %v1614 = vpack.c.bf16 %v1551, %v1550
        %v1615 = vpack.c.bf16 %v1553, %v1552
        %v1616 = vpack.c.bf16 %v1555, %v1554
        %v1617 = vpack.c.bf16 %v1557, %v1556
        %v1618 = vpack.c.bf16 %v1559, %v1558
        %v1619 = vpack.c.bf16 %v1561, %v1560
        %v1620 = vpack.c.bf16 %v1563, %v1562
        %v1621 = vpack.c.bf16 %v1565, %v1564
        %v1622 = vpack.c.bf16 %v1567, %v1566
        %v1623 = vpack.c.bf16 %v1569, %v1568
        %v1624 = vpack.c.bf16 %v1571, %v1570
        %v1626 = vshrl.u32 %v1609, 16
        %v1628 = vshll.u32 %v1609, 16
        %v1630 = vrot.slane %v1628, 1
        %v1631 = vor.u32 %v1626, %v1630
        %v1633 = vshrl.u32 %v1610, 16
        %v1635 = vshll.u32 %v1610, 16
        %v1637 = vrot.slane %v1635, 1
        %v1638 = vor.u32 %v1633, %v1637
        %v1640 = vshrl.u32 %v1611, 16
        %v1642 = vshll.u32 %v1611, 16
        %v1644 = vrot.slane %v1642, 1
        %v1645 = vor.u32 %v1640, %v1644
        %v1647 = vshrl.u32 %v1612, 16
        %v1649 = vshll.u32 %v1612, 16
        %v1651 = vrot.slane %v1649, 1
        %v1652 = vor.u32 %v1647, %v1651
        %v1654 = vshrl.u32 %v1613, 16
        %v1656 = vshll.u32 %v1613, 16
        %v1658 = vrot.slane %v1656, 1
        %v1659 = vor.u32 %v1654, %v1658
        %v1661 = vshrl.u32 %v1614, 16
        %v1663 = vshll.u32 %v1614, 16
        %v1665 = vrot.slane %v1663, 1
        %v1666 = vor.u32 %v1661, %v1665
        %v1668 = vshrl.u32 %v1615, 16
        %v1670 = vshll.u32 %v1615, 16
        %v1672 = vrot.slane %v1670, 1
        %v1673 = vor.u32 %v1668, %v1672
        %v1675 = vshrl.u32 %v1616, 16
        %v1677 = vshll.u32 %v1616, 16
        %v1679 = vrot.slane %v1677, 1
        %v1680 = vor.u32 %v1675, %v1679
        %v1682 = vshrl.u32 %v1617, 16
        %v1684 = vshll.u32 %v1617, 16
        %v1686 = vrot.slane %v1684, 1
        %v1687 = vor.u32 %v1682, %v1686
        %v1689 = vshrl.u32 %v1618, 16
        %v1691 = vshll.u32 %v1618, 16
        %v1693 = vrot.slane %v1691, 1
        %v1694 = vor.u32 %v1689, %v1693
        %v1696 = vshrl.u32 %v1619, 16
        %v1698 = vshll.u32 %v1619, 16
        %v1700 = vrot.slane %v1698, 1
        %v1701 = vor.u32 %v1696, %v1700
        %v1703 = vshrl.u32 %v1620, 16
        %v1705 = vshll.u32 %v1620, 16
        %v1707 = vrot.slane %v1705, 1
        %v1708 = vor.u32 %v1703, %v1707
        %v1710 = vshrl.u32 %v1621, 16
        %v1712 = vshll.u32 %v1621, 16
        %v1714 = vrot.slane %v1712, 1
        %v1715 = vor.u32 %v1710, %v1714
        %v1717 = vshrl.u32 %v1622, 16
        %v1719 = vshll.u32 %v1622, 16
        %v1721 = vrot.slane %v1719, 1
        %v1722 = vor.u32 %v1717, %v1721
        %1723 = vrot.lane.b32.xlu0 %v1631, 32
        %v1724 = vpop.permute.xlu0 %1723
        %1725 = vrot.lane.b32.xlu0 %v1638, 32
        %v1726 = vpop.permute.xlu0 %1725
        %1727 = vrot.lane.b32.xlu0 %v1645, 32
        %v1728 = vpop.permute.xlu0 %1727
        %1729 = vrot.lane.b32.xlu0 %v1652, 32
        %v1730 = vpop.permute.xlu0 %1729
        %1731 = vrot.lane.b32.xlu0 %v1659, 32
        %v1732 = vpop.permute.xlu0 %1731
        %1733 = vrot.lane.b32.xlu0 %v1666, 32
        %v1734 = vpop.permute.xlu0 %1733
        %1735 = vrot.lane.b32.xlu0 %v1673, 32
        %v1736 = vpop.permute.xlu0 %1735
        %1737 = vrot.lane.b32.xlu0 %v1680, 32
        %v1738 = vpop.permute.xlu0 %1737
        %1739 = vrot.lane.b32.xlu0 %v1687, 32
        %v1740 = vpop.permute.xlu0 %1739
        %1741 = vrot.lane.b32.xlu0 %v1694, 32
        %v1742 = vpop.permute.xlu0 %1741
        %1743 = vrot.lane.b32.xlu0 %v1701, 32
        %v1744 = vpop.permute.xlu0 %1743
        %1745 = vrot.lane.b32.xlu0 %v1708, 32
        %v1746 = vpop.permute.xlu0 %1745
        %1747 = vrot.lane.b32.xlu0 %v1715, 32
        %v1748 = vpop.permute.xlu0 %1747
        %1749 = vrot.lane.b32.xlu0 %v1722, 32
        %v1750 = vpop.permute.xlu0 %1749
        %v1765 = vrot.slane %v1609, 1
        %v1766 = vrot.slane %v1610, 1
        %v1767 = vrot.slane %v1611, 1
        %v1768 = vrot.slane %v1612, 1
        %v1769 = vrot.slane %v1613, 1
        %v1770 = vrot.slane %v1614, 1
        %v1771 = vrot.slane %v1615, 1
        %v1772 = vrot.slane %v1616, 1
        %v1773 = vrot.slane %v1617, 1
        %v1774 = vrot.slane %v1618, 1
        %v1775 = vrot.slane %v1619, 1
        %v1776 = vrot.slane %v1620, 1
        %v1777 = vrot.slane %v1621, 1
        %v1778 = vrot.slane %v1622, 1
        %1779 = vrot.lane.b32.xlu0 %v1765, 64
        %v1780 = vpop.permute.xlu0 %1779
        %1781 = vrot.lane.b32.xlu0 %v1766, 64
        %v1782 = vpop.permute.xlu0 %1781
        %1783 = vrot.lane.b32.xlu0 %v1767, 64
        %v1784 = vpop.permute.xlu0 %1783
        %1785 = vrot.lane.b32.xlu0 %v1768, 64
        %v1786 = vpop.permute.xlu0 %1785
        %1787 = vrot.lane.b32.xlu0 %v1769, 64
        %v1788 = vpop.permute.xlu0 %1787
        %1789 = vrot.lane.b32.xlu0 %v1770, 64
        %v1790 = vpop.permute.xlu0 %1789
        %1791 = vrot.lane.b32.xlu0 %v1771, 64
        %v1792 = vpop.permute.xlu0 %1791
        %1793 = vrot.lane.b32.xlu0 %v1772, 64
        %v1794 = vpop.permute.xlu0 %1793
        %1795 = vrot.lane.b32.xlu0 %v1773, 64
        %v1796 = vpop.permute.xlu0 %1795
        %1797 = vrot.lane.b32.xlu0 %v1774, 64
        %v1798 = vpop.permute.xlu0 %1797
        %1799 = vrot.lane.b32.xlu0 %v1775, 64
        %v1800 = vpop.permute.xlu0 %1799
        %1801 = vrot.lane.b32.xlu0 %v1776, 64
        %v1802 = vpop.permute.xlu0 %1801
        %1803 = vrot.lane.b32.xlu0 %v1777, 64
        %v1804 = vpop.permute.xlu0 %1803
        %1805 = vrot.lane.b32.xlu0 %v1778, 64
        %v1806 = vpop.permute.xlu0 %1805
        %1808 = vrot.lane.b32.xlu0 %v1610, 96
        %v1809 = vpop.permute.xlu0 %1808
        %1810 = vrot.lane.b32.xlu0 %v1611, 96
        %v1811 = vpop.permute.xlu0 %1810
        %1812 = vrot.lane.b32.xlu0 %v1612, 96
        %v1813 = vpop.permute.xlu0 %1812
        %1814 = vrot.lane.b32.xlu0 %v1613, 96
        %v1815 = vpop.permute.xlu0 %1814
        %1816 = vrot.lane.b32.xlu0 %v1614, 96
        %v1817 = vpop.permute.xlu0 %1816
        %1818 = vrot.lane.b32.xlu0 %v1615, 96
        %v1819 = vpop.permute.xlu0 %1818
        %1820 = vrot.lane.b32.xlu0 %v1616, 96
        %v1821 = vpop.permute.xlu0 %1820
        %1822 = vrot.lane.b32.xlu0 %v1617, 96
        %v1823 = vpop.permute.xlu0 %1822
        %1824 = vrot.lane.b32.xlu0 %v1618, 96
        %v1825 = vpop.permute.xlu0 %1824
        %1826 = vrot.lane.b32.xlu0 %v1619, 96
        %v1827 = vpop.permute.xlu0 %1826
        %1828 = vrot.lane.b32.xlu0 %v1620, 96
        %v1829 = vpop.permute.xlu0 %1828
        %1830 = vrot.lane.b32.xlu0 %v1621, 96
        %v1831 = vpop.permute.xlu0 %1830
        %1832 = vrot.lane.b32.xlu0 %v1622, 96
        %v1833 = vpop.permute.xlu0 %1832
        %1834 = vrot.lane.b32.xlu0 %v1623, 96
        %v1835 = vpop.permute.xlu0 %1834
        %v1837 = vshrl.u32 %v1623, 16
        %v1839 = vshll.u32 %v1623, 16
        %v1841 = vrot.slane %v1839, 1
        %v1842 = vor.u32 %v1837, %v1841
        %v1843 = vrot.slane %v1623, 1
        %1844 = vrot.lane.b32.xlu0 %v1766, 32
        %v1845 = vpop.permute.xlu0 %1844
        %1846 = vrot.lane.b32.xlu0 %v1767, 32
        %v1847 = vpop.permute.xlu0 %1846
        %1848 = vrot.lane.b32.xlu0 %v1768, 32
        %v1849 = vpop.permute.xlu0 %1848
        %1850 = vrot.lane.b32.xlu0 %v1769, 32
        %v1851 = vpop.permute.xlu0 %1850
        %1852 = vrot.lane.b32.xlu0 %v1770, 32
        %v1853 = vpop.permute.xlu0 %1852
        %1854 = vrot.lane.b32.xlu0 %v1771, 32
        %v1855 = vpop.permute.xlu0 %1854
        %1856 = vrot.lane.b32.xlu0 %v1772, 32
        %v1857 = vpop.permute.xlu0 %1856
        %1858 = vrot.lane.b32.xlu0 %v1773, 32
        %v1859 = vpop.permute.xlu0 %1858
        %1860 = vrot.lane.b32.xlu0 %v1774, 32
        %v1861 = vpop.permute.xlu0 %1860
        %1862 = vrot.lane.b32.xlu0 %v1775, 32
        %v1863 = vpop.permute.xlu0 %1862
        %1864 = vrot.lane.b32.xlu0 %v1776, 32
        %v1865 = vpop.permute.xlu0 %1864
        %1866 = vrot.lane.b32.xlu0 %v1777, 32
        %v1867 = vpop.permute.xlu0 %1866
        %1868 = vrot.lane.b32.xlu0 %v1778, 32
        %v1869 = vpop.permute.xlu0 %1868
        %1870 = vrot.lane.b32.xlu0 %v1843, 32
        %v1871 = vpop.permute.xlu0 %1870
        %1873 = vrot.lane.b32.xlu0 %v1611, 64
        %v1874 = vpop.permute.xlu0 %1873
        %1875 = vrot.lane.b32.xlu0 %v1612, 64
        %v1876 = vpop.permute.xlu0 %1875
        %1877 = vrot.lane.b32.xlu0 %v1613, 64
        %v1878 = vpop.permute.xlu0 %1877
        %1879 = vrot.lane.b32.xlu0 %v1614, 64
        %v1880 = vpop.permute.xlu0 %1879
        %1881 = vrot.lane.b32.xlu0 %v1615, 64
        %v1882 = vpop.permute.xlu0 %1881
        %1883 = vrot.lane.b32.xlu0 %v1616, 64
        %v1884 = vpop.permute.xlu0 %1883
        %1885 = vrot.lane.b32.xlu0 %v1617, 64
        %v1886 = vpop.permute.xlu0 %1885
        %1887 = vrot.lane.b32.xlu0 %v1618, 64
        %v1888 = vpop.permute.xlu0 %1887
        %1889 = vrot.lane.b32.xlu0 %v1619, 64
        %v1890 = vpop.permute.xlu0 %1889
        %1891 = vrot.lane.b32.xlu0 %v1620, 64
        %v1892 = vpop.permute.xlu0 %1891
        %1893 = vrot.lane.b32.xlu0 %v1621, 64
        %v1894 = vpop.permute.xlu0 %1893
        %1895 = vrot.lane.b32.xlu0 %v1622, 64
        %v1896 = vpop.permute.xlu0 %1895
        %1897 = vrot.lane.b32.xlu0 %v1623, 64
        %v1898 = vpop.permute.xlu0 %1897
        %1899 = vrot.lane.b32.xlu0 %v1624, 64
        %v1900 = vpop.permute.xlu0 %1899
        %v1902 = vshrl.u32 %v1624, 16
        %v1904 = vshll.u32 %v1624, 16
        %v1906 = vrot.slane %v1904, 1
        %v1907 = vor.u32 %v1902, %v1906
        %1908 = vrot.lane.b32.xlu0 %v1645, 96
        %v1909 = vpop.permute.xlu0 %1908
        %1910 = vrot.lane.b32.xlu0 %v1652, 96
        %v1911 = vpop.permute.xlu0 %1910
        %1912 = vrot.lane.b32.xlu0 %v1659, 96
        %v1913 = vpop.permute.xlu0 %1912
        %1914 = vrot.lane.b32.xlu0 %v1666, 96
        %v1915 = vpop.permute.xlu0 %1914
        %1916 = vrot.lane.b32.xlu0 %v1673, 96
        %v1917 = vpop.permute.xlu0 %1916
        %1918 = vrot.lane.b32.xlu0 %v1680, 96
        %v1919 = vpop.permute.xlu0 %1918
        %1920 = vrot.lane.b32.xlu0 %v1687, 96
        %v1921 = vpop.permute.xlu0 %1920
        %1922 = vrot.lane.b32.xlu0 %v1694, 96
        %v1923 = vpop.permute.xlu0 %1922
        %1924 = vrot.lane.b32.xlu0 %v1701, 96
        %v1925 = vpop.permute.xlu0 %1924
        %1926 = vrot.lane.b32.xlu0 %v1708, 96
        %v1927 = vpop.permute.xlu0 %1926
        %1928 = vrot.lane.b32.xlu0 %v1715, 96
        %v1929 = vpop.permute.xlu0 %1928
        %1930 = vrot.lane.b32.xlu0 %v1722, 96
        %v1931 = vpop.permute.xlu0 %1930
        %1932 = vrot.lane.b32.xlu0 %v1842, 96
        %v1933 = vpop.permute.xlu0 %1932
        %1934 = vrot.lane.b32.xlu0 %v1907, 96
        %v1935 = vpop.permute.xlu0 %1934
        %v1936 = vrot.slane %v1624, 1
        %v1938 = vsel %vm661, %v1609, %v1724
        %v1940 = vsel %vm661, %v1610, %v1726
        %v1942 = vsel %vm661, %v1611, %v1728
        %v1944 = vsel %vm661, %v1612, %v1730
        %v1946 = vsel %vm661, %v1613, %v1732
        %v1948 = vsel %vm661, %v1614, %v1734
        %v1950 = vsel %vm661, %v1615, %v1736
        %v1952 = vsel %vm661, %v1616, %v1738
        %v1954 = vsel %vm661, %v1617, %v1740
        %v1956 = vsel %vm661, %v1618, %v1742
        %v1958 = vsel %vm661, %v1619, %v1744
        %v1960 = vsel %vm661, %v1620, %v1746
        %v1962 = vsel %vm661, %v1621, %v1748
        %v1964 = vsel %vm661, %v1622, %v1750
        %v1966 = vsel %vm674, %v1938, %v1780
        %v1968 = vsel %vm674, %v1940, %v1782
        %v1970 = vsel %vm674, %v1942, %v1784
        %v1972 = vsel %vm674, %v1944, %v1786
        %v1974 = vsel %vm674, %v1946, %v1788
        %v1976 = vsel %vm674, %v1948, %v1790
        %v1978 = vsel %vm674, %v1950, %v1792
        %v1980 = vsel %vm674, %v1952, %v1794
        %v1982 = vsel %vm674, %v1954, %v1796
        %v1984 = vsel %vm674, %v1956, %v1798
        %v1986 = vsel %vm674, %v1958, %v1800
        %v1988 = vsel %vm674, %v1960, %v1802
        %v1990 = vsel %vm674, %v1962, %v1804
        %v1992 = vsel %vm674, %v1964, %v1806
        %v1994 = vsel %vm687, %v1966, %v1809
        %v1996 = vsel %vm687, %v1968, %v1811
        %v1998 = vsel %vm687, %v1970, %v1813
        %v2000 = vsel %vm687, %v1972, %v1815
        %v2002 = vsel %vm687, %v1974, %v1817
        %v2004 = vsel %vm687, %v1976, %v1819
        %v2006 = vsel %vm687, %v1978, %v1821
        %v2008 = vsel %vm687, %v1980, %v1823
        %v2010 = vsel %vm687, %v1982, %v1825
        %v2012 = vsel %vm687, %v1984, %v1827
        %v2014 = vsel %vm687, %v1986, %v1829
        %v2016 = vsel %vm687, %v1988, %v1831
        %v2018 = vsel %vm687, %v1990, %v1833
        %v2020 = vsel %vm687, %v1992, %v1835
        %v2023 = vsel %vm661, %v1638, %v1845
        %v2026 = vsel %vm661, %v1645, %v1847
        %v2029 = vsel %vm661, %v1652, %v1849
        %v2032 = vsel %vm661, %v1659, %v1851
        %v2035 = vsel %vm661, %v1666, %v1853
        %v2038 = vsel %vm661, %v1673, %v1855
        %v2041 = vsel %vm661, %v1680, %v1857
        %v2044 = vsel %vm661, %v1687, %v1859
        %v2047 = vsel %vm661, %v1694, %v1861
        %v2050 = vsel %vm661, %v1701, %v1863
        %v2053 = vsel %vm661, %v1708, %v1865
        %v2056 = vsel %vm661, %v1715, %v1867
        %v2059 = vsel %vm661, %v1722, %v1869
        %v2062 = vsel %vm661, %v1842, %v1871
        %v2064 = vsel %vm674, %v2023, %v1874
        %v2066 = vsel %vm674, %v2026, %v1876
        %v2068 = vsel %vm674, %v2029, %v1878
        %v2070 = vsel %vm674, %v2032, %v1880
        %v2072 = vsel %vm674, %v2035, %v1882
        %v2074 = vsel %vm674, %v2038, %v1884
        %v2076 = vsel %vm674, %v2041, %v1886
        %v2078 = vsel %vm674, %v2044, %v1888
        %v2080 = vsel %vm674, %v2047, %v1890
        %v2082 = vsel %vm674, %v2050, %v1892
        %v2084 = vsel %vm674, %v2053, %v1894
        %v2086 = vsel %vm674, %v2056, %v1896
        %v2088 = vsel %vm674, %v2059, %v1898
        %v2090 = vsel %vm674, %v2062, %v1900
        %v2092 = vsel %vm687, %v2064, %v1909
        %v2094 = vsel %vm687, %v2066, %v1911
        %v2096 = vsel %vm687, %v2068, %v1913
        %v2098 = vsel %vm687, %v2070, %v1915
        %v2100 = vsel %vm687, %v2072, %v1917
        %v2102 = vsel %vm687, %v2074, %v1919
        %v2104 = vsel %vm687, %v2076, %v1921
        %v2106 = vsel %vm687, %v2078, %v1923
        %v2108 = vsel %vm687, %v2080, %v1925
        %v2110 = vsel %vm687, %v2082, %v1927
        %v2112 = vsel %vm687, %v2084, %v1929
        %v2114 = vsel %vm687, %v2086, %v1931
        %v2116 = vsel %vm687, %v2088, %v1933
        %v2118 = vsel %vm687, %v2090, %v1935
        %v2147 = vcombine.low %v1994, %v2092
        %v2148 = vcombine.high %v1994, %v2092
        %v2149 = vcombine.high %v1767, %v1767
        %v2151 = vunpack.c.l.s4 1966171168
        %v2152 = vunpack.c.0.s8 %v2151
        %v2153 = vlaneseq
        %v2154 = vshrl.u32 %v2153, 7
        %v2155 = vsub.s32 %v2152, %v2154
        %v2156 = vrot.slane %v2147, %v2155
        %v2158 = vunpack.c.l.s4 1966171168
        %v2159 = vunpack.c.0.s8 %v2158
        %v2160 = vlaneseq
        %v2161 = vshrl.u32 %v2160, 7
        %v2162 = vsub.s32 %v2159, %v2161
        %v2163 = vrot.slane %v2148, %v2162
        %v2165 = vunpack.c.l.s4 1966171168
        %v2166 = vunpack.c.0.s8 %v2165
        %v2167 = vlaneseq
        %v2168 = vshrl.u32 %v2167, 7
        %v2169 = vsub.s32 %v2166, %v2168
        %v2170 = vrot.slane %v1767, %v2169
        %v2172 = vunpack.c.l.s4 1966171168
        %v2173 = vunpack.c.0.s8 %v2172
        %v2174 = vlaneseq
        %v2175 = vshrl.u32 %v2174, 7
        %v2176 = vsub.s32 %v2173, %v2175
        %v2177 = vrot.slane %v2149, %v2176
        %v2178 = vcombine.low %v2156, %v2170
        %v2179 = vcombine.high %v2156, %v2170
        %v2180 = vcombine.low %v2163, %v2177
        %v2181 = vcombine.high %v2163, %v2177
        %v2183 = vunpack.c.l.s4 1966171168
        %v2184 = vunpack.c.0.s8 %v2183
        %v2185 = vlaneseq
        %v2186 = vshrl.u32 %v2185, 7
        %v2187 = vsub.s32 %v2184, %v2186
        %v2188 = vrot.slane %v2178, %v2187
        %v2190 = vunpack.c.l.s4 1966171168
        %v2191 = vunpack.c.0.s8 %v2190
        %v2192 = vlaneseq
        %v2193 = vshrl.u32 %v2192, 7
        %v2194 = vsub.s32 %v2191, %v2193
        %v2195 = vrot.slane %v2180, %v2194
        %v2197 = vunpack.c.l.s4 1966171168
        %v2198 = vunpack.c.0.s8 %v2197
        %v2199 = vlaneseq
        %v2200 = vshrl.u32 %v2199, 7
        %v2201 = vsub.s32 %v2198, %v2200
        %v2202 = vrot.slane %v2179, %v2201
        %v2204 = vunpack.c.l.s4 1966171168
        %v2205 = vunpack.c.0.s8 %v2204
        %v2206 = vlaneseq
        %v2207 = vshrl.u32 %v2206, 7
        %v2208 = vsub.s32 %v2205, %v2207
        %v2209 = vrot.slane %v2181, %v2208
        %v2210 = vcombine.high %v2188, %v2188
        %v2211 = vcombine.high %v2195, %v2195
        %v2212 = vcombine.high %v2202, %v2202
        %v2213 = vcombine.low %v1996, %v2094
        %v2214 = vcombine.high %v1996, %v2094
        %v2215 = vcombine.high %v1768, %v1768
        %v2217 = vunpack.c.l.s4 1966171168
        %v2218 = vunpack.c.0.s8 %v2217
        %v2219 = vlaneseq
        %v2220 = vshrl.u32 %v2219, 7
        %v2221 = vsub.s32 %v2218, %v2220
        %v2222 = vrot.slane %v2213, %v2221
        %v2224 = vunpack.c.l.s4 1966171168
        %v2225 = vunpack.c.0.s8 %v2224
        %v2226 = vlaneseq
        %v2227 = vshrl.u32 %v2226, 7
        %v2228 = vsub.s32 %v2225, %v2227
        %v2229 = vrot.slane %v2214, %v2228
        %v2231 = vunpack.c.l.s4 1966171168
        %v2232 = vunpack.c.0.s8 %v2231
        %v2233 = vlaneseq
        %v2234 = vshrl.u32 %v2233, 7
        %v2235 = vsub.s32 %v2232, %v2234
        %v2236 = vrot.slane %v1768, %v2235
        %v2238 = vunpack.c.l.s4 1966171168
        %v2239 = vunpack.c.0.s8 %v2238
        %v2240 = vlaneseq
        %v2241 = vshrl.u32 %v2240, 7
        %v2242 = vsub.s32 %v2239, %v2241
        %v2243 = vrot.slane %v2215, %v2242
        %v2244 = vcombine.low %v2222, %v2236
        %v2245 = vcombine.high %v2222, %v2236
        %v2246 = vcombine.low %v2229, %v2243
        %v2247 = vcombine.high %v2229, %v2243
        %v2249 = vunpack.c.l.s4 1966171168
        %v2250 = vunpack.c.0.s8 %v2249
        %v2251 = vlaneseq
        %v2252 = vshrl.u32 %v2251, 7
        %v2253 = vsub.s32 %v2250, %v2252
        %v2254 = vrot.slane %v2244, %v2253
        %v2256 = vunpack.c.l.s4 1966171168
        %v2257 = vunpack.c.0.s8 %v2256
        %v2258 = vlaneseq
        %v2259 = vshrl.u32 %v2258, 7
        %v2260 = vsub.s32 %v2257, %v2259
        %v2261 = vrot.slane %v2246, %v2260
        %v2263 = vunpack.c.l.s4 1966171168
        %v2264 = vunpack.c.0.s8 %v2263
        %v2265 = vlaneseq
        %v2266 = vshrl.u32 %v2265, 7
        %v2267 = vsub.s32 %v2264, %v2266
        %v2268 = vrot.slane %v2245, %v2267
        %v2270 = vunpack.c.l.s4 1966171168
        %v2271 = vunpack.c.0.s8 %v2270
        %v2272 = vlaneseq
        %v2273 = vshrl.u32 %v2272, 7
        %v2274 = vsub.s32 %v2271, %v2273
        %v2275 = vrot.slane %v2247, %v2274
        %v2276 = vcombine.high %v2254, %v2254
        %v2277 = vcombine.high %v2261, %v2261
        %v2278 = vcombine.high %v2268, %v2268
        %v2279 = vcombine.low %v1998, %v2096
        %v2280 = vcombine.high %v1998, %v2096
        %v2281 = vcombine.high %v1769, %v1769
        %v2283 = vunpack.c.l.s4 1966171168
        %v2284 = vunpack.c.0.s8 %v2283
        %v2285 = vlaneseq
        %v2286 = vshrl.u32 %v2285, 7
        %v2287 = vsub.s32 %v2284, %v2286
        %v2288 = vrot.slane %v2279, %v2287
        %v2290 = vunpack.c.l.s4 1966171168
        %v2291 = vunpack.c.0.s8 %v2290
        %v2292 = vlaneseq
        %v2293 = vshrl.u32 %v2292, 7
        %v2294 = vsub.s32 %v2291, %v2293
        %v2295 = vrot.slane %v2280, %v2294
        %v2297 = vunpack.c.l.s4 1966171168
        %v2298 = vunpack.c.0.s8 %v2297
        %v2299 = vlaneseq
        %v2300 = vshrl.u32 %v2299, 7
        %v2301 = vsub.s32 %v2298, %v2300
        %v2302 = vrot.slane %v1769, %v2301
        %v2304 = vunpack.c.l.s4 1966171168
        %v2305 = vunpack.c.0.s8 %v2304
        %v2306 = vlaneseq
        %v2307 = vshrl.u32 %v2306, 7
        %v2308 = vsub.s32 %v2305, %v2307
        %v2309 = vrot.slane %v2281, %v2308
        %v2310 = vcombine.low %v2288, %v2302
        %v2311 = vcombine.high %v2288, %v2302
        %v2312 = vcombine.low %v2295, %v2309
        %v2313 = vcombine.high %v2295, %v2309
        %v2315 = vunpack.c.l.s4 1966171168
        %v2316 = vunpack.c.0.s8 %v2315
        %v2317 = vlaneseq
        %v2318 = vshrl.u32 %v2317, 7
        %v2319 = vsub.s32 %v2316, %v2318
        %v2320 = vrot.slane %v2310, %v2319
        %v2322 = vunpack.c.l.s4 1966171168
        %v2323 = vunpack.c.0.s8 %v2322
        %v2324 = vlaneseq
        %v2325 = vshrl.u32 %v2324, 7
        %v2326 = vsub.s32 %v2323, %v2325
        %v2327 = vrot.slane %v2312, %v2326
        %v2329 = vunpack.c.l.s4 1966171168
        %v2330 = vunpack.c.0.s8 %v2329
        %v2331 = vlaneseq
        %v2332 = vshrl.u32 %v2331, 7
        %v2333 = vsub.s32 %v2330, %v2332
        %v2334 = vrot.slane %v2311, %v2333
        %v2336 = vunpack.c.l.s4 1966171168
        %v2337 = vunpack.c.0.s8 %v2336
        %v2338 = vlaneseq
        %v2339 = vshrl.u32 %v2338, 7
        %v2340 = vsub.s32 %v2337, %v2339
        %v2341 = vrot.slane %v2313, %v2340
        %v2342 = vcombine.high %v2320, %v2320
        %v2343 = vcombine.high %v2327, %v2327
        %v2344 = vcombine.high %v2334, %v2334
        %v2345 = vcombine.low %v2000, %v2098
        %v2346 = vcombine.high %v2000, %v2098
        %v2347 = vcombine.high %v1770, %v1770
        %v2349 = vunpack.c.l.s4 1966171168
        %v2350 = vunpack.c.0.s8 %v2349
        %v2351 = vlaneseq
        %v2352 = vshrl.u32 %v2351, 7
        %v2353 = vsub.s32 %v2350, %v2352
        %v2354 = vrot.slane %v2345, %v2353
        %v2356 = vunpack.c.l.s4 1966171168
        %v2357 = vunpack.c.0.s8 %v2356
        %v2358 = vlaneseq
        %v2359 = vshrl.u32 %v2358, 7
        %v2360 = vsub.s32 %v2357, %v2359
        %v2361 = vrot.slane %v2346, %v2360
        %v2363 = vunpack.c.l.s4 1966171168
        %v2364 = vunpack.c.0.s8 %v2363
        %v2365 = vlaneseq
        %v2366 = vshrl.u32 %v2365, 7
        %v2367 = vsub.s32 %v2364, %v2366
        %v2368 = vrot.slane %v1770, %v2367
        %v2370 = vunpack.c.l.s4 1966171168
        %v2371 = vunpack.c.0.s8 %v2370
        %v2372 = vlaneseq
        %v2373 = vshrl.u32 %v2372, 7
        %v2374 = vsub.s32 %v2371, %v2373
        %v2375 = vrot.slane %v2347, %v2374
        %v2376 = vcombine.low %v2354, %v2368
        %v2377 = vcombine.high %v2354, %v2368
        %v2378 = vcombine.low %v2361, %v2375
        %v2379 = vcombine.high %v2361, %v2375
        %v2381 = vunpack.c.l.s4 1966171168
        %v2382 = vunpack.c.0.s8 %v2381
        %v2383 = vlaneseq
        %v2384 = vshrl.u32 %v2383, 7
        %v2385 = vsub.s32 %v2382, %v2384
        %v2386 = vrot.slane %v2376, %v2385
        %v2388 = vunpack.c.l.s4 1966171168
        %v2389 = vunpack.c.0.s8 %v2388
        %v2390 = vlaneseq
        %v2391 = vshrl.u32 %v2390, 7
        %v2392 = vsub.s32 %v2389, %v2391
        %v2393 = vrot.slane %v2378, %v2392
        %v2395 = vunpack.c.l.s4 1966171168
        %v2396 = vunpack.c.0.s8 %v2395
        %v2397 = vlaneseq
        %v2398 = vshrl.u32 %v2397, 7
        %v2399 = vsub.s32 %v2396, %v2398
        %v2400 = vrot.slane %v2377, %v2399
        %v2402 = vunpack.c.l.s4 1966171168
        %v2403 = vunpack.c.0.s8 %v2402
        %v2404 = vlaneseq
        %v2405 = vshrl.u32 %v2404, 7
        %v2406 = vsub.s32 %v2403, %v2405
        %v2407 = vrot.slane %v2379, %v2406
        %v2408 = vcombine.high %v2386, %v2386
        %v2409 = vcombine.high %v2393, %v2393
        %v2410 = vcombine.high %v2400, %v2400
        %v2411 = vcombine.low %v2002, %v2100
        %v2412 = vcombine.high %v2002, %v2100
        %v2413 = vcombine.high %v1771, %v1771
        %v2415 = vunpack.c.l.s4 1966171168
        %v2416 = vunpack.c.0.s8 %v2415
        %v2417 = vlaneseq
        %v2418 = vshrl.u32 %v2417, 7
        %v2419 = vsub.s32 %v2416, %v2418
        %v2420 = vrot.slane %v2411, %v2419
        %v2422 = vunpack.c.l.s4 1966171168
        %v2423 = vunpack.c.0.s8 %v2422
        %v2424 = vlaneseq
        %v2425 = vshrl.u32 %v2424, 7
        %v2426 = vsub.s32 %v2423, %v2425
        %v2427 = vrot.slane %v2412, %v2426
        %v2429 = vunpack.c.l.s4 1966171168
        %v2430 = vunpack.c.0.s8 %v2429
        %v2431 = vlaneseq
        %v2432 = vshrl.u32 %v2431, 7
        %v2433 = vsub.s32 %v2430, %v2432
        %v2434 = vrot.slane %v1771, %v2433
        %v2436 = vunpack.c.l.s4 1966171168
        %v2437 = vunpack.c.0.s8 %v2436
        %v2438 = vlaneseq
        %v2439 = vshrl.u32 %v2438, 7
        %v2440 = vsub.s32 %v2437, %v2439
        %v2441 = vrot.slane %v2413, %v2440
        %v2442 = vcombine.low %v2420, %v2434
        %v2443 = vcombine.high %v2420, %v2434
        %v2444 = vcombine.low %v2427, %v2441
        %v2445 = vcombine.high %v2427, %v2441
        %v2447 = vunpack.c.l.s4 1966171168
        %v2448 = vunpack.c.0.s8 %v2447
        %v2449 = vlaneseq
        %v2450 = vshrl.u32 %v2449, 7
        %v2451 = vsub.s32 %v2448, %v2450
        %v2452 = vrot.slane %v2442, %v2451
        %v2454 = vunpack.c.l.s4 1966171168
        %v2455 = vunpack.c.0.s8 %v2454
        %v2456 = vlaneseq
        %v2457 = vshrl.u32 %v2456, 7
        %v2458 = vsub.s32 %v2455, %v2457
        %v2459 = vrot.slane %v2444, %v2458
        %v2461 = vunpack.c.l.s4 1966171168
        %v2462 = vunpack.c.0.s8 %v2461
        %v2463 = vlaneseq
        %v2464 = vshrl.u32 %v2463, 7
        %v2465 = vsub.s32 %v2462, %v2464
        %v2466 = vrot.slane %v2443, %v2465
        %v2468 = vunpack.c.l.s4 1966171168
        %v2469 = vunpack.c.0.s8 %v2468
        %v2470 = vlaneseq
        %v2471 = vshrl.u32 %v2470, 7
        %v2472 = vsub.s32 %v2469, %v2471
        %v2473 = vrot.slane %v2445, %v2472
        %v2474 = vcombine.high %v2452, %v2452
        %v2475 = vcombine.high %v2459, %v2459
        %v2476 = vcombine.high %v2466, %v2466
        %v2477 = vcombine.low %v2004, %v2102
        %v2478 = vcombine.high %v2004, %v2102
        %v2479 = vcombine.high %v1772, %v1772
        %v2481 = vunpack.c.l.s4 1966171168
        %v2482 = vunpack.c.0.s8 %v2481
        %v2483 = vlaneseq
        %v2484 = vshrl.u32 %v2483, 7
        %v2485 = vsub.s32 %v2482, %v2484
        %v2486 = vrot.slane %v2477, %v2485
        %v2488 = vunpack.c.l.s4 1966171168
        %v2489 = vunpack.c.0.s8 %v2488
        %v2490 = vlaneseq
        %v2491 = vshrl.u32 %v2490, 7
        %v2492 = vsub.s32 %v2489, %v2491
        %v2493 = vrot.slane %v2478, %v2492
        %v2495 = vunpack.c.l.s4 1966171168
        %v2496 = vunpack.c.0.s8 %v2495
        %v2497 = vlaneseq
        %v2498 = vshrl.u32 %v2497, 7
        %v2499 = vsub.s32 %v2496, %v2498
        %v2500 = vrot.slane %v1772, %v2499
        %v2502 = vunpack.c.l.s4 1966171168
        %v2503 = vunpack.c.0.s8 %v2502
        %v2504 = vlaneseq
        %v2505 = vshrl.u32 %v2504, 7
        %v2506 = vsub.s32 %v2503, %v2505
        %v2507 = vrot.slane %v2479, %v2506
        %v2508 = vcombine.low %v2486, %v2500
        %v2509 = vcombine.high %v2486, %v2500
        %v2510 = vcombine.low %v2493, %v2507
        %v2511 = vcombine.high %v2493, %v2507
        %v2513 = vunpack.c.l.s4 1966171168
        %v2514 = vunpack.c.0.s8 %v2513
        %v2515 = vlaneseq
        %v2516 = vshrl.u32 %v2515, 7
        %v2517 = vsub.s32 %v2514, %v2516
        %v2518 = vrot.slane %v2508, %v2517
        %v2520 = vunpack.c.l.s4 1966171168
        %v2521 = vunpack.c.0.s8 %v2520
        %v2522 = vlaneseq
        %v2523 = vshrl.u32 %v2522, 7
        %v2524 = vsub.s32 %v2521, %v2523
        %v2525 = vrot.slane %v2510, %v2524
        %v2527 = vunpack.c.l.s4 1966171168
        %v2528 = vunpack.c.0.s8 %v2527
        %v2529 = vlaneseq
        %v2530 = vshrl.u32 %v2529, 7
        %v2531 = vsub.s32 %v2528, %v2530
        %v2532 = vrot.slane %v2509, %v2531
        %v2534 = vunpack.c.l.s4 1966171168
        %v2535 = vunpack.c.0.s8 %v2534
        %v2536 = vlaneseq
        %v2537 = vshrl.u32 %v2536, 7
        %v2538 = vsub.s32 %v2535, %v2537
        %v2539 = vrot.slane %v2511, %v2538
        %v2540 = vcombine.high %v2518, %v2518
        %v2541 = vcombine.high %v2525, %v2525
        %v2542 = vcombine.high %v2532, %v2532
        %v2543 = vcombine.low %v2006, %v2104
        %v2544 = vcombine.high %v2006, %v2104
        %v2545 = vcombine.high %v1773, %v1773
        %v2547 = vunpack.c.l.s4 1966171168
        %v2548 = vunpack.c.0.s8 %v2547
        %v2549 = vlaneseq
        %v2550 = vshrl.u32 %v2549, 7
        %v2551 = vsub.s32 %v2548, %v2550
        %v2552 = vrot.slane %v2543, %v2551
        %v2554 = vunpack.c.l.s4 1966171168
        %v2555 = vunpack.c.0.s8 %v2554
        %v2556 = vlaneseq
        %v2557 = vshrl.u32 %v2556, 7
        %v2558 = vsub.s32 %v2555, %v2557
        %v2559 = vrot.slane %v2544, %v2558
        %v2561 = vunpack.c.l.s4 1966171168
        %v2562 = vunpack.c.0.s8 %v2561
        %v2563 = vlaneseq
        %v2564 = vshrl.u32 %v2563, 7
        %v2565 = vsub.s32 %v2562, %v2564
        %v2566 = vrot.slane %v1773, %v2565
        %v2568 = vunpack.c.l.s4 1966171168
        %v2569 = vunpack.c.0.s8 %v2568
        %v2570 = vlaneseq
        %v2571 = vshrl.u32 %v2570, 7
        %v2572 = vsub.s32 %v2569, %v2571
        %v2573 = vrot.slane %v2545, %v2572
        %v2574 = vcombine.low %v2552, %v2566
        %v2575 = vcombine.high %v2552, %v2566
        %v2576 = vcombine.low %v2559, %v2573
        %v2577 = vcombine.high %v2559, %v2573
        %v2579 = vunpack.c.l.s4 1966171168
        %v2580 = vunpack.c.0.s8 %v2579
        %v2581 = vlaneseq
        %v2582 = vshrl.u32 %v2581, 7
        %v2583 = vsub.s32 %v2580, %v2582
        %v2584 = vrot.slane %v2574, %v2583
        %v2586 = vunpack.c.l.s4 1966171168
        %v2587 = vunpack.c.0.s8 %v2586
        %v2588 = vlaneseq
        %v2589 = vshrl.u32 %v2588, 7
        %v2590 = vsub.s32 %v2587, %v2589
        %v2591 = vrot.slane %v2576, %v2590
        %v2593 = vunpack.c.l.s4 1966171168
        %v2594 = vunpack.c.0.s8 %v2593
        %v2595 = vlaneseq
        %v2596 = vshrl.u32 %v2595, 7
        %v2597 = vsub.s32 %v2594, %v2596
        %v2598 = vrot.slane %v2575, %v2597
        %v2600 = vunpack.c.l.s4 1966171168
        %v2601 = vunpack.c.0.s8 %v2600
        %v2602 = vlaneseq
        %v2603 = vshrl.u32 %v2602, 7
        %v2604 = vsub.s32 %v2601, %v2603
        %v2605 = vrot.slane %v2577, %v2604
        %v2606 = vcombine.high %v2584, %v2584
        %v2607 = vcombine.high %v2591, %v2591
        %v2608 = vcombine.high %v2598, %v2598
        %v2609 = vcombine.low %v2008, %v2106
        %v2610 = vcombine.high %v2008, %v2106
        %v2611 = vcombine.high %v1774, %v1774
        %v2613 = vunpack.c.l.s4 1966171168
        %v2614 = vunpack.c.0.s8 %v2613
        %v2615 = vlaneseq
        %v2616 = vshrl.u32 %v2615, 7
        %v2617 = vsub.s32 %v2614, %v2616
        %v2618 = vrot.slane %v2609, %v2617
        %v2620 = vunpack.c.l.s4 1966171168
        %v2621 = vunpack.c.0.s8 %v2620
        %v2622 = vlaneseq
        %v2623 = vshrl.u32 %v2622, 7
        %v2624 = vsub.s32 %v2621, %v2623
        %v2625 = vrot.slane %v2610, %v2624
        %v2627 = vunpack.c.l.s4 1966171168
        %v2628 = vunpack.c.0.s8 %v2627
        %v2629 = vlaneseq
        %v2630 = vshrl.u32 %v2629, 7
        %v2631 = vsub.s32 %v2628, %v2630
        %v2632 = vrot.slane %v1774, %v2631
        %v2634 = vunpack.c.l.s4 1966171168
        %v2635 = vunpack.c.0.s8 %v2634
        %v2636 = vlaneseq
        %v2637 = vshrl.u32 %v2636, 7
        %v2638 = vsub.s32 %v2635, %v2637
        %v2639 = vrot.slane %v2611, %v2638
        %v2640 = vcombine.low %v2618, %v2632
        %v2641 = vcombine.high %v2618, %v2632
        %v2642 = vcombine.low %v2625, %v2639
        %v2643 = vcombine.high %v2625, %v2639
        %v2645 = vunpack.c.l.s4 1966171168
        %v2646 = vunpack.c.0.s8 %v2645
        %v2647 = vlaneseq
        %v2648 = vshrl.u32 %v2647, 7
        %v2649 = vsub.s32 %v2646, %v2648
        %v2650 = vrot.slane %v2640, %v2649
        %v2652 = vunpack.c.l.s4 1966171168
        %v2653 = vunpack.c.0.s8 %v2652
        %v2654 = vlaneseq
        %v2655 = vshrl.u32 %v2654, 7
        %v2656 = vsub.s32 %v2653, %v2655
        %v2657 = vrot.slane %v2642, %v2656
        %v2659 = vunpack.c.l.s4 1966171168
        %v2660 = vunpack.c.0.s8 %v2659
        %v2661 = vlaneseq
        %v2662 = vshrl.u32 %v2661, 7
        %v2663 = vsub.s32 %v2660, %v2662
        %v2664 = vrot.slane %v2641, %v2663
        %v2666 = vunpack.c.l.s4 1966171168
        %v2667 = vunpack.c.0.s8 %v2666
        %v2668 = vlaneseq
        %v2669 = vshrl.u32 %v2668, 7
        %v2670 = vsub.s32 %v2667, %v2669
        %v2671 = vrot.slane %v2643, %v2670
        %v2672 = vcombine.high %v2650, %v2650
        %v2673 = vcombine.high %v2657, %v2657
        %v2674 = vcombine.high %v2664, %v2664
        %v2675 = vcombine.low %v2010, %v2108
        %v2676 = vcombine.high %v2010, %v2108
        %v2677 = vcombine.high %v1775, %v1775
        %v2679 = vunpack.c.l.s4 1966171168
        %v2680 = vunpack.c.0.s8 %v2679
        %v2681 = vlaneseq
        %v2682 = vshrl.u32 %v2681, 7
        %v2683 = vsub.s32 %v2680, %v2682
        %v2684 = vrot.slane %v2675, %v2683
        %v2686 = vunpack.c.l.s4 1966171168
        %v2687 = vunpack.c.0.s8 %v2686
        %v2688 = vlaneseq
        %v2689 = vshrl.u32 %v2688, 7
        %v2690 = vsub.s32 %v2687, %v2689
        %v2691 = vrot.slane %v2676, %v2690
        %v2693 = vunpack.c.l.s4 1966171168
        %v2694 = vunpack.c.0.s8 %v2693
        %v2695 = vlaneseq
        %v2696 = vshrl.u32 %v2695, 7
        %v2697 = vsub.s32 %v2694, %v2696
        %v2698 = vrot.slane %v1775, %v2697
        %v2700 = vunpack.c.l.s4 1966171168
        %v2701 = vunpack.c.0.s8 %v2700
        %v2702 = vlaneseq
        %v2703 = vshrl.u32 %v2702, 7
        %v2704 = vsub.s32 %v2701, %v2703
        %v2705 = vrot.slane %v2677, %v2704
        %v2706 = vcombine.low %v2684, %v2698
        %v2707 = vcombine.high %v2684, %v2698
        %v2708 = vcombine.low %v2691, %v2705
        %v2709 = vcombine.high %v2691, %v2705
        %v2711 = vunpack.c.l.s4 1966171168
        %v2712 = vunpack.c.0.s8 %v2711
        %v2713 = vlaneseq
        %v2714 = vshrl.u32 %v2713, 7
        %v2715 = vsub.s32 %v2712, %v2714
        %v2716 = vrot.slane %v2706, %v2715
        %v2718 = vunpack.c.l.s4 1966171168
        %v2719 = vunpack.c.0.s8 %v2718
        %v2720 = vlaneseq
        %v2721 = vshrl.u32 %v2720, 7
        %v2722 = vsub.s32 %v2719, %v2721
        %v2723 = vrot.slane %v2708, %v2722
        %v2725 = vunpack.c.l.s4 1966171168
        %v2726 = vunpack.c.0.s8 %v2725
        %v2727 = vlaneseq
        %v2728 = vshrl.u32 %v2727, 7
        %v2729 = vsub.s32 %v2726, %v2728
        %v2730 = vrot.slane %v2707, %v2729
        %v2732 = vunpack.c.l.s4 1966171168
        %v2733 = vunpack.c.0.s8 %v2732
        %v2734 = vlaneseq
        %v2735 = vshrl.u32 %v2734, 7
        %v2736 = vsub.s32 %v2733, %v2735
        %v2737 = vrot.slane %v2709, %v2736
        %v2738 = vcombine.high %v2716, %v2716
        %v2739 = vcombine.high %v2723, %v2723
        %v2740 = vcombine.high %v2730, %v2730
        %v2741 = vcombine.low %v2012, %v2110
        %v2742 = vcombine.high %v2012, %v2110
        %v2743 = vcombine.high %v1776, %v1776
        %v2745 = vunpack.c.l.s4 1966171168
        %v2746 = vunpack.c.0.s8 %v2745
        %v2747 = vlaneseq
        %v2748 = vshrl.u32 %v2747, 7
        %v2749 = vsub.s32 %v2746, %v2748
        %v2750 = vrot.slane %v2741, %v2749
        %v2752 = vunpack.c.l.s4 1966171168
        %v2753 = vunpack.c.0.s8 %v2752
        %v2754 = vlaneseq
        %v2755 = vshrl.u32 %v2754, 7
        %v2756 = vsub.s32 %v2753, %v2755
        %v2757 = vrot.slane %v2742, %v2756
        %v2759 = vunpack.c.l.s4 1966171168
        %v2760 = vunpack.c.0.s8 %v2759
        %v2761 = vlaneseq
        %v2762 = vshrl.u32 %v2761, 7
        %v2763 = vsub.s32 %v2760, %v2762
        %v2764 = vrot.slane %v1776, %v2763
        %v2766 = vunpack.c.l.s4 1966171168
        %v2767 = vunpack.c.0.s8 %v2766
        %v2768 = vlaneseq
        %v2769 = vshrl.u32 %v2768, 7
        %v2770 = vsub.s32 %v2767, %v2769
        %v2771 = vrot.slane %v2743, %v2770
        %v2772 = vcombine.low %v2750, %v2764
        %v2773 = vcombine.high %v2750, %v2764
        %v2774 = vcombine.low %v2757, %v2771
        %v2775 = vcombine.high %v2757, %v2771
        %v2777 = vunpack.c.l.s4 1966171168
        %v2778 = vunpack.c.0.s8 %v2777
        %v2779 = vlaneseq
        %v2780 = vshrl.u32 %v2779, 7
        %v2781 = vsub.s32 %v2778, %v2780
        %v2782 = vrot.slane %v2772, %v2781
        %v2784 = vunpack.c.l.s4 1966171168
        %v2785 = vunpack.c.0.s8 %v2784
        %v2786 = vlaneseq
        %v2787 = vshrl.u32 %v2786, 7
        %v2788 = vsub.s32 %v2785, %v2787
        %v2789 = vrot.slane %v2774, %v2788
        %v2791 = vunpack.c.l.s4 1966171168
        %v2792 = vunpack.c.0.s8 %v2791
        %v2793 = vlaneseq
        %v2794 = vshrl.u32 %v2793, 7
        %v2795 = vsub.s32 %v2792, %v2794
        %v2796 = vrot.slane %v2773, %v2795
        %v2798 = vunpack.c.l.s4 1966171168
        %v2799 = vunpack.c.0.s8 %v2798
        %v2800 = vlaneseq
        %v2801 = vshrl.u32 %v2800, 7
        %v2802 = vsub.s32 %v2799, %v2801
        %v2803 = vrot.slane %v2775, %v2802
        %v2804 = vcombine.high %v2782, %v2782
        %v2805 = vcombine.high %v2789, %v2789
        %v2806 = vcombine.high %v2796, %v2796
        %v2807 = vcombine.low %v2014, %v2112
        %v2808 = vcombine.high %v2014, %v2112
        %v2809 = vcombine.high %v1777, %v1777
        %v2811 = vunpack.c.l.s4 1966171168
        %v2812 = vunpack.c.0.s8 %v2811
        %v2813 = vlaneseq
        %v2814 = vshrl.u32 %v2813, 7
        %v2815 = vsub.s32 %v2812, %v2814
        %v2816 = vrot.slane %v2807, %v2815
        %v2818 = vunpack.c.l.s4 1966171168
        %v2819 = vunpack.c.0.s8 %v2818
        %v2820 = vlaneseq
        %v2821 = vshrl.u32 %v2820, 7
        %v2822 = vsub.s32 %v2819, %v2821
        %v2823 = vrot.slane %v2808, %v2822
        %v2825 = vunpack.c.l.s4 1966171168
        %v2826 = vunpack.c.0.s8 %v2825
        %v2827 = vlaneseq
        %v2828 = vshrl.u32 %v2827, 7
        %v2829 = vsub.s32 %v2826, %v2828
        %v2830 = vrot.slane %v1777, %v2829
        %v2832 = vunpack.c.l.s4 1966171168
        %v2833 = vunpack.c.0.s8 %v2832
        %v2834 = vlaneseq
        %v2835 = vshrl.u32 %v2834, 7
        %v2836 = vsub.s32 %v2833, %v2835
        %v2837 = vrot.slane %v2809, %v2836
        %v2838 = vcombine.low %v2816, %v2830
        %v2839 = vcombine.high %v2816, %v2830
        %v2840 = vcombine.low %v2823, %v2837
        %v2841 = vcombine.high %v2823, %v2837
        %v2843 = vunpack.c.l.s4 1966171168
        %v2844 = vunpack.c.0.s8 %v2843
        %v2845 = vlaneseq
        %v2846 = vshrl.u32 %v2845, 7
        %v2847 = vsub.s32 %v2844, %v2846
        %v2848 = vrot.slane %v2838, %v2847
        %v2850 = vunpack.c.l.s4 1966171168
        %v2851 = vunpack.c.0.s8 %v2850
        %v2852 = vlaneseq
        %v2853 = vshrl.u32 %v2852, 7
        %v2854 = vsub.s32 %v2851, %v2853
        %v2855 = vrot.slane %v2840, %v2854
        %v2857 = vunpack.c.l.s4 1966171168
        %v2858 = vunpack.c.0.s8 %v2857
        %v2859 = vlaneseq
        %v2860 = vshrl.u32 %v2859, 7
        %v2861 = vsub.s32 %v2858, %v2860
        %v2862 = vrot.slane %v2839, %v2861
        %v2864 = vunpack.c.l.s4 1966171168
        %v2865 = vunpack.c.0.s8 %v2864
        %v2866 = vlaneseq
        %v2867 = vshrl.u32 %v2866, 7
        %v2868 = vsub.s32 %v2865, %v2867
        %v2869 = vrot.slane %v2841, %v2868
        %v2870 = vcombine.high %v2848, %v2848
        %v2871 = vcombine.high %v2855, %v2855
        %v2872 = vcombine.high %v2862, %v2862
        %v2873 = vcombine.low %v2016, %v2114
        %v2874 = vcombine.high %v2016, %v2114
        %v2875 = vcombine.high %v1778, %v1778
        %v2877 = vunpack.c.l.s4 1966171168
        %v2878 = vunpack.c.0.s8 %v2877
        %v2879 = vlaneseq
        %v2880 = vshrl.u32 %v2879, 7
        %v2881 = vsub.s32 %v2878, %v2880
        %v2882 = vrot.slane %v2873, %v2881
        %v2884 = vunpack.c.l.s4 1966171168
        %v2885 = vunpack.c.0.s8 %v2884
        %v2886 = vlaneseq
        %v2887 = vshrl.u32 %v2886, 7
        %v2888 = vsub.s32 %v2885, %v2887
        %v2889 = vrot.slane %v2874, %v2888
        %v2891 = vunpack.c.l.s4 1966171168
        %v2892 = vunpack.c.0.s8 %v2891
        %v2893 = vlaneseq
        %v2894 = vshrl.u32 %v2893, 7
        %v2895 = vsub.s32 %v2892, %v2894
        %v2896 = vrot.slane %v1778, %v2895
        %v2898 = vunpack.c.l.s4 1966171168
        %v2899 = vunpack.c.0.s8 %v2898
        %v2900 = vlaneseq
        %v2901 = vshrl.u32 %v2900, 7
        %v2902 = vsub.s32 %v2899, %v2901
        %v2903 = vrot.slane %v2875, %v2902
        %v2904 = vcombine.low %v2882, %v2896
        %v2905 = vcombine.high %v2882, %v2896
        %v2906 = vcombine.low %v2889, %v2903
        %v2907 = vcombine.high %v2889, %v2903
        %v2909 = vunpack.c.l.s4 1966171168
        %v2910 = vunpack.c.0.s8 %v2909
        %v2911 = vlaneseq
        %v2912 = vshrl.u32 %v2911, 7
        %v2913 = vsub.s32 %v2910, %v2912
        %v2914 = vrot.slane %v2904, %v2913
        %v2916 = vunpack.c.l.s4 1966171168
        %v2917 = vunpack.c.0.s8 %v2916
        %v2918 = vlaneseq
        %v2919 = vshrl.u32 %v2918, 7
        %v2920 = vsub.s32 %v2917, %v2919
        %v2921 = vrot.slane %v2906, %v2920
        %v2923 = vunpack.c.l.s4 1966171168
        %v2924 = vunpack.c.0.s8 %v2923
        %v2925 = vlaneseq
        %v2926 = vshrl.u32 %v2925, 7
        %v2927 = vsub.s32 %v2924, %v2926
        %v2928 = vrot.slane %v2905, %v2927
        %v2930 = vunpack.c.l.s4 1966171168
        %v2931 = vunpack.c.0.s8 %v2930
        %v2932 = vlaneseq
        %v2933 = vshrl.u32 %v2932, 7
        %v2934 = vsub.s32 %v2931, %v2933
        %v2935 = vrot.slane %v2907, %v2934
        %v2936 = vcombine.high %v2914, %v2914
        %v2937 = vcombine.high %v2921, %v2921
        %v2938 = vcombine.high %v2928, %v2928
        %v2939 = vcombine.low %v2018, %v2116
        %v2940 = vcombine.high %v2018, %v2116
        %v2941 = vcombine.high %v1843, %v1843
        %v2943 = vunpack.c.l.s4 1966171168
        %v2944 = vunpack.c.0.s8 %v2943
        %v2945 = vlaneseq
        %v2946 = vshrl.u32 %v2945, 7
        %v2947 = vsub.s32 %v2944, %v2946
        %v2948 = vrot.slane %v2939, %v2947
        %v2950 = vunpack.c.l.s4 1966171168
        %v2951 = vunpack.c.0.s8 %v2950
        %v2952 = vlaneseq
        %v2953 = vshrl.u32 %v2952, 7
        %v2954 = vsub.s32 %v2951, %v2953
        %v2955 = vrot.slane %v2940, %v2954
        %v2957 = vunpack.c.l.s4 1966171168
        %v2958 = vunpack.c.0.s8 %v2957
        %v2959 = vlaneseq
        %v2960 = vshrl.u32 %v2959, 7
        %v2961 = vsub.s32 %v2958, %v2960
        %v2962 = vrot.slane %v1843, %v2961
        %v2964 = vunpack.c.l.s4 1966171168
        %v2965 = vunpack.c.0.s8 %v2964
        %v2966 = vlaneseq
        %v2967 = vshrl.u32 %v2966, 7
        %v2968 = vsub.s32 %v2965, %v2967
        %v2969 = vrot.slane %v2941, %v2968
        %v2970 = vcombine.low %v2948, %v2962
        %v2971 = vcombine.high %v2948, %v2962
        %v2972 = vcombine.low %v2955, %v2969
        %v2973 = vcombine.high %v2955, %v2969
        %v2975 = vunpack.c.l.s4 1966171168
        %v2976 = vunpack.c.0.s8 %v2975
        %v2977 = vlaneseq
        %v2978 = vshrl.u32 %v2977, 7
        %v2979 = vsub.s32 %v2976, %v2978
        %v2980 = vrot.slane %v2970, %v2979
        %v2982 = vunpack.c.l.s4 1966171168
        %v2983 = vunpack.c.0.s8 %v2982
        %v2984 = vlaneseq
        %v2985 = vshrl.u32 %v2984, 7
        %v2986 = vsub.s32 %v2983, %v2985
        %v2987 = vrot.slane %v2972, %v2986
        %v2989 = vunpack.c.l.s4 1966171168
        %v2990 = vunpack.c.0.s8 %v2989
        %v2991 = vlaneseq
        %v2992 = vshrl.u32 %v2991, 7
        %v2993 = vsub.s32 %v2990, %v2992
        %v2994 = vrot.slane %v2971, %v2993
        %v2996 = vunpack.c.l.s4 1966171168
        %v2997 = vunpack.c.0.s8 %v2996
        %v2998 = vlaneseq
        %v2999 = vshrl.u32 %v2998, 7
        %v3000 = vsub.s32 %v2997, %v2999
        %v3001 = vrot.slane %v2973, %v3000
        %v3002 = vcombine.high %v2980, %v2980
        %v3003 = vcombine.high %v2987, %v2987
        %v3004 = vcombine.high %v2994, %v2994
        %v3005 = vcombine.low %v2020, %v2118
        %v3006 = vcombine.high %v2020, %v2118
        %v3007 = vcombine.high %v1936, %v1936
        %v3009 = vunpack.c.l.s4 1966171168
        %v3010 = vunpack.c.0.s8 %v3009
        %v3011 = vlaneseq
        %v3012 = vshrl.u32 %v3011, 7
        %v3013 = vsub.s32 %v3010, %v3012
        %v3014 = vrot.slane %v3005, %v3013
        %v3016 = vunpack.c.l.s4 1966171168
        %v3017 = vunpack.c.0.s8 %v3016
        %v3018 = vlaneseq
        %v3019 = vshrl.u32 %v3018, 7
        %v3020 = vsub.s32 %v3017, %v3019
        %v3021 = vrot.slane %v3006, %v3020
        %v3023 = vunpack.c.l.s4 1966171168
        %v3024 = vunpack.c.0.s8 %v3023
        %v3025 = vlaneseq
        %v3026 = vshrl.u32 %v3025, 7
        %v3027 = vsub.s32 %v3024, %v3026
        %v3028 = vrot.slane %v1936, %v3027
        %v3030 = vunpack.c.l.s4 1966171168
        %v3031 = vunpack.c.0.s8 %v3030
        %v3032 = vlaneseq
        %v3033 = vshrl.u32 %v3032, 7
        %v3034 = vsub.s32 %v3031, %v3033
        %v3035 = vrot.slane %v3007, %v3034
        %v3036 = vcombine.low %v3014, %v3028
        %v3037 = vcombine.high %v3014, %v3028
        %v3038 = vcombine.low %v3021, %v3035
        %v3039 = vcombine.high %v3021, %v3035
        %v3041 = vunpack.c.l.s4 1966171168
        %v3042 = vunpack.c.0.s8 %v3041
        %v3043 = vlaneseq
        %v3044 = vshrl.u32 %v3043, 7
        %v3045 = vsub.s32 %v3042, %v3044
        %v3046 = vrot.slane %v3036, %v3045
        %v3048 = vunpack.c.l.s4 1966171168
        %v3049 = vunpack.c.0.s8 %v3048
        %v3050 = vlaneseq
        %v3051 = vshrl.u32 %v3050, 7
        %v3052 = vsub.s32 %v3049, %v3051
        %v3053 = vrot.slane %v3038, %v3052
        %v3055 = vunpack.c.l.s4 1966171168
        %v3056 = vunpack.c.0.s8 %v3055
        %v3057 = vlaneseq
        %v3058 = vshrl.u32 %v3057, 7
        %v3059 = vsub.s32 %v3056, %v3058
        %v3060 = vrot.slane %v3037, %v3059
        %v3062 = vunpack.c.l.s4 1966171168
        %v3063 = vunpack.c.0.s8 %v3062
        %v3064 = vlaneseq
        %v3065 = vshrl.u32 %v3064, 7
        %v3066 = vsub.s32 %v3063, %v3065
        %v3067 = vrot.slane %v3039, %v3066
        %v3068 = vcombine.high %v3046, %v3046
        %v3069 = vcombine.high %v3053, %v3053
        %v3070 = vcombine.high %v3060, %v3060
        %v3072 = vlaneseq
        %v3073 = vshrl.u32 %v3072, 7
        %v3074 = vsub.s32 0, %v3073
        %v3075 = vrot.slane %v1608, %v3074
        %v3077 = vcombine.low %v2188, %v2202
        %v3078 = vcombine.low %v2210, %v2212
        %v3079 = vcombine.low %v2195, %v2209
        %v3080 = vcombine.low %v2211, %v2254
        %v3082 = vunpack.c.l.s4 1966171168
        %v3083 = vunpack.c.0.s8 %v3082
        %v3084 = vlaneseq
        %v3085 = vshrl.u32 %v3084, 7
        %v3086 = vsub.s32 %v3083, %v3085
        %v3087 = vrot.slane %v3077, %v3086
        %v3089 = vunpack.c.l.s4 1966171168
        %v3090 = vunpack.c.0.s8 %v3089
        %v3091 = vlaneseq
        %v3092 = vshrl.u32 %v3091, 7
        %v3093 = vsub.s32 %v3090, %v3092
        %v3094 = vrot.slane %v3078, %v3093
        %v3096 = vunpack.c.l.s4 1966171168
        %v3097 = vunpack.c.0.s8 %v3096
        %v3098 = vlaneseq
        %v3099 = vshrl.u32 %v3098, 7
        %v3100 = vsub.s32 %v3097, %v3099
        %v3101 = vrot.slane %v3079, %v3100
        %v3103 = vunpack.c.l.s4 1966171168
        %v3104 = vunpack.c.0.s8 %v3103
        %v3105 = vlaneseq
        %v3106 = vshrl.u32 %v3105, 7
        %v3107 = vsub.s32 %v3104, %v3106
        %v3108 = vrot.slane %v3080, %v3107
        %v3109 = vcombine.low %v3087, %v3094
        %v3110 = vcombine.high %v3087, %v3094
        %v3111 = vcombine.low %v3101, %v3108
        %v3112 = vcombine.high %v3101, %v3108
        %v3114 = vunpack.c.l.s4 1966171168
        %v3115 = vunpack.c.0.s8 %v3114
        %v3116 = vlaneseq
        %v3117 = vshrl.u32 %v3116, 7
        %v3118 = vsub.s32 %v3115, %v3117
        %v3119 = vrot.slane %v3109, %v3118
        %v3121 = vunpack.c.l.s4 1966171168
        %v3122 = vunpack.c.0.s8 %v3121
        %v3123 = vlaneseq
        %v3124 = vshrl.u32 %v3123, 7
        %v3125 = vsub.s32 %v3122, %v3124
        %v3126 = vrot.slane %v3110, %v3125
        %v3128 = vunpack.c.l.s4 1966171168
        %v3129 = vunpack.c.0.s8 %v3128
        %v3130 = vlaneseq
        %v3131 = vshrl.u32 %v3130, 7
        %v3132 = vsub.s32 %v3129, %v3131
        %v3133 = vrot.slane %v3111, %v3132
        %v3135 = vunpack.c.l.s4 1966171168
        %v3136 = vunpack.c.0.s8 %v3135
        %v3137 = vlaneseq
        %v3138 = vshrl.u32 %v3137, 7
        %v3139 = vsub.s32 %v3136, %v3138
        %v3140 = vrot.slane %v3112, %v3139
        %v3141 = vcombine.low %v3119, %v3133
        %v3142 = vcombine.high %v3119, %v3133
        %v3143 = vcombine.low %v3126, %v3140
        %v3144 = vcombine.low %v2268, %v2276
        %v3145 = vcombine.low %v2278, %v2261
        %v3146 = vcombine.low %v2275, %v2277
        %v3147 = vcombine.low %v2320, %v2334
        %v3149 = vunpack.c.l.s4 1966171168
        %v3150 = vunpack.c.0.s8 %v3149
        %v3151 = vlaneseq
        %v3152 = vshrl.u32 %v3151, 7
        %v3153 = vsub.s32 %v3150, %v3152
        %v3154 = vrot.slane %v3144, %v3153
        %v3156 = vunpack.c.l.s4 1966171168
        %v3157 = vunpack.c.0.s8 %v3156
        %v3158 = vlaneseq
        %v3159 = vshrl.u32 %v3158, 7
        %v3160 = vsub.s32 %v3157, %v3159
        %v3161 = vrot.slane %v3145, %v3160
        %v3163 = vunpack.c.l.s4 1966171168
        %v3164 = vunpack.c.0.s8 %v3163
        %v3165 = vlaneseq
        %v3166 = vshrl.u32 %v3165, 7
        %v3167 = vsub.s32 %v3164, %v3166
        %v3168 = vrot.slane %v3146, %v3167
        %v3170 = vunpack.c.l.s4 1966171168
        %v3171 = vunpack.c.0.s8 %v3170
        %v3172 = vlaneseq
        %v3173 = vshrl.u32 %v3172, 7
        %v3174 = vsub.s32 %v3171, %v3173
        %v3175 = vrot.slane %v3147, %v3174
        %v3176 = vcombine.low %v3154, %v3161
        %v3177 = vcombine.high %v3154, %v3161
        %v3178 = vcombine.low %v3168, %v3175
        %v3179 = vcombine.high %v3168, %v3175
        %v3181 = vunpack.c.l.s4 1966171168
        %v3182 = vunpack.c.0.s8 %v3181
        %v3183 = vlaneseq
        %v3184 = vshrl.u32 %v3183, 7
        %v3185 = vsub.s32 %v3182, %v3184
        %v3186 = vrot.slane %v3176, %v3185
        %v3188 = vunpack.c.l.s4 1966171168
        %v3189 = vunpack.c.0.s8 %v3188
        %v3190 = vlaneseq
        %v3191 = vshrl.u32 %v3190, 7
        %v3192 = vsub.s32 %v3189, %v3191
        %v3193 = vrot.slane %v3177, %v3192
        %v3195 = vunpack.c.l.s4 1966171168
        %v3196 = vunpack.c.0.s8 %v3195
        %v3197 = vlaneseq
        %v3198 = vshrl.u32 %v3197, 7
        %v3199 = vsub.s32 %v3196, %v3198
        %v3200 = vrot.slane %v3178, %v3199
        %v3202 = vunpack.c.l.s4 1966171168
        %v3203 = vunpack.c.0.s8 %v3202
        %v3204 = vlaneseq
        %v3205 = vshrl.u32 %v3204, 7
        %v3206 = vsub.s32 %v3203, %v3205
        %v3207 = vrot.slane %v3179, %v3206
        %v3208 = vcombine.low %v3186, %v3200
        %v3209 = vcombine.high %v3186, %v3200
        %v3210 = vcombine.low %v3193, %v3207
        %v3211 = vcombine.low %v2342, %v2344
        %v3212 = vcombine.low %v2327, %v2341
        %v3213 = vcombine.low %v2343, %v2386
        %v3214 = vcombine.low %v2400, %v2408
        %v3216 = vunpack.c.l.s4 1966171168
        %v3217 = vunpack.c.0.s8 %v3216
        %v3218 = vlaneseq
        %v3219 = vshrl.u32 %v3218, 7
        %v3220 = vsub.s32 %v3217, %v3219
        %v3221 = vrot.slane %v3211, %v3220
        %v3223 = vunpack.c.l.s4 1966171168
        %v3224 = vunpack.c.0.s8 %v3223
        %v3225 = vlaneseq
        %v3226 = vshrl.u32 %v3225, 7
        %v3227 = vsub.s32 %v3224, %v3226
        %v3228 = vrot.slane %v3212, %v3227
        %v3230 = vunpack.c.l.s4 1966171168
        %v3231 = vunpack.c.0.s8 %v3230
        %v3232 = vlaneseq
        %v3233 = vshrl.u32 %v3232, 7
        %v3234 = vsub.s32 %v3231, %v3233
        %v3235 = vrot.slane %v3213, %v3234
        %v3237 = vunpack.c.l.s4 1966171168
        %v3238 = vunpack.c.0.s8 %v3237
        %v3239 = vlaneseq
        %v3240 = vshrl.u32 %v3239, 7
        %v3241 = vsub.s32 %v3238, %v3240
        %v3242 = vrot.slane %v3214, %v3241
        %v3243 = vcombine.low %v3221, %v3228
        %v3244 = vcombine.high %v3221, %v3228
        %v3245 = vcombine.low %v3235, %v3242
        %v3246 = vcombine.high %v3235, %v3242
        %v3248 = vunpack.c.l.s4 1966171168
        %v3249 = vunpack.c.0.s8 %v3248
        %v3250 = vlaneseq
        %v3251 = vshrl.u32 %v3250, 7
        %v3252 = vsub.s32 %v3249, %v3251
        %v3253 = vrot.slane %v3243, %v3252
        %v3255 = vunpack.c.l.s4 1966171168
        %v3256 = vunpack.c.0.s8 %v3255
        %v3257 = vlaneseq
        %v3258 = vshrl.u32 %v3257, 7
        %v3259 = vsub.s32 %v3256, %v3258
        %v3260 = vrot.slane %v3244, %v3259
        %v3262 = vunpack.c.l.s4 1966171168
        %v3263 = vunpack.c.0.s8 %v3262
        %v3264 = vlaneseq
        %v3265 = vshrl.u32 %v3264, 7
        %v3266 = vsub.s32 %v3263, %v3265
        %v3267 = vrot.slane %v3245, %v3266
        %v3269 = vunpack.c.l.s4 1966171168
        %v3270 = vunpack.c.0.s8 %v3269
        %v3271 = vlaneseq
        %v3272 = vshrl.u32 %v3271, 7
        %v3273 = vsub.s32 %v3270, %v3272
        %v3274 = vrot.slane %v3246, %v3273
        %v3275 = vcombine.low %v3253, %v3267
        %v3276 = vcombine.high %v3253, %v3267
        %v3277 = vcombine.low %v3260, %v3274
        %v3278 = vcombine.low %v2410, %v2393
        %v3279 = vcombine.low %v2407, %v2409
        %v3280 = vcombine.low %v2452, %v2466
        %v3281 = vcombine.low %v2474, %v2476
        %v3283 = vunpack.c.l.s4 1966171168
        %v3284 = vunpack.c.0.s8 %v3283
        %v3285 = vlaneseq
        %v3286 = vshrl.u32 %v3285, 7
        %v3287 = vsub.s32 %v3284, %v3286
        %v3288 = vrot.slane %v3278, %v3287
        %v3290 = vunpack.c.l.s4 1966171168
        %v3291 = vunpack.c.0.s8 %v3290
        %v3292 = vlaneseq
        %v3293 = vshrl.u32 %v3292, 7
        %v3294 = vsub.s32 %v3291, %v3293
        %v3295 = vrot.slane %v3279, %v3294
        %v3297 = vunpack.c.l.s4 1966171168
        %v3298 = vunpack.c.0.s8 %v3297
        %v3299 = vlaneseq
        %v3300 = vshrl.u32 %v3299, 7
        %v3301 = vsub.s32 %v3298, %v3300
        %v3302 = vrot.slane %v3280, %v3301
        %v3304 = vunpack.c.l.s4 1966171168
        %v3305 = vunpack.c.0.s8 %v3304
        %v3306 = vlaneseq
        %v3307 = vshrl.u32 %v3306, 7
        %v3308 = vsub.s32 %v3305, %v3307
        %v3309 = vrot.slane %v3281, %v3308
        %v3310 = vcombine.low %v3288, %v3295
        %v3311 = vcombine.high %v3288, %v3295
        %v3312 = vcombine.low %v3302, %v3309
        %v3313 = vcombine.high %v3302, %v3309
        %v3315 = vunpack.c.l.s4 1966171168
        %v3316 = vunpack.c.0.s8 %v3315
        %v3317 = vlaneseq
        %v3318 = vshrl.u32 %v3317, 7
        %v3319 = vsub.s32 %v3316, %v3318
        %v3320 = vrot.slane %v3310, %v3319
        %v3322 = vunpack.c.l.s4 1966171168
        %v3323 = vunpack.c.0.s8 %v3322
        %v3324 = vlaneseq
        %v3325 = vshrl.u32 %v3324, 7
        %v3326 = vsub.s32 %v3323, %v3325
        %v3327 = vrot.slane %v3311, %v3326
        %v3329 = vunpack.c.l.s4 1966171168
        %v3330 = vunpack.c.0.s8 %v3329
        %v3331 = vlaneseq
        %v3332 = vshrl.u32 %v3331, 7
        %v3333 = vsub.s32 %v3330, %v3332
        %v3334 = vrot.slane %v3312, %v3333
        %v3336 = vunpack.c.l.s4 1966171168
        %v3337 = vunpack.c.0.s8 %v3336
        %v3338 = vlaneseq
        %v3339 = vshrl.u32 %v3338, 7
        %v3340 = vsub.s32 %v3337, %v3339
        %v3341 = vrot.slane %v3313, %v3340
        %v3342 = vcombine.low %v3320, %v3334
        %v3343 = vcombine.high %v3320, %v3334
        %v3344 = vcombine.low %v3327, %v3341
        %v3345 = vcombine.low %v2459, %v2473
        %v3346 = vcombine.low %v2475, %v2518
        %v3347 = vcombine.low %v2532, %v2540
        %v3348 = vcombine.low %v2542, %v2525
        %v3350 = vunpack.c.l.s4 1966171168
        %v3351 = vunpack.c.0.s8 %v3350
        %v3352 = vlaneseq
        %v3353 = vshrl.u32 %v3352, 7
        %v3354 = vsub.s32 %v3351, %v3353
        %v3355 = vrot.slane %v3345, %v3354
        %v3357 = vunpack.c.l.s4 1966171168
        %v3358 = vunpack.c.0.s8 %v3357
        %v3359 = vlaneseq
        %v3360 = vshrl.u32 %v3359, 7
        %v3361 = vsub.s32 %v3358, %v3360
        %v3362 = vrot.slane %v3346, %v3361
        %v3364 = vunpack.c.l.s4 1966171168
        %v3365 = vunpack.c.0.s8 %v3364
        %v3366 = vlaneseq
        %v3367 = vshrl.u32 %v3366, 7
        %v3368 = vsub.s32 %v3365, %v3367
        %v3369 = vrot.slane %v3347, %v3368
        %v3371 = vunpack.c.l.s4 1966171168
        %v3372 = vunpack.c.0.s8 %v3371
        %v3373 = vlaneseq
        %v3374 = vshrl.u32 %v3373, 7
        %v3375 = vsub.s32 %v3372, %v3374
        %v3376 = vrot.slane %v3348, %v3375
        %v3377 = vcombine.low %v3355, %v3362
        %v3378 = vcombine.high %v3355, %v3362
        %v3379 = vcombine.low %v3369, %v3376
        %v3380 = vcombine.high %v3369, %v3376
        %v3382 = vunpack.c.l.s4 1966171168
        %v3383 = vunpack.c.0.s8 %v3382
        %v3384 = vlaneseq
        %v3385 = vshrl.u32 %v3384, 7
        %v3386 = vsub.s32 %v3383, %v3385
        %v3387 = vrot.slane %v3377, %v3386
        %v3389 = vunpack.c.l.s4 1966171168
        %v3390 = vunpack.c.0.s8 %v3389
        %v3391 = vlaneseq
        %v3392 = vshrl.u32 %v3391, 7
        %v3393 = vsub.s32 %v3390, %v3392
        %v3394 = vrot.slane %v3378, %v3393
        %v3396 = vunpack.c.l.s4 1966171168
        %v3397 = vunpack.c.0.s8 %v3396
        %v3398 = vlaneseq
        %v3399 = vshrl.u32 %v3398, 7
        %v3400 = vsub.s32 %v3397, %v3399
        %v3401 = vrot.slane %v3379, %v3400
        %v3403 = vunpack.c.l.s4 1966171168
        %v3404 = vunpack.c.0.s8 %v3403
        %v3405 = vlaneseq
        %v3406 = vshrl.u32 %v3405, 7
        %v3407 = vsub.s32 %v3404, %v3406
        %v3408 = vrot.slane %v3380, %v3407
        %v3409 = vcombine.low %v3387, %v3401
        %v3410 = vcombine.high %v3387, %v3401
        %v3411 = vcombine.low %v3394, %v3408
        %v3412 = vcombine.low %v2539, %v2541
        %v3413 = vcombine.low %v2584, %v2598
        %v3414 = vcombine.low %v2606, %v2608
        %v3415 = vcombine.low %v2591, %v2605
        %v3417 = vunpack.c.l.s4 1966171168
        %v3418 = vunpack.c.0.s8 %v3417
        %v3419 = vlaneseq
        %v3420 = vshrl.u32 %v3419, 7
        %v3421 = vsub.s32 %v3418, %v3420
        %v3422 = vrot.slane %v3412, %v3421
        %v3424 = vunpack.c.l.s4 1966171168
        %v3425 = vunpack.c.0.s8 %v3424
        %v3426 = vlaneseq
        %v3427 = vshrl.u32 %v3426, 7
        %v3428 = vsub.s32 %v3425, %v3427
        %v3429 = vrot.slane %v3413, %v3428
        %v3431 = vunpack.c.l.s4 1966171168
        %v3432 = vunpack.c.0.s8 %v3431
        %v3433 = vlaneseq
        %v3434 = vshrl.u32 %v3433, 7
        %v3435 = vsub.s32 %v3432, %v3434
        %v3436 = vrot.slane %v3414, %v3435
        %v3438 = vunpack.c.l.s4 1966171168
        %v3439 = vunpack.c.0.s8 %v3438
        %v3440 = vlaneseq
        %v3441 = vshrl.u32 %v3440, 7
        %v3442 = vsub.s32 %v3439, %v3441
        %v3443 = vrot.slane %v3415, %v3442
        %v3444 = vcombine.low %v3422, %v3429
        %v3445 = vcombine.high %v3422, %v3429
        %v3446 = vcombine.low %v3436, %v3443
        %v3447 = vcombine.high %v3436, %v3443
        %v3449 = vunpack.c.l.s4 1966171168
        %v3450 = vunpack.c.0.s8 %v3449
        %v3451 = vlaneseq
        %v3452 = vshrl.u32 %v3451, 7
        %v3453 = vsub.s32 %v3450, %v3452
        %v3454 = vrot.slane %v3444, %v3453
        %v3456 = vunpack.c.l.s4 1966171168
        %v3457 = vunpack.c.0.s8 %v3456
        %v3458 = vlaneseq
        %v3459 = vshrl.u32 %v3458, 7
        %v3460 = vsub.s32 %v3457, %v3459
        %v3461 = vrot.slane %v3445, %v3460
        %v3463 = vunpack.c.l.s4 1966171168
        %v3464 = vunpack.c.0.s8 %v3463
        %v3465 = vlaneseq
        %v3466 = vshrl.u32 %v3465, 7
        %v3467 = vsub.s32 %v3464, %v3466
        %v3468 = vrot.slane %v3446, %v3467
        %v3470 = vunpack.c.l.s4 1966171168
        %v3471 = vunpack.c.0.s8 %v3470
        %v3472 = vlaneseq
        %v3473 = vshrl.u32 %v3472, 7
        %v3474 = vsub.s32 %v3471, %v3473
        %v3475 = vrot.slane %v3447, %v3474
        %v3476 = vcombine.low %v3454, %v3468
        %v3477 = vcombine.high %v3454, %v3468
        %v3478 = vcombine.low %v3461, %v3475
        %v3479 = vcombine.low %v2607, %v2650
        %v3480 = vcombine.low %v2664, %v2672
        %v3481 = vcombine.low %v2674, %v2657
        %v3482 = vcombine.low %v2671, %v2673
        %v3484 = vunpack.c.l.s4 1966171168
        %v3485 = vunpack.c.0.s8 %v3484
        %v3486 = vlaneseq
        %v3487 = vshrl.u32 %v3486, 7
        %v3488 = vsub.s32 %v3485, %v3487
        %v3489 = vrot.slane %v3479, %v3488
        %v3491 = vunpack.c.l.s4 1966171168
        %v3492 = vunpack.c.0.s8 %v3491
        %v3493 = vlaneseq
        %v3494 = vshrl.u32 %v3493, 7
        %v3495 = vsub.s32 %v3492, %v3494
        %v3496 = vrot.slane %v3480, %v3495
        %v3498 = vunpack.c.l.s4 1966171168
        %v3499 = vunpack.c.0.s8 %v3498
        %v3500 = vlaneseq
        %v3501 = vshrl.u32 %v3500, 7
        %v3502 = vsub.s32 %v3499, %v3501
        %v3503 = vrot.slane %v3481, %v3502
        %v3505 = vunpack.c.l.s4 1966171168
        %v3506 = vunpack.c.0.s8 %v3505
        %v3507 = vlaneseq
        %v3508 = vshrl.u32 %v3507, 7
        %v3509 = vsub.s32 %v3506, %v3508
        %v3510 = vrot.slane %v3482, %v3509
        %v3511 = vcombine.low %v3489, %v3496
        %v3512 = vcombine.high %v3489, %v3496
        %v3513 = vcombine.low %v3503, %v3510
        %v3514 = vcombine.high %v3503, %v3510
        %v3516 = vunpack.c.l.s4 1966171168
        %v3517 = vunpack.c.0.s8 %v3516
        %v3518 = vlaneseq
        %v3519 = vshrl.u32 %v3518, 7
        %v3520 = vsub.s32 %v3517, %v3519
        %v3521 = vrot.slane %v3511, %v3520
        %v3523 = vunpack.c.l.s4 1966171168
        %v3524 = vunpack.c.0.s8 %v3523
        %v3525 = vlaneseq
        %v3526 = vshrl.u32 %v3525, 7
        %v3527 = vsub.s32 %v3524, %v3526
        %v3528 = vrot.slane %v3512, %v3527
        %v3530 = vunpack.c.l.s4 1966171168
        %v3531 = vunpack.c.0.s8 %v3530
        %v3532 = vlaneseq
        %v3533 = vshrl.u32 %v3532, 7
        %v3534 = vsub.s32 %v3531, %v3533
        %v3535 = vrot.slane %v3513, %v3534
        %v3537 = vunpack.c.l.s4 1966171168
        %v3538 = vunpack.c.0.s8 %v3537
        %v3539 = vlaneseq
        %v3540 = vshrl.u32 %v3539, 7
        %v3541 = vsub.s32 %v3538, %v3540
        %v3542 = vrot.slane %v3514, %v3541
        %v3543 = vcombine.low %v3521, %v3535
        %v3544 = vcombine.high %v3521, %v3535
        %v3545 = vcombine.low %v3528, %v3542
        %v3546 = vcombine.low %v2716, %v2730
        %v3547 = vcombine.low %v2738, %v2740
        %v3548 = vcombine.low %v2723, %v2737
        %v3549 = vcombine.low %v2739, %v2782
        %v3551 = vunpack.c.l.s4 1966171168
        %v3552 = vunpack.c.0.s8 %v3551
        %v3553 = vlaneseq
        %v3554 = vshrl.u32 %v3553, 7
        %v3555 = vsub.s32 %v3552, %v3554
        %v3556 = vrot.slane %v3546, %v3555
        %v3558 = vunpack.c.l.s4 1966171168
        %v3559 = vunpack.c.0.s8 %v3558
        %v3560 = vlaneseq
        %v3561 = vshrl.u32 %v3560, 7
        %v3562 = vsub.s32 %v3559, %v3561
        %v3563 = vrot.slane %v3547, %v3562
        %v3565 = vunpack.c.l.s4 1966171168
        %v3566 = vunpack.c.0.s8 %v3565
        %v3567 = vlaneseq
        %v3568 = vshrl.u32 %v3567, 7
        %v3569 = vsub.s32 %v3566, %v3568
        %v3570 = vrot.slane %v3548, %v3569
        %v3572 = vunpack.c.l.s4 1966171168
        %v3573 = vunpack.c.0.s8 %v3572
        %v3574 = vlaneseq
        %v3575 = vshrl.u32 %v3574, 7
        %v3576 = vsub.s32 %v3573, %v3575
        %v3577 = vrot.slane %v3549, %v3576
        %v3578 = vcombine.low %v3556, %v3563
        %v3579 = vcombine.high %v3556, %v3563
        %v3580 = vcombine.low %v3570, %v3577
        %v3581 = vcombine.high %v3570, %v3577
        %v3583 = vunpack.c.l.s4 1966171168
        %v3584 = vunpack.c.0.s8 %v3583
        %v3585 = vlaneseq
        %v3586 = vshrl.u32 %v3585, 7
        %v3587 = vsub.s32 %v3584, %v3586
        %v3588 = vrot.slane %v3578, %v3587
        %v3590 = vunpack.c.l.s4 1966171168
        %v3591 = vunpack.c.0.s8 %v3590
        %v3592 = vlaneseq
        %v3593 = vshrl.u32 %v3592, 7
        %v3594 = vsub.s32 %v3591, %v3593
        %v3595 = vrot.slane %v3579, %v3594
        %v3597 = vunpack.c.l.s4 1966171168
        %v3598 = vunpack.c.0.s8 %v3597
        %v3599 = vlaneseq
        %v3600 = vshrl.u32 %v3599, 7
        %v3601 = vsub.s32 %v3598, %v3600
        %v3602 = vrot.slane %v3580, %v3601
        %v3604 = vunpack.c.l.s4 1966171168
        %v3605 = vunpack.c.0.s8 %v3604
        %v3606 = vlaneseq
        %v3607 = vshrl.u32 %v3606, 7
        %v3608 = vsub.s32 %v3605, %v3607
        %v3609 = vrot.slane %v3581, %v3608
        %v3610 = vcombine.low %v3588, %v3602
        %v3611 = vcombine.high %v3588, %v3602
        %v3612 = vcombine.low %v3595, %v3609
        %v3613 = vcombine.low %v2796, %v2804
        %v3614 = vcombine.low %v2806, %v2789
        %v3615 = vcombine.low %v2803, %v2805
        %v3616 = vcombine.low %v2848, %v2862
        %v3618 = vunpack.c.l.s4 1966171168
        %v3619 = vunpack.c.0.s8 %v3618
        %v3620 = vlaneseq
        %v3621 = vshrl.u32 %v3620, 7
        %v3622 = vsub.s32 %v3619, %v3621
        %v3623 = vrot.slane %v3613, %v3622
        %v3625 = vunpack.c.l.s4 1966171168
        %v3626 = vunpack.c.0.s8 %v3625
        %v3627 = vlaneseq
        %v3628 = vshrl.u32 %v3627, 7
        %v3629 = vsub.s32 %v3626, %v3628
        %v3630 = vrot.slane %v3614, %v3629
        %v3632 = vunpack.c.l.s4 1966171168
        %v3633 = vunpack.c.0.s8 %v3632
        %v3634 = vlaneseq
        %v3635 = vshrl.u32 %v3634, 7
        %v3636 = vsub.s32 %v3633, %v3635
        %v3637 = vrot.slane %v3615, %v3636
        %v3639 = vunpack.c.l.s4 1966171168
        %v3640 = vunpack.c.0.s8 %v3639
        %v3641 = vlaneseq
        %v3642 = vshrl.u32 %v3641, 7
        %v3643 = vsub.s32 %v3640, %v3642
        %v3644 = vrot.slane %v3616, %v3643
        %v3645 = vcombine.low %v3623, %v3630
        %v3646 = vcombine.high %v3623, %v3630
        %v3647 = vcombine.low %v3637, %v3644
        %v3648 = vcombine.high %v3637, %v3644
        %v3650 = vunpack.c.l.s4 1966171168
        %v3651 = vunpack.c.0.s8 %v3650
        %v3652 = vlaneseq
        %v3653 = vshrl.u32 %v3652, 7
        %v3654 = vsub.s32 %v3651, %v3653
        %v3655 = vrot.slane %v3645, %v3654
        %v3657 = vunpack.c.l.s4 1966171168
        %v3658 = vunpack.c.0.s8 %v3657
        %v3659 = vlaneseq
        %v3660 = vshrl.u32 %v3659, 7
        %v3661 = vsub.s32 %v3658, %v3660
        %v3662 = vrot.slane %v3646, %v3661
        %v3664 = vunpack.c.l.s4 1966171168
        %v3665 = vunpack.c.0.s8 %v3664
        %v3666 = vlaneseq
        %v3667 = vshrl.u32 %v3666, 7
        %v3668 = vsub.s32 %v3665, %v3667
        %v3669 = vrot.slane %v3647, %v3668
        %v3671 = vunpack.c.l.s4 1966171168
        %v3672 = vunpack.c.0.s8 %v3671
        %v3673 = vlaneseq
        %v3674 = vshrl.u32 %v3673, 7
        %v3675 = vsub.s32 %v3672, %v3674
        %v3676 = vrot.slane %v3648, %v3675
        %v3677 = vcombine.low %v3655, %v3669
        %v3678 = vcombine.high %v3655, %v3669
        %v3679 = vcombine.low %v3662, %v3676
        %v3680 = vcombine.low %v2870, %v2872
        %v3681 = vcombine.low %v2855, %v2869
        %v3682 = vcombine.low %v2871, %v2914
        %v3683 = vcombine.low %v2928, %v2936
        %v3685 = vunpack.c.l.s4 1966171168
        %v3686 = vunpack.c.0.s8 %v3685
        %v3687 = vlaneseq
        %v3688 = vshrl.u32 %v3687, 7
        %v3689 = vsub.s32 %v3686, %v3688
        %v3690 = vrot.slane %v3680, %v3689
        %v3692 = vunpack.c.l.s4 1966171168
        %v3693 = vunpack.c.0.s8 %v3692
        %v3694 = vlaneseq
        %v3695 = vshrl.u32 %v3694, 7
        %v3696 = vsub.s32 %v3693, %v3695
        %v3697 = vrot.slane %v3681, %v3696
        %v3699 = vunpack.c.l.s4 1966171168
        %v3700 = vunpack.c.0.s8 %v3699
        %v3701 = vlaneseq
        %v3702 = vshrl.u32 %v3701, 7
        %v3703 = vsub.s32 %v3700, %v3702
        %v3704 = vrot.slane %v3682, %v3703
        %v3706 = vunpack.c.l.s4 1966171168
        %v3707 = vunpack.c.0.s8 %v3706
        %v3708 = vlaneseq
        %v3709 = vshrl.u32 %v3708, 7
        %v3710 = vsub.s32 %v3707, %v3709
        %v3711 = vrot.slane %v3683, %v3710
        %v3712 = vcombine.low %v3690, %v3697
        %v3713 = vcombine.high %v3690, %v3697
        %v3714 = vcombine.low %v3704, %v3711
        %v3715 = vcombine.high %v3704, %v3711
        %v3717 = vunpack.c.l.s4 1966171168
        %v3718 = vunpack.c.0.s8 %v3717
        %v3719 = vlaneseq
        %v3720 = vshrl.u32 %v3719, 7
        %v3721 = vsub.s32 %v3718, %v3720
        %v3722 = vrot.slane %v3712, %v3721
        %v3724 = vunpack.c.l.s4 1966171168
        %v3725 = vunpack.c.0.s8 %v3724
        %v3726 = vlaneseq
        %v3727 = vshrl.u32 %v3726, 7
        %v3728 = vsub.s32 %v3725, %v3727
        %v3729 = vrot.slane %v3713, %v3728
        %v3731 = vunpack.c.l.s4 1966171168
        %v3732 = vunpack.c.0.s8 %v3731
        %v3733 = vlaneseq
        %v3734 = vshrl.u32 %v3733, 7
        %v3735 = vsub.s32 %v3732, %v3734
        %v3736 = vrot.slane %v3714, %v3735
        %v3738 = vunpack.c.l.s4 1966171168
        %v3739 = vunpack.c.0.s8 %v3738
        %v3740 = vlaneseq
        %v3741 = vshrl.u32 %v3740, 7
        %v3742 = vsub.s32 %v3739, %v3741
        %v3743 = vrot.slane %v3715, %v3742
        %v3744 = vcombine.low %v3722, %v3736
        %v3745 = vcombine.high %v3722, %v3736
        %v3746 = vcombine.low %v3729, %v3743
        %v3747 = vcombine.low %v2938, %v2921
        %v3748 = vcombine.low %v2935, %v2937
        %v3749 = vcombine.low %v2980, %v2994
        %v3750 = vcombine.low %v3002, %v3004
        %v3752 = vunpack.c.l.s4 1966171168
        %v3753 = vunpack.c.0.s8 %v3752
        %v3754 = vlaneseq
        %v3755 = vshrl.u32 %v3754, 7
        %v3756 = vsub.s32 %v3753, %v3755
        %v3757 = vrot.slane %v3747, %v3756
        %v3759 = vunpack.c.l.s4 1966171168
        %v3760 = vunpack.c.0.s8 %v3759
        %v3761 = vlaneseq
        %v3762 = vshrl.u32 %v3761, 7
        %v3763 = vsub.s32 %v3760, %v3762
        %v3764 = vrot.slane %v3748, %v3763
        %v3766 = vunpack.c.l.s4 1966171168
        %v3767 = vunpack.c.0.s8 %v3766
        %v3768 = vlaneseq
        %v3769 = vshrl.u32 %v3768, 7
        %v3770 = vsub.s32 %v3767, %v3769
        %v3771 = vrot.slane %v3749, %v3770
        %v3773 = vunpack.c.l.s4 1966171168
        %v3774 = vunpack.c.0.s8 %v3773
        %v3775 = vlaneseq
        %v3776 = vshrl.u32 %v3775, 7
        %v3777 = vsub.s32 %v3774, %v3776
        %v3778 = vrot.slane %v3750, %v3777
        %v3779 = vcombine.low %v3757, %v3764
        %v3780 = vcombine.high %v3757, %v3764
        %v3781 = vcombine.low %v3771, %v3778
        %v3782 = vcombine.high %v3771, %v3778
        %v3784 = vunpack.c.l.s4 1966171168
        %v3785 = vunpack.c.0.s8 %v3784
        %v3786 = vlaneseq
        %v3787 = vshrl.u32 %v3786, 7
        %v3788 = vsub.s32 %v3785, %v3787
        %v3789 = vrot.slane %v3779, %v3788
        %v3791 = vunpack.c.l.s4 1966171168
        %v3792 = vunpack.c.0.s8 %v3791
        %v3793 = vlaneseq
        %v3794 = vshrl.u32 %v3793, 7
        %v3795 = vsub.s32 %v3792, %v3794
        %v3796 = vrot.slane %v3780, %v3795
        %v3798 = vunpack.c.l.s4 1966171168
        %v3799 = vunpack.c.0.s8 %v3798
        %v3800 = vlaneseq
        %v3801 = vshrl.u32 %v3800, 7
        %v3802 = vsub.s32 %v3799, %v3801
        %v3803 = vrot.slane %v3781, %v3802
        %v3805 = vunpack.c.l.s4 1966171168
        %v3806 = vunpack.c.0.s8 %v3805
        %v3807 = vlaneseq
        %v3808 = vshrl.u32 %v3807, 7
        %v3809 = vsub.s32 %v3806, %v3808
        %v3810 = vrot.slane %v3782, %v3809
        %v3811 = vcombine.low %v3789, %v3803
        %v3812 = vcombine.high %v3789, %v3803
        %v3813 = vcombine.low %v3796, %v3810
        %v3814 = vcombine.low %v2987, %v3001
        %v3815 = vcombine.low %v3003, %v3046
        %v3816 = vcombine.low %v3060, %v3068
        %v3817 = vcombine.low %v3070, %v3053
        %v3819 = vunpack.c.l.s4 1966171168
        %v3820 = vunpack.c.0.s8 %v3819
        %v3821 = vlaneseq
        %v3822 = vshrl.u32 %v3821, 7
        %v3823 = vsub.s32 %v3820, %v3822
        %v3824 = vrot.slane %v3814, %v3823
        %v3826 = vunpack.c.l.s4 1966171168
        %v3827 = vunpack.c.0.s8 %v3826
        %v3828 = vlaneseq
        %v3829 = vshrl.u32 %v3828, 7
        %v3830 = vsub.s32 %v3827, %v3829
        %v3831 = vrot.slane %v3815, %v3830
        %v3833 = vunpack.c.l.s4 1966171168
        %v3834 = vunpack.c.0.s8 %v3833
        %v3835 = vlaneseq
        %v3836 = vshrl.u32 %v3835, 7
        %v3837 = vsub.s32 %v3834, %v3836
        %v3838 = vrot.slane %v3816, %v3837
        %v3840 = vunpack.c.l.s4 1966171168
        %v3841 = vunpack.c.0.s8 %v3840
        %v3842 = vlaneseq
        %v3843 = vshrl.u32 %v3842, 7
        %v3844 = vsub.s32 %v3841, %v3843
        %v3845 = vrot.slane %v3817, %v3844
        %v3846 = vcombine.low %v3824, %v3831
        %v3847 = vcombine.high %v3824, %v3831
        %v3848 = vcombine.low %v3838, %v3845
        %v3849 = vcombine.high %v3838, %v3845
        %v3851 = vunpack.c.l.s4 1966171168
        %v3852 = vunpack.c.0.s8 %v3851
        %v3853 = vlaneseq
        %v3854 = vshrl.u32 %v3853, 7
        %v3855 = vsub.s32 %v3852, %v3854
        %v3856 = vrot.slane %v3846, %v3855
        %v3858 = vunpack.c.l.s4 1966171168
        %v3859 = vunpack.c.0.s8 %v3858
        %v3860 = vlaneseq
        %v3861 = vshrl.u32 %v3860, 7
        %v3862 = vsub.s32 %v3859, %v3861
        %v3863 = vrot.slane %v3847, %v3862
        %v3865 = vunpack.c.l.s4 1966171168
        %v3866 = vunpack.c.0.s8 %v3865
        %v3867 = vlaneseq
        %v3868 = vshrl.u32 %v3867, 7
        %v3869 = vsub.s32 %v3866, %v3868
        %v3870 = vrot.slane %v3848, %v3869
        %v3872 = vunpack.c.l.s4 1966171168
        %v3873 = vunpack.c.0.s8 %v3872
        %v3874 = vlaneseq
        %v3875 = vshrl.u32 %v3874, 7
        %v3876 = vsub.s32 %v3873, %v3875
        %v3877 = vrot.slane %v3849, %v3876
        %v3878 = vcombine.low %v3856, %v3870
        %v3879 = vcombine.high %v3856, %v3870
        %v3880 = vcombine.low %v3863, %v3877
        %v3881 = vcombine.low %v3067, %v3069
        %v3883 = vunpack.c.l.s4 1966171168
        %v3884 = vunpack.c.0.s8 %v3883
        %v3885 = vlaneseq
        %v3886 = vshrl.u32 %v3885, 7
        %v3887 = vsub.s32 %v3884, %v3886
        %v3888 = vrot.slane %v3881, %v3887
        %v3889 = vcombine.high %v3888, %v3888
        %v3891 = vunpack.c.l.s4 1966171168
        %v3892 = vunpack.c.0.s8 %v3891
        %v3893 = vlaneseq
        %v3894 = vshrl.u32 %v3893, 7
        %v3895 = vsub.s32 %v3892, %v3894
        %v3896 = vrot.slane %v3888, %v3895
        %v3898 = vunpack.c.l.s4 1966171168
        %v3899 = vunpack.c.0.s8 %v3898
        %v3900 = vlaneseq
        %v3901 = vshrl.u32 %v3900, 7
        %v3902 = vsub.s32 %v3899, %v3901
        %v3903 = vrot.slane %v3889, %v3902
        %v3904 = vcombine.high %v3896, %v3896
        %v3967 = vunpack.c.l.b16 %v1572
        %v3968 = vunpack.c.l.b16 %v1573
        %v3969 = vunpack.c.l.b16 %v1574
        %v3970 = vunpack.c.l.b16 %v1575
        %v3971 = vunpack.c.l.b16 %v1576
        %v3972 = vunpack.c.l.b16 %v1577
        %v3973 = vunpack.c.l.b16 %v1578
        %v3974 = vunpack.c.l.b16 %v1579
        %v3975 = vunpack.c.l.b16 %v1580
        %v3976 = vunpack.c.l.b16 %v1581
        %v3977 = vunpack.c.l.b16 %v1582
        %v3978 = vunpack.c.l.b16 %v1583
        %v3979 = vunpack.c.l.b16 %v1584
        %v3980 = vunpack.c.l.b16 %v1585
        %v3981 = vunpack.c.l.b16 %v1586
        %v3982 = vunpack.c.l.b16 %v1587
        %v3983 = vunpack.c.l.b16 %v1588
        %v3984 = vunpack.c.l.b16 %v1589
        %v3985 = vunpack.c.l.b16 %v1590
        %v3986 = vunpack.c.l.b16 %v1591
        %v3987 = vunpack.c.l.b16 %v1592
        %v3988 = vunpack.c.l.b16 %v1593
        %v3989 = vunpack.c.l.b16 %v1594
        %v3990 = vunpack.c.l.b16 %v1595
        %v3991 = vunpack.c.l.b16 %v1596
        %v3992 = vunpack.c.l.b16 %v1597
        %v3993 = vunpack.c.l.b16 %v1598
        %v3994 = vunpack.c.l.b16 %v1599
        %v3995 = vunpack.c.l.b16 %v1600
        %v3996 = vunpack.c.l.b16 %v1601
        %v3997 = vunpack.c.l.b16 %v1602
        %v3998 = vunpack.c.l.b16 %v1603
        %v3999 = vunpack.c.l.b16 %v1604
        %v4000 = vunpack.c.l.b16 %v1605
        %v4001 = vunpack.c.l.b16 %v1606
        %v4002 = vunpack.c.l.b16 %v1607
        %v4003 = vpack.c.b16 %v3968, %v3967
        %v4004 = vpack.c.b16 %v3970, %v3969
        %v4005 = vpack.c.b16 %v3972, %v3971
        %v4006 = vpack.c.b16 %v3974, %v3973
        %v4007 = vpack.c.b16 %v3976, %v3975
        %v4008 = vpack.c.b16 %v3978, %v3977
        %v4009 = vpack.c.b16 %v3980, %v3979
        %v4010 = vpack.c.b16 %v3982, %v3981
        %v4011 = vpack.c.b16 %v3984, %v3983
        %v4012 = vpack.c.b16 %v3986, %v3985
        %v4013 = vpack.c.b16 %v3988, %v3987
        %v4014 = vpack.c.b16 %v3990, %v3989
        %v4015 = vpack.c.b16 %v3992, %v3991
        %v4016 = vpack.c.b16 %v3994, %v3993
        %v4017 = vpack.c.b16 %v3996, %v3995
        %v4018 = vpack.c.b16 %v3998, %v3997
        %v4019 = vpack.c.b16 %v4000, %v3999
        %v4020 = vpack.c.b16 %v4002, %v4001
        %v4040 = vsel %vm661, %v3142, 0
        %v4043 = vsel %vm661, %v3209, 0
        %v4046 = vsel %vm661, %v3276, 0
        %v4049 = vsel %vm661, %v3343, 0
        %v4052 = vsel %vm661, %v3410, 0
        %v4055 = vsel %vm661, %v3477, 0
        %v4058 = vsel %vm661, %v3544, 0
        %v4061 = vsel %vm661, %v3611, 0
        %v4064 = vsel %vm661, %v3678, 0
        %v4067 = vsel %vm661, %v3745, 0
        %v4070 = vsel %vm661, %v3812, 0
        %v4073 = vsel %vm661, %v3879, 0
        %v4076 = vsel %vm661, %v3904, 0
        %4078 = vmatprep.subr.bf16.mxu0 0
        %4079 = vmatpush1.bf16.msra.mxu0 %v4003
        %4080 = vmatprep.subr.bf16.mxu0 0
        %4081 = vmatpush1.bf16.msra.mxu0 %v4004
        %4082 = vmatprep.subr.bf16.mxu0 0
        %4083 = vmatpush1.bf16.msra.mxu0 %v4005
        %4084 = vmatprep.subr.bf16.mxu0 0
        %4085 = vmatpush1.bf16.msra.mxu0 %v4006
        %4086 = vmatprep.subr.bf16.mxu0 0
        %4087 = vmatpush1.bf16.msra.mxu0 %v4007
        %4088 = vmatprep.subr.bf16.mxu0 0
        %4089 = vmatpush1.bf16.msra.mxu0 %v4008
        %4090 = vmatprep.subr.bf16.mxu0 0
        %4091 = vmatpush1.bf16.msra.mxu0 %v4009
        %4092 = vmatprep.subr.bf16.mxu0 0
        %4093 = vmatpush1.bf16.msra.mxu0 %v4010
        %4094 = vmatprep.subr.bf16.mxu0 0
        %4095 = vmatpush1.bf16.msra.mxu0 %v4011
        %4096 = vmatprep.subr.bf16.mxu0 0
        %4097 = vmatpush1.bf16.msra.mxu0 %v4012
        %4098 = vmatprep.subr.bf16.mxu0 0
        %4099 = vmatpush1.bf16.msra.mxu0 %v4013
        %4100 = vmatprep.subr.bf16.mxu0 0
        %4101 = vmatpush1.bf16.msra.mxu0 %v4014
        %4102 = vmatprep.subr.bf16.mxu0 0
        %4103 = vmatpush1.bf16.msra.mxu0 %v4015
        %4104 = vmatprep.subr.bf16.mxu0 0
        %4105 = vmatpush1.bf16.msra.mxu0 %v4016
        %4106 = vmatprep.subr.bf16.mxu0 0
        %4107 = vmatpush1.bf16.msra.mxu0 %v4017
        %4108 = vmatprep.subr.bf16.mxu0 0
        %4109 = vmatpush1.bf16.msra.mxu0 %v4018
        %4110 = vmatprep.mubr.bf16.mxu0 %v3143
        %4111 = vmatmul.mubr.bf16.gmra.mrb[0].mxu0 %v3141
        %v4112 = vpop.f32.mrb[0].mxu0
        %v4113 = vadd.f32 %v3075, %v4112
        %v4114 = vpop.f32.mrb[0].mxu0
        %v4115 = vpop.f32.mrb[0].mxu0
        %v4116 = vadd.f32 %v3075, %v4115
        %v4117 = vpop.f32.mrb[0].mxu0
        %4118 = vmatprep.mubr.bf16.mxu0 %v3210
        %4119 = vmatmul.mubr.bf16.gmra.mrb[0].mxu0 %v3208
        %v4120 = vpop.f32.mrb[0].mxu0
        %v4121 = vadd.f32 %v3075, %v4120
        %v4122 = vpop.f32.mrb[0].mxu0
        %v4123 = vpop.f32.mrb[0].mxu0
        %v4124 = vadd.f32 %v3075, %v4123
        %v4125 = vpop.f32.mrb[0].mxu0
        %4126 = vmatprep.mubr.bf16.mxu0 %v3277
        %4127 = vmatmul.mubr.bf16.gmra.mrb[0].mxu0 %v3275
        %v4128 = vpop.f32.mrb[0].mxu0
        %v4129 = vadd.f32 %v3075, %v4128
        %v4130 = vpop.f32.mrb[0].mxu0
        %v4131 = vpop.f32.mrb[0].mxu0
        %v4132 = vadd.f32 %v3075, %v4131
        %v4133 = vpop.f32.mrb[0].mxu0
        %4134 = vmatprep.mubr.bf16.mxu0 %v3344
        %4135 = vmatmul.mubr.bf16.gmra.mrb[0].mxu0 %v3342
        %v4136 = vpop.f32.mrb[0].mxu0
        %v4137 = vadd.f32 %v3075, %v4136
        %v4138 = vpop.f32.mrb[0].mxu0
        %v4139 = vpop.f32.mrb[0].mxu0
        %v4140 = vadd.f32 %v3075, %v4139
        %v4141 = vpop.f32.mrb[0].mxu0
        %4142 = vmatprep.mubr.bf16.mxu0 %v3411
        %4143 = vmatmul.mubr.bf16.gmra.mrb[0].mxu0 %v3409
        %v4144 = vpop.f32.mrb[0].mxu0
        %v4145 = vadd.f32 %v3075, %v4144
        %v4146 = vpop.f32.mrb[0].mxu0
        %v4147 = vpop.f32.mrb[0].mxu0
        %v4148 = vadd.f32 %v3075, %v4147
        %v4149 = vpop.f32.mrb[0].mxu0
        %4150 = vmatprep.mubr.bf16.mxu0 %v3478
        %4151 = vmatmul.mubr.bf16.gmra.mrb[0].mxu0 %v3476
        %v4152 = vpop.f32.mrb[0].mxu0
        %v4153 = vadd.f32 %v3075, %v4152
        %v4154 = vpop.f32.mrb[0].mxu0
        %v4155 = vpop.f32.mrb[0].mxu0
        %v4156 = vadd.f32 %v3075, %v4155
        %v4157 = vpop.f32.mrb[0].mxu0
        %4158 = vmatprep.mubr.bf16.mxu0 %v3545
        %4159 = vmatmul.mubr.bf16.gmra.mrb[0].mxu0 %v3543
        %v4160 = vpop.f32.mrb[0].mxu0
        %v4161 = vadd.f32 %v3075, %v4160
        %v4162 = vpop.f32.mrb[0].mxu0
        %v4163 = vpop.f32.mrb[0].mxu0
        %v4164 = vadd.f32 %v3075, %v4163
        %v4165 = vpop.f32.mrb[0].mxu0
        %4166 = vmatprep.mubr.bf16.mxu0 %v3612
        %4167 = vmatmul.mubr.bf16.gmra.mrb[0].mxu0 %v3610
        %v4168 = vpop.f32.mrb[0].mxu0
        %v4169 = vadd.f32 %v3075, %v4168
        %v4170 = vpop.f32.mrb[0].mxu0
        %v4171 = vpop.f32.mrb[0].mxu0
        %v4172 = vadd.f32 %v3075, %v4171
        %v4173 = vpop.f32.mrb[0].mxu0
        %4174 = vmatprep.mubr.bf16.mxu0 %v3679
        %4175 = vmatmul.mubr.bf16.gmra.mrb[0].mxu0 %v3677
        %v4176 = vpop.f32.mrb[0].mxu0
        %v4177 = vadd.f32 %v3075, %v4176
        %v4178 = vpop.f32.mrb[0].mxu0
        %v4179 = vpop.f32.mrb[0].mxu0
        %v4180 = vadd.f32 %v3075, %v4179
        %v4181 = vpop.f32.mrb[0].mxu0
        %4182 = vmatprep.mubr.bf16.mxu0 %v3746
        %4183 = vmatmul.mubr.bf16.gmra.mrb[0].mxu0 %v3744
        %v4184 = vpop.f32.mrb[0].mxu0
        %v4185 = vadd.f32 %v3075, %v4184
        %v4186 = vpop.f32.mrb[0].mxu0
        %v4187 = vpop.f32.mrb[0].mxu0
        %v4188 = vadd.f32 %v3075, %v4187
        %v4189 = vpop.f32.mrb[0].mxu0
        %4190 = vmatprep.mubr.bf16.mxu0 %v3813
        %4191 = vmatmul.mubr.bf16.gmra.mrb[0].mxu0 %v3811
        %v4192 = vpop.f32.mrb[0].mxu0
        %v4193 = vadd.f32 %v3075, %v4192
        %v4194 = vpop.f32.mrb[0].mxu0
        %v4195 = vpop.f32.mrb[0].mxu0
        %v4196 = vadd.f32 %v3075, %v4195
        %v4197 = vpop.f32.mrb[0].mxu0
        %4198 = vmatprep.mubr.bf16.mxu0 %v3880
        %4199 = vmatmul.mubr.bf16.gmra.mrb[0].mxu0 %v3878
        %v4200 = vpop.f32.mrb[0].mxu0
        %v4201 = vadd.f32 %v3075, %v4200
        %v4202 = vpop.f32.mrb[0].mxu0
        %v4203 = vpop.f32.mrb[0].mxu0
        %v4204 = vadd.f32 %v3075, %v4203
        %v4205 = vpop.f32.mrb[0].mxu0
        %4206 = vmatprep.mubr.bf16.mxu0 %v3903
        %4207 = vmatmul.mubr.bf16.gmra.mrb[0].mxu0 %v3896
        %v4208 = vpop.f32.mrb[0].mxu0
        %v4209 = vadd.f32 %v3075, %v4208
        %v4210 = vpop.f32.mrb[0].mxu0
        %v4211 = vpop.f32.mrb[0].mxu0
        %v4212 = vpop.f32.mrb[0].mxu0
        %4213 = vdwg.mxu0
        %4214 = vmatprep.subr.bf16.mxu0 0
        %4215 = vmatpush1.bf16.msra.mxu0 %v4019
        %4216 = vmatprep.subr.bf16.mxu0 0
        %4217 = vmatpush1.bf16.msra.mxu0 %v4020
        %4218 = vmatprep.subr.bf16.mxu0 0
        %4219 = vmatpush1.bf16.msra.mxu0 0
        %4220 = vmatprep.subr.bf16.mxu0 0
        %4221 = vmatpush1.bf16.msra.mxu0 0
        %4222 = vmatprep.subr.bf16.mxu0 0
        %4223 = vmatpush1.bf16.msra.mxu0 0
        %4224 = vmatprep.subr.bf16.mxu0 0
        %4225 = vmatpush1.bf16.msra.mxu0 0
        %4226 = vmatprep.subr.bf16.mxu0 0
        %4227 = vmatpush1.bf16.msra.mxu0 0
        %4228 = vmatprep.subr.bf16.mxu0 0
        %4229 = vmatpush1.bf16.msra.mxu0 0
        %4230 = vmatprep.subr.bf16.mxu0 0
        %4231 = vmatpush1.bf16.msra.mxu0 0
        %4232 = vmatprep.subr.bf16.mxu0 0
        %4233 = vmatpush1.bf16.msra.mxu0 0
        %4234 = vmatprep.subr.bf16.mxu0 0
        %4235 = vmatpush1.bf16.msra.mxu0 0
        %4236 = vmatprep.subr.bf16.mxu0 0
        %4237 = vmatpush1.bf16.msra.mxu0 0
        %4238 = vmatprep.subr.bf16.mxu0 0
        %4239 = vmatpush1.bf16.msra.mxu0 0
        %4240 = vmatprep.subr.bf16.mxu0 0
        %4241 = vmatpush1.bf16.msra.mxu0 0
        %4242 = vmatprep.subr.bf16.mxu0 0
        %4243 = vmatpush1.bf16.msra.mxu0 0
        %4244 = vmatprep.subr.bf16.mxu0 0
        %4245 = vmatpush1.bf16.msra.mxu0 0
        %4246 = vmatprep.mubr.bf16.mxu0 0
        %4247 = vmatmul.mubr.bf16.gmra.mrb[0].mxu0 %v4040
        %v4248 = vpop.f32.mrb[0].mxu0
        %v4249 = vadd.f32 %v4113, %v4248
        %v4250 = vpop.f32.mrb[0].mxu0
        %v4251 = vpop.f32.mrb[0].mxu0
        %v4252 = vadd.f32 %v4116, %v4251
        %v4253 = vpop.f32.mrb[0].mxu0
        %4254 = vmatprep.mubr.bf16.mxu0 0
        %4255 = vmatmul.mubr.bf16.gmra.mrb[0].mxu0 %v4043
        %v4256 = vpop.f32.mrb[0].mxu0
        %v4257 = vadd.f32 %v4121, %v4256
        %v4258 = vpop.f32.mrb[0].mxu0
        %v4259 = vpop.f32.mrb[0].mxu0
        %v4260 = vadd.f32 %v4124, %v4259
        %v4261 = vpop.f32.mrb[0].mxu0
        %4262 = vmatprep.mubr.bf16.mxu0 0
        %4263 = vmatmul.mubr.bf16.gmra.mrb[0].mxu0 %v4046
        %v4264 = vpop.f32.mrb[0].mxu0
        %v4265 = vadd.f32 %v4129, %v4264
        %v4266 = vpop.f32.mrb[0].mxu0
        %v4267 = vpop.f32.mrb[0].mxu0
        %v4268 = vadd.f32 %v4132, %v4267
        %v4269 = vpop.f32.mrb[0].mxu0
        %4270 = vmatprep.mubr.bf16.mxu0 0
        %4271 = vmatmul.mubr.bf16.gmra.mrb[0].mxu0 %v4049
        %v4272 = vpop.f32.mrb[0].mxu0
        %v4273 = vadd.f32 %v4137, %v4272
        %v4274 = vpop.f32.mrb[0].mxu0
        %v4275 = vpop.f32.mrb[0].mxu0
        %v4276 = vadd.f32 %v4140, %v4275
        %v4277 = vpop.f32.mrb[0].mxu0
        %4278 = vmatprep.mubr.bf16.mxu0 0
        %4279 = vmatmul.mubr.bf16.gmra.mrb[0].mxu0 %v4052
        %v4280 = vpop.f32.mrb[0].mxu0
        %v4281 = vadd.f32 %v4145, %v4280
        %v4282 = vpop.f32.mrb[0].mxu0
        %v4283 = vpop.f32.mrb[0].mxu0
        %v4284 = vadd.f32 %v4148, %v4283
        %v4285 = vpop.f32.mrb[0].mxu0
        %4286 = vmatprep.mubr.bf16.mxu0 0
        %4287 = vmatmul.mubr.bf16.gmra.mrb[0].mxu0 %v4055
        %v4288 = vpop.f32.mrb[0].mxu0
        %v4289 = vadd.f32 %v4153, %v4288
        %v4290 = vpop.f32.mrb[0].mxu0
        %v4291 = vpop.f32.mrb[0].mxu0
        %v4292 = vadd.f32 %v4156, %v4291
        %v4293 = vpop.f32.mrb[0].mxu0
        %4294 = vmatprep.mubr.bf16.mxu0 0
        %4295 = vmatmul.mubr.bf16.gmra.mrb[0].mxu0 %v4058
        %v4296 = vpop.f32.mrb[0].mxu0
        %v4297 = vadd.f32 %v4161, %v4296
        %v4298 = vpop.f32.mrb[0].mxu0
        %v4299 = vpop.f32.mrb[0].mxu0
        %v4300 = vadd.f32 %v4164, %v4299
        %v4301 = vpop.f32.mrb[0].mxu0
        %4302 = vmatprep.mubr.bf16.mxu0 0
        %4303 = vmatmul.mubr.bf16.gmra.mrb[0].mxu0 %v4061
        %v4304 = vpop.f32.mrb[0].mxu0
        %v4305 = vadd.f32 %v4169, %v4304
        %v4306 = vpop.f32.mrb[0].mxu0
        %v4307 = vpop.f32.mrb[0].mxu0
        %v4308 = vadd.f32 %v4172, %v4307
        %v4309 = vpop.f32.mrb[0].mxu0
        %4310 = vmatprep.mubr.bf16.mxu0 0
        %4311 = vmatmul.mubr.bf16.gmra.mrb[0].mxu0 %v4064
        %v4312 = vpop.f32.mrb[0].mxu0
        %v4313 = vadd.f32 %v4177, %v4312
        %v4314 = vpop.f32.mrb[0].mxu0
        %v4315 = vpop.f32.mrb[0].mxu0
        %v4316 = vadd.f32 %v4180, %v4315
        %v4317 = vpop.f32.mrb[0].mxu0
        %4318 = vmatprep.mubr.bf16.mxu0 0
        %4319 = vmatmul.mubr.bf16.gmra.mrb[0].mxu0 %v4067
        %v4320 = vpop.f32.mrb[0].mxu0
        %v4321 = vadd.f32 %v4185, %v4320
        %v4322 = vpop.f32.mrb[0].mxu0
        %v4323 = vpop.f32.mrb[0].mxu0
        %v4324 = vadd.f32 %v4188, %v4323
        %v4325 = vpop.f32.mrb[0].mxu0
        %4326 = vmatprep.mubr.bf16.mxu0 0
        %4327 = vmatmul.mubr.bf16.gmra.mrb[0].mxu0 %v4070
        %v4328 = vpop.f32.mrb[0].mxu0
        %v4329 = vadd.f32 %v4193, %v4328
        %v4330 = vpop.f32.mrb[0].mxu0
        %v4331 = vpop.f32.mrb[0].mxu0
        %v4332 = vadd.f32 %v4196, %v4331
        %v4333 = vpop.f32.mrb[0].mxu0
        %4334 = vmatprep.mubr.bf16.mxu0 0
        %4335 = vmatmul.mubr.bf16.gmra.mrb[0].mxu0 %v4073
        %v4336 = vpop.f32.mrb[0].mxu0
        %v4337 = vadd.f32 %v4201, %v4336
        %v4338 = vpop.f32.mrb[0].mxu0
        %v4339 = vpop.f32.mrb[0].mxu0
        %v4340 = vadd.f32 %v4204, %v4339
        %v4341 = vpop.f32.mrb[0].mxu0
        %4342 = vmatprep.mubr.bf16.mxu0 0
        %4343 = vmatmul.mubr.bf16.gmra.mrb[0].mxu0 %v4076
        %v4344 = vpop.f32.mrb[0].mxu0
        %v4345 = vadd.f32 %v4209, %v4344
        %v4346 = vpop.f32.mrb[0].mxu0
        %v4347 = vpop.f32.mrb[0].mxu0
        %v4348 = vpop.f32.mrb[0].mxu0
        %4349 = vdwg.mxu0
        %v4350 = vmax.f32 %v4249, 0.0
        %v4351 = vmax.f32 %v4252, 0.0
        %v4352 = vmax.f32 %v4257, 0.0
        %v4353 = vmax.f32 %v4260, 0.0
        %v4354 = vmax.f32 %v4265, 0.0
        %v4355 = vmax.f32 %v4268, 0.0
        %v4356 = vmax.f32 %v4273, 0.0
        %v4357 = vmax.f32 %v4276, 0.0
        %v4358 = vmax.f32 %v4281, 0.0
        %v4359 = vmax.f32 %v4284, 0.0
        %v4360 = vmax.f32 %v4289, 0.0
        %v4361 = vmax.f32 %v4292, 0.0
        %v4362 = vmax.f32 %v4297, 0.0
        %v4363 = vmax.f32 %v4300, 0.0
        %v4364 = vmax.f32 %v4305, 0.0
        %v4365 = vmax.f32 %v4308, 0.0
        %v4366 = vmax.f32 %v4313, 0.0
        %v4367 = vmax.f32 %v4316, 0.0
        %v4368 = vmax.f32 %v4321, 0.0
        %v4369 = vmax.f32 %v4324, 0.0
        %v4370 = vmax.f32 %v4329, 0.0
        %v4371 = vmax.f32 %v4332, 0.0
        %v4372 = vmax.f32 %v4337, 0.0
        %v4373 = vmax.f32 %v4340, 0.0
        %v4374 = vmax.f32 %v4345, 0.0
        %v4400 = vcombine.high %v4350, %v4350
        %v4402 = vunpack.c.l.s4 1983009808
        %v4403 = vunpack.c.0.s8 %v4402
        %v4404 = vlaneseq
        %v4405 = vshrl.u32 %v4404, 7
        %v4406 = vsub.s32 %v4403, %v4405
        %v4407 = vrot.slane %v4350, %v4406
        %v4409 = vunpack.c.l.s4 1983009808
        %v4410 = vunpack.c.0.s8 %v4409
        %v4411 = vlaneseq
        %v4412 = vshrl.u32 %v4411, 7
        %v4413 = vsub.s32 %v4410, %v4412
        %v4414 = vrot.slane %v4400, %v4413
        %v4415 = vcombine.high %v4407, %v4407
        %v4416 = vcombine.high %v4414, %v4414
        %v4417 = vcombine.high %v4351, %v4351
        %v4419 = vunpack.c.l.s4 1983009808
        %v4420 = vunpack.c.0.s8 %v4419
        %v4421 = vlaneseq
        %v4422 = vshrl.u32 %v4421, 7
        %v4423 = vsub.s32 %v4420, %v4422
        %v4424 = vrot.slane %v4351, %v4423
        %v4426 = vunpack.c.l.s4 1983009808
        %v4427 = vunpack.c.0.s8 %v4426
        %v4428 = vlaneseq
        %v4429 = vshrl.u32 %v4428, 7
        %v4430 = vsub.s32 %v4427, %v4429
        %v4431 = vrot.slane %v4417, %v4430
        %v4432 = vcombine.high %v4424, %v4424
        %v4433 = vcombine.high %v4431, %v4431
        %v4434 = vcombine.high %v4352, %v4352
        %v4436 = vunpack.c.l.s4 1983009808
        %v4437 = vunpack.c.0.s8 %v4436
        %v4438 = vlaneseq
        %v4439 = vshrl.u32 %v4438, 7
        %v4440 = vsub.s32 %v4437, %v4439
        %v4441 = vrot.slane %v4352, %v4440
        %v4443 = vunpack.c.l.s4 1983009808
        %v4444 = vunpack.c.0.s8 %v4443
        %v4445 = vlaneseq
        %v4446 = vshrl.u32 %v4445, 7
        %v4447 = vsub.s32 %v4444, %v4446
        %v4448 = vrot.slane %v4434, %v4447
        %v4449 = vcombine.high %v4441, %v4441
        %v4450 = vcombine.high %v4448, %v4448
        %v4451 = vcombine.high %v4353, %v4353
        %v4453 = vunpack.c.l.s4 1983009808
        %v4454 = vunpack.c.0.s8 %v4453
        %v4455 = vlaneseq
        %v4456 = vshrl.u32 %v4455, 7
        %v4457 = vsub.s32 %v4454, %v4456
        %v4458 = vrot.slane %v4353, %v4457
        %v4460 = vunpack.c.l.s4 1983009808
        %v4461 = vunpack.c.0.s8 %v4460
        %v4462 = vlaneseq
        %v4463 = vshrl.u32 %v4462, 7
        %v4464 = vsub.s32 %v4461, %v4463
        %v4465 = vrot.slane %v4451, %v4464
        %v4466 = vcombine.high %v4458, %v4458
        %v4467 = vcombine.high %v4465, %v4465
        %v4468 = vcombine.high %v4354, %v4354
        %v4470 = vunpack.c.l.s4 1983009808
        %v4471 = vunpack.c.0.s8 %v4470
        %v4472 = vlaneseq
        %v4473 = vshrl.u32 %v4472, 7
        %v4474 = vsub.s32 %v4471, %v4473
        %v4475 = vrot.slane %v4354, %v4474
        %v4477 = vunpack.c.l.s4 1983009808
        %v4478 = vunpack.c.0.s8 %v4477
        %v4479 = vlaneseq
        %v4480 = vshrl.u32 %v4479, 7
        %v4481 = vsub.s32 %v4478, %v4480
        %v4482 = vrot.slane %v4468, %v4481
        %v4483 = vcombine.high %v4475, %v4475
        %v4484 = vcombine.high %v4482, %v4482
        %v4485 = vcombine.high %v4355, %v4355
        %v4487 = vunpack.c.l.s4 1983009808
        %v4488 = vunpack.c.0.s8 %v4487
        %v4489 = vlaneseq
        %v4490 = vshrl.u32 %v4489, 7
        %v4491 = vsub.s32 %v4488, %v4490
        %v4492 = vrot.slane %v4355, %v4491
        %v4494 = vunpack.c.l.s4 1983009808
        %v4495 = vunpack.c.0.s8 %v4494
        %v4496 = vlaneseq
        %v4497 = vshrl.u32 %v4496, 7
        %v4498 = vsub.s32 %v4495, %v4497
        %v4499 = vrot.slane %v4485, %v4498
        %v4500 = vcombine.high %v4492, %v4492
        %v4501 = vcombine.high %v4499, %v4499
        %v4502 = vcombine.high %v4356, %v4356
        %v4504 = vunpack.c.l.s4 1983009808
        %v4505 = vunpack.c.0.s8 %v4504
        %v4506 = vlaneseq
        %v4507 = vshrl.u32 %v4506, 7
        %v4508 = vsub.s32 %v4505, %v4507
        %v4509 = vrot.slane %v4356, %v4508
        %v4511 = vunpack.c.l.s4 1983009808
        %v4512 = vunpack.c.0.s8 %v4511
        %v4513 = vlaneseq
        %v4514 = vshrl.u32 %v4513, 7
        %v4515 = vsub.s32 %v4512, %v4514
        %v4516 = vrot.slane %v4502, %v4515
        %v4517 = vcombine.high %v4509, %v4509
        %v4518 = vcombine.high %v4516, %v4516
        %v4519 = vcombine.high %v4357, %v4357
        %v4521 = vunpack.c.l.s4 1983009808
        %v4522 = vunpack.c.0.s8 %v4521
        %v4523 = vlaneseq
        %v4524 = vshrl.u32 %v4523, 7
        %v4525 = vsub.s32 %v4522, %v4524
        %v4526 = vrot.slane %v4357, %v4525
        %v4528 = vunpack.c.l.s4 1983009808
        %v4529 = vunpack.c.0.s8 %v4528
        %v4530 = vlaneseq
        %v4531 = vshrl.u32 %v4530, 7
        %v4532 = vsub.s32 %v4529, %v4531
        %v4533 = vrot.slane %v4519, %v4532
        %v4534 = vcombine.high %v4526, %v4526
        %v4535 = vcombine.high %v4533, %v4533
        %v4536 = vcombine.high %v4358, %v4358
        %v4538 = vunpack.c.l.s4 1983009808
        %v4539 = vunpack.c.0.s8 %v4538
        %v4540 = vlaneseq
        %v4541 = vshrl.u32 %v4540, 7
        %v4542 = vsub.s32 %v4539, %v4541
        %v4543 = vrot.slane %v4358, %v4542
        %v4545 = vunpack.c.l.s4 1983009808
        %v4546 = vunpack.c.0.s8 %v4545
        %v4547 = vlaneseq
        %v4548 = vshrl.u32 %v4547, 7
        %v4549 = vsub.s32 %v4546, %v4548
        %v4550 = vrot.slane %v4536, %v4549
        %v4551 = vcombine.high %v4543, %v4543
        %v4552 = vcombine.high %v4550, %v4550
        %v4553 = vcombine.high %v4359, %v4359
        %v4555 = vunpack.c.l.s4 1983009808
        %v4556 = vunpack.c.0.s8 %v4555
        %v4557 = vlaneseq
        %v4558 = vshrl.u32 %v4557, 7
        %v4559 = vsub.s32 %v4556, %v4558
        %v4560 = vrot.slane %v4359, %v4559
        %v4562 = vunpack.c.l.s4 1983009808
        %v4563 = vunpack.c.0.s8 %v4562
        %v4564 = vlaneseq
        %v4565 = vshrl.u32 %v4564, 7
        %v4566 = vsub.s32 %v4563, %v4565
        %v4567 = vrot.slane %v4553, %v4566
        %v4568 = vcombine.high %v4560, %v4560
        %v4569 = vcombine.high %v4567, %v4567
        %v4570 = vcombine.high %v4360, %v4360
        %v4572 = vunpack.c.l.s4 1983009808
        %v4573 = vunpack.c.0.s8 %v4572
        %v4574 = vlaneseq
        %v4575 = vshrl.u32 %v4574, 7
        %v4576 = vsub.s32 %v4573, %v4575
        %v4577 = vrot.slane %v4360, %v4576
        %v4579 = vunpack.c.l.s4 1983009808
        %v4580 = vunpack.c.0.s8 %v4579
        %v4581 = vlaneseq
        %v4582 = vshrl.u32 %v4581, 7
        %v4583 = vsub.s32 %v4580, %v4582
        %v4584 = vrot.slane %v4570, %v4583
        %v4585 = vcombine.high %v4577, %v4577
        %v4586 = vcombine.high %v4584, %v4584
        %v4587 = vcombine.high %v4361, %v4361
        %v4589 = vunpack.c.l.s4 1983009808
        %v4590 = vunpack.c.0.s8 %v4589
        %v4591 = vlaneseq
        %v4592 = vshrl.u32 %v4591, 7
        %v4593 = vsub.s32 %v4590, %v4592
        %v4594 = vrot.slane %v4361, %v4593
        %v4596 = vunpack.c.l.s4 1983009808
        %v4597 = vunpack.c.0.s8 %v4596
        %v4598 = vlaneseq
        %v4599 = vshrl.u32 %v4598, 7
        %v4600 = vsub.s32 %v4597, %v4599
        %v4601 = vrot.slane %v4587, %v4600
        %v4602 = vcombine.high %v4594, %v4594
        %v4603 = vcombine.high %v4601, %v4601
        %v4604 = vcombine.high %v4362, %v4362
        %v4606 = vunpack.c.l.s4 1983009808
        %v4607 = vunpack.c.0.s8 %v4606
        %v4608 = vlaneseq
        %v4609 = vshrl.u32 %v4608, 7
        %v4610 = vsub.s32 %v4607, %v4609
        %v4611 = vrot.slane %v4362, %v4610
        %v4613 = vunpack.c.l.s4 1983009808
        %v4614 = vunpack.c.0.s8 %v4613
        %v4615 = vlaneseq
        %v4616 = vshrl.u32 %v4615, 7
        %v4617 = vsub.s32 %v4614, %v4616
        %v4618 = vrot.slane %v4604, %v4617
        %v4619 = vcombine.high %v4611, %v4611
        %v4620 = vcombine.high %v4618, %v4618
        %v4621 = vcombine.high %v4363, %v4363
        %v4623 = vunpack.c.l.s4 1983009808
        %v4624 = vunpack.c.0.s8 %v4623
        %v4625 = vlaneseq
        %v4626 = vshrl.u32 %v4625, 7
        %v4627 = vsub.s32 %v4624, %v4626
        %v4628 = vrot.slane %v4363, %v4627
        %v4630 = vunpack.c.l.s4 1983009808
        %v4631 = vunpack.c.0.s8 %v4630
        %v4632 = vlaneseq
        %v4633 = vshrl.u32 %v4632, 7
        %v4634 = vsub.s32 %v4631, %v4633
        %v4635 = vrot.slane %v4621, %v4634
        %v4636 = vcombine.high %v4628, %v4628
        %v4637 = vcombine.high %v4635, %v4635
        %v4638 = vcombine.high %v4364, %v4364
        %v4640 = vunpack.c.l.s4 1983009808
        %v4641 = vunpack.c.0.s8 %v4640
        %v4642 = vlaneseq
        %v4643 = vshrl.u32 %v4642, 7
        %v4644 = vsub.s32 %v4641, %v4643
        %v4645 = vrot.slane %v4364, %v4644
        %v4647 = vunpack.c.l.s4 1983009808
        %v4648 = vunpack.c.0.s8 %v4647
        %v4649 = vlaneseq
        %v4650 = vshrl.u32 %v4649, 7
        %v4651 = vsub.s32 %v4648, %v4650
        %v4652 = vrot.slane %v4638, %v4651
        %v4653 = vcombine.high %v4645, %v4645
        %v4654 = vcombine.high %v4652, %v4652
        %v4655 = vcombine.high %v4365, %v4365
        %v4657 = vunpack.c.l.s4 1983009808
        %v4658 = vunpack.c.0.s8 %v4657
        %v4659 = vlaneseq
        %v4660 = vshrl.u32 %v4659, 7
        %v4661 = vsub.s32 %v4658, %v4660
        %v4662 = vrot.slane %v4365, %v4661
        %v4664 = vunpack.c.l.s4 1983009808
        %v4665 = vunpack.c.0.s8 %v4664
        %v4666 = vlaneseq
        %v4667 = vshrl.u32 %v4666, 7
        %v4668 = vsub.s32 %v4665, %v4667
        %v4669 = vrot.slane %v4655, %v4668
        %v4670 = vcombine.high %v4662, %v4662
        %v4671 = vcombine.high %v4669, %v4669
        %v4672 = vcombine.high %v4366, %v4366
        %v4674 = vunpack.c.l.s4 1983009808
        %v4675 = vunpack.c.0.s8 %v4674
        %v4676 = vlaneseq
        %v4677 = vshrl.u32 %v4676, 7
        %v4678 = vsub.s32 %v4675, %v4677
        %v4679 = vrot.slane %v4366, %v4678
        %v4681 = vunpack.c.l.s4 1983009808
        %v4682 = vunpack.c.0.s8 %v4681
        %v4683 = vlaneseq
        %v4684 = vshrl.u32 %v4683, 7
        %v4685 = vsub.s32 %v4682, %v4684
        %v4686 = vrot.slane %v4672, %v4685
        %v4687 = vcombine.high %v4679, %v4679
        %v4688 = vcombine.high %v4686, %v4686
        %v4689 = vcombine.high %v4367, %v4367
        %v4691 = vunpack.c.l.s4 1983009808
        %v4692 = vunpack.c.0.s8 %v4691
        %v4693 = vlaneseq
        %v4694 = vshrl.u32 %v4693, 7
        %v4695 = vsub.s32 %v4692, %v4694
        %v4696 = vrot.slane %v4367, %v4695
        %v4698 = vunpack.c.l.s4 1983009808
        %v4699 = vunpack.c.0.s8 %v4698
        %v4700 = vlaneseq
        %v4701 = vshrl.u32 %v4700, 7
        %v4702 = vsub.s32 %v4699, %v4701
        %v4703 = vrot.slane %v4689, %v4702
        %v4704 = vcombine.high %v4696, %v4696
        %v4705 = vcombine.high %v4703, %v4703
        %v4706 = vcombine.high %v4368, %v4368
        %v4708 = vunpack.c.l.s4 1983009808
        %v4709 = vunpack.c.0.s8 %v4708
        %v4710 = vlaneseq
        %v4711 = vshrl.u32 %v4710, 7
        %v4712 = vsub.s32 %v4709, %v4711
        %v4713 = vrot.slane %v4368, %v4712
        %v4715 = vunpack.c.l.s4 1983009808
        %v4716 = vunpack.c.0.s8 %v4715
        %v4717 = vlaneseq
        %v4718 = vshrl.u32 %v4717, 7
        %v4719 = vsub.s32 %v4716, %v4718
        %v4720 = vrot.slane %v4706, %v4719
        %v4721 = vcombine.high %v4713, %v4713
        %v4722 = vcombine.high %v4720, %v4720
        %v4723 = vcombine.high %v4369, %v4369
        %v4725 = vunpack.c.l.s4 1983009808
        %v4726 = vunpack.c.0.s8 %v4725
        %v4727 = vlaneseq
        %v4728 = vshrl.u32 %v4727, 7
        %v4729 = vsub.s32 %v4726, %v4728
        %v4730 = vrot.slane %v4369, %v4729
        %v4732 = vunpack.c.l.s4 1983009808
        %v4733 = vunpack.c.0.s8 %v4732
        %v4734 = vlaneseq
        %v4735 = vshrl.u32 %v4734, 7
        %v4736 = vsub.s32 %v4733, %v4735
        %v4737 = vrot.slane %v4723, %v4736
        %v4738 = vcombine.high %v4730, %v4730
        %v4739 = vcombine.high %v4737, %v4737
        %v4740 = vcombine.high %v4370, %v4370
        %v4742 = vunpack.c.l.s4 1983009808
        %v4743 = vunpack.c.0.s8 %v4742
        %v4744 = vlaneseq
        %v4745 = vshrl.u32 %v4744, 7
        %v4746 = vsub.s32 %v4743, %v4745
        %v4747 = vrot.slane %v4370, %v4746
        %v4749 = vunpack.c.l.s4 1983009808
        %v4750 = vunpack.c.0.s8 %v4749
        %v4751 = vlaneseq
        %v4752 = vshrl.u32 %v4751, 7
        %v4753 = vsub.s32 %v4750, %v4752
        %v4754 = vrot.slane %v4740, %v4753
        %v4755 = vcombine.high %v4747, %v4747
        %v4756 = vcombine.high %v4754, %v4754
        %v4757 = vcombine.high %v4371, %v4371
        %v4759 = vunpack.c.l.s4 1983009808
        %v4760 = vunpack.c.0.s8 %v4759
        %v4761 = vlaneseq
        %v4762 = vshrl.u32 %v4761, 7
        %v4763 = vsub.s32 %v4760, %v4762
        %v4764 = vrot.slane %v4371, %v4763
        %v4766 = vunpack.c.l.s4 1983009808
        %v4767 = vunpack.c.0.s8 %v4766
        %v4768 = vlaneseq
        %v4769 = vshrl.u32 %v4768, 7
        %v4770 = vsub.s32 %v4767, %v4769
        %v4771 = vrot.slane %v4757, %v4770
        %v4772 = vcombine.high %v4764, %v4764
        %v4773 = vcombine.high %v4771, %v4771
        %v4774 = vcombine.high %v4372, %v4372
        %v4776 = vunpack.c.l.s4 1983009808
        %v4777 = vunpack.c.0.s8 %v4776
        %v4778 = vlaneseq
        %v4779 = vshrl.u32 %v4778, 7
        %v4780 = vsub.s32 %v4777, %v4779
        %v4781 = vrot.slane %v4372, %v4780
        %v4783 = vunpack.c.l.s4 1983009808
        %v4784 = vunpack.c.0.s8 %v4783
        %v4785 = vlaneseq
        %v4786 = vshrl.u32 %v4785, 7
        %v4787 = vsub.s32 %v4784, %v4786
        %v4788 = vrot.slane %v4774, %v4787
        %v4789 = vcombine.high %v4781, %v4781
        %v4790 = vcombine.high %v4788, %v4788
        %v4791 = vcombine.high %v4373, %v4373
        %v4793 = vunpack.c.l.s4 1983009808
        %v4794 = vunpack.c.0.s8 %v4793
        %v4795 = vlaneseq
        %v4796 = vshrl.u32 %v4795, 7
        %v4797 = vsub.s32 %v4794, %v4796
        %v4798 = vrot.slane %v4373, %v4797
        %v4800 = vunpack.c.l.s4 1983009808
        %v4801 = vunpack.c.0.s8 %v4800
        %v4802 = vlaneseq
        %v4803 = vshrl.u32 %v4802, 7
        %v4804 = vsub.s32 %v4801, %v4803
        %v4805 = vrot.slane %v4791, %v4804
        %v4806 = vcombine.high %v4798, %v4798
        %v4807 = vcombine.high %v4805, %v4805
        %v4809 = vunpack.c.l.s4 1983009808
        %v4810 = vunpack.c.0.s8 %v4809
        %v4811 = vlaneseq
        %v4812 = vshrl.u32 %v4811, 7
        %v4813 = vsub.s32 %v4810, %v4812
        %v4814 = vrot.slane %v4374, %v4813
        %v4815 = vcombine.high %v4814, %v4814
        %v4816 = vcombine.low %v4407, %v4415
        %v4817 = vcombine.low %v4414, %v4416
        %v4819 = vunpack.c.l.s4 1983009808
        %v4820 = vunpack.c.0.s8 %v4819
        %v4821 = vlaneseq
        %v4822 = vshrl.u32 %v4821, 7
        %v4823 = vsub.s32 %v4820, %v4822
        %v4824 = vrot.slane %v4816, %v4823
        %v4826 = vunpack.c.l.s4 1983009808
        %v4827 = vunpack.c.0.s8 %v4826
        %v4828 = vlaneseq
        %v4829 = vshrl.u32 %v4828, 7
        %v4830 = vsub.s32 %v4827, %v4829
        %v4831 = vrot.slane %v4817, %v4830
        %v4832 = vcombine.low %v4824, %v4831
        %v4833 = vcombine.low %v4424, %v4432
        %v4835 = vunpack.c.l.s4 1983009808
        %v4836 = vunpack.c.0.s8 %v4835
        %v4837 = vlaneseq
        %v4838 = vshrl.u32 %v4837, 7
        %v4839 = vsub.s32 %v4836, %v4838
        %v4840 = vrot.slane %v4833, %v4839
        %v4842 = vunpack.c.l.s4 1983009808
        %v4843 = vunpack.c.0.s8 %v4842
        %v4844 = vlaneseq
        %v4845 = vshrl.u32 %v4844, 7
        %v4846 = vsub.s32 %v4843, %v4845
        %v4847 = vrot.slane %v4431, %v4846
        %v4848 = vcombine.low %v4840, %v4847
        %v4849 = vcombine.low %v4433, %v4441
        %v4850 = vcombine.low %v4449, %v4448
        %v4852 = vunpack.c.l.s4 1983009808
        %v4853 = vunpack.c.0.s8 %v4852
        %v4854 = vlaneseq
        %v4855 = vshrl.u32 %v4854, 7
        %v4856 = vsub.s32 %v4853, %v4855
        %v4857 = vrot.slane %v4849, %v4856
        %v4859 = vunpack.c.l.s4 1983009808
        %v4860 = vunpack.c.0.s8 %v4859
        %v4861 = vlaneseq
        %v4862 = vshrl.u32 %v4861, 7
        %v4863 = vsub.s32 %v4860, %v4862
        %v4864 = vrot.slane %v4850, %v4863
        %v4865 = vcombine.low %v4857, %v4864
        %v4866 = vcombine.low %v4450, %v4458
        %v4868 = vunpack.c.l.s4 1983009808
        %v4869 = vunpack.c.0.s8 %v4868
        %v4870 = vlaneseq
        %v4871 = vshrl.u32 %v4870, 7
        %v4872 = vsub.s32 %v4869, %v4871
        %v4873 = vrot.slane %v4866, %v4872
        %v4875 = vunpack.c.l.s4 1983009808
        %v4876 = vunpack.c.0.s8 %v4875
        %v4877 = vlaneseq
        %v4878 = vshrl.u32 %v4877, 7
        %v4879 = vsub.s32 %v4876, %v4878
        %v4880 = vrot.slane %v4466, %v4879
        %v4881 = vcombine.low %v4873, %v4880
        %v4882 = vcombine.low %v4465, %v4467
        %v4883 = vcombine.low %v4475, %v4483
        %v4885 = vunpack.c.l.s4 1983009808
        %v4886 = vunpack.c.0.s8 %v4885
        %v4887 = vlaneseq
        %v4888 = vshrl.u32 %v4887, 7
        %v4889 = vsub.s32 %v4886, %v4888
        %v4890 = vrot.slane %v4882, %v4889
        %v4892 = vunpack.c.l.s4 1983009808
        %v4893 = vunpack.c.0.s8 %v4892
        %v4894 = vlaneseq
        %v4895 = vshrl.u32 %v4894, 7
        %v4896 = vsub.s32 %v4893, %v4895
        %v4897 = vrot.slane %v4883, %v4896
        %v4898 = vcombine.low %v4890, %v4897
        %v4899 = vcombine.low %v4482, %v4484
        %v4901 = vunpack.c.l.s4 1983009808
        %v4902 = vunpack.c.0.s8 %v4901
        %v4903 = vlaneseq
        %v4904 = vshrl.u32 %v4903, 7
        %v4905 = vsub.s32 %v4902, %v4904
        %v4906 = vrot.slane %v4899, %v4905
        %v4908 = vunpack.c.l.s4 1983009808
        %v4909 = vunpack.c.0.s8 %v4908
        %v4910 = vlaneseq
        %v4911 = vshrl.u32 %v4910, 7
        %v4912 = vsub.s32 %v4909, %v4911
        %v4913 = vrot.slane %v4492, %v4912
        %v4914 = vcombine.low %v4906, %v4913
        %v4915 = vcombine.low %v4500, %v4499
        %v4916 = vcombine.low %v4501, %v4509
        %v4918 = vunpack.c.l.s4 1983009808
        %v4919 = vunpack.c.0.s8 %v4918
        %v4920 = vlaneseq
        %v4921 = vshrl.u32 %v4920, 7
        %v4922 = vsub.s32 %v4919, %v4921
        %v4923 = vrot.slane %v4915, %v4922
        %v4925 = vunpack.c.l.s4 1983009808
        %v4926 = vunpack.c.0.s8 %v4925
        %v4927 = vlaneseq
        %v4928 = vshrl.u32 %v4927, 7
        %v4929 = vsub.s32 %v4926, %v4928
        %v4930 = vrot.slane %v4916, %v4929
        %v4931 = vcombine.low %v4923, %v4930
        %v4932 = vcombine.low %v4517, %v4516
        %v4934 = vunpack.c.l.s4 1983009808
        %v4935 = vunpack.c.0.s8 %v4934
        %v4936 = vlaneseq
        %v4937 = vshrl.u32 %v4936, 7
        %v4938 = vsub.s32 %v4935, %v4937
        %v4939 = vrot.slane %v4932, %v4938
        %v4941 = vunpack.c.l.s4 1983009808
        %v4942 = vunpack.c.0.s8 %v4941
        %v4943 = vlaneseq
        %v4944 = vshrl.u32 %v4943, 7
        %v4945 = vsub.s32 %v4942, %v4944
        %v4946 = vrot.slane %v4518, %v4945
        %v4947 = vcombine.low %v4939, %v4946
        %v4948 = vcombine.low %v4526, %v4534
        %v4949 = vcombine.low %v4533, %v4535
        %v4951 = vunpack.c.l.s4 1983009808
        %v4952 = vunpack.c.0.s8 %v4951
        %v4953 = vlaneseq
        %v4954 = vshrl.u32 %v4953, 7
        %v4955 = vsub.s32 %v4952, %v4954
        %v4956 = vrot.slane %v4948, %v4955
        %v4958 = vunpack.c.l.s4 1983009808
        %v4959 = vunpack.c.0.s8 %v4958
        %v4960 = vlaneseq
        %v4961 = vshrl.u32 %v4960, 7
        %v4962 = vsub.s32 %v4959, %v4961
        %v4963 = vrot.slane %v4949, %v4962
        %v4964 = vcombine.low %v4956, %v4963
        %v4965 = vcombine.low %v4543, %v4551
        %v4967 = vunpack.c.l.s4 1983009808
        %v4968 = vunpack.c.0.s8 %v4967
        %v4969 = vlaneseq
        %v4970 = vshrl.u32 %v4969, 7
        %v4971 = vsub.s32 %v4968, %v4970
        %v4972 = vrot.slane %v4965, %v4971
        %v4974 = vunpack.c.l.s4 1983009808
        %v4975 = vunpack.c.0.s8 %v4974
        %v4976 = vlaneseq
        %v4977 = vshrl.u32 %v4976, 7
        %v4978 = vsub.s32 %v4975, %v4977
        %v4979 = vrot.slane %v4550, %v4978
        %v4980 = vcombine.low %v4972, %v4979
        %v4981 = vcombine.low %v4552, %v4560
        %v4982 = vcombine.low %v4568, %v4567
        %v4984 = vunpack.c.l.s4 1983009808
        %v4985 = vunpack.c.0.s8 %v4984
        %v4986 = vlaneseq
        %v4987 = vshrl.u32 %v4986, 7
        %v4988 = vsub.s32 %v4985, %v4987
        %v4989 = vrot.slane %v4981, %v4988
        %v4991 = vunpack.c.l.s4 1983009808
        %v4992 = vunpack.c.0.s8 %v4991
        %v4993 = vlaneseq
        %v4994 = vshrl.u32 %v4993, 7
        %v4995 = vsub.s32 %v4992, %v4994
        %v4996 = vrot.slane %v4982, %v4995
        %v4997 = vcombine.low %v4989, %v4996
        %v4998 = vcombine.low %v4569, %v4577
        %v5000 = vunpack.c.l.s4 1983009808
        %v5001 = vunpack.c.0.s8 %v5000
        %v5002 = vlaneseq
        %v5003 = vshrl.u32 %v5002, 7
        %v5004 = vsub.s32 %v5001, %v5003
        %v5005 = vrot.slane %v4998, %v5004
        %v5007 = vunpack.c.l.s4 1983009808
        %v5008 = vunpack.c.0.s8 %v5007
        %v5009 = vlaneseq
        %v5010 = vshrl.u32 %v5009, 7
        %v5011 = vsub.s32 %v5008, %v5010
        %v5012 = vrot.slane %v4585, %v5011
        %v5013 = vcombine.low %v5005, %v5012
        %v5014 = vcombine.low %v4584, %v4586
        %v5015 = vcombine.low %v4594, %v4602
        %v5017 = vunpack.c.l.s4 1983009808
        %v5018 = vunpack.c.0.s8 %v5017
        %v5019 = vlaneseq
        %v5020 = vshrl.u32 %v5019, 7
        %v5021 = vsub.s32 %v5018, %v5020
        %v5022 = vrot.slane %v5014, %v5021
        %v5024 = vunpack.c.l.s4 1983009808
        %v5025 = vunpack.c.0.s8 %v5024
        %v5026 = vlaneseq
        %v5027 = vshrl.u32 %v5026, 7
        %v5028 = vsub.s32 %v5025, %v5027
        %v5029 = vrot.slane %v5015, %v5028
        %v5030 = vcombine.low %v5022, %v5029
        %v5031 = vcombine.low %v4601, %v4603
        %v5033 = vunpack.c.l.s4 1983009808
        %v5034 = vunpack.c.0.s8 %v5033
        %v5035 = vlaneseq
        %v5036 = vshrl.u32 %v5035, 7
        %v5037 = vsub.s32 %v5034, %v5036
        %v5038 = vrot.slane %v5031, %v5037
        %v5040 = vunpack.c.l.s4 1983009808
        %v5041 = vunpack.c.0.s8 %v5040
        %v5042 = vlaneseq
        %v5043 = vshrl.u32 %v5042, 7
        %v5044 = vsub.s32 %v5041, %v5043
        %v5045 = vrot.slane %v4611, %v5044
        %v5046 = vcombine.low %v5038, %v5045
        %v5047 = vcombine.low %v4619, %v4618
        %v5048 = vcombine.low %v4620, %v4628
        %v5050 = vunpack.c.l.s4 1983009808
        %v5051 = vunpack.c.0.s8 %v5050
        %v5052 = vlaneseq
        %v5053 = vshrl.u32 %v5052, 7
        %v5054 = vsub.s32 %v5051, %v5053
        %v5055 = vrot.slane %v5047, %v5054
        %v5057 = vunpack.c.l.s4 1983009808
        %v5058 = vunpack.c.0.s8 %v5057
        %v5059 = vlaneseq
        %v5060 = vshrl.u32 %v5059, 7
        %v5061 = vsub.s32 %v5058, %v5060
        %v5062 = vrot.slane %v5048, %v5061
        %v5063 = vcombine.low %v5055, %v5062
        %v5064 = vcombine.low %v4636, %v4635
        %v5066 = vunpack.c.l.s4 1983009808
        %v5067 = vunpack.c.0.s8 %v5066
        %v5068 = vlaneseq
        %v5069 = vshrl.u32 %v5068, 7
        %v5070 = vsub.s32 %v5067, %v5069
        %v5071 = vrot.slane %v5064, %v5070
        %v5073 = vunpack.c.l.s4 1983009808
        %v5074 = vunpack.c.0.s8 %v5073
        %v5075 = vlaneseq
        %v5076 = vshrl.u32 %v5075, 7
        %v5077 = vsub.s32 %v5074, %v5076
        %v5078 = vrot.slane %v4637, %v5077
        %v5079 = vcombine.low %v5071, %v5078
        %v5080 = vcombine.low %v4645, %v4653
        %v5081 = vcombine.low %v4652, %v4654
        %v5083 = vunpack.c.l.s4 1983009808
        %v5084 = vunpack.c.0.s8 %v5083
        %v5085 = vlaneseq
        %v5086 = vshrl.u32 %v5085, 7
        %v5087 = vsub.s32 %v5084, %v5086
        %v5088 = vrot.slane %v5080, %v5087
        %v5090 = vunpack.c.l.s4 1983009808
        %v5091 = vunpack.c.0.s8 %v5090
        %v5092 = vlaneseq
        %v5093 = vshrl.u32 %v5092, 7
        %v5094 = vsub.s32 %v5091, %v5093
        %v5095 = vrot.slane %v5081, %v5094
        %v5096 = vcombine.low %v5088, %v5095
        %v5097 = vcombine.low %v4662, %v4670
        %v5099 = vunpack.c.l.s4 1983009808
        %v5100 = vunpack.c.0.s8 %v5099
        %v5101 = vlaneseq
        %v5102 = vshrl.u32 %v5101, 7
        %v5103 = vsub.s32 %v5100, %v5102
        %v5104 = vrot.slane %v5097, %v5103
        %v5106 = vunpack.c.l.s4 1983009808
        %v5107 = vunpack.c.0.s8 %v5106
        %v5108 = vlaneseq
        %v5109 = vshrl.u32 %v5108, 7
        %v5110 = vsub.s32 %v5107, %v5109
        %v5111 = vrot.slane %v4669, %v5110
        %v5112 = vcombine.low %v5104, %v5111
        %v5113 = vcombine.low %v4671, %v4679
        %v5114 = vcombine.low %v4687, %v4686
        %v5116 = vunpack.c.l.s4 1983009808
        %v5117 = vunpack.c.0.s8 %v5116
        %v5118 = vlaneseq
        %v5119 = vshrl.u32 %v5118, 7
        %v5120 = vsub.s32 %v5117, %v5119
        %v5121 = vrot.slane %v5113, %v5120
        %v5123 = vunpack.c.l.s4 1983009808
        %v5124 = vunpack.c.0.s8 %v5123
        %v5125 = vlaneseq
        %v5126 = vshrl.u32 %v5125, 7
        %v5127 = vsub.s32 %v5124, %v5126
        %v5128 = vrot.slane %v5114, %v5127
        %v5129 = vcombine.low %v5121, %v5128
        %v5130 = vcombine.low %v4688, %v4696
        %v5132 = vunpack.c.l.s4 1983009808
        %v5133 = vunpack.c.0.s8 %v5132
        %v5134 = vlaneseq
        %v5135 = vshrl.u32 %v5134, 7
        %v5136 = vsub.s32 %v5133, %v5135
        %v5137 = vrot.slane %v5130, %v5136
        %v5139 = vunpack.c.l.s4 1983009808
        %v5140 = vunpack.c.0.s8 %v5139
        %v5141 = vlaneseq
        %v5142 = vshrl.u32 %v5141, 7
        %v5143 = vsub.s32 %v5140, %v5142
        %v5144 = vrot.slane %v4704, %v5143
        %v5145 = vcombine.low %v5137, %v5144
        %v5146 = vcombine.low %v4703, %v4705
        %v5147 = vcombine.low %v4713, %v4721
        %v5149 = vunpack.c.l.s4 1983009808
        %v5150 = vunpack.c.0.s8 %v5149
        %v5151 = vlaneseq
        %v5152 = vshrl.u32 %v5151, 7
        %v5153 = vsub.s32 %v5150, %v5152
        %v5154 = vrot.slane %v5146, %v5153
        %v5156 = vunpack.c.l.s4 1983009808
        %v5157 = vunpack.c.0.s8 %v5156
        %v5158 = vlaneseq
        %v5159 = vshrl.u32 %v5158, 7
        %v5160 = vsub.s32 %v5157, %v5159
        %v5161 = vrot.slane %v5147, %v5160
        %v5162 = vcombine.low %v5154, %v5161
        %v5163 = vcombine.low %v4720, %v4722
        %v5165 = vunpack.c.l.s4 1983009808
        %v5166 = vunpack.c.0.s8 %v5165
        %v5167 = vlaneseq
        %v5168 = vshrl.u32 %v5167, 7
        %v5169 = vsub.s32 %v5166, %v5168
        %v5170 = vrot.slane %v5163, %v5169
        %v5172 = vunpack.c.l.s4 1983009808
        %v5173 = vunpack.c.0.s8 %v5172
        %v5174 = vlaneseq
        %v5175 = vshrl.u32 %v5174, 7
        %v5176 = vsub.s32 %v5173, %v5175
        %v5177 = vrot.slane %v4730, %v5176
        %v5178 = vcombine.low %v5170, %v5177
        %v5179 = vcombine.low %v4738, %v4737
        %v5180 = vcombine.low %v4739, %v4747
        %v5182 = vunpack.c.l.s4 1983009808
        %v5183 = vunpack.c.0.s8 %v5182
        %v5184 = vlaneseq
        %v5185 = vshrl.u32 %v5184, 7
        %v5186 = vsub.s32 %v5183, %v5185
        %v5187 = vrot.slane %v5179, %v5186
        %v5189 = vunpack.c.l.s4 1983009808
        %v5190 = vunpack.c.0.s8 %v5189
        %v5191 = vlaneseq
        %v5192 = vshrl.u32 %v5191, 7
        %v5193 = vsub.s32 %v5190, %v5192
        %v5194 = vrot.slane %v5180, %v5193
        %v5195 = vcombine.low %v5187, %v5194
        %v5196 = vcombine.low %v4755, %v4754
        %v5198 = vunpack.c.l.s4 1983009808
        %v5199 = vunpack.c.0.s8 %v5198
        %v5200 = vlaneseq
        %v5201 = vshrl.u32 %v5200, 7
        %v5202 = vsub.s32 %v5199, %v5201
        %v5203 = vrot.slane %v5196, %v5202
        %v5205 = vunpack.c.l.s4 1983009808
        %v5206 = vunpack.c.0.s8 %v5205
        %v5207 = vlaneseq
        %v5208 = vshrl.u32 %v5207, 7
        %v5209 = vsub.s32 %v5206, %v5208
        %v5210 = vrot.slane %v4756, %v5209
        %v5211 = vcombine.low %v5203, %v5210
        %v5212 = vcombine.low %v4764, %v4772
        %v5213 = vcombine.low %v4771, %v4773
        %v5215 = vunpack.c.l.s4 1983009808
        %v5216 = vunpack.c.0.s8 %v5215
        %v5217 = vlaneseq
        %v5218 = vshrl.u32 %v5217, 7
        %v5219 = vsub.s32 %v5216, %v5218
        %v5220 = vrot.slane %v5212, %v5219
        %v5222 = vunpack.c.l.s4 1983009808
        %v5223 = vunpack.c.0.s8 %v5222
        %v5224 = vlaneseq
        %v5225 = vshrl.u32 %v5224, 7
        %v5226 = vsub.s32 %v5223, %v5225
        %v5227 = vrot.slane %v5213, %v5226
        %v5228 = vcombine.low %v5220, %v5227
        %v5229 = vcombine.low %v4781, %v4789
        %v5231 = vunpack.c.l.s4 1983009808
        %v5232 = vunpack.c.0.s8 %v5231
        %v5233 = vlaneseq
        %v5234 = vshrl.u32 %v5233, 7
        %v5235 = vsub.s32 %v5232, %v5234
        %v5236 = vrot.slane %v5229, %v5235
        %v5238 = vunpack.c.l.s4 1983009808
        %v5239 = vunpack.c.0.s8 %v5238
        %v5240 = vlaneseq
        %v5241 = vshrl.u32 %v5240, 7
        %v5242 = vsub.s32 %v5239, %v5241
        %v5243 = vrot.slane %v4788, %v5242
        %v5244 = vcombine.low %v5236, %v5243
        %v5245 = vcombine.low %v4790, %v4798
        %v5246 = vcombine.low %v4806, %v4805
        %v5248 = vunpack.c.l.s4 1983009808
        %v5249 = vunpack.c.0.s8 %v5248
        %v5250 = vlaneseq
        %v5251 = vshrl.u32 %v5250, 7
        %v5252 = vsub.s32 %v5249, %v5251
        %v5253 = vrot.slane %v5245, %v5252
        %v5255 = vunpack.c.l.s4 1983009808
        %v5256 = vunpack.c.0.s8 %v5255
        %v5257 = vlaneseq
        %v5258 = vshrl.u32 %v5257, 7
        %v5259 = vsub.s32 %v5256, %v5258
        %v5260 = vrot.slane %v5246, %v5259
        %v5261 = vcombine.low %v5253, %v5260
        %v5262 = vcombine.low %v4807, %v4814
        %v5264 = vunpack.c.l.s4 1983009808
        %v5265 = vunpack.c.0.s8 %v5264
        %v5266 = vlaneseq
        %v5267 = vshrl.u32 %v5266, 7
        %v5268 = vsub.s32 %v5265, %v5267
        %v5269 = vrot.slane %v5262, %v5268
        %v5271 = vunpack.c.l.s4 1983009808
        %v5272 = vunpack.c.0.s8 %v5271
        %v5273 = vlaneseq
        %v5274 = vshrl.u32 %v5273, 7
        %v5275 = vsub.s32 %v5272, %v5274
        %v5276 = vrot.slane %v4815, %v5275
        %v5277 = vcombine.low %v5269, %v5276
        %5306 = vst.msk [vmem:[#allocation3] sm:$0xff] %vm674, %v4832
        %5307 = vst.msk [vmem:[#allocation3 + $0x8] sm:$0x3f] %vm1533, %v4848
        %5308 = vst.msk [vmem:[#allocation3 + $0x10] sm:$0xff] %vm674, %v4865
        %5309 = vst.msk [vmem:[#allocation3 + $0x18] sm:$0x3f] %vm1533, %v4881
        %5310 = vst.msk [vmem:[#allocation3 + $0x20] sm:$0xff] %vm674, %v4898
        %5311 = vst.msk [vmem:[#allocation3 + $0x28] sm:$0x3f] %vm1533, %v4914
        %5312 = vst.msk [vmem:[#allocation3 + $0x30] sm:$0xff] %vm674, %v4931
        %5313 = vst.msk [vmem:[#allocation3 + $0x38] sm:$0x3f] %vm1533, %v4947
        %5314 = vst.msk [vmem:[#allocation3 + $0x40] sm:$0xff] %vm674, %v4964
        %5315 = vst.msk [vmem:[#allocation3 + $0x48] sm:$0x3f] %vm1533, %v4980
        %5316 = vst.msk [vmem:[#allocation3 + $0x50] sm:$0xff] %vm674, %v4997
        %5317 = vst.msk [vmem:[#allocation3 + $0x58] sm:$0x3f] %vm1533, %v5013
        %5318 = vst.msk [vmem:[#allocation3 + $0x60] sm:$0xff] %vm674, %v5030
        %5319 = vst.msk [vmem:[#allocation3 + $0x68] sm:$0x3f] %vm1533, %v5046
        %5320 = vst.msk [vmem:[#allocation3 + $0x70] sm:$0xff] %vm674, %v5063
        %5321 = vst.msk [vmem:[#allocation3 + $0x78] sm:$0x3f] %vm1533, %v5079
        %5322 = vst.msk [vmem:[#allocation3 + $0x80] sm:$0xff] %vm674, %v5096
        %5323 = vst.msk [vmem:[#allocation3 + $0x88] sm:$0x3f] %vm1533, %v5112
        %5324 = vst.msk [vmem:[#allocation3 + $0x90] sm:$0xff] %vm674, %v5129
        %5325 = vst.msk [vmem:[#allocation3 + $0x98] sm:$0x3f] %vm1533, %v5145
        %5326 = vst.msk [vmem:[#allocation3 + $0xa0] sm:$0xff] %vm674, %v5162
        %5327 = vst.msk [vmem:[#allocation3 + $0xa8] sm:$0x3f] %vm1533, %v5178
        %5328 = vst.msk [vmem:[#allocation3 + $0xb0] sm:$0xff] %vm674, %v5195
        %5329 = vst.msk [vmem:[#allocation3 + $0xb8] sm:$0x3f] %vm1533, %v5211
        %5330 = vst.msk [vmem:[#allocation3 + $0xc0] sm:$0xff] %vm674, %v5228
        %5331 = vst.msk [vmem:[#allocation3 + $0xc8] sm:$0x3f] %vm1533, %v5244
        %5332 = vst.msk [vmem:[#allocation3 + $0xd0] sm:$0xff] %vm674, %v5261
        %5333 = vst.msk [vmem:[#allocation3 + $0xd8] sm:$0x3f] %vm1533, %v5277
        %v5334 = vld [vmem:[#allocation3] sm:$0xff]
        %v5335 = vld [vmem:[#allocation3 + $0x8] sm:$0x1]
        %v5336 = vld [vmem:[#allocation3 + $0x10] sm:$0xff]
        %v5337 = vld [vmem:[#allocation3 + $0x18] sm:$0x1]
        %v5338 = vld [vmem:[#allocation3 + $0x20] sm:$0xff]
        %v5339 = vld [vmem:[#allocation3 + $0x28] sm:$0x1]
        %v5340 = vld [vmem:[#allocation3 + $0x30] sm:$0xff]
        %v5341 = vld [vmem:[#allocation3 + $0x38] sm:$0x1]
        %v5342 = vld [vmem:[#allocation3 + $0x40] sm:$0xff]
        %v5343 = vld [vmem:[#allocation3 + $0x48] sm:$0x1]
        %v5344 = vld [vmem:[#allocation3 + $0x50] sm:$0xff]
        %v5345 = vld [vmem:[#allocation3 + $0x58] sm:$0x1]
        %v5346 = vld [vmem:[#allocation3 + $0x60] sm:$0xff]
        %v5347 = vld [vmem:[#allocation3 + $0x68] sm:$0x1]
        %v5348 = vld [vmem:[#allocation3 + $0x70] sm:$0xff]
        %v5349 = vld [vmem:[#allocation3 + $0x78] sm:$0x1]
        %v5350 = vld [vmem:[#allocation3 + $0x80] sm:$0xff]
        %v5351 = vld [vmem:[#allocation3 + $0x88] sm:$0x1]
        %v5352 = vld [vmem:[#allocation2] sm:$0x1]
        %v5353 = vlaneseq
        %v5354 = vshrl.u32 %v5353, 7
        %v5355 = vsub.s32 0, %v5354
        %v5356 = vrot.slane %v5352, %v5355
        %v5357 = vmul.f32 %v5334, %v5356
        %v5358 = vmul.f32 %v5335, %v5356
        %v5359 = vmul.f32 %v5336, %v5356
        %v5360 = vmul.f32 %v5337, %v5356
        %v5361 = vmul.f32 %v5338, %v5356
        %v5362 = vmul.f32 %v5339, %v5356
        %v5363 = vmul.f32 %v5340, %v5356
        %v5364 = vmul.f32 %v5341, %v5356
        %v5365 = vmul.f32 %v5342, %v5356
        %v5366 = vmul.f32 %v5343, %v5356
        %v5367 = vmul.f32 %v5344, %v5356
        %v5368 = vmul.f32 %v5345, %v5356
        %v5369 = vmul.f32 %v5346, %v5356
        %v5370 = vmul.f32 %v5347, %v5356
        %v5371 = vmul.f32 %v5348, %v5356
        %v5372 = vmul.f32 %v5349, %v5356
        %v5373 = vmul.f32 %v5350, %v5356
        %v5374 = vmul.f32 %v5351, %v5356
        %v5375 = vadd.f32 %v5357, 0.0
        %v5376 = vadd.f32 %v5358, 0.0
        %v5377 = vadd.f32 %v5359, 0.0
        %v5378 = vadd.f32 %v5360, 0.0
        %v5379 = vadd.f32 %v5361, 0.0
        %v5380 = vadd.f32 %v5362, 0.0
        %v5381 = vadd.f32 %v5363, 0.0
        %v5382 = vadd.f32 %v5364, 0.0
        %v5383 = vadd.f32 %v5365, 0.0
        %v5384 = vadd.f32 %v5366, 0.0
        %v5385 = vadd.f32 %v5367, 0.0
        %v5386 = vadd.f32 %v5368, 0.0
        %v5387 = vadd.f32 %v5369, 0.0
        %v5388 = vadd.f32 %v5370, 0.0
        %v5389 = vadd.f32 %v5371, 0.0
        %v5390 = vadd.f32 %v5372, 0.0
        %v5391 = vadd.f32 %v5373, 0.0
        %v5392 = vadd.f32 %v5374, 0.0
        %v5393 = vld [vmem:[#allocation3 + $0x1] sm:$0xff]
        %v5394 = vld [vmem:[#allocation3 + $0x9] sm:$0x1]
        %v5395 = vld [vmem:[#allocation3 + $0x11] sm:$0xff]
        %v5396 = vld [vmem:[#allocation3 + $0x19] sm:$0x1]
        %v5397 = vld [vmem:[#allocation3 + $0x21] sm:$0xff]
        %v5398 = vld [vmem:[#allocation3 + $0x29] sm:$0x1]
        %v5399 = vld [vmem:[#allocation3 + $0x31] sm:$0xff]
        %v5400 = vld [vmem:[#allocation3 + $0x39] sm:$0x1]
        %v5401 = vld [vmem:[#allocation3 + $0x41] sm:$0xff]
        %v5402 = vld [vmem:[#allocation3 + $0x49] sm:$0x1]
        %v5403 = vld [vmem:[#allocation3 + $0x51] sm:$0xff]
        %v5404 = vld [vmem:[#allocation3 + $0x59] sm:$0x1]
        %v5405 = vld [vmem:[#allocation3 + $0x61] sm:$0xff]
        %v5406 = vld [vmem:[#allocation3 + $0x69] sm:$0x1]
        %v5407 = vld [vmem:[#allocation3 + $0x71] sm:$0xff]
        %v5408 = vld [vmem:[#allocation3 + $0x79] sm:$0x1]
        %v5409 = vld [vmem:[#allocation3 + $0x81] sm:$0xff]
        %v5410 = vld [vmem:[#allocation3 + $0x89] sm:$0x1]
        %v5411 = vld [vmem:[#allocation2 + $0x1] sm:$0x1]
        %v5412 = vlaneseq
        %v5413 = vshrl.u32 %v5412, 7
        %v5414 = vsub.s32 0, %v5413
        %v5415 = vrot.slane %v5411, %v5414
        %v5416 = vmul.f32 %v5393, %v5415
        %v5417 = vmul.f32 %v5394, %v5415
        %v5418 = vmul.f32 %v5395, %v5415
        %v5419 = vmul.f32 %v5396, %v5415
        %v5420 = vmul.f32 %v5397, %v5415
        %v5421 = vmul.f32 %v5398, %v5415
        %v5422 = vmul.f32 %v5399, %v5415
        %v5423 = vmul.f32 %v5400, %v5415
        %v5424 = vmul.f32 %v5401, %v5415
        %v5425 = vmul.f32 %v5402, %v5415
        %v5426 = vmul.f32 %v5403, %v5415
        %v5427 = vmul.f32 %v5404, %v5415
        %v5428 = vmul.f32 %v5405, %v5415
        %v5429 = vmul.f32 %v5406, %v5415
        %v5430 = vmul.f32 %v5407, %v5415
        %v5431 = vmul.f32 %v5408, %v5415
        %v5432 = vmul.f32 %v5409, %v5415
        %v5433 = vmul.f32 %v5410, %v5415
        %v5434 = vadd.f32 %v5375, %v5416
        %v5435 = vadd.f32 %v5376, %v5417
        %v5436 = vadd.f32 %v5377, %v5418
        %v5437 = vadd.f32 %v5378, %v5419
        %v5438 = vadd.f32 %v5379, %v5420
        %v5439 = vadd.f32 %v5380, %v5421
        %v5440 = vadd.f32 %v5381, %v5422
        %v5441 = vadd.f32 %v5382, %v5423
        %v5442 = vadd.f32 %v5383, %v5424
        %v5443 = vadd.f32 %v5384, %v5425
        %v5444 = vadd.f32 %v5385, %v5426
        %v5445 = vadd.f32 %v5386, %v5427
        %v5446 = vadd.f32 %v5387, %v5428
        %v5447 = vadd.f32 %v5388, %v5429
        %v5448 = vadd.f32 %v5389, %v5430
        %v5449 = vadd.f32 %v5390, %v5431
        %v5450 = vadd.f32 %v5391, %v5432
        %v5451 = vadd.f32 %v5392, %v5433
        %v5452 = vld [vmem:[#allocation3 + $0x2] sm:$0xff]
        %v5453 = vld [vmem:[#allocation3 + $0xa] sm:$0x1]
        %v5454 = vld [vmem:[#allocation3 + $0x12] sm:$0xff]
        %v5455 = vld [vmem:[#allocation3 + $0x1a] sm:$0x1]
        %v5456 = vld [vmem:[#allocation3 + $0x22] sm:$0xff]
        %v5457 = vld [vmem:[#allocation3 + $0x2a] sm:$0x1]
        %v5458 = vld [vmem:[#allocation3 + $0x32] sm:$0xff]
        %v5459 = vld [vmem:[#allocation3 + $0x3a] sm:$0x1]
        %v5460 = vld [vmem:[#allocation3 + $0x42] sm:$0xff]
        %v5461 = vld [vmem:[#allocation3 + $0x4a] sm:$0x1]
        %v5462 = vld [vmem:[#allocation3 + $0x52] sm:$0xff]
        %v5463 = vld [vmem:[#allocation3 + $0x5a] sm:$0x1]
        %v5464 = vld [vmem:[#allocation3 + $0x62] sm:$0xff]
        %v5465 = vld [vmem:[#allocation3 + $0x6a] sm:$0x1]
        %v5466 = vld [vmem:[#allocation3 + $0x72] sm:$0xff]
        %v5467 = vld [vmem:[#allocation3 + $0x7a] sm:$0x1]
        %v5468 = vld [vmem:[#allocation3 + $0x82] sm:$0xff]
        %v5469 = vld [vmem:[#allocation3 + $0x8a] sm:$0x1]
        %v5470 = vld [vmem:[#allocation2 + $0x2] sm:$0x1]
        %v5471 = vlaneseq
        %v5472 = vshrl.u32 %v5471, 7
        %v5473 = vsub.s32 0, %v5472
        %v5474 = vrot.slane %v5470, %v5473
        %v5475 = vmul.f32 %v5452, %v5474
        %v5476 = vmul.f32 %v5453, %v5474
        %v5477 = vmul.f32 %v5454, %v5474
        %v5478 = vmul.f32 %v5455, %v5474
        %v5479 = vmul.f32 %v5456, %v5474
        %v5480 = vmul.f32 %v5457, %v5474
        %v5481 = vmul.f32 %v5458, %v5474
        %v5482 = vmul.f32 %v5459, %v5474
        %v5483 = vmul.f32 %v5460, %v5474
        %v5484 = vmul.f32 %v5461, %v5474
        %v5485 = vmul.f32 %v5462, %v5474
        %v5486 = vmul.f32 %v5463, %v5474
        %v5487 = vmul.f32 %v5464, %v5474
        %v5488 = vmul.f32 %v5465, %v5474
        %v5489 = vmul.f32 %v5466, %v5474
        %v5490 = vmul.f32 %v5467, %v5474
        %v5491 = vmul.f32 %v5468, %v5474
        %v5492 = vmul.f32 %v5469, %v5474
        %v5493 = vadd.f32 %v5434, %v5475
        %v5494 = vadd.f32 %v5435, %v5476
        %v5495 = vadd.f32 %v5436, %v5477
        %v5496 = vadd.f32 %v5437, %v5478
        %v5497 = vadd.f32 %v5438, %v5479
        %v5498 = vadd.f32 %v5439, %v5480
        %v5499 = vadd.f32 %v5440, %v5481
        %v5500 = vadd.f32 %v5441, %v5482
        %v5501 = vadd.f32 %v5442, %v5483
        %v5502 = vadd.f32 %v5443, %v5484
        %v5503 = vadd.f32 %v5444, %v5485
        %v5504 = vadd.f32 %v5445, %v5486
        %v5505 = vadd.f32 %v5446, %v5487
        %v5506 = vadd.f32 %v5447, %v5488
        %v5507 = vadd.f32 %v5448, %v5489
        %v5508 = vadd.f32 %v5449, %v5490
        %v5509 = vadd.f32 %v5450, %v5491
        %v5510 = vadd.f32 %v5451, %v5492
        %v5511 = vld [vmem:[#allocation3 + $0x3] sm:$0xff]
        %v5512 = vld [vmem:[#allocation3 + $0xb] sm:$0x1]
        %v5513 = vld [vmem:[#allocation3 + $0x13] sm:$0xff]
        %v5514 = vld [vmem:[#allocation3 + $0x1b] sm:$0x1]
        %v5515 = vld [vmem:[#allocation3 + $0x23] sm:$0xff]
        %v5516 = vld [vmem:[#allocation3 + $0x2b] sm:$0x1]
        %v5517 = vld [vmem:[#allocation3 + $0x33] sm:$0xff]
        %v5518 = vld [vmem:[#allocation3 + $0x3b] sm:$0x1]
        %v5519 = vld [vmem:[#allocation3 + $0x43] sm:$0xff]
        %v5520 = vld [vmem:[#allocation3 + $0x4b] sm:$0x1]
        %v5521 = vld [vmem:[#allocation3 + $0x53] sm:$0xff]
        %v5522 = vld [vmem:[#allocation3 + $0x5b] sm:$0x1]
        %v5523 = vld [vmem:[#allocation3 + $0x63] sm:$0xff]
        %v5524 = vld [vmem:[#allocation3 + $0x6b] sm:$0x1]
        %v5525 = vld [vmem:[#allocation3 + $0x73] sm:$0xff]
        %v5526 = vld [vmem:[#allocation3 + $0x7b] sm:$0x1]
        %v5527 = vld [vmem:[#allocation3 + $0x83] sm:$0xff]
        %v5528 = vld [vmem:[#allocation3 + $0x8b] sm:$0x1]
        %v5529 = vld [vmem:[#allocation2 + $0x3] sm:$0x1]
        %v5530 = vlaneseq
        %v5531 = vshrl.u32 %v5530, 7
        %v5532 = vsub.s32 0, %v5531
        %v5533 = vrot.slane %v5529, %v5532
        %v5534 = vmul.f32 %v5511, %v5533
        %v5535 = vmul.f32 %v5512, %v5533
        %v5536 = vmul.f32 %v5513, %v5533
        %v5537 = vmul.f32 %v5514, %v5533
        %v5538 = vmul.f32 %v5515, %v5533
        %v5539 = vmul.f32 %v5516, %v5533
        %v5540 = vmul.f32 %v5517, %v5533
        %v5541 = vmul.f32 %v5518, %v5533
        %v5542 = vmul.f32 %v5519, %v5533
        %v5543 = vmul.f32 %v5520, %v5533
        %v5544 = vmul.f32 %v5521, %v5533
        %v5545 = vmul.f32 %v5522, %v5533
        %v5546 = vmul.f32 %v5523, %v5533
        %v5547 = vmul.f32 %v5524, %v5533
        %v5548 = vmul.f32 %v5525, %v5533
        %v5549 = vmul.f32 %v5526, %v5533
        %v5550 = vmul.f32 %v5527, %v5533
        %v5551 = vmul.f32 %v5528, %v5533
        %v5552 = vadd.f32 %v5493, %v5534
        %v5553 = vadd.f32 %v5494, %v5535
        %v5554 = vadd.f32 %v5495, %v5536
        %v5555 = vadd.f32 %v5496, %v5537
        %v5556 = vadd.f32 %v5497, %v5538
        %v5557 = vadd.f32 %v5498, %v5539
        %v5558 = vadd.f32 %v5499, %v5540
        %v5559 = vadd.f32 %v5500, %v5541
        %v5560 = vadd.f32 %v5501, %v5542
        %v5561 = vadd.f32 %v5502, %v5543
        %v5562 = vadd.f32 %v5503, %v5544
        %v5563 = vadd.f32 %v5504, %v5545
        %v5564 = vadd.f32 %v5505, %v5546
        %v5565 = vadd.f32 %v5506, %v5547
        %v5566 = vadd.f32 %v5507, %v5548
        %v5567 = vadd.f32 %v5508, %v5549
        %v5568 = vadd.f32 %v5509, %v5550
        %v5569 = vadd.f32 %v5510, %v5551
        %v5570 = vld [vmem:[#allocation3 + $0x4] sm:$0xff]
        %v5571 = vld [vmem:[#allocation3 + $0xc] sm:$0x1]
        %v5572 = vld [vmem:[#allocation3 + $0x14] sm:$0xff]
        %v5573 = vld [vmem:[#allocation3 + $0x1c] sm:$0x1]
        %v5574 = vld [vmem:[#allocation3 + $0x24] sm:$0xff]
        %v5575 = vld [vmem:[#allocation3 + $0x2c] sm:$0x1]
        %v5576 = vld [vmem:[#allocation3 + $0x34] sm:$0xff]
        %v5577 = vld [vmem:[#allocation3 + $0x3c] sm:$0x1]
        %v5578 = vld [vmem:[#allocation3 + $0x44] sm:$0xff]
        %v5579 = vld [vmem:[#allocation3 + $0x4c] sm:$0x1]
        %v5580 = vld [vmem:[#allocation3 + $0x54] sm:$0xff]
        %v5581 = vld [vmem:[#allocation3 + $0x5c] sm:$0x1]
        %v5582 = vld [vmem:[#allocation3 + $0x64] sm:$0xff]
        %v5583 = vld [vmem:[#allocation3 + $0x6c] sm:$0x1]
        %v5584 = vld [vmem:[#allocation3 + $0x74] sm:$0xff]
        %v5585 = vld [vmem:[#allocation3 + $0x7c] sm:$0x1]
        %v5586 = vld [vmem:[#allocation3 + $0x84] sm:$0xff]
        %v5587 = vld [vmem:[#allocation3 + $0x8c] sm:$0x1]
        %v5588 = vld [vmem:[#allocation2 + $0x4] sm:$0x1]
        %v5589 = vlaneseq
        %v5590 = vshrl.u32 %v5589, 7
        %v5591 = vsub.s32 0, %v5590
        %v5592 = vrot.slane %v5588, %v5591
        %v5593 = vmul.f32 %v5570, %v5592
        %v5594 = vmul.f32 %v5571, %v5592
        %v5595 = vmul.f32 %v5572, %v5592
        %v5596 = vmul.f32 %v5573, %v5592
        %v5597 = vmul.f32 %v5574, %v5592
        %v5598 = vmul.f32 %v5575, %v5592
        %v5599 = vmul.f32 %v5576, %v5592
        %v5600 = vmul.f32 %v5577, %v5592
        %v5601 = vmul.f32 %v5578, %v5592
        %v5602 = vmul.f32 %v5579, %v5592
        %v5603 = vmul.f32 %v5580, %v5592
        %v5604 = vmul.f32 %v5581, %v5592
        %v5605 = vmul.f32 %v5582, %v5592
        %v5606 = vmul.f32 %v5583, %v5592
        %v5607 = vmul.f32 %v5584, %v5592
        %v5608 = vmul.f32 %v5585, %v5592
        %v5609 = vmul.f32 %v5586, %v5592
        %v5610 = vmul.f32 %v5587, %v5592
        %v5611 = vadd.f32 %v5552, %v5593
        %v5612 = vadd.f32 %v5553, %v5594
        %v5613 = vadd.f32 %v5554, %v5595
        %v5614 = vadd.f32 %v5555, %v5596
        %v5615 = vadd.f32 %v5556, %v5597
        %v5616 = vadd.f32 %v5557, %v5598
        %v5617 = vadd.f32 %v5558, %v5599
        %v5618 = vadd.f32 %v5559, %v5600
        %v5619 = vadd.f32 %v5560, %v5601
        %v5620 = vadd.f32 %v5561, %v5602
        %v5621 = vadd.f32 %v5562, %v5603
        %v5622 = vadd.f32 %v5563, %v5604
        %v5623 = vadd.f32 %v5564, %v5605
        %v5624 = vadd.f32 %v5565, %v5606
        %v5625 = vadd.f32 %v5566, %v5607
        %v5626 = vadd.f32 %v5567, %v5608
        %v5627 = vadd.f32 %v5568, %v5609
        %v5628 = vadd.f32 %v5569, %v5610
        %v5629 = vld [vmem:[#allocation3 + $0x5] sm:$0xff]
        %v5630 = vld [vmem:[#allocation3 + $0xd] sm:$0x1]
        %v5631 = vld [vmem:[#allocation3 + $0x15] sm:$0xff]
        %v5632 = vld [vmem:[#allocation3 + $0x1d] sm:$0x1]
        %v5633 = vld [vmem:[#allocation3 + $0x25] sm:$0xff]
        %v5634 = vld [vmem:[#allocation3 + $0x2d] sm:$0x1]
        %v5635 = vld [vmem:[#allocation3 + $0x35] sm:$0xff]
        %v5636 = vld [vmem:[#allocation3 + $0x3d] sm:$0x1]
        %v5637 = vld [vmem:[#allocation3 + $0x45] sm:$0xff]
        %v5638 = vld [vmem:[#allocation3 + $0x4d] sm:$0x1]
        %v5639 = vld [vmem:[#allocation3 + $0x55] sm:$0xff]
        %v5640 = vld [vmem:[#allocation3 + $0x5d] sm:$0x1]
        %v5641 = vld [vmem:[#allocation3 + $0x65] sm:$0xff]
        %v5642 = vld [vmem:[#allocation3 + $0x6d] sm:$0x1]
        %v5643 = vld [vmem:[#allocation3 + $0x75] sm:$0xff]
        %v5644 = vld [vmem:[#allocation3 + $0x7d] sm:$0x1]
        %v5645 = vld [vmem:[#allocation3 + $0x85] sm:$0xff]
        %v5646 = vld [vmem:[#allocation3 + $0x8d] sm:$0x1]
        %v5647 = vld [vmem:[#allocation2 + $0x5] sm:$0x1]
        %v5648 = vlaneseq
        %v5649 = vshrl.u32 %v5648, 7
        %v5650 = vsub.s32 0, %v5649
        %v5651 = vrot.slane %v5647, %v5650
        %v5652 = vmul.f32 %v5629, %v5651
        %v5653 = vmul.f32 %v5630, %v5651
        %v5654 = vmul.f32 %v5631, %v5651
        %v5655 = vmul.f32 %v5632, %v5651
        %v5656 = vmul.f32 %v5633, %v5651
        %v5657 = vmul.f32 %v5634, %v5651
        %v5658 = vmul.f32 %v5635, %v5651
        %v5659 = vmul.f32 %v5636, %v5651
        %v5660 = vmul.f32 %v5637, %v5651
        %v5661 = vmul.f32 %v5638, %v5651
        %v5662 = vmul.f32 %v5639, %v5651
        %v5663 = vmul.f32 %v5640, %v5651
        %v5664 = vmul.f32 %v5641, %v5651
        %v5665 = vmul.f32 %v5642, %v5651
        %v5666 = vmul.f32 %v5643, %v5651
        %v5667 = vmul.f32 %v5644, %v5651
        %v5668 = vmul.f32 %v5645, %v5651
        %v5669 = vmul.f32 %v5646, %v5651
        %v5670 = vadd.f32 %v5611, %v5652
        %v5671 = vadd.f32 %v5612, %v5653
        %v5672 = vadd.f32 %v5613, %v5654
        %v5673 = vadd.f32 %v5614, %v5655
        %v5674 = vadd.f32 %v5615, %v5656
        %v5675 = vadd.f32 %v5616, %v5657
        %v5676 = vadd.f32 %v5617, %v5658
        %v5677 = vadd.f32 %v5618, %v5659
        %v5678 = vadd.f32 %v5619, %v5660
        %v5679 = vadd.f32 %v5620, %v5661
        %v5680 = vadd.f32 %v5621, %v5662
        %v5681 = vadd.f32 %v5622, %v5663
        %v5682 = vadd.f32 %v5623, %v5664
        %v5683 = vadd.f32 %v5624, %v5665
        %v5684 = vadd.f32 %v5625, %v5666
        %v5685 = vadd.f32 %v5626, %v5667
        %v5686 = vadd.f32 %v5627, %v5668
        %v5687 = vadd.f32 %v5628, %v5669
        %s5688 = scalar_lea.vmem [#allocation3], 16
        %v5689 = vld [vmem:[%s5688] sm:$0xff]
        %v5690 = vld [vmem:[%s5688 + $0x8] sm:$0x1]
        %v5691 = vld [vmem:[%s5688 + $0x10] sm:$0xff]
        %v5692 = vld [vmem:[%s5688 + $0x18] sm:$0x1]
        %v5693 = vld [vmem:[%s5688 + $0x20] sm:$0xff]
        %v5694 = vld [vmem:[%s5688 + $0x28] sm:$0x1]
        %v5695 = vld [vmem:[%s5688 + $0x30] sm:$0xff]
        %v5696 = vld [vmem:[%s5688 + $0x38] sm:$0x1]
        %v5697 = vld [vmem:[%s5688 + $0x40] sm:$0xff]
        %v5698 = vld [vmem:[%s5688 + $0x48] sm:$0x1]
        %v5699 = vld [vmem:[%s5688 + $0x50] sm:$0xff]
        %v5700 = vld [vmem:[%s5688 + $0x58] sm:$0x1]
        %v5701 = vld [vmem:[%s5688 + $0x60] sm:$0xff]
        %v5702 = vld [vmem:[%s5688 + $0x68] sm:$0x1]
        %v5703 = vld [vmem:[%s5688 + $0x70] sm:$0xff]
        %v5704 = vld [vmem:[%s5688 + $0x78] sm:$0x1]
        %v5705 = vld [vmem:[%s5688 + $0x80] sm:$0xff]
        %v5706 = vld [vmem:[%s5688 + $0x88] sm:$0x1]
        %s5707 = scalar_lea.vmem [#allocation2], 8
        %v5708 = vld [vmem:[%s5707] sm:$0x1]
        %v5709 = vlaneseq
        %v5710 = vshrl.u32 %v5709, 7
        %v5711 = vsub.s32 0, %v5710
        %v5712 = vrot.slane %v5708, %v5711
        %v5713 = vmul.f32 %v5689, %v5712
        %v5714 = vmul.f32 %v5690, %v5712
        %v5715 = vmul.f32 %v5691, %v5712
        %v5716 = vmul.f32 %v5692, %v5712
        %v5717 = vmul.f32 %v5693, %v5712
        %v5718 = vmul.f32 %v5694, %v5712
        %v5719 = vmul.f32 %v5695, %v5712
        %v5720 = vmul.f32 %v5696, %v5712
        %v5721 = vmul.f32 %v5697, %v5712
        %v5722 = vmul.f32 %v5698, %v5712
        %v5723 = vmul.f32 %v5699, %v5712
        %v5724 = vmul.f32 %v5700, %v5712
        %v5725 = vmul.f32 %v5701, %v5712
        %v5726 = vmul.f32 %v5702, %v5712
        %v5727 = vmul.f32 %v5703, %v5712
        %v5728 = vmul.f32 %v5704, %v5712
        %v5729 = vmul.f32 %v5705, %v5712
        %v5730 = vmul.f32 %v5706, %v5712
        %v5731 = vadd.f32 %v5670, %v5713
        %v5732 = vadd.f32 %v5671, %v5714
        %v5733 = vadd.f32 %v5672, %v5715
        %v5734 = vadd.f32 %v5673, %v5716
        %v5735 = vadd.f32 %v5674, %v5717
        %v5736 = vadd.f32 %v5675, %v5718
        %v5737 = vadd.f32 %v5676, %v5719
        %v5738 = vadd.f32 %v5677, %v5720
        %v5739 = vadd.f32 %v5678, %v5721
        %v5740 = vadd.f32 %v5679, %v5722
        %v5741 = vadd.f32 %v5680, %v5723
        %v5742 = vadd.f32 %v5681, %v5724
        %v5743 = vadd.f32 %v5682, %v5725
        %v5744 = vadd.f32 %v5683, %v5726
        %v5745 = vadd.f32 %v5684, %v5727
        %v5746 = vadd.f32 %v5685, %v5728
        %v5747 = vadd.f32 %v5686, %v5729
        %v5748 = vadd.f32 %v5687, %v5730
        %v5749 = vld [vmem:[%s5688 + $0x1] sm:$0xff]
        %v5750 = vld [vmem:[%s5688 + $0x9] sm:$0x1]
        %v5751 = vld [vmem:[%s5688 + $0x11] sm:$0xff]
        %v5752 = vld [vmem:[%s5688 + $0x19] sm:$0x1]
        %v5753 = vld [vmem:[%s5688 + $0x21] sm:$0xff]
        %v5754 = vld [vmem:[%s5688 + $0x29] sm:$0x1]
        %v5755 = vld [vmem:[%s5688 + $0x31] sm:$0xff]
        %v5756 = vld [vmem:[%s5688 + $0x39] sm:$0x1]
        %v5757 = vld [vmem:[%s5688 + $0x41] sm:$0xff]
        %v5758 = vld [vmem:[%s5688 + $0x49] sm:$0x1]
        %v5759 = vld [vmem:[%s5688 + $0x51] sm:$0xff]
        %v5760 = vld [vmem:[%s5688 + $0x59] sm:$0x1]
        %v5761 = vld [vmem:[%s5688 + $0x61] sm:$0xff]
        %v5762 = vld [vmem:[%s5688 + $0x69] sm:$0x1]
        %v5763 = vld [vmem:[%s5688 + $0x71] sm:$0xff]
        %v5764 = vld [vmem:[%s5688 + $0x79] sm:$0x1]
        %v5765 = vld [vmem:[%s5688 + $0x81] sm:$0xff]
        %v5766 = vld [vmem:[%s5688 + $0x89] sm:$0x1]
        %v5767 = vld [vmem:[%s5707 + $0x1] sm:$0x1]
        %v5768 = vlaneseq
        %v5769 = vshrl.u32 %v5768, 7
        %v5770 = vsub.s32 0, %v5769
        %v5771 = vrot.slane %v5767, %v5770
        %v5772 = vmul.f32 %v5749, %v5771
        %v5773 = vmul.f32 %v5750, %v5771
        %v5774 = vmul.f32 %v5751, %v5771
        %v5775 = vmul.f32 %v5752, %v5771
        %v5776 = vmul.f32 %v5753, %v5771
        %v5777 = vmul.f32 %v5754, %v5771
        %v5778 = vmul.f32 %v5755, %v5771
        %v5779 = vmul.f32 %v5756, %v5771
        %v5780 = vmul.f32 %v5757, %v5771
        %v5781 = vmul.f32 %v5758, %v5771
        %v5782 = vmul.f32 %v5759, %v5771
        %v5783 = vmul.f32 %v5760, %v5771
        %v5784 = vmul.f32 %v5761, %v5771
        %v5785 = vmul.f32 %v5762, %v5771
        %v5786 = vmul.f32 %v5763, %v5771
        %v5787 = vmul.f32 %v5764, %v5771
        %v5788 = vmul.f32 %v5765, %v5771
        %v5789 = vmul.f32 %v5766, %v5771
        %v5790 = vadd.f32 %v5731, %v5772
        %v5791 = vadd.f32 %v5732, %v5773
        %v5792 = vadd.f32 %v5733, %v5774
        %v5793 = vadd.f32 %v5734, %v5775
        %v5794 = vadd.f32 %v5735, %v5776
        %v5795 = vadd.f32 %v5736, %v5777
        %v5796 = vadd.f32 %v5737, %v5778
        %v5797 = vadd.f32 %v5738, %v5779
        %v5798 = vadd.f32 %v5739, %v5780
        %v5799 = vadd.f32 %v5740, %v5781
        %v5800 = vadd.f32 %v5741, %v5782
        %v5801 = vadd.f32 %v5742, %v5783
        %v5802 = vadd.f32 %v5743, %v5784
        %v5803 = vadd.f32 %v5744, %v5785
        %v5804 = vadd.f32 %v5745, %v5786
        %v5805 = vadd.f32 %v5746, %v5787
        %v5806 = vadd.f32 %v5747, %v5788
        %v5807 = vadd.f32 %v5748, %v5789
        %v5808 = vld [vmem:[%s5688 + $0x2] sm:$0xff]
        %v5809 = vld [vmem:[%s5688 + $0xa] sm:$0x1]
        %v5810 = vld [vmem:[%s5688 + $0x12] sm:$0xff]
        %v5811 = vld [vmem:[%s5688 + $0x1a] sm:$0x1]
        %v5812 = vld [vmem:[%s5688 + $0x22] sm:$0xff]
        %v5813 = vld [vmem:[%s5688 + $0x2a] sm:$0x1]
        %v5814 = vld [vmem:[%s5688 + $0x32] sm:$0xff]
        %v5815 = vld [vmem:[%s5688 + $0x3a] sm:$0x1]
        %v5816 = vld [vmem:[%s5688 + $0x42] sm:$0xff]
        %v5817 = vld [vmem:[%s5688 + $0x4a] sm:$0x1]
        %v5818 = vld [vmem:[%s5688 + $0x52] sm:$0xff]
        %v5819 = vld [vmem:[%s5688 + $0x5a] sm:$0x1]
        %v5820 = vld [vmem:[%s5688 + $0x62] sm:$0xff]
        %v5821 = vld [vmem:[%s5688 + $0x6a] sm:$0x1]
        %v5822 = vld [vmem:[%s5688 + $0x72] sm:$0xff]
        %v5823 = vld [vmem:[%s5688 + $0x7a] sm:$0x1]
        %v5824 = vld [vmem:[%s5688 + $0x82] sm:$0xff]
        %v5825 = vld [vmem:[%s5688 + $0x8a] sm:$0x1]
        %v5826 = vld [vmem:[%s5707 + $0x2] sm:$0x1]
        %v5827 = vlaneseq
        %v5828 = vshrl.u32 %v5827, 7
        %v5829 = vsub.s32 0, %v5828
        %v5830 = vrot.slane %v5826, %v5829
        %v5831 = vmul.f32 %v5808, %v5830
        %v5832 = vmul.f32 %v5809, %v5830
        %v5833 = vmul.f32 %v5810, %v5830
        %v5834 = vmul.f32 %v5811, %v5830
        %v5835 = vmul.f32 %v5812, %v5830
        %v5836 = vmul.f32 %v5813, %v5830
        %v5837 = vmul.f32 %v5814, %v5830
        %v5838 = vmul.f32 %v5815, %v5830
        %v5839 = vmul.f32 %v5816, %v5830
        %v5840 = vmul.f32 %v5817, %v5830
        %v5841 = vmul.f32 %v5818, %v5830
        %v5842 = vmul.f32 %v5819, %v5830
        %v5843 = vmul.f32 %v5820, %v5830
        %v5844 = vmul.f32 %v5821, %v5830
        %v5845 = vmul.f32 %v5822, %v5830
        %v5846 = vmul.f32 %v5823, %v5830
        %v5847 = vmul.f32 %v5824, %v5830
        %v5848 = vmul.f32 %v5825, %v5830
        %v5849 = vadd.f32 %v5790, %v5831
        %v5850 = vadd.f32 %v5791, %v5832
        %v5851 = vadd.f32 %v5792, %v5833
        %v5852 = vadd.f32 %v5793, %v5834
        %v5853 = vadd.f32 %v5794, %v5835
        %v5854 = vadd.f32 %v5795, %v5836
        %v5855 = vadd.f32 %v5796, %v5837
        %v5856 = vadd.f32 %v5797, %v5838
        %v5857 = vadd.f32 %v5798, %v5839
        %v5858 = vadd.f32 %v5799, %v5840
        %v5859 = vadd.f32 %v5800, %v5841
        %v5860 = vadd.f32 %v5801, %v5842
        %v5861 = vadd.f32 %v5802, %v5843
        %v5862 = vadd.f32 %v5803, %v5844
        %v5863 = vadd.f32 %v5804, %v5845
        %v5864 = vadd.f32 %v5805, %v5846
        %v5865 = vadd.f32 %v5806, %v5847
        %v5866 = vadd.f32 %v5807, %v5848
        %v5867 = vld [vmem:[%s5688 + $0x3] sm:$0xff]
        %v5868 = vld [vmem:[%s5688 + $0xb] sm:$0x1]
        %v5869 = vld [vmem:[%s5688 + $0x13] sm:$0xff]
        %v5870 = vld [vmem:[%s5688 + $0x1b] sm:$0x1]
        %v5871 = vld [vmem:[%s5688 + $0x23] sm:$0xff]
        %v5872 = vld [vmem:[%s5688 + $0x2b] sm:$0x1]
        %v5873 = vld [vmem:[%s5688 + $0x33] sm:$0xff]
        %v5874 = vld [vmem:[%s5688 + $0x3b] sm:$0x1]
        %v5875 = vld [vmem:[%s5688 + $0x43] sm:$0xff]
        %v5876 = vld [vmem:[%s5688 + $0x4b] sm:$0x1]
        %v5877 = vld [vmem:[%s5688 + $0x53] sm:$0xff]
        %v5878 = vld [vmem:[%s5688 + $0x5b] sm:$0x1]
        %v5879 = vld [vmem:[%s5688 + $0x63] sm:$0xff]
        %v5880 = vld [vmem:[%s5688 + $0x6b] sm:$0x1]
        %v5881 = vld [vmem:[%s5688 + $0x73] sm:$0xff]
        %v5882 = vld [vmem:[%s5688 + $0x7b] sm:$0x1]
        %v5883 = vld [vmem:[%s5688 + $0x83] sm:$0xff]
        %v5884 = vld [vmem:[%s5688 + $0x8b] sm:$0x1]
        %v5885 = vld [vmem:[%s5707 + $0x3] sm:$0x1]
        %v5886 = vlaneseq
        %v5887 = vshrl.u32 %v5886, 7
        %v5888 = vsub.s32 0, %v5887
        %v5889 = vrot.slane %v5885, %v5888
        %v5890 = vmul.f32 %v5867, %v5889
        %v5891 = vmul.f32 %v5868, %v5889
        %v5892 = vmul.f32 %v5869, %v5889
        %v5893 = vmul.f32 %v5870, %v5889
        %v5894 = vmul.f32 %v5871, %v5889
        %v5895 = vmul.f32 %v5872, %v5889
        %v5896 = vmul.f32 %v5873, %v5889
        %v5897 = vmul.f32 %v5874, %v5889
        %v5898 = vmul.f32 %v5875, %v5889
        %v5899 = vmul.f32 %v5876, %v5889
        %v5900 = vmul.f32 %v5877, %v5889
        %v5901 = vmul.f32 %v5878, %v5889
        %v5902 = vmul.f32 %v5879, %v5889
        %v5903 = vmul.f32 %v5880, %v5889
        %v5904 = vmul.f32 %v5881, %v5889
        %v5905 = vmul.f32 %v5882, %v5889
        %v5906 = vmul.f32 %v5883, %v5889
        %v5907 = vmul.f32 %v5884, %v5889
        %v5908 = vadd.f32 %v5849, %v5890
        %v5909 = vadd.f32 %v5850, %v5891
        %v5910 = vadd.f32 %v5851, %v5892
        %v5911 = vadd.f32 %v5852, %v5893
        %v5912 = vadd.f32 %v5853, %v5894
        %v5913 = vadd.f32 %v5854, %v5895
        %v5914 = vadd.f32 %v5855, %v5896
        %v5915 = vadd.f32 %v5856, %v5897
        %v5916 = vadd.f32 %v5857, %v5898
        %v5917 = vadd.f32 %v5858, %v5899
        %v5918 = vadd.f32 %v5859, %v5900
        %v5919 = vadd.f32 %v5860, %v5901
        %v5920 = vadd.f32 %v5861, %v5902
        %v5921 = vadd.f32 %v5862, %v5903
        %v5922 = vadd.f32 %v5863, %v5904
        %v5923 = vadd.f32 %v5864, %v5905
        %v5924 = vadd.f32 %v5865, %v5906
        %v5925 = vadd.f32 %v5866, %v5907
        %v5926 = vld [vmem:[%s5688 + $0x4] sm:$0xff]
        %v5927 = vld [vmem:[%s5688 + $0xc] sm:$0x1]
        %v5928 = vld [vmem:[%s5688 + $0x14] sm:$0xff]
        %v5929 = vld [vmem:[%s5688 + $0x1c] sm:$0x1]
        %v5930 = vld [vmem:[%s5688 + $0x24] sm:$0xff]
        %v5931 = vld [vmem:[%s5688 + $0x2c] sm:$0x1]
        %v5932 = vld [vmem:[%s5688 + $0x34] sm:$0xff]
        %v5933 = vld [vmem:[%s5688 + $0x3c] sm:$0x1]
        %v5934 = vld [vmem:[%s5688 + $0x44] sm:$0xff]
        %v5935 = vld [vmem:[%s5688 + $0x4c] sm:$0x1]
        %v5936 = vld [vmem:[%s5688 + $0x54] sm:$0xff]
        %v5937 = vld [vmem:[%s5688 + $0x5c] sm:$0x1]
        %v5938 = vld [vmem:[%s5688 + $0x64] sm:$0xff]
        %v5939 = vld [vmem:[%s5688 + $0x6c] sm:$0x1]
        %v5940 = vld [vmem:[%s5688 + $0x74] sm:$0xff]
        %v5941 = vld [vmem:[%s5688 + $0x7c] sm:$0x1]
        %v5942 = vld [vmem:[%s5688 + $0x84] sm:$0xff]
        %v5943 = vld [vmem:[%s5688 + $0x8c] sm:$0x1]
        %v5944 = vld [vmem:[%s5707 + $0x4] sm:$0x1]
        %v5945 = vlaneseq
        %v5946 = vshrl.u32 %v5945, 7
        %v5947 = vsub.s32 0, %v5946
        %v5948 = vrot.slane %v5944, %v5947
        %v5949 = vmul.f32 %v5926, %v5948
        %v5950 = vmul.f32 %v5927, %v5948
        %v5951 = vmul.f32 %v5928, %v5948
        %v5952 = vmul.f32 %v5929, %v5948
        %v5953 = vmul.f32 %v5930, %v5948
        %v5954 = vmul.f32 %v5931, %v5948
        %v5955 = vmul.f32 %v5932, %v5948
        %v5956 = vmul.f32 %v5933, %v5948
        %v5957 = vmul.f32 %v5934, %v5948
        %v5958 = vmul.f32 %v5935, %v5948
        %v5959 = vmul.f32 %v5936, %v5948
        %v5960 = vmul.f32 %v5937, %v5948
        %v5961 = vmul.f32 %v5938, %v5948
        %v5962 = vmul.f32 %v5939, %v5948
        %v5963 = vmul.f32 %v5940, %v5948
        %v5964 = vmul.f32 %v5941, %v5948
        %v5965 = vmul.f32 %v5942, %v5948
        %v5966 = vmul.f32 %v5943, %v5948
        %v5967 = vadd.f32 %v5908, %v5949
        %v5968 = vadd.f32 %v5909, %v5950
        %v5969 = vadd.f32 %v5910, %v5951
        %v5970 = vadd.f32 %v5911, %v5952
        %v5971 = vadd.f32 %v5912, %v5953
        %v5972 = vadd.f32 %v5913, %v5954
        %v5973 = vadd.f32 %v5914, %v5955
        %v5974 = vadd.f32 %v5915, %v5956
        %v5975 = vadd.f32 %v5916, %v5957
        %v5976 = vadd.f32 %v5917, %v5958
        %v5977 = vadd.f32 %v5918, %v5959
        %v5978 = vadd.f32 %v5919, %v5960
        %v5979 = vadd.f32 %v5920, %v5961
        %v5980 = vadd.f32 %v5921, %v5962
        %v5981 = vadd.f32 %v5922, %v5963
        %v5982 = vadd.f32 %v5923, %v5964
        %v5983 = vadd.f32 %v5924, %v5965
        %v5984 = vadd.f32 %v5925, %v5966
        %v5985 = vld [vmem:[%s5688 + $0x5] sm:$0xff]
        %v5986 = vld [vmem:[%s5688 + $0xd] sm:$0x1]
        %v5987 = vld [vmem:[%s5688 + $0x15] sm:$0xff]
        %v5988 = vld [vmem:[%s5688 + $0x1d] sm:$0x1]
        %v5989 = vld [vmem:[%s5688 + $0x25] sm:$0xff]
        %v5990 = vld [vmem:[%s5688 + $0x2d] sm:$0x1]
        %v5991 = vld [vmem:[%s5688 + $0x35] sm:$0xff]
        %v5992 = vld [vmem:[%s5688 + $0x3d] sm:$0x1]
        %v5993 = vld [vmem:[%s5688 + $0x45] sm:$0xff]
        %v5994 = vld [vmem:[%s5688 + $0x4d] sm:$0x1]
        %v5995 = vld [vmem:[%s5688 + $0x55] sm:$0xff]
        %v5996 = vld [vmem:[%s5688 + $0x5d] sm:$0x1]
        %v5997 = vld [vmem:[%s5688 + $0x65] sm:$0xff]
        %v5998 = vld [vmem:[%s5688 + $0x6d] sm:$0x1]
        %v5999 = vld [vmem:[%s5688 + $0x75] sm:$0xff]
        %v6000 = vld [vmem:[%s5688 + $0x7d] sm:$0x1]
        %v6001 = vld [vmem:[%s5688 + $0x85] sm:$0xff]
        %v6002 = vld [vmem:[%s5688 + $0x8d] sm:$0x1]
        %v6003 = vld [vmem:[%s5707 + $0x5] sm:$0x1]
        %v6004 = vlaneseq
        %v6005 = vshrl.u32 %v6004, 7
        %v6006 = vsub.s32 0, %v6005
        %v6007 = vrot.slane %v6003, %v6006
        %v6008 = vmul.f32 %v5985, %v6007
        %v6009 = vmul.f32 %v5986, %v6007
        %v6010 = vmul.f32 %v5987, %v6007
        %v6011 = vmul.f32 %v5988, %v6007
        %v6012 = vmul.f32 %v5989, %v6007
        %v6013 = vmul.f32 %v5990, %v6007
        %v6014 = vmul.f32 %v5991, %v6007
        %v6015 = vmul.f32 %v5992, %v6007
        %v6016 = vmul.f32 %v5993, %v6007
        %v6017 = vmul.f32 %v5994, %v6007
        %v6018 = vmul.f32 %v5995, %v6007
        %v6019 = vmul.f32 %v5996, %v6007
        %v6020 = vmul.f32 %v5997, %v6007
        %v6021 = vmul.f32 %v5998, %v6007
        %v6022 = vmul.f32 %v5999, %v6007
        %v6023 = vmul.f32 %v6000, %v6007
        %v6024 = vmul.f32 %v6001, %v6007
        %v6025 = vmul.f32 %v6002, %v6007
        %v6026 = vadd.f32 %v5967, %v6008
        %v6027 = vadd.f32 %v5968, %v6009
        %v6028 = vadd.f32 %v5969, %v6010
        %v6029 = vadd.f32 %v5970, %v6011
        %v6030 = vadd.f32 %v5971, %v6012
        %v6031 = vadd.f32 %v5972, %v6013
        %v6032 = vadd.f32 %v5973, %v6014
        %v6033 = vadd.f32 %v5974, %v6015
        %v6034 = vadd.f32 %v5975, %v6016
        %v6035 = vadd.f32 %v5976, %v6017
        %v6036 = vadd.f32 %v5977, %v6018
        %v6037 = vadd.f32 %v5978, %v6019
        %v6038 = vadd.f32 %v5979, %v6020
        %v6039 = vadd.f32 %v5980, %v6021
        %v6040 = vadd.f32 %v5981, %v6022
        %v6041 = vadd.f32 %v5982, %v6023
        %v6042 = vadd.f32 %v5983, %v6024
        %v6043 = vadd.f32 %v5984, %v6025
        %s6044 = scalar_lea.vmem [#allocation3], 32
        %v6045 = vld [vmem:[%s6044] sm:$0xff]
        %v6046 = vld [vmem:[%s6044 + $0x8] sm:$0x1]
        %v6047 = vld [vmem:[%s6044 + $0x10] sm:$0xff]
        %v6048 = vld [vmem:[%s6044 + $0x18] sm:$0x1]
        %v6049 = vld [vmem:[%s6044 + $0x20] sm:$0xff]
        %v6050 = vld [vmem:[%s6044 + $0x28] sm:$0x1]
        %v6051 = vld [vmem:[%s6044 + $0x30] sm:$0xff]
        %v6052 = vld [vmem:[%s6044 + $0x38] sm:$0x1]
        %v6053 = vld [vmem:[%s6044 + $0x40] sm:$0xff]
        %v6054 = vld [vmem:[%s6044 + $0x48] sm:$0x1]
        %v6055 = vld [vmem:[%s6044 + $0x50] sm:$0xff]
        %v6056 = vld [vmem:[%s6044 + $0x58] sm:$0x1]
        %v6057 = vld [vmem:[%s6044 + $0x60] sm:$0xff]
        %v6058 = vld [vmem:[%s6044 + $0x68] sm:$0x1]
        %v6059 = vld [vmem:[%s6044 + $0x70] sm:$0xff]
        %v6060 = vld [vmem:[%s6044 + $0x78] sm:$0x1]
        %v6061 = vld [vmem:[%s6044 + $0x80] sm:$0xff]
        %v6062 = vld [vmem:[%s6044 + $0x88] sm:$0x1]
        %s6063 = scalar_lea.vmem [#allocation2], 16
        %v6064 = vld [vmem:[%s6063] sm:$0x1]
        %v6065 = vlaneseq
        %v6066 = vshrl.u32 %v6065, 7
        %v6067 = vsub.s32 0, %v6066
        %v6068 = vrot.slane %v6064, %v6067
        %v6069 = vmul.f32 %v6045, %v6068
        %v6070 = vmul.f32 %v6046, %v6068
        %v6071 = vmul.f32 %v6047, %v6068
        %v6072 = vmul.f32 %v6048, %v6068
        %v6073 = vmul.f32 %v6049, %v6068
        %v6074 = vmul.f32 %v6050, %v6068
        %v6075 = vmul.f32 %v6051, %v6068
        %v6076 = vmul.f32 %v6052, %v6068
        %v6077 = vmul.f32 %v6053, %v6068
        %v6078 = vmul.f32 %v6054, %v6068
        %v6079 = vmul.f32 %v6055, %v6068
        %v6080 = vmul.f32 %v6056, %v6068
        %v6081 = vmul.f32 %v6057, %v6068
        %v6082 = vmul.f32 %v6058, %v6068
        %v6083 = vmul.f32 %v6059, %v6068
        %v6084 = vmul.f32 %v6060, %v6068
        %v6085 = vmul.f32 %v6061, %v6068
        %v6086 = vmul.f32 %v6062, %v6068
        %v6087 = vadd.f32 %v6026, %v6069
        %v6088 = vadd.f32 %v6027, %v6070
        %v6089 = vadd.f32 %v6028, %v6071
        %v6090 = vadd.f32 %v6029, %v6072
        %v6091 = vadd.f32 %v6030, %v6073
        %v6092 = vadd.f32 %v6031, %v6074
        %v6093 = vadd.f32 %v6032, %v6075
        %v6094 = vadd.f32 %v6033, %v6076
        %v6095 = vadd.f32 %v6034, %v6077
        %v6096 = vadd.f32 %v6035, %v6078
        %v6097 = vadd.f32 %v6036, %v6079
        %v6098 = vadd.f32 %v6037, %v6080
        %v6099 = vadd.f32 %v6038, %v6081
        %v6100 = vadd.f32 %v6039, %v6082
        %v6101 = vadd.f32 %v6040, %v6083
        %v6102 = vadd.f32 %v6041, %v6084
        %v6103 = vadd.f32 %v6042, %v6085
        %v6104 = vadd.f32 %v6043, %v6086
        %v6105 = vld [vmem:[%s6044 + $0x1] sm:$0xff]
        %v6106 = vld [vmem:[%s6044 + $0x9] sm:$0x1]
        %v6107 = vld [vmem:[%s6044 + $0x11] sm:$0xff]
        %v6108 = vld [vmem:[%s6044 + $0x19] sm:$0x1]
        %v6109 = vld [vmem:[%s6044 + $0x21] sm:$0xff]
        %v6110 = vld [vmem:[%s6044 + $0x29] sm:$0x1]
        %v6111 = vld [vmem:[%s6044 + $0x31] sm:$0xff]
        %v6112 = vld [vmem:[%s6044 + $0x39] sm:$0x1]
        %v6113 = vld [vmem:[%s6044 + $0x41] sm:$0xff]
        %v6114 = vld [vmem:[%s6044 + $0x49] sm:$0x1]
        %v6115 = vld [vmem:[%s6044 + $0x51] sm:$0xff]
        %v6116 = vld [vmem:[%s6044 + $0x59] sm:$0x1]
        %v6117 = vld [vmem:[%s6044 + $0x61] sm:$0xff]
        %v6118 = vld [vmem:[%s6044 + $0x69] sm:$0x1]
        %v6119 = vld [vmem:[%s6044 + $0x71] sm:$0xff]
        %v6120 = vld [vmem:[%s6044 + $0x79] sm:$0x1]
        %v6121 = vld [vmem:[%s6044 + $0x81] sm:$0xff]
        %v6122 = vld [vmem:[%s6044 + $0x89] sm:$0x1]
        %v6123 = vld [vmem:[%s6063 + $0x1] sm:$0x1]
        %v6124 = vlaneseq
        %v6125 = vshrl.u32 %v6124, 7
        %v6126 = vsub.s32 0, %v6125
        %v6127 = vrot.slane %v6123, %v6126
        %v6128 = vmul.f32 %v6105, %v6127
        %v6129 = vmul.f32 %v6106, %v6127
        %v6130 = vmul.f32 %v6107, %v6127
        %v6131 = vmul.f32 %v6108, %v6127
        %v6132 = vmul.f32 %v6109, %v6127
        %v6133 = vmul.f32 %v6110, %v6127
        %v6134 = vmul.f32 %v6111, %v6127
        %v6135 = vmul.f32 %v6112, %v6127
        %v6136 = vmul.f32 %v6113, %v6127
        %v6137 = vmul.f32 %v6114, %v6127
        %v6138 = vmul.f32 %v6115, %v6127
        %v6139 = vmul.f32 %v6116, %v6127
        %v6140 = vmul.f32 %v6117, %v6127
        %v6141 = vmul.f32 %v6118, %v6127
        %v6142 = vmul.f32 %v6119, %v6127
        %v6143 = vmul.f32 %v6120, %v6127
        %v6144 = vmul.f32 %v6121, %v6127
        %v6145 = vmul.f32 %v6122, %v6127
        %v6146 = vadd.f32 %v6087, %v6128
        %v6147 = vadd.f32 %v6088, %v6129
        %v6148 = vadd.f32 %v6089, %v6130
        %v6149 = vadd.f32 %v6090, %v6131
        %v6150 = vadd.f32 %v6091, %v6132
        %v6151 = vadd.f32 %v6092, %v6133
        %v6152 = vadd.f32 %v6093, %v6134
        %v6153 = vadd.f32 %v6094, %v6135
        %v6154 = vadd.f32 %v6095, %v6136
        %v6155 = vadd.f32 %v6096, %v6137
        %v6156 = vadd.f32 %v6097, %v6138
        %v6157 = vadd.f32 %v6098, %v6139
        %v6158 = vadd.f32 %v6099, %v6140
        %v6159 = vadd.f32 %v6100, %v6141
        %v6160 = vadd.f32 %v6101, %v6142
        %v6161 = vadd.f32 %v6102, %v6143
        %v6162 = vadd.f32 %v6103, %v6144
        %v6163 = vadd.f32 %v6104, %v6145
        %v6164 = vld [vmem:[%s6044 + $0x2] sm:$0xff]
        %v6165 = vld [vmem:[%s6044 + $0xa] sm:$0x1]
        %v6166 = vld [vmem:[%s6044 + $0x12] sm:$0xff]
        %v6167 = vld [vmem:[%s6044 + $0x1a] sm:$0x1]
        %v6168 = vld [vmem:[%s6044 + $0x22] sm:$0xff]
        %v6169 = vld [vmem:[%s6044 + $0x2a] sm:$0x1]
        %v6170 = vld [vmem:[%s6044 + $0x32] sm:$0xff]
        %v6171 = vld [vmem:[%s6044 + $0x3a] sm:$0x1]
        %v6172 = vld [vmem:[%s6044 + $0x42] sm:$0xff]
        %v6173 = vld [vmem:[%s6044 + $0x4a] sm:$0x1]
        %v6174 = vld [vmem:[%s6044 + $0x52] sm:$0xff]
        %v6175 = vld [vmem:[%s6044 + $0x5a] sm:$0x1]
        %v6176 = vld [vmem:[%s6044 + $0x62] sm:$0xff]
        %v6177 = vld [vmem:[%s6044 + $0x6a] sm:$0x1]
        %v6178 = vld [vmem:[%s6044 + $0x72] sm:$0xff]
        %v6179 = vld [vmem:[%s6044 + $0x7a] sm:$0x1]
        %v6180 = vld [vmem:[%s6044 + $0x82] sm:$0xff]
        %v6181 = vld [vmem:[%s6044 + $0x8a] sm:$0x1]
        %v6182 = vld [vmem:[%s6063 + $0x2] sm:$0x1]
        %v6183 = vlaneseq
        %v6184 = vshrl.u32 %v6183, 7
        %v6185 = vsub.s32 0, %v6184
        %v6186 = vrot.slane %v6182, %v6185
        %v6187 = vmul.f32 %v6164, %v6186
        %v6188 = vmul.f32 %v6165, %v6186
        %v6189 = vmul.f32 %v6166, %v6186
        %v6190 = vmul.f32 %v6167, %v6186
        %v6191 = vmul.f32 %v6168, %v6186
        %v6192 = vmul.f32 %v6169, %v6186
        %v6193 = vmul.f32 %v6170, %v6186
        %v6194 = vmul.f32 %v6171, %v6186
        %v6195 = vmul.f32 %v6172, %v6186
        %v6196 = vmul.f32 %v6173, %v6186
        %v6197 = vmul.f32 %v6174, %v6186
        %v6198 = vmul.f32 %v6175, %v6186
        %v6199 = vmul.f32 %v6176, %v6186
        %v6200 = vmul.f32 %v6177, %v6186
        %v6201 = vmul.f32 %v6178, %v6186
        %v6202 = vmul.f32 %v6179, %v6186
        %v6203 = vmul.f32 %v6180, %v6186
        %v6204 = vmul.f32 %v6181, %v6186
        %v6205 = vadd.f32 %v6146, %v6187
        %v6206 = vadd.f32 %v6147, %v6188
        %v6207 = vadd.f32 %v6148, %v6189
        %v6208 = vadd.f32 %v6149, %v6190
        %v6209 = vadd.f32 %v6150, %v6191
        %v6210 = vadd.f32 %v6151, %v6192
        %v6211 = vadd.f32 %v6152, %v6193
        %v6212 = vadd.f32 %v6153, %v6194
        %v6213 = vadd.f32 %v6154, %v6195
        %v6214 = vadd.f32 %v6155, %v6196
        %v6215 = vadd.f32 %v6156, %v6197
        %v6216 = vadd.f32 %v6157, %v6198
        %v6217 = vadd.f32 %v6158, %v6199
        %v6218 = vadd.f32 %v6159, %v6200
        %v6219 = vadd.f32 %v6160, %v6201
        %v6220 = vadd.f32 %v6161, %v6202
        %v6221 = vadd.f32 %v6162, %v6203
        %v6222 = vadd.f32 %v6163, %v6204
        %v6223 = vld [vmem:[%s6044 + $0x3] sm:$0xff]
        %v6224 = vld [vmem:[%s6044 + $0xb] sm:$0x1]
        %v6225 = vld [vmem:[%s6044 + $0x13] sm:$0xff]
        %v6226 = vld [vmem:[%s6044 + $0x1b] sm:$0x1]
        %v6227 = vld [vmem:[%s6044 + $0x23] sm:$0xff]
        %v6228 = vld [vmem:[%s6044 + $0x2b] sm:$0x1]
        %v6229 = vld [vmem:[%s6044 + $0x33] sm:$0xff]
        %v6230 = vld [vmem:[%s6044 + $0x3b] sm:$0x1]
        %v6231 = vld [vmem:[%s6044 + $0x43] sm:$0xff]
        %v6232 = vld [vmem:[%s6044 + $0x4b] sm:$0x1]
        %v6233 = vld [vmem:[%s6044 + $0x53] sm:$0xff]
        %v6234 = vld [vmem:[%s6044 + $0x5b] sm:$0x1]
        %v6235 = vld [vmem:[%s6044 + $0x63] sm:$0xff]
        %v6236 = vld [vmem:[%s6044 + $0x6b] sm:$0x1]
        %v6237 = vld [vmem:[%s6044 + $0x73] sm:$0xff]
        %v6238 = vld [vmem:[%s6044 + $0x7b] sm:$0x1]
        %v6239 = vld [vmem:[%s6044 + $0x83] sm:$0xff]
        %v6240 = vld [vmem:[%s6044 + $0x8b] sm:$0x1]
        %v6241 = vld [vmem:[%s6063 + $0x3] sm:$0x1]
        %v6242 = vlaneseq
        %v6243 = vshrl.u32 %v6242, 7
        %v6244 = vsub.s32 0, %v6243
        %v6245 = vrot.slane %v6241, %v6244
        %v6246 = vmul.f32 %v6223, %v6245
        %v6247 = vmul.f32 %v6224, %v6245
        %v6248 = vmul.f32 %v6225, %v6245
        %v6249 = vmul.f32 %v6226, %v6245
        %v6250 = vmul.f32 %v6227, %v6245
        %v6251 = vmul.f32 %v6228, %v6245
        %v6252 = vmul.f32 %v6229, %v6245
        %v6253 = vmul.f32 %v6230, %v6245
        %v6254 = vmul.f32 %v6231, %v6245
        %v6255 = vmul.f32 %v6232, %v6245
        %v6256 = vmul.f32 %v6233, %v6245
        %v6257 = vmul.f32 %v6234, %v6245
        %v6258 = vmul.f32 %v6235, %v6245
        %v6259 = vmul.f32 %v6236, %v6245
        %v6260 = vmul.f32 %v6237, %v6245
        %v6261 = vmul.f32 %v6238, %v6245
        %v6262 = vmul.f32 %v6239, %v6245
        %v6263 = vmul.f32 %v6240, %v6245
        %v6264 = vadd.f32 %v6205, %v6246
        %v6265 = vadd.f32 %v6206, %v6247
        %v6266 = vadd.f32 %v6207, %v6248
        %v6267 = vadd.f32 %v6208, %v6249
        %v6268 = vadd.f32 %v6209, %v6250
        %v6269 = vadd.f32 %v6210, %v6251
        %v6270 = vadd.f32 %v6211, %v6252
        %v6271 = vadd.f32 %v6212, %v6253
        %v6272 = vadd.f32 %v6213, %v6254
        %v6273 = vadd.f32 %v6214, %v6255
        %v6274 = vadd.f32 %v6215, %v6256
        %v6275 = vadd.f32 %v6216, %v6257
        %v6276 = vadd.f32 %v6217, %v6258
        %v6277 = vadd.f32 %v6218, %v6259
        %v6278 = vadd.f32 %v6219, %v6260
        %v6279 = vadd.f32 %v6220, %v6261
        %v6280 = vadd.f32 %v6221, %v6262
        %v6281 = vadd.f32 %v6222, %v6263
        %v6282 = vld [vmem:[%s6044 + $0x4] sm:$0xff]
        %v6283 = vld [vmem:[%s6044 + $0xc] sm:$0x1]
        %v6284 = vld [vmem:[%s6044 + $0x14] sm:$0xff]
        %v6285 = vld [vmem:[%s6044 + $0x1c] sm:$0x1]
        %v6286 = vld [vmem:[%s6044 + $0x24] sm:$0xff]
        %v6287 = vld [vmem:[%s6044 + $0x2c] sm:$0x1]
        %v6288 = vld [vmem:[%s6044 + $0x34] sm:$0xff]
        %v6289 = vld [vmem:[%s6044 + $0x3c] sm:$0x1]
        %v6290 = vld [vmem:[%s6044 + $0x44] sm:$0xff]
        %v6291 = vld [vmem:[%s6044 + $0x4c] sm:$0x1]
        %v6292 = vld [vmem:[%s6044 + $0x54] sm:$0xff]
        %v6293 = vld [vmem:[%s6044 + $0x5c] sm:$0x1]
        %v6294 = vld [vmem:[%s6044 + $0x64] sm:$0xff]
        %v6295 = vld [vmem:[%s6044 + $0x6c] sm:$0x1]
        %v6296 = vld [vmem:[%s6044 + $0x74] sm:$0xff]
        %v6297 = vld [vmem:[%s6044 + $0x7c] sm:$0x1]
        %v6298 = vld [vmem:[%s6044 + $0x84] sm:$0xff]
        %v6299 = vld [vmem:[%s6044 + $0x8c] sm:$0x1]
        %v6300 = vld [vmem:[%s6063 + $0x4] sm:$0x1]
        %v6301 = vlaneseq
        %v6302 = vshrl.u32 %v6301, 7
        %v6303 = vsub.s32 0, %v6302
        %v6304 = vrot.slane %v6300, %v6303
        %v6305 = vmul.f32 %v6282, %v6304
        %v6306 = vmul.f32 %v6283, %v6304
        %v6307 = vmul.f32 %v6284, %v6304
        %v6308 = vmul.f32 %v6285, %v6304
        %v6309 = vmul.f32 %v6286, %v6304
        %v6310 = vmul.f32 %v6287, %v6304
        %v6311 = vmul.f32 %v6288, %v6304
        %v6312 = vmul.f32 %v6289, %v6304
        %v6313 = vmul.f32 %v6290, %v6304
        %v6314 = vmul.f32 %v6291, %v6304
        %v6315 = vmul.f32 %v6292, %v6304
        %v6316 = vmul.f32 %v6293, %v6304
        %v6317 = vmul.f32 %v6294, %v6304
        %v6318 = vmul.f32 %v6295, %v6304
        %v6319 = vmul.f32 %v6296, %v6304
        %v6320 = vmul.f32 %v6297, %v6304
        %v6321 = vmul.f32 %v6298, %v6304
        %v6322 = vmul.f32 %v6299, %v6304
        %v6323 = vadd.f32 %v6264, %v6305
        %v6324 = vadd.f32 %v6265, %v6306
        %v6325 = vadd.f32 %v6266, %v6307
        %v6326 = vadd.f32 %v6267, %v6308
        %v6327 = vadd.f32 %v6268, %v6309
        %v6328 = vadd.f32 %v6269, %v6310
        %v6329 = vadd.f32 %v6270, %v6311
        %v6330 = vadd.f32 %v6271, %v6312
        %v6331 = vadd.f32 %v6272, %v6313
        %v6332 = vadd.f32 %v6273, %v6314
        %v6333 = vadd.f32 %v6274, %v6315
        %v6334 = vadd.f32 %v6275, %v6316
        %v6335 = vadd.f32 %v6276, %v6317
        %v6336 = vadd.f32 %v6277, %v6318
        %v6337 = vadd.f32 %v6278, %v6319
        %v6338 = vadd.f32 %v6279, %v6320
        %v6339 = vadd.f32 %v6280, %v6321
        %v6340 = vadd.f32 %v6281, %v6322
        %v6341 = vld [vmem:[%s6044 + $0x5] sm:$0xff]
        %v6342 = vld [vmem:[%s6044 + $0xd] sm:$0x1]
        %v6343 = vld [vmem:[%s6044 + $0x15] sm:$0xff]
        %v6344 = vld [vmem:[%s6044 + $0x1d] sm:$0x1]
        %v6345 = vld [vmem:[%s6044 + $0x25] sm:$0xff]
        %v6346 = vld [vmem:[%s6044 + $0x2d] sm:$0x1]
        %v6347 = vld [vmem:[%s6044 + $0x35] sm:$0xff]
        %v6348 = vld [vmem:[%s6044 + $0x3d] sm:$0x1]
        %v6349 = vld [vmem:[%s6044 + $0x45] sm:$0xff]
        %v6350 = vld [vmem:[%s6044 + $0x4d] sm:$0x1]
        %v6351 = vld [vmem:[%s6044 + $0x55] sm:$0xff]
        %v6352 = vld [vmem:[%s6044 + $0x5d] sm:$0x1]
        %v6353 = vld [vmem:[%s6044 + $0x65] sm:$0xff]
        %v6354 = vld [vmem:[%s6044 + $0x6d] sm:$0x1]
        %v6355 = vld [vmem:[%s6044 + $0x75] sm:$0xff]
        %v6356 = vld [vmem:[%s6044 + $0x7d] sm:$0x1]
        %v6357 = vld [vmem:[%s6044 + $0x85] sm:$0xff]
        %v6358 = vld [vmem:[%s6044 + $0x8d] sm:$0x1]
        %v6359 = vld [vmem:[%s6063 + $0x5] sm:$0x1]
        %v6360 = vlaneseq
        %v6361 = vshrl.u32 %v6360, 7
        %v6362 = vsub.s32 0, %v6361
        %v6363 = vrot.slane %v6359, %v6362
        %v6364 = vmul.f32 %v6341, %v6363
        %v6365 = vmul.f32 %v6342, %v6363
        %v6366 = vmul.f32 %v6343, %v6363
        %v6367 = vmul.f32 %v6344, %v6363
        %v6368 = vmul.f32 %v6345, %v6363
        %v6369 = vmul.f32 %v6346, %v6363
        %v6370 = vmul.f32 %v6347, %v6363
        %v6371 = vmul.f32 %v6348, %v6363
        %v6372 = vmul.f32 %v6349, %v6363
        %v6373 = vmul.f32 %v6350, %v6363
        %v6374 = vmul.f32 %v6351, %v6363
        %v6375 = vmul.f32 %v6352, %v6363
        %v6376 = vmul.f32 %v6353, %v6363
        %v6377 = vmul.f32 %v6354, %v6363
        %v6378 = vmul.f32 %v6355, %v6363
        %v6379 = vmul.f32 %v6356, %v6363
        %v6380 = vmul.f32 %v6357, %v6363
        %v6381 = vmul.f32 %v6358, %v6363
        %v6382 = vadd.f32 %v6323, %v6364
        %v6383 = vadd.f32 %v6324, %v6365
        %v6384 = vadd.f32 %v6325, %v6366
        %v6385 = vadd.f32 %v6326, %v6367
        %v6386 = vadd.f32 %v6327, %v6368
        %v6387 = vadd.f32 %v6328, %v6369
        %v6388 = vadd.f32 %v6329, %v6370
        %v6389 = vadd.f32 %v6330, %v6371
        %v6390 = vadd.f32 %v6331, %v6372
        %v6391 = vadd.f32 %v6332, %v6373
        %v6392 = vadd.f32 %v6333, %v6374
        %v6393 = vadd.f32 %v6334, %v6375
        %v6394 = vadd.f32 %v6335, %v6376
        %v6395 = vadd.f32 %v6336, %v6377
        %v6396 = vadd.f32 %v6337, %v6378
        %v6397 = vadd.f32 %v6338, %v6379
        %v6398 = vadd.f32 %v6339, %v6380
        %v6399 = vadd.f32 %v6340, %v6381
        %s6400 = scalar_lea.vmem [#allocation3], 48
        %v6401 = vld [vmem:[%s6400] sm:$0xff]
        %v6402 = vld [vmem:[%s6400 + $0x8] sm:$0x1]
        %v6403 = vld [vmem:[%s6400 + $0x10] sm:$0xff]
        %v6404 = vld [vmem:[%s6400 + $0x18] sm:$0x1]
        %v6405 = vld [vmem:[%s6400 + $0x20] sm:$0xff]
        %v6406 = vld [vmem:[%s6400 + $0x28] sm:$0x1]
        %v6407 = vld [vmem:[%s6400 + $0x30] sm:$0xff]
        %v6408 = vld [vmem:[%s6400 + $0x38] sm:$0x1]
        %v6409 = vld [vmem:[%s6400 + $0x40] sm:$0xff]
        %v6410 = vld [vmem:[%s6400 + $0x48] sm:$0x1]
        %v6411 = vld [vmem:[%s6400 + $0x50] sm:$0xff]
        %v6412 = vld [vmem:[%s6400 + $0x58] sm:$0x1]
        %v6413 = vld [vmem:[%s6400 + $0x60] sm:$0xff]
        %v6414 = vld [vmem:[%s6400 + $0x68] sm:$0x1]
        %v6415 = vld [vmem:[%s6400 + $0x70] sm:$0xff]
        %v6416 = vld [vmem:[%s6400 + $0x78] sm:$0x1]
        %v6417 = vld [vmem:[%s6400 + $0x80] sm:$0xff]
        %v6418 = vld [vmem:[%s6400 + $0x88] sm:$0x1]
        %s6419 = scalar_lea.vmem [#allocation2], 24
        %v6420 = vld [vmem:[%s6419] sm:$0x1]
        %v6421 = vlaneseq
        %v6422 = vshrl.u32 %v6421, 7
        %v6423 = vsub.s32 0, %v6422
        %v6424 = vrot.slane %v6420, %v6423
        %v6425 = vmul.f32 %v6401, %v6424
        %v6426 = vmul.f32 %v6402, %v6424
        %v6427 = vmul.f32 %v6403, %v6424
        %v6428 = vmul.f32 %v6404, %v6424
        %v6429 = vmul.f32 %v6405, %v6424
        %v6430 = vmul.f32 %v6406, %v6424
        %v6431 = vmul.f32 %v6407, %v6424
        %v6432 = vmul.f32 %v6408, %v6424
        %v6433 = vmul.f32 %v6409, %v6424
        %v6434 = vmul.f32 %v6410, %v6424
        %v6435 = vmul.f32 %v6411, %v6424
        %v6436 = vmul.f32 %v6412, %v6424
        %v6437 = vmul.f32 %v6413, %v6424
        %v6438 = vmul.f32 %v6414, %v6424
        %v6439 = vmul.f32 %v6415, %v6424
        %v6440 = vmul.f32 %v6416, %v6424
        %v6441 = vmul.f32 %v6417, %v6424
        %v6442 = vmul.f32 %v6418, %v6424
        %v6443 = vadd.f32 %v6382, %v6425
        %v6444 = vadd.f32 %v6383, %v6426
        %v6445 = vadd.f32 %v6384, %v6427
        %v6446 = vadd.f32 %v6385, %v6428
        %v6447 = vadd.f32 %v6386, %v6429
        %v6448 = vadd.f32 %v6387, %v6430
        %v6449 = vadd.f32 %v6388, %v6431
        %v6450 = vadd.f32 %v6389, %v6432
        %v6451 = vadd.f32 %v6390, %v6433
        %v6452 = vadd.f32 %v6391, %v6434
        %v6453 = vadd.f32 %v6392, %v6435
        %v6454 = vadd.f32 %v6393, %v6436
        %v6455 = vadd.f32 %v6394, %v6437
        %v6456 = vadd.f32 %v6395, %v6438
        %v6457 = vadd.f32 %v6396, %v6439
        %v6458 = vadd.f32 %v6397, %v6440
        %v6459 = vadd.f32 %v6398, %v6441
        %v6460 = vadd.f32 %v6399, %v6442
        %v6461 = vld [vmem:[%s6400 + $0x1] sm:$0xff]
        %v6462 = vld [vmem:[%s6400 + $0x9] sm:$0x1]
        %v6463 = vld [vmem:[%s6400 + $0x11] sm:$0xff]
        %v6464 = vld [vmem:[%s6400 + $0x19] sm:$0x1]
        %v6465 = vld [vmem:[%s6400 + $0x21] sm:$0xff]
        %v6466 = vld [vmem:[%s6400 + $0x29] sm:$0x1]
        %v6467 = vld [vmem:[%s6400 + $0x31] sm:$0xff]
        %v6468 = vld [vmem:[%s6400 + $0x39] sm:$0x1]
        %v6469 = vld [vmem:[%s6400 + $0x41] sm:$0xff]
        %v6470 = vld [vmem:[%s6400 + $0x49] sm:$0x1]
        %v6471 = vld [vmem:[%s6400 + $0x51] sm:$0xff]
        %v6472 = vld [vmem:[%s6400 + $0x59] sm:$0x1]
        %v6473 = vld [vmem:[%s6400 + $0x61] sm:$0xff]
        %v6474 = vld [vmem:[%s6400 + $0x69] sm:$0x1]
        %v6475 = vld [vmem:[%s6400 + $0x71] sm:$0xff]
        %v6476 = vld [vmem:[%s6400 + $0x79] sm:$0x1]
        %v6477 = vld [vmem:[%s6400 + $0x81] sm:$0xff]
        %v6478 = vld [vmem:[%s6400 + $0x89] sm:$0x1]
        %v6479 = vld [vmem:[%s6419 + $0x1] sm:$0x1]
        %v6480 = vlaneseq
        %v6481 = vshrl.u32 %v6480, 7
        %v6482 = vsub.s32 0, %v6481
        %v6483 = vrot.slane %v6479, %v6482
        %v6484 = vmul.f32 %v6461, %v6483
        %v6485 = vmul.f32 %v6462, %v6483
        %v6486 = vmul.f32 %v6463, %v6483
        %v6487 = vmul.f32 %v6464, %v6483
        %v6488 = vmul.f32 %v6465, %v6483
        %v6489 = vmul.f32 %v6466, %v6483
        %v6490 = vmul.f32 %v6467, %v6483
        %v6491 = vmul.f32 %v6468, %v6483
        %v6492 = vmul.f32 %v6469, %v6483
        %v6493 = vmul.f32 %v6470, %v6483
        %v6494 = vmul.f32 %v6471, %v6483
        %v6495 = vmul.f32 %v6472, %v6483
        %v6496 = vmul.f32 %v6473, %v6483
        %v6497 = vmul.f32 %v6474, %v6483
        %v6498 = vmul.f32 %v6475, %v6483
        %v6499 = vmul.f32 %v6476, %v6483
        %v6500 = vmul.f32 %v6477, %v6483
        %v6501 = vmul.f32 %v6478, %v6483
        %v6502 = vadd.f32 %v6443, %v6484
        %v6503 = vadd.f32 %v6444, %v6485
        %v6504 = vadd.f32 %v6445, %v6486
        %v6505 = vadd.f32 %v6446, %v6487
        %v6506 = vadd.f32 %v6447, %v6488
        %v6507 = vadd.f32 %v6448, %v6489
        %v6508 = vadd.f32 %v6449, %v6490
        %v6509 = vadd.f32 %v6450, %v6491
        %v6510 = vadd.f32 %v6451, %v6492
        %v6511 = vadd.f32 %v6452, %v6493
        %v6512 = vadd.f32 %v6453, %v6494
        %v6513 = vadd.f32 %v6454, %v6495
        %v6514 = vadd.f32 %v6455, %v6496
        %v6515 = vadd.f32 %v6456, %v6497
        %v6516 = vadd.f32 %v6457, %v6498
        %v6517 = vadd.f32 %v6458, %v6499
        %v6518 = vadd.f32 %v6459, %v6500
        %v6519 = vadd.f32 %v6460, %v6501
        %v6520 = vld [vmem:[%s6400 + $0x2] sm:$0xff]
        %v6521 = vld [vmem:[%s6400 + $0xa] sm:$0x1]
        %v6522 = vld [vmem:[%s6400 + $0x12] sm:$0xff]
        %v6523 = vld [vmem:[%s6400 + $0x1a] sm:$0x1]
        %v6524 = vld [vmem:[%s6400 + $0x22] sm:$0xff]
        %v6525 = vld [vmem:[%s6400 + $0x2a] sm:$0x1]
        %v6526 = vld [vmem:[%s6400 + $0x32] sm:$0xff]
        %v6527 = vld [vmem:[%s6400 + $0x3a] sm:$0x1]
        %v6528 = vld [vmem:[%s6400 + $0x42] sm:$0xff]
        %v6529 = vld [vmem:[%s6400 + $0x4a] sm:$0x1]
        %v6530 = vld [vmem:[%s6400 + $0x52] sm:$0xff]
        %v6531 = vld [vmem:[%s6400 + $0x5a] sm:$0x1]
        %v6532 = vld [vmem:[%s6400 + $0x62] sm:$0xff]
        %v6533 = vld [vmem:[%s6400 + $0x6a] sm:$0x1]
        %v6534 = vld [vmem:[%s6400 + $0x72] sm:$0xff]
        %v6535 = vld [vmem:[%s6400 + $0x7a] sm:$0x1]
        %v6536 = vld [vmem:[%s6400 + $0x82] sm:$0xff]
        %v6537 = vld [vmem:[%s6400 + $0x8a] sm:$0x1]
        %v6538 = vld [vmem:[%s6419 + $0x2] sm:$0x1]
        %v6539 = vlaneseq
        %v6540 = vshrl.u32 %v6539, 7
        %v6541 = vsub.s32 0, %v6540
        %v6542 = vrot.slane %v6538, %v6541
        %v6543 = vmul.f32 %v6520, %v6542
        %v6544 = vmul.f32 %v6521, %v6542
        %v6545 = vmul.f32 %v6522, %v6542
        %v6546 = vmul.f32 %v6523, %v6542
        %v6547 = vmul.f32 %v6524, %v6542
        %v6548 = vmul.f32 %v6525, %v6542
        %v6549 = vmul.f32 %v6526, %v6542
        %v6550 = vmul.f32 %v6527, %v6542
        %v6551 = vmul.f32 %v6528, %v6542
        %v6552 = vmul.f32 %v6529, %v6542
        %v6553 = vmul.f32 %v6530, %v6542
        %v6554 = vmul.f32 %v6531, %v6542
        %v6555 = vmul.f32 %v6532, %v6542
        %v6556 = vmul.f32 %v6533, %v6542
        %v6557 = vmul.f32 %v6534, %v6542
        %v6558 = vmul.f32 %v6535, %v6542
        %v6559 = vmul.f32 %v6536, %v6542
        %v6560 = vmul.f32 %v6537, %v6542
        %v6561 = vadd.f32 %v6502, %v6543
        %v6562 = vadd.f32 %v6503, %v6544
        %v6563 = vadd.f32 %v6504, %v6545
        %v6564 = vadd.f32 %v6505, %v6546
        %v6565 = vadd.f32 %v6506, %v6547
        %v6566 = vadd.f32 %v6507, %v6548
        %v6567 = vadd.f32 %v6508, %v6549
        %v6568 = vadd.f32 %v6509, %v6550
        %v6569 = vadd.f32 %v6510, %v6551
        %v6570 = vadd.f32 %v6511, %v6552
        %v6571 = vadd.f32 %v6512, %v6553
        %v6572 = vadd.f32 %v6513, %v6554
        %v6573 = vadd.f32 %v6514, %v6555
        %v6574 = vadd.f32 %v6515, %v6556
        %v6575 = vadd.f32 %v6516, %v6557
        %v6576 = vadd.f32 %v6517, %v6558
        %v6577 = vadd.f32 %v6518, %v6559
        %v6578 = vadd.f32 %v6519, %v6560
        %v6579 = vld [vmem:[%s6400 + $0x3] sm:$0xff]
        %v6580 = vld [vmem:[%s6400 + $0xb] sm:$0x1]
        %v6581 = vld [vmem:[%s6400 + $0x13] sm:$0xff]
        %v6582 = vld [vmem:[%s6400 + $0x1b] sm:$0x1]
        %v6583 = vld [vmem:[%s6400 + $0x23] sm:$0xff]
        %v6584 = vld [vmem:[%s6400 + $0x2b] sm:$0x1]
        %v6585 = vld [vmem:[%s6400 + $0x33] sm:$0xff]
        %v6586 = vld [vmem:[%s6400 + $0x3b] sm:$0x1]
        %v6587 = vld [vmem:[%s6400 + $0x43] sm:$0xff]
        %v6588 = vld [vmem:[%s6400 + $0x4b] sm:$0x1]
        %v6589 = vld [vmem:[%s6400 + $0x53] sm:$0xff]
        %v6590 = vld [vmem:[%s6400 + $0x5b] sm:$0x1]
        %v6591 = vld [vmem:[%s6400 + $0x63] sm:$0xff]
        %v6592 = vld [vmem:[%s6400 + $0x6b] sm:$0x1]
        %v6593 = vld [vmem:[%s6400 + $0x73] sm:$0xff]
        %v6594 = vld [vmem:[%s6400 + $0x7b] sm:$0x1]
        %v6595 = vld [vmem:[%s6400 + $0x83] sm:$0xff]
        %v6596 = vld [vmem:[%s6400 + $0x8b] sm:$0x1]
        %v6597 = vld [vmem:[%s6419 + $0x3] sm:$0x1]
        %v6598 = vlaneseq
        %v6599 = vshrl.u32 %v6598, 7
        %v6600 = vsub.s32 0, %v6599
        %v6601 = vrot.slane %v6597, %v6600
        %v6602 = vmul.f32 %v6579, %v6601
        %v6603 = vmul.f32 %v6580, %v6601
        %v6604 = vmul.f32 %v6581, %v6601
        %v6605 = vmul.f32 %v6582, %v6601
        %v6606 = vmul.f32 %v6583, %v6601
        %v6607 = vmul.f32 %v6584, %v6601
        %v6608 = vmul.f32 %v6585, %v6601
        %v6609 = vmul.f32 %v6586, %v6601
        %v6610 = vmul.f32 %v6587, %v6601
        %v6611 = vmul.f32 %v6588, %v6601
        %v6612 = vmul.f32 %v6589, %v6601
        %v6613 = vmul.f32 %v6590, %v6601
        %v6614 = vmul.f32 %v6591, %v6601
        %v6615 = vmul.f32 %v6592, %v6601
        %v6616 = vmul.f32 %v6593, %v6601
        %v6617 = vmul.f32 %v6594, %v6601
        %v6618 = vmul.f32 %v6595, %v6601
        %v6619 = vmul.f32 %v6596, %v6601
        %v6620 = vadd.f32 %v6561, %v6602
        %v6621 = vadd.f32 %v6562, %v6603
        %v6622 = vadd.f32 %v6563, %v6604
        %v6623 = vadd.f32 %v6564, %v6605
        %v6624 = vadd.f32 %v6565, %v6606
        %v6625 = vadd.f32 %v6566, %v6607
        %v6626 = vadd.f32 %v6567, %v6608
        %v6627 = vadd.f32 %v6568, %v6609
        %v6628 = vadd.f32 %v6569, %v6610
        %v6629 = vadd.f32 %v6570, %v6611
        %v6630 = vadd.f32 %v6571, %v6612
        %v6631 = vadd.f32 %v6572, %v6613
        %v6632 = vadd.f32 %v6573, %v6614
        %v6633 = vadd.f32 %v6574, %v6615
        %v6634 = vadd.f32 %v6575, %v6616
        %v6635 = vadd.f32 %v6576, %v6617
        %v6636 = vadd.f32 %v6577, %v6618
        %v6637 = vadd.f32 %v6578, %v6619
        %v6638 = vld [vmem:[%s6400 + $0x4] sm:$0xff]
        %v6639 = vld [vmem:[%s6400 + $0xc] sm:$0x1]
        %v6640 = vld [vmem:[%s6400 + $0x14] sm:$0xff]
        %v6641 = vld [vmem:[%s6400 + $0x1c] sm:$0x1]
        %v6642 = vld [vmem:[%s6400 + $0x24] sm:$0xff]
        %v6643 = vld [vmem:[%s6400 + $0x2c] sm:$0x1]
        %v6644 = vld [vmem:[%s6400 + $0x34] sm:$0xff]
        %v6645 = vld [vmem:[%s6400 + $0x3c] sm:$0x1]
        %v6646 = vld [vmem:[%s6400 + $0x44] sm:$0xff]
        %v6647 = vld [vmem:[%s6400 + $0x4c] sm:$0x1]
        %v6648 = vld [vmem:[%s6400 + $0x54] sm:$0xff]
        %v6649 = vld [vmem:[%s6400 + $0x5c] sm:$0x1]
        %v6650 = vld [vmem:[%s6400 + $0x64] sm:$0xff]
        %v6651 = vld [vmem:[%s6400 + $0x6c] sm:$0x1]
        %v6652 = vld [vmem:[%s6400 + $0x74] sm:$0xff]
        %v6653 = vld [vmem:[%s6400 + $0x7c] sm:$0x1]
        %v6654 = vld [vmem:[%s6400 + $0x84] sm:$0xff]
        %v6655 = vld [vmem:[%s6400 + $0x8c] sm:$0x1]
        %v6656 = vld [vmem:[%s6419 + $0x4] sm:$0x1]
        %v6657 = vlaneseq
        %v6658 = vshrl.u32 %v6657, 7
        %v6659 = vsub.s32 0, %v6658
        %v6660 = vrot.slane %v6656, %v6659
        %v6661 = vmul.f32 %v6638, %v6660
        %v6662 = vmul.f32 %v6639, %v6660
        %v6663 = vmul.f32 %v6640, %v6660
        %v6664 = vmul.f32 %v6641, %v6660
        %v6665 = vmul.f32 %v6642, %v6660
        %v6666 = vmul.f32 %v6643, %v6660
        %v6667 = vmul.f32 %v6644, %v6660
        %v6668 = vmul.f32 %v6645, %v6660
        %v6669 = vmul.f32 %v6646, %v6660
        %v6670 = vmul.f32 %v6647, %v6660
        %v6671 = vmul.f32 %v6648, %v6660
        %v6672 = vmul.f32 %v6649, %v6660
        %v6673 = vmul.f32 %v6650, %v6660
        %v6674 = vmul.f32 %v6651, %v6660
        %v6675 = vmul.f32 %v6652, %v6660
        %v6676 = vmul.f32 %v6653, %v6660
        %v6677 = vmul.f32 %v6654, %v6660
        %v6678 = vmul.f32 %v6655, %v6660
        %v6679 = vadd.f32 %v6620, %v6661
        %v6680 = vadd.f32 %v6621, %v6662
        %v6681 = vadd.f32 %v6622, %v6663
        %v6682 = vadd.f32 %v6623, %v6664
        %v6683 = vadd.f32 %v6624, %v6665
        %v6684 = vadd.f32 %v6625, %v6666
        %v6685 = vadd.f32 %v6626, %v6667
        %v6686 = vadd.f32 %v6627, %v6668
        %v6687 = vadd.f32 %v6628, %v6669
        %v6688 = vadd.f32 %v6629, %v6670
        %v6689 = vadd.f32 %v6630, %v6671
        %v6690 = vadd.f32 %v6631, %v6672
        %v6691 = vadd.f32 %v6632, %v6673
        %v6692 = vadd.f32 %v6633, %v6674
        %v6693 = vadd.f32 %v6634, %v6675
        %v6694 = vadd.f32 %v6635, %v6676
        %v6695 = vadd.f32 %v6636, %v6677
        %v6696 = vadd.f32 %v6637, %v6678
        %v6697 = vld [vmem:[%s6400 + $0x5] sm:$0xff]
        %v6698 = vld [vmem:[%s6400 + $0xd] sm:$0x1]
        %v6699 = vld [vmem:[%s6400 + $0x15] sm:$0xff]
        %v6700 = vld [vmem:[%s6400 + $0x1d] sm:$0x1]
        %v6701 = vld [vmem:[%s6400 + $0x25] sm:$0xff]
        %v6702 = vld [vmem:[%s6400 + $0x2d] sm:$0x1]
        %v6703 = vld [vmem:[%s6400 + $0x35] sm:$0xff]
        %v6704 = vld [vmem:[%s6400 + $0x3d] sm:$0x1]
        %v6705 = vld [vmem:[%s6400 + $0x45] sm:$0xff]
        %v6706 = vld [vmem:[%s6400 + $0x4d] sm:$0x1]
        %v6707 = vld [vmem:[%s6400 + $0x55] sm:$0xff]
        %v6708 = vld [vmem:[%s6400 + $0x5d] sm:$0x1]
        %v6709 = vld [vmem:[%s6400 + $0x65] sm:$0xff]
        %v6710 = vld [vmem:[%s6400 + $0x6d] sm:$0x1]
        %v6711 = vld [vmem:[%s6400 + $0x75] sm:$0xff]
        %v6712 = vld [vmem:[%s6400 + $0x7d] sm:$0x1]
        %v6713 = vld [vmem:[%s6400 + $0x85] sm:$0xff]
        %v6714 = vld [vmem:[%s6400 + $0x8d] sm:$0x1]
        %v6715 = vld [vmem:[%s6419 + $0x5] sm:$0x1]
        %v6716 = vlaneseq
        %v6717 = vshrl.u32 %v6716, 7
        %v6718 = vsub.s32 0, %v6717
        %v6719 = vrot.slane %v6715, %v6718
        %v6720 = vmul.f32 %v6697, %v6719
        %v6721 = vmul.f32 %v6698, %v6719
        %v6722 = vmul.f32 %v6699, %v6719
        %v6723 = vmul.f32 %v6700, %v6719
        %v6724 = vmul.f32 %v6701, %v6719
        %v6725 = vmul.f32 %v6702, %v6719
        %v6726 = vmul.f32 %v6703, %v6719
        %v6727 = vmul.f32 %v6704, %v6719
        %v6728 = vmul.f32 %v6705, %v6719
        %v6729 = vmul.f32 %v6706, %v6719
        %v6730 = vmul.f32 %v6707, %v6719
        %v6731 = vmul.f32 %v6708, %v6719
        %v6732 = vmul.f32 %v6709, %v6719
        %v6733 = vmul.f32 %v6710, %v6719
        %v6734 = vmul.f32 %v6711, %v6719
        %v6735 = vmul.f32 %v6712, %v6719
        %v6736 = vmul.f32 %v6713, %v6719
        %v6737 = vmul.f32 %v6714, %v6719
        %v6738 = vadd.f32 %v6679, %v6720
        %v6739 = vadd.f32 %v6680, %v6721
        %v6740 = vadd.f32 %v6681, %v6722
        %v6741 = vadd.f32 %v6682, %v6723
        %v6742 = vadd.f32 %v6683, %v6724
        %v6743 = vadd.f32 %v6684, %v6725
        %v6744 = vadd.f32 %v6685, %v6726
        %v6745 = vadd.f32 %v6686, %v6727
        %v6746 = vadd.f32 %v6687, %v6728
        %v6747 = vadd.f32 %v6688, %v6729
        %v6748 = vadd.f32 %v6689, %v6730
        %v6749 = vadd.f32 %v6690, %v6731
        %v6750 = vadd.f32 %v6691, %v6732
        %v6751 = vadd.f32 %v6692, %v6733
        %v6752 = vadd.f32 %v6693, %v6734
        %v6753 = vadd.f32 %v6694, %v6735
        %v6754 = vadd.f32 %v6695, %v6736
        %v6755 = vadd.f32 %v6696, %v6737
        %s6756 = scalar_lea.vmem [#allocation3], 64
        %v6757 = vld [vmem:[%s6756] sm:$0xff]
        %v6758 = vld [vmem:[%s6756 + $0x8] sm:$0x1]
        %v6759 = vld [vmem:[%s6756 + $0x10] sm:$0xff]
        %v6760 = vld [vmem:[%s6756 + $0x18] sm:$0x1]
        %v6761 = vld [vmem:[%s6756 + $0x20] sm:$0xff]
        %v6762 = vld [vmem:[%s6756 + $0x28] sm:$0x1]
        %v6763 = vld [vmem:[%s6756 + $0x30] sm:$0xff]
        %v6764 = vld [vmem:[%s6756 + $0x38] sm:$0x1]
        %v6765 = vld [vmem:[%s6756 + $0x40] sm:$0xff]
        %v6766 = vld [vmem:[%s6756 + $0x48] sm:$0x1]
        %v6767 = vld [vmem:[%s6756 + $0x50] sm:$0xff]
        %v6768 = vld [vmem:[%s6756 + $0x58] sm:$0x1]
        %v6769 = vld [vmem:[%s6756 + $0x60] sm:$0xff]
        %v6770 = vld [vmem:[%s6756 + $0x68] sm:$0x1]
        %v6771 = vld [vmem:[%s6756 + $0x70] sm:$0xff]
        %v6772 = vld [vmem:[%s6756 + $0x78] sm:$0x1]
        %v6773 = vld [vmem:[%s6756 + $0x80] sm:$0xff]
        %v6774 = vld [vmem:[%s6756 + $0x88] sm:$0x1]
        %s6775 = scalar_lea.vmem [#allocation2], 32
        %v6776 = vld [vmem:[%s6775] sm:$0x1]
        %v6777 = vlaneseq
        %v6778 = vshrl.u32 %v6777, 7
        %v6779 = vsub.s32 0, %v6778
        %v6780 = vrot.slane %v6776, %v6779
        %v6781 = vmul.f32 %v6757, %v6780
        %v6782 = vmul.f32 %v6758, %v6780
        %v6783 = vmul.f32 %v6759, %v6780
        %v6784 = vmul.f32 %v6760, %v6780
        %v6785 = vmul.f32 %v6761, %v6780
        %v6786 = vmul.f32 %v6762, %v6780
        %v6787 = vmul.f32 %v6763, %v6780
        %v6788 = vmul.f32 %v6764, %v6780
        %v6789 = vmul.f32 %v6765, %v6780
        %v6790 = vmul.f32 %v6766, %v6780
        %v6791 = vmul.f32 %v6767, %v6780
        %v6792 = vmul.f32 %v6768, %v6780
        %v6793 = vmul.f32 %v6769, %v6780
        %v6794 = vmul.f32 %v6770, %v6780
        %v6795 = vmul.f32 %v6771, %v6780
        %v6796 = vmul.f32 %v6772, %v6780
        %v6797 = vmul.f32 %v6773, %v6780
        %v6798 = vmul.f32 %v6774, %v6780
        %v6799 = vadd.f32 %v6738, %v6781
        %v6800 = vadd.f32 %v6739, %v6782
        %v6801 = vadd.f32 %v6740, %v6783
        %v6802 = vadd.f32 %v6741, %v6784
        %v6803 = vadd.f32 %v6742, %v6785
        %v6804 = vadd.f32 %v6743, %v6786
        %v6805 = vadd.f32 %v6744, %v6787
        %v6806 = vadd.f32 %v6745, %v6788
        %v6807 = vadd.f32 %v6746, %v6789
        %v6808 = vadd.f32 %v6747, %v6790
        %v6809 = vadd.f32 %v6748, %v6791
        %v6810 = vadd.f32 %v6749, %v6792
        %v6811 = vadd.f32 %v6750, %v6793
        %v6812 = vadd.f32 %v6751, %v6794
        %v6813 = vadd.f32 %v6752, %v6795
        %v6814 = vadd.f32 %v6753, %v6796
        %v6815 = vadd.f32 %v6754, %v6797
        %v6816 = vadd.f32 %v6755, %v6798
        %v6817 = vld [vmem:[%s6756 + $0x1] sm:$0xff]
        %v6818 = vld [vmem:[%s6756 + $0x9] sm:$0x1]
        %v6819 = vld [vmem:[%s6756 + $0x11] sm:$0xff]
        %v6820 = vld [vmem:[%s6756 + $0x19] sm:$0x1]
        %v6821 = vld [vmem:[%s6756 + $0x21] sm:$0xff]
        %v6822 = vld [vmem:[%s6756 + $0x29] sm:$0x1]
        %v6823 = vld [vmem:[%s6756 + $0x31] sm:$0xff]
        %v6824 = vld [vmem:[%s6756 + $0x39] sm:$0x1]
        %v6825 = vld [vmem:[%s6756 + $0x41] sm:$0xff]
        %v6826 = vld [vmem:[%s6756 + $0x49] sm:$0x1]
        %v6827 = vld [vmem:[%s6756 + $0x51] sm:$0xff]
        %v6828 = vld [vmem:[%s6756 + $0x59] sm:$0x1]
        %v6829 = vld [vmem:[%s6756 + $0x61] sm:$0xff]
        %v6830 = vld [vmem:[%s6756 + $0x69] sm:$0x1]
        %v6831 = vld [vmem:[%s6756 + $0x71] sm:$0xff]
        %v6832 = vld [vmem:[%s6756 + $0x79] sm:$0x1]
        %v6833 = vld [vmem:[%s6756 + $0x81] sm:$0xff]
        %v6834 = vld [vmem:[%s6756 + $0x89] sm:$0x1]
        %v6835 = vld [vmem:[%s6775 + $0x1] sm:$0x1]
        %v6836 = vlaneseq
        %v6837 = vshrl.u32 %v6836, 7
        %v6838 = vsub.s32 0, %v6837
        %v6839 = vrot.slane %v6835, %v6838
        %v6840 = vmul.f32 %v6817, %v6839
        %v6841 = vmul.f32 %v6818, %v6839
        %v6842 = vmul.f32 %v6819, %v6839
        %v6843 = vmul.f32 %v6820, %v6839
        %v6844 = vmul.f32 %v6821, %v6839
        %v6845 = vmul.f32 %v6822, %v6839
        %v6846 = vmul.f32 %v6823, %v6839
        %v6847 = vmul.f32 %v6824, %v6839
        %v6848 = vmul.f32 %v6825, %v6839
        %v6849 = vmul.f32 %v6826, %v6839
        %v6850 = vmul.f32 %v6827, %v6839
        %v6851 = vmul.f32 %v6828, %v6839
        %v6852 = vmul.f32 %v6829, %v6839
        %v6853 = vmul.f32 %v6830, %v6839
        %v6854 = vmul.f32 %v6831, %v6839
        %v6855 = vmul.f32 %v6832, %v6839
        %v6856 = vmul.f32 %v6833, %v6839
        %v6857 = vmul.f32 %v6834, %v6839
        %v6858 = vadd.f32 %v6799, %v6840
        %v6859 = vadd.f32 %v6800, %v6841
        %v6860 = vadd.f32 %v6801, %v6842
        %v6861 = vadd.f32 %v6802, %v6843
        %v6862 = vadd.f32 %v6803, %v6844
        %v6863 = vadd.f32 %v6804, %v6845
        %v6864 = vadd.f32 %v6805, %v6846
        %v6865 = vadd.f32 %v6806, %v6847
        %v6866 = vadd.f32 %v6807, %v6848
        %v6867 = vadd.f32 %v6808, %v6849
        %v6868 = vadd.f32 %v6809, %v6850
        %v6869 = vadd.f32 %v6810, %v6851
        %v6870 = vadd.f32 %v6811, %v6852
        %v6871 = vadd.f32 %v6812, %v6853
        %v6872 = vadd.f32 %v6813, %v6854
        %v6873 = vadd.f32 %v6814, %v6855
        %v6874 = vadd.f32 %v6815, %v6856
        %v6875 = vadd.f32 %v6816, %v6857
        %v6876 = vld [vmem:[%s6756 + $0x2] sm:$0xff]
        %v6877 = vld [vmem:[%s6756 + $0xa] sm:$0x1]
        %v6878 = vld [vmem:[%s6756 + $0x12] sm:$0xff]
        %v6879 = vld [vmem:[%s6756 + $0x1a] sm:$0x1]
        %v6880 = vld [vmem:[%s6756 + $0x22] sm:$0xff]
        %v6881 = vld [vmem:[%s6756 + $0x2a] sm:$0x1]
        %v6882 = vld [vmem:[%s6756 + $0x32] sm:$0xff]
        %v6883 = vld [vmem:[%s6756 + $0x3a] sm:$0x1]
        %v6884 = vld [vmem:[%s6756 + $0x42] sm:$0xff]
        %v6885 = vld [vmem:[%s6756 + $0x4a] sm:$0x1]
        %v6886 = vld [vmem:[%s6756 + $0x52] sm:$0xff]
        %v6887 = vld [vmem:[%s6756 + $0x5a] sm:$0x1]
        %v6888 = vld [vmem:[%s6756 + $0x62] sm:$0xff]
        %v6889 = vld [vmem:[%s6756 + $0x6a] sm:$0x1]
        %v6890 = vld [vmem:[%s6756 + $0x72] sm:$0xff]
        %v6891 = vld [vmem:[%s6756 + $0x7a] sm:$0x1]
        %v6892 = vld [vmem:[%s6756 + $0x82] sm:$0xff]
        %v6893 = vld [vmem:[%s6756 + $0x8a] sm:$0x1]
        %v6894 = vld [vmem:[%s6775 + $0x2] sm:$0x1]
        %v6895 = vlaneseq
        %v6896 = vshrl.u32 %v6895, 7
        %v6897 = vsub.s32 0, %v6896
        %v6898 = vrot.slane %v6894, %v6897
        %v6899 = vmul.f32 %v6876, %v6898
        %v6900 = vmul.f32 %v6877, %v6898
        %v6901 = vmul.f32 %v6878, %v6898
        %v6902 = vmul.f32 %v6879, %v6898
        %v6903 = vmul.f32 %v6880, %v6898
        %v6904 = vmul.f32 %v6881, %v6898
        %v6905 = vmul.f32 %v6882, %v6898
        %v6906 = vmul.f32 %v6883, %v6898
        %v6907 = vmul.f32 %v6884, %v6898
        %v6908 = vmul.f32 %v6885, %v6898
        %v6909 = vmul.f32 %v6886, %v6898
        %v6910 = vmul.f32 %v6887, %v6898
        %v6911 = vmul.f32 %v6888, %v6898
        %v6912 = vmul.f32 %v6889, %v6898
        %v6913 = vmul.f32 %v6890, %v6898
        %v6914 = vmul.f32 %v6891, %v6898
        %v6915 = vmul.f32 %v6892, %v6898
        %v6916 = vmul.f32 %v6893, %v6898
        %v6917 = vadd.f32 %v6858, %v6899
        %v6918 = vadd.f32 %v6859, %v6900
        %v6919 = vadd.f32 %v6860, %v6901
        %v6920 = vadd.f32 %v6861, %v6902
        %v6921 = vadd.f32 %v6862, %v6903
        %v6922 = vadd.f32 %v6863, %v6904
        %v6923 = vadd.f32 %v6864, %v6905
        %v6924 = vadd.f32 %v6865, %v6906
        %v6925 = vadd.f32 %v6866, %v6907
        %v6926 = vadd.f32 %v6867, %v6908
        %v6927 = vadd.f32 %v6868, %v6909
        %v6928 = vadd.f32 %v6869, %v6910
        %v6929 = vadd.f32 %v6870, %v6911
        %v6930 = vadd.f32 %v6871, %v6912
        %v6931 = vadd.f32 %v6872, %v6913
        %v6932 = vadd.f32 %v6873, %v6914
        %v6933 = vadd.f32 %v6874, %v6915
        %v6934 = vadd.f32 %v6875, %v6916
        %v6935 = vld [vmem:[%s6756 + $0x3] sm:$0xff]
        %v6936 = vld [vmem:[%s6756 + $0xb] sm:$0x1]
        %v6937 = vld [vmem:[%s6756 + $0x13] sm:$0xff]
        %v6938 = vld [vmem:[%s6756 + $0x1b] sm:$0x1]
        %v6939 = vld [vmem:[%s6756 + $0x23] sm:$0xff]
        %v6940 = vld [vmem:[%s6756 + $0x2b] sm:$0x1]
        %v6941 = vld [vmem:[%s6756 + $0x33] sm:$0xff]
        %v6942 = vld [vmem:[%s6756 + $0x3b] sm:$0x1]
        %v6943 = vld [vmem:[%s6756 + $0x43] sm:$0xff]
        %v6944 = vld [vmem:[%s6756 + $0x4b] sm:$0x1]
        %v6945 = vld [vmem:[%s6756 + $0x53] sm:$0xff]
        %v6946 = vld [vmem:[%s6756 + $0x5b] sm:$0x1]
        %v6947 = vld [vmem:[%s6756 + $0x63] sm:$0xff]
        %v6948 = vld [vmem:[%s6756 + $0x6b] sm:$0x1]
        %v6949 = vld [vmem:[%s6756 + $0x73] sm:$0xff]
        %v6950 = vld [vmem:[%s6756 + $0x7b] sm:$0x1]
        %v6951 = vld [vmem:[%s6756 + $0x83] sm:$0xff]
        %v6952 = vld [vmem:[%s6756 + $0x8b] sm:$0x1]
        %v6953 = vld [vmem:[%s6775 + $0x3] sm:$0x1]
        %v6954 = vlaneseq
        %v6955 = vshrl.u32 %v6954, 7
        %v6956 = vsub.s32 0, %v6955
        %v6957 = vrot.slane %v6953, %v6956
        %v6958 = vmul.f32 %v6935, %v6957
        %v6959 = vmul.f32 %v6936, %v6957
        %v6960 = vmul.f32 %v6937, %v6957
        %v6961 = vmul.f32 %v6938, %v6957
        %v6962 = vmul.f32 %v6939, %v6957
        %v6963 = vmul.f32 %v6940, %v6957
        %v6964 = vmul.f32 %v6941, %v6957
        %v6965 = vmul.f32 %v6942, %v6957
        %v6966 = vmul.f32 %v6943, %v6957
        %v6967 = vmul.f32 %v6944, %v6957
        %v6968 = vmul.f32 %v6945, %v6957
        %v6969 = vmul.f32 %v6946, %v6957
        %v6970 = vmul.f32 %v6947, %v6957
        %v6971 = vmul.f32 %v6948, %v6957
        %v6972 = vmul.f32 %v6949, %v6957
        %v6973 = vmul.f32 %v6950, %v6957
        %v6974 = vmul.f32 %v6951, %v6957
        %v6975 = vmul.f32 %v6952, %v6957
        %v6976 = vadd.f32 %v6917, %v6958
        %v6977 = vadd.f32 %v6918, %v6959
        %v6978 = vadd.f32 %v6919, %v6960
        %v6979 = vadd.f32 %v6920, %v6961
        %v6980 = vadd.f32 %v6921, %v6962
        %v6981 = vadd.f32 %v6922, %v6963
        %v6982 = vadd.f32 %v6923, %v6964
        %v6983 = vadd.f32 %v6924, %v6965
        %v6984 = vadd.f32 %v6925, %v6966
        %v6985 = vadd.f32 %v6926, %v6967
        %v6986 = vadd.f32 %v6927, %v6968
        %v6987 = vadd.f32 %v6928, %v6969
        %v6988 = vadd.f32 %v6929, %v6970
        %v6989 = vadd.f32 %v6930, %v6971
        %v6990 = vadd.f32 %v6931, %v6972
        %v6991 = vadd.f32 %v6932, %v6973
        %v6992 = vadd.f32 %v6933, %v6974
        %v6993 = vadd.f32 %v6934, %v6975
        %v6994 = vld [vmem:[%s6756 + $0x4] sm:$0xff]
        %v6995 = vld [vmem:[%s6756 + $0xc] sm:$0x1]
        %v6996 = vld [vmem:[%s6756 + $0x14] sm:$0xff]
        %v6997 = vld [vmem:[%s6756 + $0x1c] sm:$0x1]
        %v6998 = vld [vmem:[%s6756 + $0x24] sm:$0xff]
        %v6999 = vld [vmem:[%s6756 + $0x2c] sm:$0x1]
        %v7000 = vld [vmem:[%s6756 + $0x34] sm:$0xff]
        %v7001 = vld [vmem:[%s6756 + $0x3c] sm:$0x1]
        %v7002 = vld [vmem:[%s6756 + $0x44] sm:$0xff]
        %v7003 = vld [vmem:[%s6756 + $0x4c] sm:$0x1]
        %v7004 = vld [vmem:[%s6756 + $0x54] sm:$0xff]
        %v7005 = vld [vmem:[%s6756 + $0x5c] sm:$0x1]
        %v7006 = vld [vmem:[%s6756 + $0x64] sm:$0xff]
        %v7007 = vld [vmem:[%s6756 + $0x6c] sm:$0x1]
        %v7008 = vld [vmem:[%s6756 + $0x74] sm:$0xff]
        %v7009 = vld [vmem:[%s6756 + $0x7c] sm:$0x1]
        %v7010 = vld [vmem:[%s6756 + $0x84] sm:$0xff]
        %v7011 = vld [vmem:[%s6756 + $0x8c] sm:$0x1]
        %v7012 = vld [vmem:[%s6775 + $0x4] sm:$0x1]
        %v7013 = vlaneseq
        %v7014 = vshrl.u32 %v7013, 7
        %v7015 = vsub.s32 0, %v7014
        %v7016 = vrot.slane %v7012, %v7015
        %v7017 = vmul.f32 %v6994, %v7016
        %v7018 = vmul.f32 %v6995, %v7016
        %v7019 = vmul.f32 %v6996, %v7016
        %v7020 = vmul.f32 %v6997, %v7016
        %v7021 = vmul.f32 %v6998, %v7016
        %v7022 = vmul.f32 %v6999, %v7016
        %v7023 = vmul.f32 %v7000, %v7016
        %v7024 = vmul.f32 %v7001, %v7016
        %v7025 = vmul.f32 %v7002, %v7016
        %v7026 = vmul.f32 %v7003, %v7016
        %v7027 = vmul.f32 %v7004, %v7016
        %v7028 = vmul.f32 %v7005, %v7016
        %v7029 = vmul.f32 %v7006, %v7016
        %v7030 = vmul.f32 %v7007, %v7016
        %v7031 = vmul.f32 %v7008, %v7016
        %v7032 = vmul.f32 %v7009, %v7016
        %v7033 = vmul.f32 %v7010, %v7016
        %v7034 = vmul.f32 %v7011, %v7016
        %v7035 = vadd.f32 %v6976, %v7017
        %v7036 = vadd.f32 %v6977, %v7018
        %v7037 = vadd.f32 %v6978, %v7019
        %v7038 = vadd.f32 %v6979, %v7020
        %v7039 = vadd.f32 %v6980, %v7021
        %v7040 = vadd.f32 %v6981, %v7022
        %v7041 = vadd.f32 %v6982, %v7023
        %v7042 = vadd.f32 %v6983, %v7024
        %v7043 = vadd.f32 %v6984, %v7025
        %v7044 = vadd.f32 %v6985, %v7026
        %v7045 = vadd.f32 %v6986, %v7027
        %v7046 = vadd.f32 %v6987, %v7028
        %v7047 = vadd.f32 %v6988, %v7029
        %v7048 = vadd.f32 %v6989, %v7030
        %v7049 = vadd.f32 %v6990, %v7031
        %v7050 = vadd.f32 %v6991, %v7032
        %v7051 = vadd.f32 %v6992, %v7033
        %v7052 = vadd.f32 %v6993, %v7034
        %v7053 = vld [vmem:[%s6756 + $0x5] sm:$0xff]
        %v7054 = vld [vmem:[%s6756 + $0xd] sm:$0x1]
        %v7055 = vld [vmem:[%s6756 + $0x15] sm:$0xff]
        %v7056 = vld [vmem:[%s6756 + $0x1d] sm:$0x1]
        %v7057 = vld [vmem:[%s6756 + $0x25] sm:$0xff]
        %v7058 = vld [vmem:[%s6756 + $0x2d] sm:$0x1]
        %v7059 = vld [vmem:[%s6756 + $0x35] sm:$0xff]
        %v7060 = vld [vmem:[%s6756 + $0x3d] sm:$0x1]
        %v7061 = vld [vmem:[%s6756 + $0x45] sm:$0xff]
        %v7062 = vld [vmem:[%s6756 + $0x4d] sm:$0x1]
        %v7063 = vld [vmem:[%s6756 + $0x55] sm:$0xff]
        %v7064 = vld [vmem:[%s6756 + $0x5d] sm:$0x1]
        %v7065 = vld [vmem:[%s6756 + $0x65] sm:$0xff]
        %v7066 = vld [vmem:[%s6756 + $0x6d] sm:$0x1]
        %v7067 = vld [vmem:[%s6756 + $0x75] sm:$0xff]
        %v7068 = vld [vmem:[%s6756 + $0x7d] sm:$0x1]
        %v7069 = vld [vmem:[%s6756 + $0x85] sm:$0xff]
        %v7070 = vld [vmem:[%s6756 + $0x8d] sm:$0x1]
        %v7071 = vld [vmem:[%s6775 + $0x5] sm:$0x1]
        %v7072 = vlaneseq
        %v7073 = vshrl.u32 %v7072, 7
        %v7074 = vsub.s32 0, %v7073
        %v7075 = vrot.slane %v7071, %v7074
        %v7076 = vmul.f32 %v7053, %v7075
        %v7077 = vmul.f32 %v7054, %v7075
        %v7078 = vmul.f32 %v7055, %v7075
        %v7079 = vmul.f32 %v7056, %v7075
        %v7080 = vmul.f32 %v7057, %v7075
        %v7081 = vmul.f32 %v7058, %v7075
        %v7082 = vmul.f32 %v7059, %v7075
        %v7083 = vmul.f32 %v7060, %v7075
        %v7084 = vmul.f32 %v7061, %v7075
        %v7085 = vmul.f32 %v7062, %v7075
        %v7086 = vmul.f32 %v7063, %v7075
        %v7087 = vmul.f32 %v7064, %v7075
        %v7088 = vmul.f32 %v7065, %v7075
        %v7089 = vmul.f32 %v7066, %v7075
        %v7090 = vmul.f32 %v7067, %v7075
        %v7091 = vmul.f32 %v7068, %v7075
        %v7092 = vmul.f32 %v7069, %v7075
        %v7093 = vmul.f32 %v7070, %v7075
        %v7094 = vadd.f32 %v7035, %v7076
        %v7095 = vadd.f32 %v7036, %v7077
        %v7096 = vadd.f32 %v7037, %v7078
        %v7097 = vadd.f32 %v7038, %v7079
        %v7098 = vadd.f32 %v7039, %v7080
        %v7099 = vadd.f32 %v7040, %v7081
        %v7100 = vadd.f32 %v7041, %v7082
        %v7101 = vadd.f32 %v7042, %v7083
        %v7102 = vadd.f32 %v7043, %v7084
        %v7103 = vadd.f32 %v7044, %v7085
        %v7104 = vadd.f32 %v7045, %v7086
        %v7105 = vadd.f32 %v7046, %v7087
        %v7106 = vadd.f32 %v7047, %v7088
        %v7107 = vadd.f32 %v7048, %v7089
        %v7108 = vadd.f32 %v7049, %v7090
        %v7109 = vadd.f32 %v7050, %v7091
        %v7110 = vadd.f32 %v7051, %v7092
        %v7111 = vadd.f32 %v7052, %v7093
        %s7112 = scalar_lea.vmem [#allocation3], 80
        %v7113 = vld [vmem:[%s7112] sm:$0xff]
        %v7114 = vld [vmem:[%s7112 + $0x8] sm:$0x1]
        %v7115 = vld [vmem:[%s7112 + $0x10] sm:$0xff]
        %v7116 = vld [vmem:[%s7112 + $0x18] sm:$0x1]
        %v7117 = vld [vmem:[%s7112 + $0x20] sm:$0xff]
        %v7118 = vld [vmem:[%s7112 + $0x28] sm:$0x1]
        %v7119 = vld [vmem:[%s7112 + $0x30] sm:$0xff]
        %v7120 = vld [vmem:[%s7112 + $0x38] sm:$0x1]
        %v7121 = vld [vmem:[%s7112 + $0x40] sm:$0xff]
        %v7122 = vld [vmem:[%s7112 + $0x48] sm:$0x1]
        %v7123 = vld [vmem:[%s7112 + $0x50] sm:$0xff]
        %v7124 = vld [vmem:[%s7112 + $0x58] sm:$0x1]
        %v7125 = vld [vmem:[%s7112 + $0x60] sm:$0xff]
        %v7126 = vld [vmem:[%s7112 + $0x68] sm:$0x1]
        %v7127 = vld [vmem:[%s7112 + $0x70] sm:$0xff]
        %v7128 = vld [vmem:[%s7112 + $0x78] sm:$0x1]
        %v7129 = vld [vmem:[%s7112 + $0x80] sm:$0xff]
        %v7130 = vld [vmem:[%s7112 + $0x88] sm:$0x1]
        %s7131 = scalar_lea.vmem [#allocation2], 40
        %v7132 = vld [vmem:[%s7131] sm:$0x1]
        %v7133 = vlaneseq
        %v7134 = vshrl.u32 %v7133, 7
        %v7135 = vsub.s32 0, %v7134
        %v7136 = vrot.slane %v7132, %v7135
        %v7137 = vmul.f32 %v7113, %v7136
        %v7138 = vmul.f32 %v7114, %v7136
        %v7139 = vmul.f32 %v7115, %v7136
        %v7140 = vmul.f32 %v7116, %v7136
        %v7141 = vmul.f32 %v7117, %v7136
        %v7142 = vmul.f32 %v7118, %v7136
        %v7143 = vmul.f32 %v7119, %v7136
        %v7144 = vmul.f32 %v7120, %v7136
        %v7145 = vmul.f32 %v7121, %v7136
        %v7146 = vmul.f32 %v7122, %v7136
        %v7147 = vmul.f32 %v7123, %v7136
        %v7148 = vmul.f32 %v7124, %v7136
        %v7149 = vmul.f32 %v7125, %v7136
        %v7150 = vmul.f32 %v7126, %v7136
        %v7151 = vmul.f32 %v7127, %v7136
        %v7152 = vmul.f32 %v7128, %v7136
        %v7153 = vmul.f32 %v7129, %v7136
        %v7154 = vmul.f32 %v7130, %v7136
        %v7155 = vadd.f32 %v7094, %v7137
        %v7156 = vadd.f32 %v7095, %v7138
        %v7157 = vadd.f32 %v7096, %v7139
        %v7158 = vadd.f32 %v7097, %v7140
        %v7159 = vadd.f32 %v7098, %v7141
        %v7160 = vadd.f32 %v7099, %v7142
        %v7161 = vadd.f32 %v7100, %v7143
        %v7162 = vadd.f32 %v7101, %v7144
        %v7163 = vadd.f32 %v7102, %v7145
        %v7164 = vadd.f32 %v7103, %v7146
        %v7165 = vadd.f32 %v7104, %v7147
        %v7166 = vadd.f32 %v7105, %v7148
        %v7167 = vadd.f32 %v7106, %v7149
        %v7168 = vadd.f32 %v7107, %v7150
        %v7169 = vadd.f32 %v7108, %v7151
        %v7170 = vadd.f32 %v7109, %v7152
        %v7171 = vadd.f32 %v7110, %v7153
        %v7172 = vadd.f32 %v7111, %v7154
        %v7173 = vld [vmem:[%s7112 + $0x1] sm:$0xff]
        %v7174 = vld [vmem:[%s7112 + $0x9] sm:$0x1]
        %v7175 = vld [vmem:[%s7112 + $0x11] sm:$0xff]
        %v7176 = vld [vmem:[%s7112 + $0x19] sm:$0x1]
        %v7177 = vld [vmem:[%s7112 + $0x21] sm:$0xff]
        %v7178 = vld [vmem:[%s7112 + $0x29] sm:$0x1]
        %v7179 = vld [vmem:[%s7112 + $0x31] sm:$0xff]
        %v7180 = vld [vmem:[%s7112 + $0x39] sm:$0x1]
        %v7181 = vld [vmem:[%s7112 + $0x41] sm:$0xff]
        %v7182 = vld [vmem:[%s7112 + $0x49] sm:$0x1]
        %v7183 = vld [vmem:[%s7112 + $0x51] sm:$0xff]
        %v7184 = vld [vmem:[%s7112 + $0x59] sm:$0x1]
        %v7185 = vld [vmem:[%s7112 + $0x61] sm:$0xff]
        %v7186 = vld [vmem:[%s7112 + $0x69] sm:$0x1]
        %v7187 = vld [vmem:[%s7112 + $0x71] sm:$0xff]
        %v7188 = vld [vmem:[%s7112 + $0x79] sm:$0x1]
        %v7189 = vld [vmem:[%s7112 + $0x81] sm:$0xff]
        %v7190 = vld [vmem:[%s7112 + $0x89] sm:$0x1]
        %v7191 = vld [vmem:[%s7131 + $0x1] sm:$0x1]
        %v7192 = vlaneseq
        %v7193 = vshrl.u32 %v7192, 7
        %v7194 = vsub.s32 0, %v7193
        %v7195 = vrot.slane %v7191, %v7194
        %v7196 = vmul.f32 %v7173, %v7195
        %v7197 = vmul.f32 %v7174, %v7195
        %v7198 = vmul.f32 %v7175, %v7195
        %v7199 = vmul.f32 %v7176, %v7195
        %v7200 = vmul.f32 %v7177, %v7195
        %v7201 = vmul.f32 %v7178, %v7195
        %v7202 = vmul.f32 %v7179, %v7195
        %v7203 = vmul.f32 %v7180, %v7195
        %v7204 = vmul.f32 %v7181, %v7195
        %v7205 = vmul.f32 %v7182, %v7195
        %v7206 = vmul.f32 %v7183, %v7195
        %v7207 = vmul.f32 %v7184, %v7195
        %v7208 = vmul.f32 %v7185, %v7195
        %v7209 = vmul.f32 %v7186, %v7195
        %v7210 = vmul.f32 %v7187, %v7195
        %v7211 = vmul.f32 %v7188, %v7195
        %v7212 = vmul.f32 %v7189, %v7195
        %v7213 = vmul.f32 %v7190, %v7195
        %v7214 = vadd.f32 %v7155, %v7196
        %v7215 = vadd.f32 %v7156, %v7197
        %v7216 = vadd.f32 %v7157, %v7198
        %v7217 = vadd.f32 %v7158, %v7199
        %v7218 = vadd.f32 %v7159, %v7200
        %v7219 = vadd.f32 %v7160, %v7201
        %v7220 = vadd.f32 %v7161, %v7202
        %v7221 = vadd.f32 %v7162, %v7203
        %v7222 = vadd.f32 %v7163, %v7204
        %v7223 = vadd.f32 %v7164, %v7205
        %v7224 = vadd.f32 %v7165, %v7206
        %v7225 = vadd.f32 %v7166, %v7207
        %v7226 = vadd.f32 %v7167, %v7208
        %v7227 = vadd.f32 %v7168, %v7209
        %v7228 = vadd.f32 %v7169, %v7210
        %v7229 = vadd.f32 %v7170, %v7211
        %v7230 = vadd.f32 %v7171, %v7212
        %v7231 = vadd.f32 %v7172, %v7213
        %v7232 = vld [vmem:[%s7112 + $0x2] sm:$0xff]
        %v7233 = vld [vmem:[%s7112 + $0xa] sm:$0x1]
        %v7234 = vld [vmem:[%s7112 + $0x12] sm:$0xff]
        %v7235 = vld [vmem:[%s7112 + $0x1a] sm:$0x1]
        %v7236 = vld [vmem:[%s7112 + $0x22] sm:$0xff]
        %v7237 = vld [vmem:[%s7112 + $0x2a] sm:$0x1]
        %v7238 = vld [vmem:[%s7112 + $0x32] sm:$0xff]
        %v7239 = vld [vmem:[%s7112 + $0x3a] sm:$0x1]
        %v7240 = vld [vmem:[%s7112 + $0x42] sm:$0xff]
        %v7241 = vld [vmem:[%s7112 + $0x4a] sm:$0x1]
        %v7242 = vld [vmem:[%s7112 + $0x52] sm:$0xff]
        %v7243 = vld [vmem:[%s7112 + $0x5a] sm:$0x1]
        %v7244 = vld [vmem:[%s7112 + $0x62] sm:$0xff]
        %v7245 = vld [vmem:[%s7112 + $0x6a] sm:$0x1]
        %v7246 = vld [vmem:[%s7112 + $0x72] sm:$0xff]
        %v7247 = vld [vmem:[%s7112 + $0x7a] sm:$0x1]
        %v7248 = vld [vmem:[%s7112 + $0x82] sm:$0xff]
        %v7249 = vld [vmem:[%s7112 + $0x8a] sm:$0x1]
        %v7250 = vld [vmem:[%s7131 + $0x2] sm:$0x1]
        %v7251 = vlaneseq
        %v7252 = vshrl.u32 %v7251, 7
        %v7253 = vsub.s32 0, %v7252
        %v7254 = vrot.slane %v7250, %v7253
        %v7255 = vmul.f32 %v7232, %v7254
        %v7256 = vmul.f32 %v7233, %v7254
        %v7257 = vmul.f32 %v7234, %v7254
        %v7258 = vmul.f32 %v7235, %v7254
        %v7259 = vmul.f32 %v7236, %v7254
        %v7260 = vmul.f32 %v7237, %v7254
        %v7261 = vmul.f32 %v7238, %v7254
        %v7262 = vmul.f32 %v7239, %v7254
        %v7263 = vmul.f32 %v7240, %v7254
        %v7264 = vmul.f32 %v7241, %v7254
        %v7265 = vmul.f32 %v7242, %v7254
        %v7266 = vmul.f32 %v7243, %v7254
        %v7267 = vmul.f32 %v7244, %v7254
        %v7268 = vmul.f32 %v7245, %v7254
        %v7269 = vmul.f32 %v7246, %v7254
        %v7270 = vmul.f32 %v7247, %v7254
        %v7271 = vmul.f32 %v7248, %v7254
        %v7272 = vmul.f32 %v7249, %v7254
        %v7273 = vadd.f32 %v7214, %v7255
        %v7274 = vadd.f32 %v7215, %v7256
        %v7275 = vadd.f32 %v7216, %v7257
        %v7276 = vadd.f32 %v7217, %v7258
        %v7277 = vadd.f32 %v7218, %v7259
        %v7278 = vadd.f32 %v7219, %v7260
        %v7279 = vadd.f32 %v7220, %v7261
        %v7280 = vadd.f32 %v7221, %v7262
        %v7281 = vadd.f32 %v7222, %v7263
        %v7282 = vadd.f32 %v7223, %v7264
        %v7283 = vadd.f32 %v7224, %v7265
        %v7284 = vadd.f32 %v7225, %v7266
        %v7285 = vadd.f32 %v7226, %v7267
        %v7286 = vadd.f32 %v7227, %v7268
        %v7287 = vadd.f32 %v7228, %v7269
        %v7288 = vadd.f32 %v7229, %v7270
        %v7289 = vadd.f32 %v7230, %v7271
        %v7290 = vadd.f32 %v7231, %v7272
        %v7291 = vld [vmem:[%s7112 + $0x3] sm:$0xff]
        %v7292 = vld [vmem:[%s7112 + $0xb] sm:$0x1]
        %v7293 = vld [vmem:[%s7112 + $0x13] sm:$0xff]
        %v7294 = vld [vmem:[%s7112 + $0x1b] sm:$0x1]
        %v7295 = vld [vmem:[%s7112 + $0x23] sm:$0xff]
        %v7296 = vld [vmem:[%s7112 + $0x2b] sm:$0x1]
        %v7297 = vld [vmem:[%s7112 + $0x33] sm:$0xff]
        %v7298 = vld [vmem:[%s7112 + $0x3b] sm:$0x1]
        %v7299 = vld [vmem:[%s7112 + $0x43] sm:$0xff]
        %v7300 = vld [vmem:[%s7112 + $0x4b] sm:$0x1]
        %v7301 = vld [vmem:[%s7112 + $0x53] sm:$0xff]
        %v7302 = vld [vmem:[%s7112 + $0x5b] sm:$0x1]
        %v7303 = vld [vmem:[%s7112 + $0x63] sm:$0xff]
        %v7304 = vld [vmem:[%s7112 + $0x6b] sm:$0x1]
        %v7305 = vld [vmem:[%s7112 + $0x73] sm:$0xff]
        %v7306 = vld [vmem:[%s7112 + $0x7b] sm:$0x1]
        %v7307 = vld [vmem:[%s7112 + $0x83] sm:$0xff]
        %v7308 = vld [vmem:[%s7112 + $0x8b] sm:$0x1]
        %v7309 = vld [vmem:[%s7131 + $0x3] sm:$0x1]
        %v7310 = vlaneseq
        %v7311 = vshrl.u32 %v7310, 7
        %v7312 = vsub.s32 0, %v7311
        %v7313 = vrot.slane %v7309, %v7312
        %v7314 = vmul.f32 %v7291, %v7313
        %v7315 = vmul.f32 %v7292, %v7313
        %v7316 = vmul.f32 %v7293, %v7313
        %v7317 = vmul.f32 %v7294, %v7313
        %v7318 = vmul.f32 %v7295, %v7313
        %v7319 = vmul.f32 %v7296, %v7313
        %v7320 = vmul.f32 %v7297, %v7313
        %v7321 = vmul.f32 %v7298, %v7313
        %v7322 = vmul.f32 %v7299, %v7313
        %v7323 = vmul.f32 %v7300, %v7313
        %v7324 = vmul.f32 %v7301, %v7313
        %v7325 = vmul.f32 %v7302, %v7313
        %v7326 = vmul.f32 %v7303, %v7313
        %v7327 = vmul.f32 %v7304, %v7313
        %v7328 = vmul.f32 %v7305, %v7313
        %v7329 = vmul.f32 %v7306, %v7313
        %v7330 = vmul.f32 %v7307, %v7313
        %v7331 = vmul.f32 %v7308, %v7313
        %v7332 = vadd.f32 %v7273, %v7314
        %v7333 = vadd.f32 %v7274, %v7315
        %v7334 = vadd.f32 %v7275, %v7316
        %v7335 = vadd.f32 %v7276, %v7317
        %v7336 = vadd.f32 %v7277, %v7318
        %v7337 = vadd.f32 %v7278, %v7319
        %v7338 = vadd.f32 %v7279, %v7320
        %v7339 = vadd.f32 %v7280, %v7321
        %v7340 = vadd.f32 %v7281, %v7322
        %v7341 = vadd.f32 %v7282, %v7323
        %v7342 = vadd.f32 %v7283, %v7324
        %v7343 = vadd.f32 %v7284, %v7325
        %v7344 = vadd.f32 %v7285, %v7326
        %v7345 = vadd.f32 %v7286, %v7327
        %v7346 = vadd.f32 %v7287, %v7328
        %v7347 = vadd.f32 %v7288, %v7329
        %v7348 = vadd.f32 %v7289, %v7330
        %v7349 = vadd.f32 %v7290, %v7331
        %v7350 = vld [vmem:[%s7112 + $0x4] sm:$0xff]
        %v7351 = vld [vmem:[%s7112 + $0xc] sm:$0x1]
        %v7352 = vld [vmem:[%s7112 + $0x14] sm:$0xff]
        %v7353 = vld [vmem:[%s7112 + $0x1c] sm:$0x1]
        %v7354 = vld [vmem:[%s7112 + $0x24] sm:$0xff]
        %v7355 = vld [vmem:[%s7112 + $0x2c] sm:$0x1]
        %v7356 = vld [vmem:[%s7112 + $0x34] sm:$0xff]
        %v7357 = vld [vmem:[%s7112 + $0x3c] sm:$0x1]
        %v7358 = vld [vmem:[%s7112 + $0x44] sm:$0xff]
        %v7359 = vld [vmem:[%s7112 + $0x4c] sm:$0x1]
        %v7360 = vld [vmem:[%s7112 + $0x54] sm:$0xff]
        %v7361 = vld [vmem:[%s7112 + $0x5c] sm:$0x1]
        %v7362 = vld [vmem:[%s7112 + $0x64] sm:$0xff]
        %v7363 = vld [vmem:[%s7112 + $0x6c] sm:$0x1]
        %v7364 = vld [vmem:[%s7112 + $0x74] sm:$0xff]
        %v7365 = vld [vmem:[%s7112 + $0x7c] sm:$0x1]
        %v7366 = vld [vmem:[%s7112 + $0x84] sm:$0xff]
        %v7367 = vld [vmem:[%s7112 + $0x8c] sm:$0x1]
        %v7368 = vld [vmem:[%s7131 + $0x4] sm:$0x1]
        %v7369 = vlaneseq
        %v7370 = vshrl.u32 %v7369, 7
        %v7371 = vsub.s32 0, %v7370
        %v7372 = vrot.slane %v7368, %v7371
        %v7373 = vmul.f32 %v7350, %v7372
        %v7374 = vmul.f32 %v7351, %v7372
        %v7375 = vmul.f32 %v7352, %v7372
        %v7376 = vmul.f32 %v7353, %v7372
        %v7377 = vmul.f32 %v7354, %v7372
        %v7378 = vmul.f32 %v7355, %v7372
        %v7379 = vmul.f32 %v7356, %v7372
        %v7380 = vmul.f32 %v7357, %v7372
        %v7381 = vmul.f32 %v7358, %v7372
        %v7382 = vmul.f32 %v7359, %v7372
        %v7383 = vmul.f32 %v7360, %v7372
        %v7384 = vmul.f32 %v7361, %v7372
        %v7385 = vmul.f32 %v7362, %v7372
        %v7386 = vmul.f32 %v7363, %v7372
        %v7387 = vmul.f32 %v7364, %v7372
        %v7388 = vmul.f32 %v7365, %v7372
        %v7389 = vmul.f32 %v7366, %v7372
        %v7390 = vmul.f32 %v7367, %v7372
        %v7391 = vadd.f32 %v7332, %v7373
        %v7392 = vadd.f32 %v7333, %v7374
        %v7393 = vadd.f32 %v7334, %v7375
        %v7394 = vadd.f32 %v7335, %v7376
        %v7395 = vadd.f32 %v7336, %v7377
        %v7396 = vadd.f32 %v7337, %v7378
        %v7397 = vadd.f32 %v7338, %v7379
        %v7398 = vadd.f32 %v7339, %v7380
        %v7399 = vadd.f32 %v7340, %v7381
        %v7400 = vadd.f32 %v7341, %v7382
        %v7401 = vadd.f32 %v7342, %v7383
        %v7402 = vadd.f32 %v7343, %v7384
        %v7403 = vadd.f32 %v7344, %v7385
        %v7404 = vadd.f32 %v7345, %v7386
        %v7405 = vadd.f32 %v7346, %v7387
        %v7406 = vadd.f32 %v7347, %v7388
        %v7407 = vadd.f32 %v7348, %v7389
        %v7408 = vadd.f32 %v7349, %v7390
        %v7409 = vld [vmem:[%s7112 + $0x5] sm:$0xff]
        %v7410 = vld [vmem:[%s7112 + $0xd] sm:$0x1]
        %v7411 = vld [vmem:[%s7112 + $0x15] sm:$0xff]
        %v7412 = vld [vmem:[%s7112 + $0x1d] sm:$0x1]
        %v7413 = vld [vmem:[%s7112 + $0x25] sm:$0xff]
        %v7414 = vld [vmem:[%s7112 + $0x2d] sm:$0x1]
        %v7415 = vld [vmem:[%s7112 + $0x35] sm:$0xff]
        %v7416 = vld [vmem:[%s7112 + $0x3d] sm:$0x1]
        %v7417 = vld [vmem:[%s7112 + $0x45] sm:$0xff]
        %v7418 = vld [vmem:[%s7112 + $0x4d] sm:$0x1]
        %v7419 = vld [vmem:[%s7112 + $0x55] sm:$0xff]
        %v7420 = vld [vmem:[%s7112 + $0x5d] sm:$0x1]
        %v7421 = vld [vmem:[%s7112 + $0x65] sm:$0xff]
        %v7422 = vld [vmem:[%s7112 + $0x6d] sm:$0x1]
        %v7423 = vld [vmem:[%s7112 + $0x75] sm:$0xff]
        %v7424 = vld [vmem:[%s7112 + $0x7d] sm:$0x1]
        %v7425 = vld [vmem:[%s7112 + $0x85] sm:$0xff]
        %v7426 = vld [vmem:[%s7112 + $0x8d] sm:$0x1]
        %v7427 = vld [vmem:[%s7131 + $0x5] sm:$0x1]
        %v7428 = vlaneseq
        %v7429 = vshrl.u32 %v7428, 7
        %v7430 = vsub.s32 0, %v7429
        %v7431 = vrot.slane %v7427, %v7430
        %v7432 = vmul.f32 %v7409, %v7431
        %v7433 = vmul.f32 %v7410, %v7431
        %v7434 = vmul.f32 %v7411, %v7431
        %v7435 = vmul.f32 %v7412, %v7431
        %v7436 = vmul.f32 %v7413, %v7431
        %v7437 = vmul.f32 %v7414, %v7431
        %v7438 = vmul.f32 %v7415, %v7431
        %v7439 = vmul.f32 %v7416, %v7431
        %v7440 = vmul.f32 %v7417, %v7431
        %v7441 = vmul.f32 %v7418, %v7431
        %v7442 = vmul.f32 %v7419, %v7431
        %v7443 = vmul.f32 %v7420, %v7431
        %v7444 = vmul.f32 %v7421, %v7431
        %v7445 = vmul.f32 %v7422, %v7431
        %v7446 = vmul.f32 %v7423, %v7431
        %v7447 = vmul.f32 %v7424, %v7431
        %v7448 = vmul.f32 %v7425, %v7431
        %v7449 = vmul.f32 %v7426, %v7431
        %v7450 = vadd.f32 %v7391, %v7432
        %v7451 = vadd.f32 %v7392, %v7433
        %v7452 = vadd.f32 %v7393, %v7434
        %v7453 = vadd.f32 %v7394, %v7435
        %v7454 = vadd.f32 %v7395, %v7436
        %v7455 = vadd.f32 %v7396, %v7437
        %v7456 = vadd.f32 %v7397, %v7438
        %v7457 = vadd.f32 %v7398, %v7439
        %v7458 = vadd.f32 %v7399, %v7440
        %v7459 = vadd.f32 %v7400, %v7441
        %v7460 = vadd.f32 %v7401, %v7442
        %v7461 = vadd.f32 %v7402, %v7443
        %v7462 = vadd.f32 %v7403, %v7444
        %v7463 = vadd.f32 %v7404, %v7445
        %v7464 = vadd.f32 %v7405, %v7446
        %v7465 = vadd.f32 %v7406, %v7447
        %v7466 = vadd.f32 %v7407, %v7448
        %v7467 = vadd.f32 %v7408, %v7449
        %7468 = vst.msk [vmem:[#allocation4] sm:$0xff] %vm674, %v7450
        %vm7469 = vcmask 516096
        %7470 = vst.msk [vmem:[#allocation4 + $0x8] sm:$0x1] %vm7469, %v7451
        %7471 = vst.msk [vmem:[#allocation4 + $0x10] sm:$0xff] %vm674, %v7452
        %7472 = vst.msk [vmem:[#allocation4 + $0x18] sm:$0x1] %vm7469, %v7453
        %7473 = vst.msk [vmem:[#allocation4 + $0x20] sm:$0xff] %vm674, %v7454
        %7474 = vst.msk [vmem:[#allocation4 + $0x28] sm:$0x1] %vm7469, %v7455
        %7475 = vst.msk [vmem:[#allocation4 + $0x30] sm:$0xff] %vm674, %v7456
        %7476 = vst.msk [vmem:[#allocation4 + $0x38] sm:$0x1] %vm7469, %v7457
        %7477 = vst.msk [vmem:[#allocation4 + $0x40] sm:$0xff] %vm674, %v7458
        %7478 = vst.msk [vmem:[#allocation4 + $0x48] sm:$0x1] %vm7469, %v7459
        %7479 = vst.msk [vmem:[#allocation4 + $0x50] sm:$0xff] %vm674, %v7460
        %7480 = vst.msk [vmem:[#allocation4 + $0x58] sm:$0x1] %vm7469, %v7461
        %7481 = vst.msk [vmem:[#allocation4 + $0x60] sm:$0xff] %vm674, %v7462
        %7482 = vst.msk [vmem:[#allocation4 + $0x68] sm:$0x1] %vm7469, %v7463
        %7483 = vst.msk [vmem:[#allocation4 + $0x70] sm:$0xff] %vm674, %v7464
        %7484 = vst.msk [vmem:[#allocation4 + $0x78] sm:$0x1] %vm7469, %v7465
        %7485 = vst.msk [vmem:[#allocation4 + $0x80] sm:$0xff] %vm674, %v7466
        %7486 = vst.msk [vmem:[#allocation4 + $0x88] sm:$0x1] %vm7469, %v7467
        %v7487 = vld [vmem:[#allocation4] sm:$0xff]
        %v7488 = vld [vmem:[#allocation4 + $0x8] sm:$0x1]
        %v7489 = vld [vmem:[#allocation4 + $0x10] sm:$0xff]
        %v7490 = vld [vmem:[#allocation4 + $0x18] sm:$0x1]
        %v7491 = vld [vmem:[#allocation4 + $0x20] sm:$0xff]
        %v7492 = vld [vmem:[#allocation4 + $0x28] sm:$0x1]
        %v7493 = vld [vmem:[#allocation4 + $0x30] sm:$0xff]
        %v7494 = vld [vmem:[#allocation4 + $0x38] sm:$0x1]
        %v7495 = vld [vmem:[#allocation4 + $0x40] sm:$0xff]
        %v7496 = vld [vmem:[#allocation4 + $0x48] sm:$0x1]
        %v7497 = vld [vmem:[#allocation4 + $0x50] sm:$0xff]
        %v7498 = vld [vmem:[#allocation4 + $0x58] sm:$0x1]
        %v7499 = vld [vmem:[#allocation4 + $0x60] sm:$0xff]
        %v7500 = vld [vmem:[#allocation4 + $0x68] sm:$0x1]
        %v7501 = vld [vmem:[#allocation4 + $0x70] sm:$0xff]
        %v7502 = vld [vmem:[#allocation4 + $0x78] sm:$0x1]
        %v7503 = vld [vmem:[#allocation4 + $0x80] sm:$0xff]
        %v7504 = vld [vmem:[#allocation4 + $0x88] sm:$0x1]
        %v7505 = vpack.c.bf16 %v7488, %v7487
        %v7506 = vpack.c.bf16 %v7490, %v7489
        %v7507 = vpack.c.bf16 %v7492, %v7491
        %v7508 = vpack.c.bf16 %v7494, %v7493
        %v7509 = vpack.c.bf16 %v7496, %v7495
        %v7510 = vpack.c.bf16 %v7498, %v7497
        %v7511 = vpack.c.bf16 %v7500, %v7499
        %v7512 = vpack.c.bf16 %v7502, %v7501
        %v7513 = vpack.c.bf16 %v7504, %v7503
        %v7523 = vcombine.high %v7505, %v7505
        %v7525 = vunpack.c.l.s4 1966171168
        %v7526 = vunpack.c.0.s8 %v7525
        %v7527 = vlaneseq
        %v7528 = vshrl.u32 %v7527, 7
        %v7529 = vsub.s32 %v7526, %v7528
        %v7530 = vrot.slane %v7505, %v7529
        %v7532 = vunpack.c.l.s4 1966171168
        %v7533 = vunpack.c.0.s8 %v7532
        %v7534 = vlaneseq
        %v7535 = vshrl.u32 %v7534, 7
        %v7536 = vsub.s32 %v7533, %v7535
        %v7537 = vrot.slane %v7523, %v7536
        %v7538 = vcombine.high %v7530, %v7530
        %v7540 = vunpack.c.l.s4 1966171168
        %v7541 = vunpack.c.0.s8 %v7540
        %v7542 = vlaneseq
        %v7543 = vshrl.u32 %v7542, 7
        %v7544 = vsub.s32 %v7541, %v7543
        %v7545 = vrot.slane %v7530, %v7544
        %v7547 = vunpack.c.l.s4 1966171168
        %v7548 = vunpack.c.0.s8 %v7547
        %v7549 = vlaneseq
        %v7550 = vshrl.u32 %v7549, 7
        %v7551 = vsub.s32 %v7548, %v7550
        %v7552 = vrot.slane %v7537, %v7551
        %v7554 = vunpack.c.l.s4 1966171168
        %v7555 = vunpack.c.0.s8 %v7554
        %v7556 = vlaneseq
        %v7557 = vshrl.u32 %v7556, 7
        %v7558 = vsub.s32 %v7555, %v7557
        %v7559 = vrot.slane %v7538, %v7558
        %v7560 = vcombine.high %v7545, %v7545
        %v7561 = vcombine.high %v7559, %v7559
        %v7562 = vcombine.high %v7506, %v7506
        %v7564 = vunpack.c.l.s4 1966171168
        %v7565 = vunpack.c.0.s8 %v7564
        %v7566 = vlaneseq
        %v7567 = vshrl.u32 %v7566, 7
        %v7568 = vsub.s32 %v7565, %v7567
        %v7569 = vrot.slane %v7506, %v7568
        %v7571 = vunpack.c.l.s4 1966171168
        %v7572 = vunpack.c.0.s8 %v7571
        %v7573 = vlaneseq
        %v7574 = vshrl.u32 %v7573, 7
        %v7575 = vsub.s32 %v7572, %v7574
        %v7576 = vrot.slane %v7562, %v7575
        %v7577 = vcombine.high %v7569, %v7569
        %v7579 = vunpack.c.l.s4 1966171168
        %v7580 = vunpack.c.0.s8 %v7579
        %v7581 = vlaneseq
        %v7582 = vshrl.u32 %v7581, 7
        %v7583 = vsub.s32 %v7580, %v7582
        %v7584 = vrot.slane %v7569, %v7583
        %v7586 = vunpack.c.l.s4 1966171168
        %v7587 = vunpack.c.0.s8 %v7586
        %v7588 = vlaneseq
        %v7589 = vshrl.u32 %v7588, 7
        %v7590 = vsub.s32 %v7587, %v7589
        %v7591 = vrot.slane %v7576, %v7590
        %v7593 = vunpack.c.l.s4 1966171168
        %v7594 = vunpack.c.0.s8 %v7593
        %v7595 = vlaneseq
        %v7596 = vshrl.u32 %v7595, 7
        %v7597 = vsub.s32 %v7594, %v7596
        %v7598 = vrot.slane %v7577, %v7597
        %v7599 = vcombine.high %v7584, %v7584
        %v7600 = vcombine.high %v7598, %v7598
        %v7601 = vcombine.high %v7507, %v7507
        %v7603 = vunpack.c.l.s4 1966171168
        %v7604 = vunpack.c.0.s8 %v7603
        %v7605 = vlaneseq
        %v7606 = vshrl.u32 %v7605, 7
        %v7607 = vsub.s32 %v7604, %v7606
        %v7608 = vrot.slane %v7507, %v7607
        %v7610 = vunpack.c.l.s4 1966171168
        %v7611 = vunpack.c.0.s8 %v7610
        %v7612 = vlaneseq
        %v7613 = vshrl.u32 %v7612, 7
        %v7614 = vsub.s32 %v7611, %v7613
        %v7615 = vrot.slane %v7601, %v7614
        %v7616 = vcombine.high %v7608, %v7608
        %v7618 = vunpack.c.l.s4 1966171168
        %v7619 = vunpack.c.0.s8 %v7618
        %v7620 = vlaneseq
        %v7621 = vshrl.u32 %v7620, 7
        %v7622 = vsub.s32 %v7619, %v7621
        %v7623 = vrot.slane %v7608, %v7622
        %v7625 = vunpack.c.l.s4 1966171168
        %v7626 = vunpack.c.0.s8 %v7625
        %v7627 = vlaneseq
        %v7628 = vshrl.u32 %v7627, 7
        %v7629 = vsub.s32 %v7626, %v7628
        %v7630 = vrot.slane %v7615, %v7629
        %v7632 = vunpack.c.l.s4 1966171168
        %v7633 = vunpack.c.0.s8 %v7632
        %v7634 = vlaneseq
        %v7635 = vshrl.u32 %v7634, 7
        %v7636 = vsub.s32 %v7633, %v7635
        %v7637 = vrot.slane %v7616, %v7636
        %v7638 = vcombine.high %v7623, %v7623
        %v7639 = vcombine.high %v7637, %v7637
        %v7640 = vcombine.high %v7508, %v7508
        %v7642 = vunpack.c.l.s4 1966171168
        %v7643 = vunpack.c.0.s8 %v7642
        %v7644 = vlaneseq
        %v7645 = vshrl.u32 %v7644, 7
        %v7646 = vsub.s32 %v7643, %v7645
        %v7647 = vrot.slane %v7508, %v7646
        %v7649 = vunpack.c.l.s4 1966171168
        %v7650 = vunpack.c.0.s8 %v7649
        %v7651 = vlaneseq
        %v7652 = vshrl.u32 %v7651, 7
        %v7653 = vsub.s32 %v7650, %v7652
        %v7654 = vrot.slane %v7640, %v7653
        %v7655 = vcombine.high %v7647, %v7647
        %v7657 = vunpack.c.l.s4 1966171168
        %v7658 = vunpack.c.0.s8 %v7657
        %v7659 = vlaneseq
        %v7660 = vshrl.u32 %v7659, 7
        %v7661 = vsub.s32 %v7658, %v7660
        %v7662 = vrot.slane %v7647, %v7661
        %v7664 = vunpack.c.l.s4 1966171168
        %v7665 = vunpack.c.0.s8 %v7664
        %v7666 = vlaneseq
        %v7667 = vshrl.u32 %v7666, 7
        %v7668 = vsub.s32 %v7665, %v7667
        %v7669 = vrot.slane %v7654, %v7668
        %v7671 = vunpack.c.l.s4 1966171168
        %v7672 = vunpack.c.0.s8 %v7671
        %v7673 = vlaneseq
        %v7674 = vshrl.u32 %v7673, 7
        %v7675 = vsub.s32 %v7672, %v7674
        %v7676 = vrot.slane %v7655, %v7675
        %v7677 = vcombine.high %v7662, %v7662
        %v7678 = vcombine.high %v7676, %v7676
        %v7679 = vcombine.high %v7509, %v7509
        %v7681 = vunpack.c.l.s4 1966171168
        %v7682 = vunpack.c.0.s8 %v7681
        %v7683 = vlaneseq
        %v7684 = vshrl.u32 %v7683, 7
        %v7685 = vsub.s32 %v7682, %v7684
        %v7686 = vrot.slane %v7509, %v7685
        %v7688 = vunpack.c.l.s4 1966171168
        %v7689 = vunpack.c.0.s8 %v7688
        %v7690 = vlaneseq
        %v7691 = vshrl.u32 %v7690, 7
        %v7692 = vsub.s32 %v7689, %v7691
        %v7693 = vrot.slane %v7679, %v7692
        %v7694 = vcombine.high %v7686, %v7686
        %v7696 = vunpack.c.l.s4 1966171168
        %v7697 = vunpack.c.0.s8 %v7696
        %v7698 = vlaneseq
        %v7699 = vshrl.u32 %v7698, 7
        %v7700 = vsub.s32 %v7697, %v7699
        %v7701 = vrot.slane %v7686, %v7700
        %v7703 = vunpack.c.l.s4 1966171168
        %v7704 = vunpack.c.0.s8 %v7703
        %v7705 = vlaneseq
        %v7706 = vshrl.u32 %v7705, 7
        %v7707 = vsub.s32 %v7704, %v7706
        %v7708 = vrot.slane %v7693, %v7707
        %v7710 = vunpack.c.l.s4 1966171168
        %v7711 = vunpack.c.0.s8 %v7710
        %v7712 = vlaneseq
        %v7713 = vshrl.u32 %v7712, 7
        %v7714 = vsub.s32 %v7711, %v7713
        %v7715 = vrot.slane %v7694, %v7714
        %v7716 = vcombine.high %v7701, %v7701
        %v7717 = vcombine.high %v7715, %v7715
        %v7718 = vcombine.high %v7510, %v7510
        %v7720 = vunpack.c.l.s4 1966171168
        %v7721 = vunpack.c.0.s8 %v7720
        %v7722 = vlaneseq
        %v7723 = vshrl.u32 %v7722, 7
        %v7724 = vsub.s32 %v7721, %v7723
        %v7725 = vrot.slane %v7510, %v7724
        %v7727 = vunpack.c.l.s4 1966171168
        %v7728 = vunpack.c.0.s8 %v7727
        %v7729 = vlaneseq
        %v7730 = vshrl.u32 %v7729, 7
        %v7731 = vsub.s32 %v7728, %v7730
        %v7732 = vrot.slane %v7718, %v7731
        %v7733 = vcombine.high %v7725, %v7725
        %v7735 = vunpack.c.l.s4 1966171168
        %v7736 = vunpack.c.0.s8 %v7735
        %v7737 = vlaneseq
        %v7738 = vshrl.u32 %v7737, 7
        %v7739 = vsub.s32 %v7736, %v7738
        %v7740 = vrot.slane %v7725, %v7739
        %v7742 = vunpack.c.l.s4 1966171168
        %v7743 = vunpack.c.0.s8 %v7742
        %v7744 = vlaneseq
        %v7745 = vshrl.u32 %v7744, 7
        %v7746 = vsub.s32 %v7743, %v7745
        %v7747 = vrot.slane %v7732, %v7746
        %v7749 = vunpack.c.l.s4 1966171168
        %v7750 = vunpack.c.0.s8 %v7749
        %v7751 = vlaneseq
        %v7752 = vshrl.u32 %v7751, 7
        %v7753 = vsub.s32 %v7750, %v7752
        %v7754 = vrot.slane %v7733, %v7753
        %v7755 = vcombine.high %v7740, %v7740
        %v7756 = vcombine.high %v7754, %v7754
        %v7757 = vcombine.high %v7511, %v7511
        %v7759 = vunpack.c.l.s4 1966171168
        %v7760 = vunpack.c.0.s8 %v7759
        %v7761 = vlaneseq
        %v7762 = vshrl.u32 %v7761, 7
        %v7763 = vsub.s32 %v7760, %v7762
        %v7764 = vrot.slane %v7511, %v7763
        %v7766 = vunpack.c.l.s4 1966171168
        %v7767 = vunpack.c.0.s8 %v7766
        %v7768 = vlaneseq
        %v7769 = vshrl.u32 %v7768, 7
        %v7770 = vsub.s32 %v7767, %v7769
        %v7771 = vrot.slane %v7757, %v7770
        %v7772 = vcombine.high %v7764, %v7764
        %v7774 = vunpack.c.l.s4 1966171168
        %v7775 = vunpack.c.0.s8 %v7774
        %v7776 = vlaneseq
        %v7777 = vshrl.u32 %v7776, 7
        %v7778 = vsub.s32 %v7775, %v7777
        %v7779 = vrot.slane %v7764, %v7778
        %v7781 = vunpack.c.l.s4 1966171168
        %v7782 = vunpack.c.0.s8 %v7781
        %v7783 = vlaneseq
        %v7784 = vshrl.u32 %v7783, 7
        %v7785 = vsub.s32 %v7782, %v7784
        %v7786 = vrot.slane %v7771, %v7785
        %v7788 = vunpack.c.l.s4 1966171168
        %v7789 = vunpack.c.0.s8 %v7788
        %v7790 = vlaneseq
        %v7791 = vshrl.u32 %v7790, 7
        %v7792 = vsub.s32 %v7789, %v7791
        %v7793 = vrot.slane %v7772, %v7792
        %v7794 = vcombine.high %v7779, %v7779
        %v7795 = vcombine.high %v7793, %v7793
        %v7796 = vcombine.high %v7512, %v7512
        %v7798 = vunpack.c.l.s4 1966171168
        %v7799 = vunpack.c.0.s8 %v7798
        %v7800 = vlaneseq
        %v7801 = vshrl.u32 %v7800, 7
        %v7802 = vsub.s32 %v7799, %v7801
        %v7803 = vrot.slane %v7512, %v7802
        %v7805 = vunpack.c.l.s4 1966171168
        %v7806 = vunpack.c.0.s8 %v7805
        %v7807 = vlaneseq
        %v7808 = vshrl.u32 %v7807, 7
        %v7809 = vsub.s32 %v7806, %v7808
        %v7810 = vrot.slane %v7796, %v7809
        %v7811 = vcombine.high %v7803, %v7803
        %v7813 = vunpack.c.l.s4 1966171168
        %v7814 = vunpack.c.0.s8 %v7813
        %v7815 = vlaneseq
        %v7816 = vshrl.u32 %v7815, 7
        %v7817 = vsub.s32 %v7814, %v7816
        %v7818 = vrot.slane %v7803, %v7817
        %v7820 = vunpack.c.l.s4 1966171168
        %v7821 = vunpack.c.0.s8 %v7820
        %v7822 = vlaneseq
        %v7823 = vshrl.u32 %v7822, 7
        %v7824 = vsub.s32 %v7821, %v7823
        %v7825 = vrot.slane %v7810, %v7824
        %v7827 = vunpack.c.l.s4 1966171168
        %v7828 = vunpack.c.0.s8 %v7827
        %v7829 = vlaneseq
        %v7830 = vshrl.u32 %v7829, 7
        %v7831 = vsub.s32 %v7828, %v7830
        %v7832 = vrot.slane %v7811, %v7831
        %v7833 = vcombine.high %v7818, %v7818
        %v7834 = vcombine.high %v7832, %v7832
        %v7835 = vcombine.high %v7513, %v7513
        %v7837 = vunpack.c.l.s4 1966171168
        %v7838 = vunpack.c.0.s8 %v7837
        %v7839 = vlaneseq
        %v7840 = vshrl.u32 %v7839, 7
        %v7841 = vsub.s32 %v7838, %v7840
        %v7842 = vrot.slane %v7513, %v7841
        %v7844 = vunpack.c.l.s4 1966171168
        %v7845 = vunpack.c.0.s8 %v7844
        %v7846 = vlaneseq
        %v7847 = vshrl.u32 %v7846, 7
        %v7848 = vsub.s32 %v7845, %v7847
        %v7849 = vrot.slane %v7835, %v7848
        %v7850 = vcombine.high %v7842, %v7842
        %v7852 = vunpack.c.l.s4 1966171168
        %v7853 = vunpack.c.0.s8 %v7852
        %v7854 = vlaneseq
        %v7855 = vshrl.u32 %v7854, 7
        %v7856 = vsub.s32 %v7853, %v7855
        %v7857 = vrot.slane %v7842, %v7856
        %v7859 = vunpack.c.l.s4 1966171168
        %v7860 = vunpack.c.0.s8 %v7859
        %v7861 = vlaneseq
        %v7862 = vshrl.u32 %v7861, 7
        %v7863 = vsub.s32 %v7860, %v7862
        %v7864 = vrot.slane %v7849, %v7863
        %v7866 = vunpack.c.l.s4 1966171168
        %v7867 = vunpack.c.0.s8 %v7866
        %v7868 = vlaneseq
        %v7869 = vshrl.u32 %v7868, 7
        %v7870 = vsub.s32 %v7867, %v7869
        %v7871 = vrot.slane %v7850, %v7870
        %v7872 = vcombine.high %v7857, %v7857
        %v7873 = vcombine.high %v7871, %v7871
        %v7874 = vunpack.i.l.s16 %v7545
        %v7875 = vunpack.i.h.s16 %v7545
        %v7876 = vunpack.i.l.s16 %v7559
        %v7877 = vunpack.i.h.s16 %v7559
        %v7878 = vunpack.i.l.s16 %v7560
        %v7879 = vunpack.i.h.s16 %v7560
        %v7880 = vunpack.i.l.s16 %v7561
        %v7881 = vunpack.i.h.s16 %v7561
        %v7882 = vunpack.i.l.s16 %v7552
        %v7883 = vunpack.i.l.s16 %v7584
        %v7884 = vunpack.i.h.s16 %v7584
        %v7885 = vunpack.i.l.s16 %v7598
        %v7886 = vunpack.i.h.s16 %v7598
        %v7887 = vunpack.i.l.s16 %v7599
        %v7888 = vunpack.i.h.s16 %v7599
        %v7889 = vunpack.i.l.s16 %v7600
        %v7890 = vunpack.i.h.s16 %v7600
        %v7891 = vunpack.i.l.s16 %v7591
        %v7892 = vunpack.i.l.s16 %v7623
        %v7893 = vunpack.i.h.s16 %v7623
        %v7894 = vunpack.i.l.s16 %v7637
        %v7895 = vunpack.i.h.s16 %v7637
        %v7896 = vunpack.i.l.s16 %v7638
        %v7897 = vunpack.i.h.s16 %v7638
        %v7898 = vunpack.i.l.s16 %v7639
        %v7899 = vunpack.i.h.s16 %v7639
        %v7900 = vunpack.i.l.s16 %v7630
        %v7901 = vunpack.i.l.s16 %v7662
        %v7902 = vunpack.i.h.s16 %v7662
        %v7903 = vunpack.i.l.s16 %v7676
        %v7904 = vunpack.i.h.s16 %v7676
        %v7905 = vunpack.i.l.s16 %v7677
        %v7906 = vunpack.i.h.s16 %v7677
        %v7907 = vunpack.i.l.s16 %v7678
        %v7908 = vunpack.i.h.s16 %v7678
        %v7909 = vunpack.i.l.s16 %v7669
        %v7910 = vunpack.i.l.s16 %v7701
        %v7911 = vunpack.i.h.s16 %v7701
        %v7912 = vunpack.i.l.s16 %v7715
        %v7913 = vunpack.i.h.s16 %v7715
        %v7914 = vunpack.i.l.s16 %v7716
        %v7915 = vunpack.i.h.s16 %v7716
        %v7916 = vunpack.i.l.s16 %v7717
        %v7917 = vunpack.i.h.s16 %v7717
        %v7918 = vunpack.i.l.s16 %v7708
        %v7919 = vunpack.i.l.s16 %v7740
        %v7920 = vunpack.i.h.s16 %v7740
        %v7921 = vunpack.i.l.s16 %v7754
        %v7922 = vunpack.i.h.s16 %v7754
        %v7923 = vunpack.i.l.s16 %v7755
        %v7924 = vunpack.i.h.s16 %v7755
        %v7925 = vunpack.i.l.s16 %v7756
        %v7926 = vunpack.i.h.s16 %v7756
        %v7927 = vunpack.i.l.s16 %v7747
        %v7928 = vunpack.i.l.s16 %v7779
        %v7929 = vunpack.i.h.s16 %v7779
        %v7930 = vunpack.i.l.s16 %v7793
        %v7931 = vunpack.i.h.s16 %v7793
        %v7932 = vunpack.i.l.s16 %v7794
        %v7933 = vunpack.i.h.s16 %v7794
        %v7934 = vunpack.i.l.s16 %v7795
        %v7935 = vunpack.i.h.s16 %v7795
        %v7936 = vunpack.i.l.s16 %v7786
        %v7937 = vunpack.i.l.s16 %v7818
        %v7938 = vunpack.i.h.s16 %v7818
        %v7939 = vunpack.i.l.s16 %v7832
        %v7940 = vunpack.i.h.s16 %v7832
        %v7941 = vunpack.i.l.s16 %v7833
        %v7942 = vunpack.i.h.s16 %v7833
        %v7943 = vunpack.i.l.s16 %v7834
        %v7944 = vunpack.i.h.s16 %v7834
        %v7945 = vunpack.i.l.s16 %v7825
        %v7946 = vunpack.i.l.s16 %v7857
        %v7947 = vunpack.i.h.s16 %v7857
        %v7948 = vunpack.i.l.s16 %v7871
        %v7949 = vunpack.i.h.s16 %v7871
        %v7950 = vunpack.i.l.s16 %v7872
        %v7951 = vunpack.i.h.s16 %v7872
        %v7952 = vunpack.i.l.s16 %v7873
        %v7953 = vunpack.i.h.s16 %v7873
        %v7954 = vunpack.i.l.s16 %v7864
        %v7955 = vld [vmem:[#allocation12] sm:$0xf]
        %v7956 = vld [vmem:[#allocation12 + $0x4] sm:$0xf]
        %v7957 = vld [vmem:[#allocation12 + $0x8] sm:$0xf]
        %v7958 = vld [vmem:[#allocation12 + $0xc] sm:$0xf]
        %v7959 = vld [vmem:[#allocation12 + $0x10] sm:$0xf]
        %v7960 = vld [vmem:[#allocation12 + $0x14] sm:$0xf]
        %v7961 = vld [vmem:[#allocation12 + $0x18] sm:$0xf]
        %v7962 = vld [vmem:[#allocation12 + $0x1c] sm:$0xf]
        %v7963 = vld [vmem:[%s7] sm:$0x1]
        %v7965 = vlaneseq
        %v7966 = vshrl.u32 %v7965, 7
        %v7967 = vsub.s32 0, %v7966
        %v7968 = vrot.slane %v7963, %v7967
        %v7970 = vpack.i.b16 %v7875, %v7874
        %v7971 = vpack.i.b16 %v7877, %v7876
        %v7972 = vpack.i.b16 %v7879, %v7878
        %v7973 = vpack.i.b16 %v7881, %v7880
        %v7974 = vpack.i.b16 %v7883, %v7882
        %v7975 = vpack.i.b16 %v7885, %v7884
        %v7976 = vpack.i.b16 %v7887, %v7886
        %v7977 = vpack.i.b16 %v7889, %v7888
        %v7978 = vpack.i.b16 %v7891, %v7890
        %v7979 = vpack.i.b16 %v7893, %v7892
        %v7980 = vpack.i.b16 %v7895, %v7894
        %v7981 = vpack.i.b16 %v7897, %v7896
        %v7982 = vpack.i.b16 %v7899, %v7898
        %v7983 = vpack.i.b16 %v7901, %v7900
        %v7984 = vpack.i.b16 %v7903, %v7902
        %v7985 = vpack.i.b16 %v7905, %v7904
        %v7986 = vpack.i.b16 %v7907, %v7906
        %v7987 = vpack.i.b16 %v7909, %v7908
        %v7988 = vpack.i.b16 %v7911, %v7910
        %v7989 = vpack.i.b16 %v7913, %v7912
        %v7990 = vpack.i.b16 %v7915, %v7914
        %v7991 = vpack.i.b16 %v7917, %v7916
        %v7992 = vpack.i.b16 %v7919, %v7918
        %v7993 = vpack.i.b16 %v7921, %v7920
        %v7994 = vpack.i.b16 %v7923, %v7922
        %v7995 = vpack.i.b16 %v7925, %v7924
        %v7996 = vpack.i.b16 %v7927, %v7926
        %v7997 = vpack.i.b16 %v7929, %v7928
        %v7998 = vpack.i.b16 %v7931, %v7930
        %v7999 = vpack.i.b16 %v7933, %v7932
        %v8000 = vpack.i.b16 %v7935, %v7934
        %v8001 = vpack.i.b16 %v7937, %v7936
        %v8002 = vpack.i.b16 %v7939, %v7938
        %v8003 = vpack.i.b16 %v7941, %v7940
        %v8004 = vpack.i.b16 %v7943, %v7942
        %v8005 = vpack.i.b16 %v7945, %v7944
        %v8006 = vpack.i.b16 %v7947, %v7946
        %v8007 = vpack.i.b16 %v7949, %v7948
        %v8008 = vpack.i.b16 %v7951, %v7950
        %v8009 = vpack.i.b16 %v7953, %v7952
        %v8011 = vcombine.low %v7970, %v7971
        %v8012 = vcombine.low %v7972, %v7973
        %v8013 = vcombine.low %v7974, %v7975
        %v8014 = vcombine.low %v7976, %v7977
        %v8016 = vunpack.c.l.s4 1966171168
        %v8017 = vunpack.c.0.s8 %v8016
        %v8018 = vlaneseq
        %v8019 = vshrl.u32 %v8018, 7
        %v8020 = vsub.s32 %v8017, %v8019
        %v8021 = vrot.slane %v8011, %v8020
        %v8023 = vunpack.c.l.s4 1966171168
        %v8024 = vunpack.c.0.s8 %v8023
        %v8025 = vlaneseq
        %v8026 = vshrl.u32 %v8025, 7
        %v8027 = vsub.s32 %v8024, %v8026
        %v8028 = vrot.slane %v8012, %v8027
        %v8030 = vunpack.c.l.s4 1966171168
        %v8031 = vunpack.c.0.s8 %v8030
        %v8032 = vlaneseq
        %v8033 = vshrl.u32 %v8032, 7
        %v8034 = vsub.s32 %v8031, %v8033
        %v8035 = vrot.slane %v8013, %v8034
        %v8037 = vunpack.c.l.s4 1966171168
        %v8038 = vunpack.c.0.s8 %v8037
        %v8039 = vlaneseq
        %v8040 = vshrl.u32 %v8039, 7
        %v8041 = vsub.s32 %v8038, %v8040
        %v8042 = vrot.slane %v8014, %v8041
        %v8043 = vcombine.low %v8021, %v8028
        %v8044 = vcombine.low %v8035, %v8042
        %v8046 = vunpack.c.l.s4 1966171168
        %v8047 = vunpack.c.0.s8 %v8046
        %v8048 = vlaneseq
        %v8049 = vshrl.u32 %v8048, 7
        %v8050 = vsub.s32 %v8047, %v8049
        %v8051 = vrot.slane %v8043, %v8050
        %v8053 = vunpack.c.l.s4 1966171168
        %v8054 = vunpack.c.0.s8 %v8053
        %v8055 = vlaneseq
        %v8056 = vshrl.u32 %v8055, 7
        %v8057 = vsub.s32 %v8054, %v8056
        %v8058 = vrot.slane %v8044, %v8057
        %v8059 = vcombine.low %v8051, %v8058
        %v8060 = vcombine.low %v7978, %v7979
        %v8061 = vcombine.low %v7980, %v7981
        %v8062 = vcombine.low %v7982, %v7983
        %v8063 = vcombine.low %v7984, %v7985
        %v8065 = vunpack.c.l.s4 1966171168
        %v8066 = vunpack.c.0.s8 %v8065
        %v8067 = vlaneseq
        %v8068 = vshrl.u32 %v8067, 7
        %v8069 = vsub.s32 %v8066, %v8068
        %v8070 = vrot.slane %v8060, %v8069
        %v8072 = vunpack.c.l.s4 1966171168
        %v8073 = vunpack.c.0.s8 %v8072
        %v8074 = vlaneseq
        %v8075 = vshrl.u32 %v8074, 7
        %v8076 = vsub.s32 %v8073, %v8075
        %v8077 = vrot.slane %v8061, %v8076
        %v8079 = vunpack.c.l.s4 1966171168
        %v8080 = vunpack.c.0.s8 %v8079
        %v8081 = vlaneseq
        %v8082 = vshrl.u32 %v8081, 7
        %v8083 = vsub.s32 %v8080, %v8082
        %v8084 = vrot.slane %v8062, %v8083
        %v8086 = vunpack.c.l.s4 1966171168
        %v8087 = vunpack.c.0.s8 %v8086
        %v8088 = vlaneseq
        %v8089 = vshrl.u32 %v8088, 7
        %v8090 = vsub.s32 %v8087, %v8089
        %v8091 = vrot.slane %v8063, %v8090
        %v8092 = vcombine.low %v8070, %v8077
        %v8093 = vcombine.low %v8084, %v8091
        %v8095 = vunpack.c.l.s4 1966171168
        %v8096 = vunpack.c.0.s8 %v8095
        %v8097 = vlaneseq
        %v8098 = vshrl.u32 %v8097, 7
        %v8099 = vsub.s32 %v8096, %v8098
        %v8100 = vrot.slane %v8092, %v8099
        %v8102 = vunpack.c.l.s4 1966171168
        %v8103 = vunpack.c.0.s8 %v8102
        %v8104 = vlaneseq
        %v8105 = vshrl.u32 %v8104, 7
        %v8106 = vsub.s32 %v8103, %v8105
        %v8107 = vrot.slane %v8093, %v8106
        %v8108 = vcombine.low %v8100, %v8107
        %v8109 = vcombine.low %v7986, %v7987
        %v8110 = vcombine.low %v7988, %v7989
        %v8111 = vcombine.low %v7990, %v7991
        %v8112 = vcombine.low %v7992, %v7993
        %v8114 = vunpack.c.l.s4 1966171168
        %v8115 = vunpack.c.0.s8 %v8114
        %v8116 = vlaneseq
        %v8117 = vshrl.u32 %v8116, 7
        %v8118 = vsub.s32 %v8115, %v8117
        %v8119 = vrot.slane %v8109, %v8118
        %v8121 = vunpack.c.l.s4 1966171168
        %v8122 = vunpack.c.0.s8 %v8121
        %v8123 = vlaneseq
        %v8124 = vshrl.u32 %v8123, 7
        %v8125 = vsub.s32 %v8122, %v8124
        %v8126 = vrot.slane %v8110, %v8125
        %v8128 = vunpack.c.l.s4 1966171168
        %v8129 = vunpack.c.0.s8 %v8128
        %v8130 = vlaneseq
        %v8131 = vshrl.u32 %v8130, 7
        %v8132 = vsub.s32 %v8129, %v8131
        %v8133 = vrot.slane %v8111, %v8132
        %v8135 = vunpack.c.l.s4 1966171168
        %v8136 = vunpack.c.0.s8 %v8135
        %v8137 = vlaneseq
        %v8138 = vshrl.u32 %v8137, 7
        %v8139 = vsub.s32 %v8136, %v8138
        %v8140 = vrot.slane %v8112, %v8139
        %v8141 = vcombine.low %v8119, %v8126
        %v8142 = vcombine.low %v8133, %v8140
        %v8144 = vunpack.c.l.s4 1966171168
        %v8145 = vunpack.c.0.s8 %v8144
        %v8146 = vlaneseq
        %v8147 = vshrl.u32 %v8146, 7
        %v8148 = vsub.s32 %v8145, %v8147
        %v8149 = vrot.slane %v8141, %v8148
        %v8151 = vunpack.c.l.s4 1966171168
        %v8152 = vunpack.c.0.s8 %v8151
        %v8153 = vlaneseq
        %v8154 = vshrl.u32 %v8153, 7
        %v8155 = vsub.s32 %v8152, %v8154
        %v8156 = vrot.slane %v8142, %v8155
        %v8157 = vcombine.low %v8149, %v8156
        %v8158 = vcombine.low %v7994, %v7995
        %v8159 = vcombine.low %v7996, %v7997
        %v8160 = vcombine.low %v7998, %v7999
        %v8161 = vcombine.low %v8000, %v8001
        %v8163 = vunpack.c.l.s4 1966171168
        %v8164 = vunpack.c.0.s8 %v8163
        %v8165 = vlaneseq
        %v8166 = vshrl.u32 %v8165, 7
        %v8167 = vsub.s32 %v8164, %v8166
        %v8168 = vrot.slane %v8158, %v8167
        %v8170 = vunpack.c.l.s4 1966171168
        %v8171 = vunpack.c.0.s8 %v8170
        %v8172 = vlaneseq
        %v8173 = vshrl.u32 %v8172, 7
        %v8174 = vsub.s32 %v8171, %v8173
        %v8175 = vrot.slane %v8159, %v8174
        %v8177 = vunpack.c.l.s4 1966171168
        %v8178 = vunpack.c.0.s8 %v8177
        %v8179 = vlaneseq
        %v8180 = vshrl.u32 %v8179, 7
        %v8181 = vsub.s32 %v8178, %v8180
        %v8182 = vrot.slane %v8160, %v8181
        %v8184 = vunpack.c.l.s4 1966171168
        %v8185 = vunpack.c.0.s8 %v8184
        %v8186 = vlaneseq
        %v8187 = vshrl.u32 %v8186, 7
        %v8188 = vsub.s32 %v8185, %v8187
        %v8189 = vrot.slane %v8161, %v8188
        %v8190 = vcombine.low %v8168, %v8175
        %v8191 = vcombine.low %v8182, %v8189
        %v8193 = vunpack.c.l.s4 1966171168
        %v8194 = vunpack.c.0.s8 %v8193
        %v8195 = vlaneseq
        %v8196 = vshrl.u32 %v8195, 7
        %v8197 = vsub.s32 %v8194, %v8196
        %v8198 = vrot.slane %v8190, %v8197
        %v8200 = vunpack.c.l.s4 1966171168
        %v8201 = vunpack.c.0.s8 %v8200
        %v8202 = vlaneseq
        %v8203 = vshrl.u32 %v8202, 7
        %v8204 = vsub.s32 %v8201, %v8203
        %v8205 = vrot.slane %v8191, %v8204
        %v8206 = vcombine.low %v8198, %v8205
        %v8207 = vcombine.low %v8002, %v8003
        %v8208 = vcombine.low %v8004, %v8005
        %v8209 = vcombine.low %v8006, %v8007
        %v8210 = vcombine.low %v8008, %v8009
        %v8212 = vunpack.c.l.s4 1966171168
        %v8213 = vunpack.c.0.s8 %v8212
        %v8214 = vlaneseq
        %v8215 = vshrl.u32 %v8214, 7
        %v8216 = vsub.s32 %v8213, %v8215
        %v8217 = vrot.slane %v8207, %v8216
        %v8219 = vunpack.c.l.s4 1966171168
        %v8220 = vunpack.c.0.s8 %v8219
        %v8221 = vlaneseq
        %v8222 = vshrl.u32 %v8221, 7
        %v8223 = vsub.s32 %v8220, %v8222
        %v8224 = vrot.slane %v8208, %v8223
        %v8226 = vunpack.c.l.s4 1966171168
        %v8227 = vunpack.c.0.s8 %v8226
        %v8228 = vlaneseq
        %v8229 = vshrl.u32 %v8228, 7
        %v8230 = vsub.s32 %v8227, %v8229
        %v8231 = vrot.slane %v8209, %v8230
        %v8233 = vunpack.c.l.s4 1966171168
        %v8234 = vunpack.c.0.s8 %v8233
        %v8235 = vlaneseq
        %v8236 = vshrl.u32 %v8235, 7
        %v8237 = vsub.s32 %v8234, %v8236
        %v8238 = vrot.slane %v8210, %v8237
        %v8239 = vcombine.low %v8217, %v8224
        %v8240 = vcombine.low %v8231, %v8238
        %v8242 = vunpack.c.l.s4 1966171168
        %v8243 = vunpack.c.0.s8 %v8242
        %v8244 = vlaneseq
        %v8245 = vshrl.u32 %v8244, 7
        %v8246 = vsub.s32 %v8243, %v8245
        %v8247 = vrot.slane %v8239, %v8246
        %v8249 = vunpack.c.l.s4 1966171168
        %v8250 = vunpack.c.0.s8 %v8249
        %v8251 = vlaneseq
        %v8252 = vshrl.u32 %v8251, 7
        %v8253 = vsub.s32 %v8250, %v8252
        %v8254 = vrot.slane %v8240, %v8253
        %v8255 = vcombine.low %v8247, %v8254
        %v8257 = vunpack.c.l.s4 1966171168
        %v8258 = vunpack.c.0.s8 %v8257
        %v8259 = vlaneseq
        %v8260 = vshrl.u32 %v8259, 7
        %v8261 = vsub.s32 %v8258, %v8260
        %v8262 = vrot.slane %v7954, %v8261
        %v8264 = vunpack.c.l.s4 1966171168
        %v8265 = vunpack.c.0.s8 %v8264
        %v8266 = vlaneseq
        %v8267 = vshrl.u32 %v8266, 7
        %v8268 = vsub.s32 %v8265, %v8267
        %v8269 = vrot.slane %v8262, %v8268
        %v8278 = vunpack.c.l.b16 %v7955
        %v8279 = vunpack.c.l.b16 %v7956
        %v8280 = vunpack.c.l.b16 %v7957
        %v8281 = vunpack.c.l.b16 %v7958
        %v8282 = vunpack.c.l.b16 %v7959
        %v8283 = vunpack.c.l.b16 %v7960
        %v8284 = vunpack.c.l.b16 %v7961
        %v8285 = vunpack.c.l.b16 %v7962
        %v8286 = vpack.c.b16 %v8279, %v8278
        %v8287 = vpack.c.b16 %v8281, %v8280
        %v8288 = vpack.c.b16 %v8283, %v8282
        %v8289 = vpack.c.b16 %v8285, %v8284
        %v8295 = vsel %vm674, %v8059, 0
        %v8298 = vsel %vm674, %v8108, 0
        %v8301 = vsel %vm674, %v8157, 0
        %v8304 = vsel %vm674, %v8206, 0
        %v8307 = vsel %vm674, %v8255, 0
        %v8310 = vsel %vm674, %v8269, 0
        %8312 = vmatprep.subr.bf16.mxu0 0
        %8313 = vmatpush1.bf16.msra.mxu0 %v8286
        %8314 = vmatprep.subr.bf16.mxu0 0
        %8315 = vmatpush1.bf16.msra.mxu0 %v8287
        %8316 = vmatprep.subr.bf16.mxu0 0
        %8317 = vmatpush1.bf16.msra.mxu0 %v8288
        %8318 = vmatprep.subr.bf16.mxu0 0
        %8319 = vmatpush1.bf16.msra.mxu0 %v8289
        %8320 = vmatprep.subr.bf16.mxu0 0
        %8321 = vmatpush1.bf16.msra.mxu0 0
        %8322 = vmatprep.subr.bf16.mxu0 0
        %8323 = vmatpush1.bf16.msra.mxu0 0
        %8324 = vmatprep.subr.bf16.mxu0 0
        %8325 = vmatpush1.bf16.msra.mxu0 0
        %8326 = vmatprep.subr.bf16.mxu0 0
        %8327 = vmatpush1.bf16.msra.mxu0 0
        %8328 = vmatprep.subr.bf16.mxu0 0
        %8329 = vmatpush1.bf16.msra.mxu0 0
        %8330 = vmatprep.subr.bf16.mxu0 0
        %8331 = vmatpush1.bf16.msra.mxu0 0
        %8332 = vmatprep.subr.bf16.mxu0 0
        %8333 = vmatpush1.bf16.msra.mxu0 0
        %8334 = vmatprep.subr.bf16.mxu0 0
        %8335 = vmatpush1.bf16.msra.mxu0 0
        %8336 = vmatprep.subr.bf16.mxu0 0
        %8337 = vmatpush1.bf16.msra.mxu0 0
        %8338 = vmatprep.subr.bf16.mxu0 0
        %8339 = vmatpush1.bf16.msra.mxu0 0
        %8340 = vmatprep.subr.bf16.mxu0 0
        %8341 = vmatpush1.bf16.msra.mxu0 0
        %8342 = vmatprep.subr.bf16.mxu0 0
        %8343 = vmatpush1.bf16.msra.mxu0 0
        %8344 = vmatprep.mubr.bf16.mxu0 0
        %8345 = vmatmul.mubr.bf16.gmra.mrb[0].mxu0 %v8295
        %v8346 = vpop.f32.mrb[0].mxu0
        %v8347 = vadd.f32 %v7968, %v8346
        %v8348 = vpop.f32.mrb[0].mxu0
        %v8349 = vpop.f32.mrb[0].mxu0
        %v8350 = vadd.f32 %v7968, %v8349
        %v8351 = vpop.f32.mrb[0].mxu0
        %8352 = vmatprep.mubr.bf16.mxu0 0
        %8353 = vmatmul.mubr.bf16.gmra.mrb[0].mxu0 %v8298
        %v8354 = vpop.f32.mrb[0].mxu0
        %v8355 = vadd.f32 %v7968, %v8354
        %v8356 = vpop.f32.mrb[0].mxu0
        %v8357 = vpop.f32.mrb[0].mxu0
        %v8358 = vadd.f32 %v7968, %v8357
        %v8359 = vpop.f32.mrb[0].mxu0
        %8360 = vmatprep.mubr.bf16.mxu0 0
        %8361 = vmatmul.mubr.bf16.gmra.mrb[0].mxu0 %v8301
        %v8362 = vpop.f32.mrb[0].mxu0
        %v8363 = vadd.f32 %v7968, %v8362
        %v8364 = vpop.f32.mrb[0].mxu0
        %v8365 = vpop.f32.mrb[0].mxu0
        %v8366 = vadd.f32 %v7968, %v8365
        %v8367 = vpop.f32.mrb[0].mxu0
        %8368 = vmatprep.mubr.bf16.mxu0 0
        %8369 = vmatmul.mubr.bf16.gmra.mrb[0].mxu0 %v8304
        %v8370 = vpop.f32.mrb[0].mxu0
        %v8371 = vadd.f32 %v7968, %v8370
        %v8372 = vpop.f32.mrb[0].mxu0
        %v8373 = vpop.f32.mrb[0].mxu0
        %v8374 = vadd.f32 %v7968, %v8373
        %v8375 = vpop.f32.mrb[0].mxu0
        %8376 = vmatprep.mubr.bf16.mxu0 0
        %8377 = vmatmul.mubr.bf16.gmra.mrb[0].mxu0 %v8307
        %v8378 = vpop.f32.mrb[0].mxu0
        %v8379 = vadd.f32 %v7968, %v8378
        %v8380 = vpop.f32.mrb[0].mxu0
        %v8381 = vpop.f32.mrb[0].mxu0
        %v8382 = vadd.f32 %v7968, %v8381
        %v8383 = vpop.f32.mrb[0].mxu0
        %8384 = vmatprep.mubr.bf16.mxu0 0
        %8385 = vmatmul.mubr.bf16.gmra.mrb[0].mxu0 %v8310
        %v8386 = vpop.f32.mrb[0].mxu0
        %v8387 = vadd.f32 %v7968, %v8386
        %v8388 = vpop.f32.mrb[0].mxu0
        %v8389 = vpop.f32.mrb[0].mxu0
        %v8390 = vpop.f32.mrb[0].mxu0
        %8391 = vdwg.mxu0
        %v8392 = vmax.f32 %v8347, 0.0
        %v8393 = vmax.f32 %v8350, 0.0
        %v8394 = vmax.f32 %v8355, 0.0
        %v8395 = vmax.f32 %v8358, 0.0
        %v8396 = vmax.f32 %v8363, 0.0
        %v8397 = vmax.f32 %v8366, 0.0
        %v8398 = vmax.f32 %v8371, 0.0
        %v8399 = vmax.f32 %v8374, 0.0
        %v8400 = vmax.f32 %v8379, 0.0
        %v8401 = vmax.f32 %v8382, 0.0
        %v8402 = vmax.f32 %v8387, 0.0
        %v8403 = vpack.c.bf16 %v8393, %v8392
        %v8404 = vpack.c.bf16 %v8395, %v8394
        %v8405 = vpack.c.bf16 %v8397, %v8396
        %v8406 = vpack.c.bf16 %v8399, %v8398
        %v8407 = vpack.c.bf16 %v8401, %v8400
        %v8408 = vpack.c.bf16 %v8402, %v8402
        %v8409 = vld [vmem:[%s8] sm:$0xf]
        %v8410 = vld [vmem:[%s8 + $0x4] sm:$0xf]
        %v8411 = vld [vmem:[%s8 + $0x8] sm:$0xf]
        %v8412 = vld [vmem:[%s8 + $0xc] sm:$0xf]
        %v8413 = vld [vmem:[%s8 + $0x10] sm:$0xf]
        %v8414 = vld [vmem:[%s8 + $0x14] sm:$0xf]
        %v8415 = vld [vmem:[%s8 + $0x18] sm:$0xf]
        %v8416 = vld [vmem:[%s8 + $0x1c] sm:$0xf]
        %v8417 = vld [vmem:[%s9] sm:$0x1]
        %v8419 = vlaneseq
        %v8420 = vshrl.u32 %v8419, 7
        %v8421 = vsub.s32 0, %v8420
        %v8422 = vrot.slane %v8417, %v8421
        %v8432 = vunpack.c.l.b16 %v8409
        %v8433 = vunpack.c.l.b16 %v8410
        %v8434 = vunpack.c.l.b16 %v8411
        %v8435 = vunpack.c.l.b16 %v8412
        %v8436 = vunpack.c.l.b16 %v8413
        %v8437 = vunpack.c.l.b16 %v8414
        %v8438 = vunpack.c.l.b16 %v8415
        %v8439 = vunpack.c.l.b16 %v8416
        %v8440 = vpack.c.b16 %v8433, %v8432
        %v8441 = vpack.c.b16 %v8435, %v8434
        %v8442 = vpack.c.b16 %v8437, %v8436
        %v8443 = vpack.c.b16 %v8439, %v8438
        %v8449 = vsel %vm674, %v8403, 0
        %v8452 = vsel %vm674, %v8404, 0
        %v8455 = vsel %vm674, %v8405, 0
        %v8458 = vsel %vm674, %v8406, 0
        %v8461 = vsel %vm674, %v8407, 0
        %v8464 = vsel %vm674, %v8408, 0
        %8466 = vmatprep.subr.bf16.mxu0 0
        %8467 = vmatpush1.bf16.msra.mxu0 %v8440
        %8468 = vmatprep.subr.bf16.mxu0 0
        %8469 = vmatpush1.bf16.msra.mxu0 %v8441
        %8470 = vmatprep.subr.bf16.mxu0 0
        %8471 = vmatpush1.bf16.msra.mxu0 %v8442
        %8472 = vmatprep.subr.bf16.mxu0 0
        %8473 = vmatpush1.bf16.msra.mxu0 %v8443
        %8474 = vmatprep.subr.bf16.mxu0 0
        %8475 = vmatpush1.bf16.msra.mxu0 0
        %8476 = vmatprep.subr.bf16.mxu0 0
        %8477 = vmatpush1.bf16.msra.mxu0 0
        %8478 = vmatprep.subr.bf16.mxu0 0
        %8479 = vmatpush1.bf16.msra.mxu0 0
        %8480 = vmatprep.subr.bf16.mxu0 0
        %8481 = vmatpush1.bf16.msra.mxu0 0
        %8482 = vmatprep.subr.bf16.mxu0 0
        %8483 = vmatpush1.bf16.msra.mxu0 0
        %8484 = vmatprep.subr.bf16.mxu0 0
        %8485 = vmatpush1.bf16.msra.mxu0 0
        %8486 = vmatprep.subr.bf16.mxu0 0
        %8487 = vmatpush1.bf16.msra.mxu0 0
        %8488 = vmatprep.subr.bf16.mxu0 0
        %8489 = vmatpush1.bf16.msra.mxu0 0
        %8490 = vmatprep.subr.bf16.mxu0 0
        %8491 = vmatpush1.bf16.msra.mxu0 0
        %8492 = vmatprep.subr.bf16.mxu0 0
        %8493 = vmatpush1.bf16.msra.mxu0 0
        %8494 = vmatprep.subr.bf16.mxu0 0
        %8495 = vmatpush1.bf16.msra.mxu0 0
        %8496 = vmatprep.subr.bf16.mxu0 0
        %8497 = vmatpush1.bf16.msra.mxu0 0
        %8498 = vmatprep.mubr.bf16.mxu0 0
        %8499 = vmatmul.mubr.bf16.gmra.mrb[0].mxu0 %v8449
        %v8500 = vpop.f32.mrb[0].mxu0
        %v8501 = vadd.f32 %v8422, %v8500
        %v8502 = vpop.f32.mrb[0].mxu0
        %v8503 = vpop.f32.mrb[0].mxu0
        %v8504 = vadd.f32 %v8422, %v8503
        %v8505 = vpop.f32.mrb[0].mxu0
        %8506 = vmatprep.mubr.bf16.mxu0 0
        %8507 = vmatmul.mubr.bf16.gmra.mrb[0].mxu0 %v8452
        %v8508 = vpop.f32.mrb[0].mxu0
        %v8509 = vadd.f32 %v8422, %v8508
        %v8510 = vpop.f32.mrb[0].mxu0
        %v8511 = vpop.f32.mrb[0].mxu0
        %v8512 = vadd.f32 %v8422, %v8511
        %v8513 = vpop.f32.mrb[0].mxu0
        %8514 = vmatprep.mubr.bf16.mxu0 0
        %8515 = vmatmul.mubr.bf16.gmra.mrb[0].mxu0 %v8455
        %v8516 = vpop.f32.mrb[0].mxu0
        %v8517 = vadd.f32 %v8422, %v8516
        %v8518 = vpop.f32.mrb[0].mxu0
        %v8519 = vpop.f32.mrb[0].mxu0
        %v8520 = vadd.f32 %v8422, %v8519
        %v8521 = vpop.f32.mrb[0].mxu0
        %8522 = vmatprep.mubr.bf16.mxu0 0
        %8523 = vmatmul.mubr.bf16.gmra.mrb[0].mxu0 %v8458
        %v8524 = vpop.f32.mrb[0].mxu0
        %v8525 = vadd.f32 %v8422, %v8524
        %v8526 = vpop.f32.mrb[0].mxu0
        %v8527 = vpop.f32.mrb[0].mxu0
        %v8528 = vadd.f32 %v8422, %v8527
        %v8529 = vpop.f32.mrb[0].mxu0
        %8530 = vmatprep.mubr.bf16.mxu0 0
        %8531 = vmatmul.mubr.bf16.gmra.mrb[0].mxu0 %v8461
        %v8532 = vpop.f32.mrb[0].mxu0
        %v8533 = vadd.f32 %v8422, %v8532
        %v8534 = vpop.f32.mrb[0].mxu0
        %v8535 = vpop.f32.mrb[0].mxu0
        %v8536 = vadd.f32 %v8422, %v8535
        %v8537 = vpop.f32.mrb[0].mxu0
        %8538 = vmatprep.mubr.bf16.mxu0 0
        %8539 = vmatmul.mubr.bf16.gmra.mrb[0].mxu0 %v8464
        %v8540 = vpop.f32.mrb[0].mxu0
        %v8541 = vadd.f32 %v8422, %v8540
        %v8542 = vpop.f32.mrb[0].mxu0
        %v8543 = vpop.f32.mrb[0].mxu0
        %v8544 = vpop.f32.mrb[0].mxu0
        %8545 = vdwg.mxu0
        %8546 = vst.msk [vmem:[%s462] sm:$0xff] %vm661, %v8501
        %8547 = vst.msk [vmem:[%s462 + $0x8] sm:$0xff] %vm661, %v8504
        %8548 = vst.msk [vmem:[%s462 + $0x10] sm:$0xff] %vm661, %v8509
        %8549 = vst.msk [vmem:[%s462 + $0x18] sm:$0xff] %vm661, %v8512
        %8550 = vst.msk [vmem:[%s462 + $0x20] sm:$0xff] %vm661, %v8517
        %8551 = vst.msk [vmem:[%s462 + $0x28] sm:$0xff] %vm661, %v8520
        %8552 = vst.msk [vmem:[%s462 + $0x30] sm:$0xff] %vm661, %v8525
        %8553 = vst.msk [vmem:[%s462 + $0x38] sm:$0xff] %vm661, %v8528
        %8554 = vst.msk [vmem:[%s462 + $0x40] sm:$0xff] %vm661, %v8533
        %8555 = vst.msk [vmem:[%s462 + $0x48] sm:$0xff] %vm661, %v8536
        %vm8556 = vcmask 253952
        %8557 = vst.msk [vmem:[%s462 + $0x50] sm:$0x1] %vm8556, %v8541
        %p8558 = scmp.lt.s32.totalorder %s28, 1
        %s8559 = scalar_select %p8558, %s28, 1
        %s8560 = smul.addr %s8559, 11
        %s8561 = smul.addr %s8560, 8
        %s8562 = scalar_lea.vmem %s10, %s8561
        // Predicated region
        $region81: #{depthwise_rpn_forward.1} parent=59 // pred_check
          %p8563 = pneg %p266
        $region82: #{depthwise_rpn_forward.1} parent=59 // pred_check_branch
          %8565 = sbr.rel (%p8563) target = $region84
        $region83: #{depthwise_rpn_forward.1} parent=59 // pred_region
          _
        $region84: #{depthwise_rpn_forward.1} parent=59 // pred_fallthru
          _
      $region60: #{depthwise_rpn_forward.1} parent=5 // pred_fallthru
        _
      %p8566 = scmp.le.s32.totalorder 2, %s23
      // Predicated region
      $region85: #{depthwise_rpn_forward.1} parent=5 // pred_check
        %p8567 = pneg %p8566
      $region86: #{depthwise_rpn_forward.1} parent=5 // pred_check_branch
        %8569 = sbr.rel (%p8567) target = $region88
      $region87: #{depthwise_rpn_forward.1} parent=5 // pred_region
        %s8570 = ssub.s32 %s23, 2
        // Predicated region
        $region89: #{depthwise_rpn_forward.1} parent=87 // pred_check
          %p8571 = pneg %p272
        $region90: #{depthwise_rpn_forward.1} parent=87 // pred_check_branch
          %8573 = sbr.rel (%p8571) target = $region92
        $region91: #{depthwise_rpn_forward.1} parent=87 // pred_region
          %p8574 = scmp.lt.s32.totalorder %s29, 1
          %s8575 = scalar_select %p8574, %s29, 1
          %s8576 = smul.addr %s8575, 11
          %s8577 = smul.addr %s8576, 8
          %s8578 = scalar_lea.vmem %s10, %s8577
        $region92: #{depthwise_rpn_forward.1} parent=87 // pred_fallthru
          _
      $region88: #{depthwise_rpn_forward.1} parent=5 // pred_fallthru
        _
    $region6: #{depthwise_rpn_forward.1} parent=1 // loop_footer
      %s27 = sadd.s32 1, %s23
    $region7: #{depthwise_rpn_forward.1} parent=1 // loop_footer_branch
      %22 = sbr.rel target = $region3
    $region8: #{depthwise_rpn_forward.1} parent=1 // loop_exit
      _
    %8579 = vsyncpa [#allocation6], 1
    %s8580 = scalar_lea.sflag [#allocation6], 1
    %8581 = vsyncpa %s8580, 1
    %8582 = vsyncpa [#allocation8], 1
    %s8583 = scalar_lea.sflag [#allocation8], 1
    %8584 = vsyncpa %s8583, 1
    %8585 = vsyncpa [#allocation11], 1

</llo_original>
